<compile_context>
chip_gen: v7x
topology: tpu7x:2x2x1
jax: 0.10.0
libtpu: 0.0.40
codegen_flags: <defaults>
</compile_context>

<pallas_src>
import functools
import math

import jax
import jax.numpy as jnp
from jax.experimental import pallas as pl
from jax.experimental.pallas import tpu as pltpu


_LANE = 128      # vreg lane width
_SUBLANE = 8     # f32 sublane count


def _round_up(v, m):
    return (v + m - 1) // m * m


# ----------------------------------------------------------------------------
# Pallas kernel: whole LSTM stack (+ fused FC/ReLU), one grid step per layer.
# ----------------------------------------------------------------------------
def _make_lstm_network_kernel(T, B, num_dirs, Hpad):
    """Kernel in the packed, padded, direction-major layout.

      Hpad  : hidden rounded up to 128 lanes (per direction)
      HD    : num_dirs * Hpad    (hidden-sequence lane width)
      Gd    : 4 * Hpad           (per-direction gate width, torch order i,f,g,o)
      G     : num_dirs * Gd      (gate columns: [i f g o]_d0 | [i f g o]_d1)
      Kin   : max(in_dim padded to 128, HD)  (shared input width of W_ih)

      seq_sc (T*B, Kin): inter-layer hidden sequence, persists across the
      layer grid; row = t*B + b; direction d output in lanes [d*Hpad, d*Hpad+H).
    """
    Gd = 4 * Hpad

    def kernel(x_ref, wih_ref, whh_ref, b_ref, wfc_ref, bfc_ref, out_ref,
               gx_sc, seq_sc):
        layer = pl.program_id(0)
        n_layers = pl.num_programs(0)

        # ---- Hoisted input projection: ONE big MXU matmul over all steps.
        # Layer 0 reads the padded network input; later layers read the
        # previous layer's hidden sequence from the persistent VMEM scratch.
        @pl.when(layer == 0)
        def _():
            # Zero once so lanes beyond HD (present when Kin > HD) are defined
            # zeros for later layers' input projection.
            seq_sc[...] = jnp.zeros_like(seq_sc)
            gx_sc[...] = (
                jnp.dot(x_ref[...], wih_ref[...],
                        preferred_element_type=jnp.float32) + b_ref[...])

        @pl.when(layer > 0)
        def _():
            gx_sc[...] = (
                jnp.dot(seq_sc[...], wih_ref[...],
                        preferred_element_type=jnp.float32) + b_ref[...])

        # ---- Serial recurrence: h/c live in the loop carry (vregs); the only
        # per-step work on the critical path is h @ W_hh + gate elementwise.
        def step(t, carry):
            hs, cs = carry
            new_h, new_c = [], []
            for d in range(num_dirs):
                t_d = t if d == 0 else T - 1 - t          # backward runs reversed
                row = pl.multiple_of(t_d * B, B)
                base = d * Gd
                gates = (gx_sc[pl.ds(row, B), base:base + Gd]
                         + jnp.dot(hs[d], whh_ref[d],
                                   preferred_element_type=jnp.float32))
                i_g = jax.nn.sigmoid(gates[:, 0 * Hpad:1 * Hpad])
                f_g = jax.nn.sigmoid(gates[:, 1 * Hpad:2 * Hpad])
                g_g = jnp.tanh(gates[:, 2 * Hpad:3 * Hpad])
                o_g = jax.nn.sigmoid(gates[:, 3 * Hpad:4 * Hpad])
                c_n = f_g * cs[d] + i_g * g_g
                h_n = o_g * jnp.tanh(c_n)
                # Lane-dense 128-aligned store; backward half lands at row T-1-t.
                seq_sc[pl.ds(row, B), d * Hpad:(d + 1) * Hpad] = h_n
                new_h.append(h_n)
                new_c.append(c_n)
            return tuple(new_h), tuple(new_c)

        z = jnp.zeros((B, Hpad), jnp.float32)
        init = (tuple(z for _ in range(num_dirs)),
                tuple(z for _ in range(num_dirs)))
        # Bounded unroll: enough cross-step overlap for the scheduler without
        # exploding code size / live ranges for long sequences.
        jax.lax.fori_loop(0, T, step, init, unroll=min(T, 8))

        # ---- Fused Linear + ReLU epilogue on the last layer only (the hidden
        # sequence never leaves VMEM).
        @pl.when(layer == n_layers - 1)
        def _():
            y = jnp.dot(seq_sc[...], wfc_ref[...],
                        preferred_element_type=jnp.float32) + bfc_ref[...]
            out_ref[...] = jnp.maximum(y, 0.0)

    return kernel


# ----------------------------------------------------------------------------
# Forward wrapper: single pallas_call, grid over layers.
# ----------------------------------------------------------------------------
@functools.partial(jax.jit, static_argnames=("layers", "num_dirs", "num_classes"))
def simple_lstm_forward(x, packed, *, layers, num_dirs, num_classes):
    """x: (seq, batch, in_dim) f32 -> (seq, batch, num_classes) f32."""
    T, B, Din = x.shape
    B_pad = _round_up(B, _SUBLANE)

    wih, whh, bias = packed["wih"], packed["whh"], packed["bias"]
    fc_w, fc_b = packed["fc_w"], packed["fc_b"]
    Kin = wih.shape[1]            # shared input width (>= padded in_dim, >= HD)
    G = wih.shape[2]              # num_dirs * 4 * Hpad
    Hpad = whh.shape[2]
    Gd = 4 * Hpad
    Cpad = fc_w.shape[1]

    # Pad batch to 8 sublanes and features to the shared Kin lane width, then
    # flatten to time-major rows so every in-kernel access is tile aligned.
    xp = jnp.pad(x, ((0, 0), (0, B_pad - B), (0, Kin - Din)))
    xf = xp.reshape(T * B_pad, Kin)

    kernel = _make_lstm_network_kernel(T, B_pad, num_dirs, Hpad)

    out = pl.pallas_call(
        kernel,
        out_shape=jax.ShapeDtypeStruct((T * B_pad, Cpad), jnp.float32),
        grid=(layers,),
        in_specs=[
            # Network input: constant block, only read at layer 0.
            pl.BlockSpec((T * B_pad, Kin), lambda l: (0, 0)),
            # Per-layer weights: next layer's blocks are prefetched behind the
            # current layer's recurrence by the Pallas pipeline.
            pl.BlockSpec((None, Kin, G), lambda l: (l, 0, 0)),
            pl.BlockSpec((None, num_dirs, Hpad, Gd), lambda l: (l, 0, 0, 0)),
            pl.BlockSpec((None, 1, G), lambda l: (l, 0, 0)),
            # FC weights: constant blocks (resident; tiny).
            pl.BlockSpec((Kin, Cpad), lambda l: (0, 0)),
            pl.BlockSpec((1, Cpad), lambda l: (0, 0)),
        ],
        out_specs=pl.BlockSpec((T * B_pad, Cpad), lambda l: (0, 0)),
        scratch_shapes=[
            pltpu.VMEM((T * B_pad, G), jnp.float32),     # hoisted x@W_ih + b
            pltpu.VMEM((T * B_pad, Kin), jnp.float32),   # inter-layer sequence
        ],
        compiler_params=pltpu.CompilerParams(
            dimension_semantics=("arbitrary",),          # layers are sequential
            vmem_limit_bytes=32 * 1024 * 1024,
        ),
    )(xf, wih, whh, bias, fc_w, fc_b)

    out = out.reshape(T, B_pad, Cpad)
    return out[:, :B, :num_classes]


# ----------------------------------------------------------------------------
# Parameters: torch-layout init + packing into the padded kernel layout
# ----------------------------------------------------------------------------
def init_params(key, in_dim, hidden, layers, num_classes, bidirectional):
    """Parameters in torch.nn.LSTM / nn.Linear layout (float32)."""
    num_dirs = 2 if bidirectional else 1
    scale = 1.0 / math.sqrt(hidden)
    params = {"lstm": []}
    for l in range(layers):
        layer_in = in_dim if l == 0 else hidden * num_dirs
        dirs = []
        for _d in range(num_dirs):
            key, k1, k2, k3, k4 = jax.random.split(key, 5)
            w_ih = jax.random.uniform(k1, (4 * hidden, layer_in), jnp.float32, -scale, scale)
            w_hh = jax.random.uniform(k2, (4 * hidden, hidden), jnp.float32, -scale, scale)
            b_ih = jax.random.uniform(k3, (4 * hidden,), jnp.float32, -scale, scale)
            b_hh = jax.random.uniform(k4, (4 * hidden,), jnp.float32, -scale, scale)
            dirs.append({"w_ih": w_ih, "w_hh": w_hh, "b": b_ih + b_hh})
        params["lstm"].append(tuple(dirs))
    params["lstm"] = tuple(params["lstm"])

    key, kw, kb = jax.random.split(key, 3)
    fc_in = hidden * num_dirs
    fscale = 1.0 / math.sqrt(fc_in)
    params["fc_w"] = jax.random.uniform(kw, (num_classes, fc_in), jnp.float32, -fscale, fscale)
    params["fc_b"] = jax.random.uniform(kb, (num_classes,), jnp.float32, -fscale, fscale)
    return params


def pack_params(params, in_dim, hidden, num_classes, layers, num_dirs):
    """Repack torch-layout weights into the padded, lane-dense kernel layout.

    Gate columns are direction-major: [i f g o]_d0 | [i f g o]_d1, each gate
    Hpad lanes wide (real weights in the first `hidden` lanes, zeros elsewhere).
    Hidden-sequence lanes: [dir0 (Hpad) | dir1 (Hpad)], real lanes 0:hidden.
    W_ih rows are padded to a layer-shared Kin so all layers stack on one axis.
    """
    H = hidden
    Hpad = _round_up(max(H, 1), _LANE)
    HD = num_dirs * Hpad
    Gd = 4 * Hpad
    G = num_dirs * Gd
    Din_pad = _round_up(in_dim, _LANE)
    Kin = max(Din_pad, HD)

    wih_all, whh_all, bias_all = [], [], []
    for l in range(layers):
        wih = jnp.zeros((Kin, G), jnp.float32)
        whh = jnp.zeros((num_dirs, Hpad, Gd), jnp.float32)
        bias = jnp.zeros((1, G), jnp.float32)
        for d in range(num_dirs):
            p = params["lstm"][l][d]
            for g in range(4):                        # torch gate order: i, f, g, o
                col0 = d * Gd + g * Hpad
                w_ih_g = p["w_ih"][g * H:(g + 1) * H, :]     # (H, layer_in)
                w_hh_g = p["w_hh"][g * H:(g + 1) * H, :]     # (H, H)
                if l == 0:
                    wih = wih.at[:in_dim, col0:col0 + H].set(w_ih_g.T)
                else:
                    for dd in range(num_dirs):        # prev-layer direction dd features
                        wih = wih.at[dd * Hpad:dd * Hpad + H, col0:col0 + H].set(
                            w_ih_g[:, dd * H:(dd + 1) * H].T)
                whh = whh.at[d, :H, g * Hpad:g * Hpad + H].set(w_hh_g.T)
                bias = bias.at[0, col0:col0 + H].set(p["b"][g * H:(g + 1) * H])
        wih_all.append(wih)
        whh_all.append(whh)
        bias_all.append(bias)

    Cpad = _round_up(num_classes, _LANE)
    wfc = jnp.zeros((Kin, Cpad), jnp.float32)
    for dd in range(num_dirs):
        wfc = wfc.at[dd * Hpad:dd * Hpad + H, :num_classes].set(
            params["fc_w"][:, dd * H:(dd + 1) * H].T)
    bfc = jnp.zeros((1, Cpad), jnp.float32).at[0, :num_classes].set(params["fc_b"])

    return {
        "wih": jnp.stack(wih_all),     # (layers, Kin, G)
        "whh": jnp.stack(whh_all),     # (layers, num_dirs, Hpad, 4*Hpad)
        "bias": jnp.stack(bias_all),   # (layers, 1, G)
        "fc_w": wfc,                   # (Kin, Cpad)
        "fc_b": bfc,                   # (1, Cpad)
    }


# ----------------------------------------------------------------------------
# Pure-JAX reference (unpadded, torch-layout weights) for correctness check
# ----------------------------------------------------------------------------
def _ref_lstm_dir(x, w_ih, w_hh, b):
    T, B, _ = x.shape
    H = w_hh.shape[1]

    def step(carry, x_t):
        h, c = carry
        gates = x_t @ w_ih.T + h @ w_hh.T + b
        i = jax.nn.sigmoid(gates[:, 0 * H:1 * H])
        f = jax.nn.sigmoid(gates[:, 1 * H:2 * H])
        g = jnp.tanh(gates[:, 2 * H:3 * H])
        o = jax.nn.sigmoid(gates[:, 3 * H:4 * H])
        c_new = f * c + i * g
        h_new = o * jnp.tanh(c_new)
        return (h_new, c_new), h_new

    init = (jnp.zeros((B, H), jnp.float32), jnp.zeros((B, H), jnp.float32))
    _, hs = jax.lax.scan(step, init, x)
    return hs


def reference_forward(x, params, layers, bidirectional):
    num_dirs = 2 if bidirectional else 1
    out = x
    for l in range(layers):
        outs = []
        for d in range(num_dirs):
            p = params["lstm"][l][d]
            xin = out if d == 0 else jnp.flip(out, axis=0)
            y = _ref_lstm_dir(xin, p["w_ih"], p["w_hh"], p["b"])
            if d == 1:
                y = jnp.flip(y, axis=0)
            outs.append(y)
        out = outs[0] if num_dirs == 1 else jnp.concatenate(outs, axis=-1)
    y = out @ params["fc_w"].T + params["fc_b"]
    return jnp.maximum(y, 0.0)


# ----------------------------------------------------------------------------
if __name__ == "__main__":
    # Small shapes implied by the forward: (seq, batch, in_dim) input.
    SEQ, BATCH, IN_DIM = 8, 2, 16
    HIDDEN, LAYERS, NUM_CLASSES, BIDIR = 32, 2, 10, True
    NUM_DIRS = 2 if BIDIR else 1

    key = jax.random.PRNGKey(0)
    key, kx, kp = jax.random.split(key, 3)
    x = jax.random.normal(kx, (SEQ, BATCH, IN_DIM), jnp.float32)

    params = init_params(kp, IN_DIM, HIDDEN, LAYERS, NUM_CLASSES, BIDIR)
    packed = pack_params(params, IN_DIM, HIDDEN, NUM_CLASSES, LAYERS, NUM_DIRS)

    out = simple_lstm_forward(x, packed, layers=LAYERS, num_dirs=NUM_DIRS,
                              num_classes=NUM_CLASSES)
    out = jax.block_until_ready(out)

    ref = jax.block_until_ready(reference_forward(x, params, LAYERS, BIDIR))
    assert out.shape == (SEQ, BATCH, NUM_CLASSES)
    max_err = float(jnp.max(jnp.abs(out - ref)))
    assert jnp.allclose(out, ref, atol=2e-4, rtol=2e-4), f"max abs err = {max_err}"

    print("KERNEL_OK")
</pallas_src>

<mosaic_0001>
module attributes {stable_mosaic.version = 11 : i64} {
  func.func @kernel(%arg0: i32, %arg1: memref<64x256xf32, #tpu.memory_space<vmem>>, %arg2: memref<1x256x1024xf32, #tpu.memory_space<vmem>>, %arg3: memref<1x2x128x512xf32, #tpu.memory_space<vmem>>, %arg4: memref<1x1x1024xf32, #tpu.memory_space<vmem>>, %arg5: memref<256x128xf32, #tpu.memory_space<vmem>>, %arg6: memref<1x128xf32, #tpu.memory_space<vmem>>, %arg7: memref<64x128xf32, #tpu.memory_space<vmem>>, %arg8: memref<64x1024xf32, #tpu.memory_space<vmem>>, %arg9: memref<64x256xf32, #tpu.memory_space<vmem>>) attributes {dimension_semantics = [#tpu.dimension_semantics<arbitrary>], iteration_bounds = array<i64: 2>, scalar_prefetch = 0 : i64, scratch_operands = 2 : i64, tpu.core_type = #tpu.core_type<tc>, window_params = [{pipeline_mode = #tpu.pipeline_mode<synchronous>, transform_indices = @transform_0, window_bounds = array<i64: 64, 256>}, {transform_indices = @transform_1, window_bounds = array<i64: 1, 256, 1024>}, {transform_indices = @transform_2, window_bounds = array<i64: 1, 2, 128, 512>}, {transform_indices = @transform_3, window_bounds = array<i64: 1, 1, 1024>}, {pipeline_mode = #tpu.pipeline_mode<synchronous>, transform_indices = @transform_4, window_bounds = array<i64: 256, 128>}, {pipeline_mode = #tpu.pipeline_mode<synchronous>, transform_indices = @transform_5, window_bounds = array<i64: 1, 128>}, {pipeline_mode = #tpu.pipeline_mode<synchronous>, transform_indices = @transform_6, window_bounds = array<i64: 64, 128>}]} {
    %c0_i32 = arith.constant 0 : i32
    %0 = arith.cmpi eq, %arg0, %c0_i32 : i32
    %1 = arith.extui %0 : i1 to i32
    %c0_i32_0 = arith.constant 0 : i32
    %2 = arith.cmpi ne, %1, %c0_i32_0 : i32
    scf.if %2 {
      %cst_186 = arith.constant 0.000000e+00 : f32
      %578 = vector.broadcast %cst_186 : f32 to vector<64x256xf32>
      %c0_187 = arith.constant 0 : index
      %c0_188 = arith.constant 0 : index
      %579 = vector.load %arg9[%c0_187, %c0_188] : memref<64x256xf32, #tpu.memory_space<vmem>>, vector<64x256xf32>
      tpu.vector_store %arg9[%c0_187, %c0_188], %578 {strides = array<i32>} : memref<64x256xf32, #tpu.memory_space<vmem>>, vector<64x256xf32>,
      %c0_189 = arith.constant 0 : index
      %c0_190 = arith.constant 0 : index
      %580 = vector.load %arg1[%c0_189, %c0_190] : memref<64x256xf32, #tpu.memory_space<vmem>>, vector<64x256xf32>
      %c0_191 = arith.constant 0 : index
      %c0_192 = arith.constant 0 : index
      %c0_193 = arith.constant 0 : index
      %581 = vector.load %arg2[%c0_191, %c0_192, %c0_193] : memref<1x256x1024xf32, #tpu.memory_space<vmem>>, vector<1x256x1024xf32>
      %582 = vector.shape_cast %581 : vector<1x256x1024xf32> to vector<256x1024xf32>
      %cst_194 = arith.constant dense<0.000000e+00> : vector<64x1024xf32>
      %583 = tpu.matmul %580, %582, %cst_194 {dimension_numbers = #tpu.dot_dimension_numbers<[1], [0], [0], [1], [0, 0, 1, 1], [], []>} : vector<64x256xf32>, vector<256x1024xf32>, vector<64x1024xf32> -> vector<64x1024xf32>
      %c0_195 = arith.constant 0 : index
      %c0_196 = arith.constant 0 : index
      %c0_197 = arith.constant 0 : index
      %584 = vector.load %arg4[%c0_195, %c0_196, %c0_197] : memref<1x1x1024xf32, #tpu.memory_space<vmem>>, vector<1x1x1024xf32>
      %585 = vector.shape_cast %584 : vector<1x1x1024xf32> to vector<1x1024xf32>
      %586 = vector.broadcast %585 : vector<1x1024xf32> to vector<64x1024xf32>
      %587 = arith.addf %583, %586 : vector<64x1024xf32>
      %c0_198 = arith.constant 0 : index
      %c0_199 = arith.constant 0 : index
      %588 = vector.load %arg8[%c0_198, %c0_199] : memref<64x1024xf32, #tpu.memory_space<vmem>>, vector<64x1024xf32>
      tpu.vector_store %arg8[%c0_198, %c0_199], %587 {strides = array<i32>} : memref<64x1024xf32, #tpu.memory_space<vmem>>, vector<64x1024xf32>,
    } else {
    }
    %c0_i32_1 = arith.constant 0 : i32
    %3 = arith.cmpi sgt, %arg0, %c0_i32_1 : i32
    %4 = arith.extui %3 : i1 to i32
    %c0_i32_2 = arith.constant 0 : i32
    %5 = arith.cmpi ne, %4, %c0_i32_2 : i32
    scf.if %5 {
      %c0_186 = arith.constant 0 : index
      %c0_187 = arith.constant 0 : index
      %578 = vector.load %arg9[%c0_186, %c0_187] : memref<64x256xf32, #tpu.memory_space<vmem>>, vector<64x256xf32>
      %c0_188 = arith.constant 0 : index
      %c0_189 = arith.constant 0 : index
      %c0_190 = arith.constant 0 : index
      %579 = vector.load %arg2[%c0_188, %c0_189, %c0_190] : memref<1x256x1024xf32, #tpu.memory_space<vmem>>, vector<1x256x1024xf32>
      %580 = vector.shape_cast %579 : vector<1x256x1024xf32> to vector<256x1024xf32>
      %cst_191 = arith.constant dense<0.000000e+00> : vector<64x1024xf32>
      %581 = tpu.matmul %578, %580, %cst_191 {dimension_numbers = #tpu.dot_dimension_numbers<[1], [0], [0], [1], [0, 0, 1, 1], [], []>} : vector<64x256xf32>, vector<256x1024xf32>, vector<64x1024xf32> -> vector<64x1024xf32>
      %c0_192 = arith.constant 0 : index
      %c0_193 = arith.constant 0 : index
      %c0_194 = arith.constant 0 : index
      %582 = vector.load %arg4[%c0_192, %c0_193, %c0_194] : memref<1x1x1024xf32, #tpu.memory_space<vmem>>, vector<1x1x1024xf32>
      %583 = vector.shape_cast %582 : vector<1x1x1024xf32> to vector<1x1024xf32>
      %584 = vector.broadcast %583 : vector<1x1024xf32> to vector<64x1024xf32>
      %585 = arith.addf %581, %584 : vector<64x1024xf32>
      %c0_195 = arith.constant 0 : index
      %c0_196 = arith.constant 0 : index
      %586 = vector.load %arg8[%c0_195, %c0_196] : memref<64x1024xf32, #tpu.memory_space<vmem>>, vector<64x1024xf32>
      tpu.vector_store %arg8[%c0_195, %c0_196], %585 {strides = array<i32>} : memref<64x1024xf32, #tpu.memory_space<vmem>>, vector<64x1024xf32>,
    } else {
    }
    %cst = arith.constant 0.000000e+00 : f32
    %6 = vector.broadcast %cst : f32 to vector<8x128xf32>
    %c0_i32_3 = arith.constant 0 : i32
    %c8_i32 = arith.constant 8 : i32
    %7 = arith.muli %c0_i32_3, %c8_i32 : i32
    %8 = tpu.assume_multiple %7, 8 : i32
    %9 = arith.index_cast %8 : i32 to index
    %c0 = arith.constant 0 : index
    %10 = vector.load %arg8[%9, %c0] : memref<64x1024xf32, #tpu.memory_space<vmem>>, vector<8x512xf32>
    %c0_4 = arith.constant 0 : index
    %c0_5 = arith.constant 0 : index
    %c0_6 = arith.constant 0 : index
    %c0_7 = arith.constant 0 : index
    %11 = vector.load %arg3[%c0_4, %c0_5, %c0_6, %c0_7] : memref<1x2x128x512xf32, #tpu.memory_space<vmem>>, vector<1x1x128x512xf32>
    %12 = vector.shape_cast %11 : vector<1x1x128x512xf32> to vector<128x512xf32>
    %cst_8 = arith.constant dense<0.000000e+00> : vector<8x512xf32>
    %13 = tpu.matmul %6, %12, %cst_8 {dimension_numbers = #tpu.dot_dimension_numbers<[1], [0], [0], [1], [0, 0, 1, 1], [], []>} : vector<8x128xf32>, vector<128x512xf32>, vector<8x512xf32> -> vector<8x512xf32>
    %14 = arith.addf %10, %13 : vector<8x512xf32>
    %15 = vector.extract_strided_slice %14 {offsets = [0, 0], sizes = [8, 128], strides = [1, 1]} : vector<8x512xf32> to vector<8x128xf32>
    %16 = arith.negf %15 : vector<8x128xf32>
    %17 = math.exp %16 : vector<8x128xf32>
    %cst_9 = arith.constant 1.000000e+00 : f32
    %18 = vector.broadcast %cst_9 : f32 to vector<8x128xf32>
    %19 = arith.addf %18, %17 : vector<8x128xf32>
    %20 = arith.divf %18, %19 : vector<8x128xf32>
    %21 = vector.extract_strided_slice %14 {offsets = [0, 128], sizes = [8, 128], strides = [1, 1]} : vector<8x512xf32> to vector<8x128xf32>
    %22 = arith.negf %21 : vector<8x128xf32>
    %23 = math.exp %22 : vector<8x128xf32>
    %cst_10 = arith.constant 1.000000e+00 : f32
    %24 = vector.broadcast %cst_10 : f32 to vector<8x128xf32>
    %25 = arith.addf %24, %23 : vector<8x128xf32>
    %26 = arith.divf %24, %25 : vector<8x128xf32>
    %27 = vector.extract_strided_slice %14 {offsets = [0, 256], sizes = [8, 128], strides = [1, 1]} : vector<8x512xf32> to vector<8x128xf32>
    %28 = math.tanh %27 : vector<8x128xf32>
    %29 = vector.extract_strided_slice %14 {offsets = [0, 384], sizes = [8, 128], strides = [1, 1]} : vector<8x512xf32> to vector<8x128xf32>
    %30 = arith.negf %29 : vector<8x128xf32>
    %31 = math.exp %30 : vector<8x128xf32>
    %cst_11 = arith.constant 1.000000e+00 : f32
    %32 = vector.broadcast %cst_11 : f32 to vector<8x128xf32>
    %33 = arith.addf %32, %31 : vector<8x128xf32>
    %34 = arith.divf %32, %33 : vector<8x128xf32>
    %35 = arith.mulf %26, %6 : vector<8x128xf32>
    %36 = arith.mulf %20, %28 : vector<8x128xf32>
    %37 = arith.addf %35, %36 : vector<8x128xf32>
    %38 = math.tanh %37 : vector<8x128xf32>
    %39 = arith.mulf %34, %38 : vector<8x128xf32>
    %40 = arith.index_cast %8 : i32 to index
    %c0_12 = arith.constant 0 : index
    %41 = vector.load %arg9[%40, %c0_12] : memref<64x256xf32, #tpu.memory_space<vmem>>, vector<8x128xf32>
    tpu.vector_store %arg9[%40, %c0_12], %39 {strides = array<i32>} : memref<64x256xf32, #tpu.memory_space<vmem>>, vector<8x128xf32>,
    %c7_i32 = arith.constant 7 : i32
    %42 = arith.subi %c7_i32, %c0_i32_3 : i32
    %c8_i32_13 = arith.constant 8 : i32
    %43 = arith.muli %42, %c8_i32_13 : i32
    %44 = tpu.assume_multiple %43, 8 : i32
    %45 = arith.index_cast %44 : i32 to index
    %c512 = arith.constant 512 : index
    %46 = vector.load %arg8[%45, %c512] : memref<64x1024xf32, #tpu.memory_space<vmem>>, vector<8x512xf32>
    %c0_14 = arith.constant 0 : index
    %c1 = arith.constant 1 : index
    %c0_15 = arith.constant 0 : index
    %c0_16 = arith.constant 0 : index
    %47 = vector.load %arg3[%c0_14, %c1, %c0_15, %c0_16] : memref<1x2x128x512xf32, #tpu.memory_space<vmem>>, vector<1x1x128x512xf32>
    %48 = vector.shape_cast %47 : vector<1x1x128x512xf32> to vector<128x512xf32>
    %cst_17 = arith.constant dense<0.000000e+00> : vector<8x512xf32>
    %49 = tpu.matmul %6, %48, %cst_17 {dimension_numbers = #tpu.dot_dimension_numbers<[1], [0], [0], [1], [0, 0, 1, 1], [], []>} : vector<8x128xf32>, vector<128x512xf32>, vector<8x512xf32> -> vector<8x512xf32>
    %50 = arith.addf %46, %49 : vector<8x512xf32>
    %51 = vector.extract_strided_slice %50 {offsets = [0, 0], sizes = [8, 128], strides = [1, 1]} : vector<8x512xf32> to vector<8x128xf32>
    %52 = arith.negf %51 : vector<8x128xf32>
    %53 = math.exp %52 : vector<8x128xf32>
    %cst_18 = arith.constant 1.000000e+00 : f32
    %54 = vector.broadcast %cst_18 : f32 to vector<8x128xf32>
    %55 = arith.addf %54, %53 : vector<8x128xf32>
    %56 = arith.divf %54, %55 : vector<8x128xf32>
    %57 = vector.extract_strided_slice %50 {offsets = [0, 128], sizes = [8, 128], strides = [1, 1]} : vector<8x512xf32> to vector<8x128xf32>
    %58 = arith.negf %57 : vector<8x128xf32>
    %59 = math.exp %58 : vector<8x128xf32>
    %cst_19 = arith.constant 1.000000e+00 : f32
    %60 = vector.broadcast %cst_19 : f32 to vector<8x128xf32>
    %61 = arith.addf %60, %59 : vector<8x128xf32>
    %62 = arith.divf %60, %61 : vector<8x128xf32>
    %63 = vector.extract_strided_slice %50 {offsets = [0, 256], sizes = [8, 128], strides = [1, 1]} : vector<8x512xf32> to vector<8x128xf32>
    %64 = math.tanh %63 : vector<8x128xf32>
    %65 = vector.extract_strided_slice %50 {offsets = [0, 384], sizes = [8, 128], strides = [1, 1]} : vector<8x512xf32> to vector<8x128xf32>
    %66 = arith.negf %65 : vector<8x128xf32>
    %67 = math.exp %66 : vector<8x128xf32>
    %cst_20 = arith.constant 1.000000e+00 : f32
    %68 = vector.broadcast %cst_20 : f32 to vector<8x128xf32>
    %69 = arith.addf %68, %67 : vector<8x128xf32>
    %70 = arith.divf %68, %69 : vector<8x128xf32>
    %71 = arith.mulf %62, %6 : vector<8x128xf32>
    %72 = arith.mulf %56, %64 : vector<8x128xf32>
    %73 = arith.addf %71, %72 : vector<8x128xf32>
    %74 = math.tanh %73 : vector<8x128xf32>
    %75 = arith.mulf %70, %74 : vector<8x128xf32>
    %76 = arith.index_cast %44 : i32 to index
    %c128 = arith.constant 128 : index
    %77 = vector.load %arg9[%76, %c128] : memref<64x256xf32, #tpu.memory_space<vmem>>, vector<8x128xf32>
    tpu.vector_store %arg9[%76, %c128], %75 {strides = array<i32>} : memref<64x256xf32, #tpu.memory_space<vmem>>, vector<8x128xf32>,
    %c1_i32 = arith.constant 1 : i32
    %c8_i32_21 = arith.constant 8 : i32
    %78 = arith.muli %c1_i32, %c8_i32_21 : i32
    %79 = tpu.assume_multiple %78, 8 : i32
    %80 = arith.index_cast %79 : i32 to index
    %c0_22 = arith.constant 0 : index
    %81 = vector.load %arg8[%80, %c0_22] : memref<64x1024xf32, #tpu.memory_space<vmem>>, vector<8x512xf32>
    %c0_23 = arith.constant 0 : index
    %c0_24 = arith.constant 0 : index
    %c0_25 = arith.constant 0 : index
    %c0_26 = arith.constant 0 : index
    %82 = vector.load %arg3[%c0_23, %c0_24, %c0_25, %c0_26] : memref<1x2x128x512xf32, #tpu.memory_space<vmem>>, vector<1x1x128x512xf32>
    %83 = vector.shape_cast %82 : vector<1x1x128x512xf32> to vector<128x512xf32>
    %cst_27 = arith.constant dense<0.000000e+00> : vector<8x512xf32>
    %84 = tpu.matmul %39, %83, %cst_27 {dimension_numbers = #tpu.dot_dimension_numbers<[1], [0], [0], [1], [0, 0, 1, 1], [], []>} : vector<8x128xf32>, vector<128x512xf32>, vector<8x512xf32> -> vector<8x512xf32>
    %85 = arith.addf %81, %84 : vector<8x512xf32>
    %86 = vector.extract_strided_slice %85 {offsets = [0, 0], sizes = [8, 128], strides = [1, 1]} : vector<8x512xf32> to vector<8x128xf32>
    %87 = arith.negf %86 : vector<8x128xf32>
    %88 = math.exp %87 : vector<8x128xf32>
    %cst_28 = arith.constant 1.000000e+00 : f32
    %89 = vector.broadcast %cst_28 : f32 to vector<8x128xf32>
    %90 = arith.addf %89, %88 : vector<8x128xf32>
    %91 = arith.divf %89, %90 : vector<8x128xf32>
    %92 = vector.extract_strided_slice %85 {offsets = [0, 128], sizes = [8, 128], strides = [1, 1]} : vector<8x512xf32> to vector<8x128xf32>
    %93 = arith.negf %92 : vector<8x128xf32>
    %94 = math.exp %93 : vector<8x128xf32>
    %cst_29 = arith.constant 1.000000e+00 : f32
    %95 = vector.broadcast %cst_29 : f32 to vector<8x128xf32>
    %96 = arith.addf %95, %94 : vector<8x128xf32>
    %97 = arith.divf %95, %96 : vector<8x128xf32>
    %98 = vector.extract_strided_slice %85 {offsets = [0, 256], sizes = [8, 128], strides = [1, 1]} : vector<8x512xf32> to vector<8x128xf32>
    %99 = math.tanh %98 : vector<8x128xf32>
    %100 = vector.extract_strided_slice %85 {offsets = [0, 384], sizes = [8, 128], strides = [1, 1]} : vector<8x512xf32> to vector<8x128xf32>
    %101 = arith.negf %100 : vector<8x128xf32>
    %102 = math.exp %101 : vector<8x128xf32>
    %cst_30 = arith.constant 1.000000e+00 : f32
    %103 = vector.broadcast %cst_30 : f32 to vector<8x128xf32>
    %104 = arith.addf %103, %102 : vector<8x128xf32>
    %105 = arith.divf %103, %104 : vector<8x128xf32>
    %106 = arith.mulf %97, %37 : vector<8x128xf32>
    %107 = arith.mulf %91, %99 : vector<8x128xf32>
    %108 = arith.addf %106, %107 : vector<8x128xf32>
    %109 = math.tanh %108 : vector<8x128xf32>
    %110 = arith.mulf %105, %109 : vector<8x128xf32>
    %111 = arith.index_cast %79 : i32 to index
    %c0_31 = arith.constant 0 : index
    %112 = vector.load %arg9[%111, %c0_31] : memref<64x256xf32, #tpu.memory_space<vmem>>, vector<8x128xf32>
    tpu.vector_store %arg9[%111, %c0_31], %110 {strides = array<i32>} : memref<64x256xf32, #tpu.memory_space<vmem>>, vector<8x128xf32>,
    %c7_i32_32 = arith.constant 7 : i32
    %113 = arith.subi %c7_i32_32, %c1_i32 : i32
    %c8_i32_33 = arith.constant 8 : i32
    %114 = arith.muli %113, %c8_i32_33 : i32
    %115 = tpu.assume_multiple %114, 8 : i32
    %116 = arith.index_cast %115 : i32 to index
    %c512_34 = arith.constant 512 : index
    %117 = vector.load %arg8[%116, %c512_34] : memref<64x1024xf32, #tpu.memory_space<vmem>>, vector<8x512xf32>
    %c0_35 = arith.constant 0 : index
    %c1_36 = arith.constant 1 : index
    %c0_37 = arith.constant 0 : index
    %c0_38 = arith.constant 0 : index
    %118 = vector.load %arg3[%c0_35, %c1_36, %c0_37, %c0_38] : memref<1x2x128x512xf32, #tpu.memory_space<vmem>>, vector<1x1x128x512xf32>
    %119 = vector.shape_cast %118 : vector<1x1x128x512xf32> to vector<128x512xf32>
    %cst_39 = arith.constant dense<0.000000e+00> : vector<8x512xf32>
    %120 = tpu.matmul %75, %119, %cst_39 {dimension_numbers = #tpu.dot_dimension_numbers<[1], [0], [0], [1], [0, 0, 1, 1], [], []>} : vector<8x128xf32>, vector<128x512xf32>, vector<8x512xf32> -> vector<8x512xf32>
    %121 = arith.addf %117, %120 : vector<8x512xf32>
    %122 = vector.extract_strided_slice %121 {offsets = [0, 0], sizes = [8, 128], strides = [1, 1]} : vector<8x512xf32> to vector<8x128xf32>
    %123 = arith.negf %122 : vector<8x128xf32>
    %124 = math.exp %123 : vector<8x128xf32>
    %cst_40 = arith.constant 1.000000e+00 : f32
    %125 = vector.broadcast %cst_40 : f32 to vector<8x128xf32>
    %126 = arith.addf %125, %124 : vector<8x128xf32>
    %127 = arith.divf %125, %126 : vector<8x128xf32>
    %128 = vector.extract_strided_slice %121 {offsets = [0, 128], sizes = [8, 128], strides = [1, 1]} : vector<8x512xf32> to vector<8x128xf32>
    %129 = arith.negf %128 : vector<8x128xf32>
    %130 = math.exp %129 : vector<8x128xf32>
    %cst_41 = arith.constant 1.000000e+00 : f32
    %131 = vector.broadcast %cst_41 : f32 to vector<8x128xf32>
    %132 = arith.addf %131, %130 : vector<8x128xf32>
    %133 = arith.divf %131, %132 : vector<8x128xf32>
    %134 = vector.extract_strided_slice %121 {offsets = [0, 256], sizes = [8, 128], strides = [1, 1]} : vector<8x512xf32> to vector<8x128xf32>
    %135 = math.tanh %134 : vector<8x128xf32>
    %136 = vector.extract_strided_slice %121 {offsets = [0, 384], sizes = [8, 128], strides = [1, 1]} : vector<8x512xf32> to vector<8x128xf32>
    %137 = arith.negf %136 : vector<8x128xf32>
    %138 = math.exp %137 : vector<8x128xf32>
    %cst_42 = arith.constant 1.000000e+00 : f32
    %139 = vector.broadcast %cst_42 : f32 to vector<8x128xf32>
    %140 = arith.addf %139, %138 : vector<8x128xf32>
    %141 = arith.divf %139, %140 : vector<8x128xf32>
    %142 = arith.mulf %133, %73 : vector<8x128xf32>
    %143 = arith.mulf %127, %135 : vector<8x128xf32>
    %144 = arith.addf %142, %143 : vector<8x128xf32>
    %145 = math.tanh %144 : vector<8x128xf32>
    %146 = arith.mulf %141, %145 : vector<8x128xf32>
    %147 = arith.index_cast %115 : i32 to index
    %c128_43 = arith.constant 128 : index
    %148 = vector.load %arg9[%147, %c128_43] : memref<64x256xf32, #tpu.memory_space<vmem>>, vector<8x128xf32>
    tpu.vector_store %arg9[%147, %c128_43], %146 {strides = array<i32>} : memref<64x256xf32, #tpu.memory_space<vmem>>, vector<8x128xf32>,
    %c2_i32 = arith.constant 2 : i32
    %c8_i32_44 = arith.constant 8 : i32
    %149 = arith.muli %c2_i32, %c8_i32_44 : i32
    %150 = tpu.assume_multiple %149, 8 : i32
    %151 = arith.index_cast %150 : i32 to index
    %c0_45 = arith.constant 0 : index
    %152 = vector.load %arg8[%151, %c0_45] : memref<64x1024xf32, #tpu.memory_space<vmem>>, vector<8x512xf32>
    %c0_46 = arith.constant 0 : index
    %c0_47 = arith.constant 0 : index
    %c0_48 = arith.constant 0 : index
    %c0_49 = arith.constant 0 : index
    %153 = vector.load %arg3[%c0_46, %c0_47, %c0_48, %c0_49] : memref<1x2x128x512xf32, #tpu.memory_space<vmem>>, vector<1x1x128x512xf32>
    %154 = vector.shape_cast %153 : vector<1x1x128x512xf32> to vector<128x512xf32>
    %cst_50 = arith.constant dense<0.000000e+00> : vector<8x512xf32>
    %155 = tpu.matmul %110, %154, %cst_50 {dimension_numbers = #tpu.dot_dimension_numbers<[1], [0], [0], [1], [0, 0, 1, 1], [], []>} : vector<8x128xf32>, vector<128x512xf32>, vector<8x512xf32> -> vector<8x512xf32>
    %156 = arith.addf %152, %155 : vector<8x512xf32>
    %157 = vector.extract_strided_slice %156 {offsets = [0, 0], sizes = [8, 128], strides = [1, 1]} : vector<8x512xf32> to vector<8x128xf32>
    %158 = arith.negf %157 : vector<8x128xf32>
    %159 = math.exp %158 : vector<8x128xf32>
    %cst_51 = arith.constant 1.000000e+00 : f32
    %160 = vector.broadcast %cst_51 : f32 to vector<8x128xf32>
    %161 = arith.addf %160, %159 : vector<8x128xf32>
    %162 = arith.divf %160, %161 : vector<8x128xf32>
    %163 = vector.extract_strided_slice %156 {offsets = [0, 128], sizes = [8, 128], strides = [1, 1]} : vector<8x512xf32> to vector<8x128xf32>
    %164 = arith.negf %163 : vector<8x128xf32>
    %165 = math.exp %164 : vector<8x128xf32>
    %cst_52 = arith.constant 1.000000e+00 : f32
    %166 = vector.broadcast %cst_52 : f32 to vector<8x128xf32>
    %167 = arith.addf %166, %165 : vector<8x128xf32>
    %168 = arith.divf %166, %167 : vector<8x128xf32>
    %169 = vector.extract_strided_slice %156 {offsets = [0, 256], sizes = [8, 128], strides = [1, 1]} : vector<8x512xf32> to vector<8x128xf32>
    %170 = math.tanh %169 : vector<8x128xf32>
    %171 = vector.extract_strided_slice %156 {offsets = [0, 384], sizes = [8, 128], strides = [1, 1]} : vector<8x512xf32> to vector<8x128xf32>
    %172 = arith.negf %171 : vector<8x128xf32>
    %173 = math.exp %172 : vector<8x128xf32>
    %cst_53 = arith.constant 1.000000e+00 : f32
    %174 = vector.broadcast %cst_53 : f32 to vector<8x128xf32>
    %175 = arith.addf %174, %173 : vector<8x128xf32>
    %176 = arith.divf %174, %175 : vector<8x128xf32>
    %177 = arith.mulf %168, %108 : vector<8x128xf32>
    %178 = arith.mulf %162, %170 : vector<8x128xf32>
    %179 = arith.addf %177, %178 : vector<8x128xf32>
    %180 = math.tanh %179 : vector<8x128xf32>
    %181 = arith.mulf %176, %180 : vector<8x128xf32>
    %182 = arith.index_cast %150 : i32 to index
    %c0_54 = arith.constant 0 : index
    %183 = vector.load %arg9[%182, %c0_54] : memref<64x256xf32, #tpu.memory_space<vmem>>, vector<8x128xf32>
    tpu.vector_store %arg9[%182, %c0_54], %181 {strides = array<i32>} : memref<64x256xf32, #tpu.memory_space<vmem>>, vector<8x128xf32>,
    %c7_i32_55 = arith.constant 7 : i32
    %184 = arith.subi %c7_i32_55, %c2_i32 : i32
    %c8_i32_56 = arith.constant 8 : i32
    %185 = arith.muli %184, %c8_i32_56 : i32
    %186 = tpu.assume_multiple %185, 8 : i32
    %187 = arith.index_cast %186 : i32 to index
    %c512_57 = arith.constant 512 : index
    %188 = vector.load %arg8[%187, %c512_57] : memref<64x1024xf32, #tpu.memory_space<vmem>>, vector<8x512xf32>
    %c0_58 = arith.constant 0 : index
    %c1_59 = arith.constant 1 : index
    %c0_60 = arith.constant 0 : index
    %c0_61 = arith.constant 0 : index
    %189 = vector.load %arg3[%c0_58, %c1_59, %c0_60, %c0_61] : memref<1x2x128x512xf32, #tpu.memory_space<vmem>>, vector<1x1x128x512xf32>
    %190 = vector.shape_cast %189 : vector<1x1x128x512xf32> to vector<128x512xf32>
    %cst_62 = arith.constant dense<0.000000e+00> : vector<8x512xf32>
    %191 = tpu.matmul %146, %190, %cst_62 {dimension_numbers = #tpu.dot_dimension_numbers<[1], [0], [0], [1], [0, 0, 1, 1], [], []>} : vector<8x128xf32>, vector<128x512xf32>, vector<8x512xf32> -> vector<8x512xf32>
    %192 = arith.addf %188, %191 : vector<8x512xf32>
    %193 = vector.extract_strided_slice %192 {offsets = [0, 0], sizes = [8, 128], strides = [1, 1]} : vector<8x512xf32> to vector<8x128xf32>
    %194 = arith.negf %193 : vector<8x128xf32>
    %195 = math.exp %194 : vector<8x128xf32>
    %cst_63 = arith.constant 1.000000e+00 : f32
    %196 = vector.broadcast %cst_63 : f32 to vector<8x128xf32>
    %197 = arith.addf %196, %195 : vector<8x128xf32>
    %198 = arith.divf %196, %197 : vector<8x128xf32>
    %199 = vector.extract_strided_slice %192 {offsets = [0, 128], sizes = [8, 128], strides = [1, 1]} : vector<8x512xf32> to vector<8x128xf32>
    %200 = arith.negf %199 : vector<8x128xf32>
    %201 = math.exp %200 : vector<8x128xf32>
    %cst_64 = arith.constant 1.000000e+00 : f32
    %202 = vector.broadcast %cst_64 : f32 to vector<8x128xf32>
    %203 = arith.addf %202, %201 : vector<8x128xf32>
    %204 = arith.divf %202, %203 : vector<8x128xf32>
    %205 = vector.extract_strided_slice %192 {offsets = [0, 256], sizes = [8, 128], strides = [1, 1]} : vector<8x512xf32> to vector<8x128xf32>
    %206 = math.tanh %205 : vector<8x128xf32>
    %207 = vector.extract_strided_slice %192 {offsets = [0, 384], sizes = [8, 128], strides = [1, 1]} : vector<8x512xf32> to vector<8x128xf32>
    %208 = arith.negf %207 : vector<8x128xf32>
    %209 = math.exp %208 : vector<8x128xf32>
    %cst_65 = arith.constant 1.000000e+00 : f32
    %210 = vector.broadcast %cst_65 : f32 to vector<8x128xf32>
    %211 = arith.addf %210, %209 : vector<8x128xf32>
    %212 = arith.divf %210, %211 : vector<8x128xf32>
    %213 = arith.mulf %204, %144 : vector<8x128xf32>
    %214 = arith.mulf %198, %206 : vector<8x128xf32>
    %215 = arith.addf %213, %214 : vector<8x128xf32>
    %216 = math.tanh %215 : vector<8x128xf32>
    %217 = arith.mulf %212, %216 : vector<8x128xf32>
    %218 = arith.index_cast %186 : i32 to index
    %c128_66 = arith.constant 128 : index
    %219 = vector.load %arg9[%218, %c128_66] : memref<64x256xf32, #tpu.memory_space<vmem>>, vector<8x128xf32>
    tpu.vector_store %arg9[%218, %c128_66], %217 {strides = array<i32>} : memref<64x256xf32, #tpu.memory_space<vmem>>, vector<8x128xf32>,
    %c3_i32 = arith.constant 3 : i32
    %c8_i32_67 = arith.constant 8 : i32
    %220 = arith.muli %c3_i32, %c8_i32_67 : i32
    %221 = tpu.assume_multiple %220, 8 : i32
    %222 = arith.index_cast %221 : i32 to index
    %c0_68 = arith.constant 0 : index
    %223 = vector.load %arg8[%222, %c0_68] : memref<64x1024xf32, #tpu.memory_space<vmem>>, vector<8x512xf32>
    %c0_69 = arith.constant 0 : index
    %c0_70 = arith.constant 0 : index
    %c0_71 = arith.constant 0 : index
    %c0_72 = arith.constant 0 : index
    %224 = vector.load %arg3[%c0_69, %c0_70, %c0_71, %c0_72] : memref<1x2x128x512xf32, #tpu.memory_space<vmem>>, vector<1x1x128x512xf32>
    %225 = vector.shape_cast %224 : vector<1x1x128x512xf32> to vector<128x512xf32>
    %cst_73 = arith.constant dense<0.000000e+00> : vector<8x512xf32>
    %226 = tpu.matmul %181, %225, %cst_73 {dimension_numbers = #tpu.dot_dimension_numbers<[1], [0], [0], [1], [0, 0, 1, 1], [], []>} : vector<8x128xf32>, vector<128x512xf32>, vector<8x512xf32> -> vector<8x512xf32>
    %227 = arith.addf %223, %226 : vector<8x512xf32>
    %228 = vector.extract_strided_slice %227 {offsets = [0, 0], sizes = [8, 128], strides = [1, 1]} : vector<8x512xf32> to vector<8x128xf32>
    %229 = arith.negf %228 : vector<8x128xf32>
    %230 = math.exp %229 : vector<8x128xf32>
    %cst_74 = arith.constant 1.000000e+00 : f32
    %231 = vector.broadcast %cst_74 : f32 to vector<8x128xf32>
    %232 = arith.addf %231, %230 : vector<8x128xf32>
    %233 = arith.divf %231, %232 : vector<8x128xf32>
    %234 = vector.extract_strided_slice %227 {offsets = [0, 128], sizes = [8, 128], strides = [1, 1]} : vector<8x512xf32> to vector<8x128xf32>
    %235 = arith.negf %234 : vector<8x128xf32>
    %236 = math.exp %235 : vector<8x128xf32>
    %cst_75 = arith.constant 1.000000e+00 : f32
    %237 = vector.broadcast %cst_75 : f32 to vector<8x128xf32>
    %238 = arith.addf %237, %236 : vector<8x128xf32>
    %239 = arith.divf %237, %238 : vector<8x128xf32>
    %240 = vector.extract_strided_slice %227 {offsets = [0, 256], sizes = [8, 128], strides = [1, 1]} : vector<8x512xf32> to vector<8x128xf32>
    %241 = math.tanh %240 : vector<8x128xf32>
    %242 = vector.extract_strided_slice %227 {offsets = [0, 384], sizes = [8, 128], strides = [1, 1]} : vector<8x512xf32> to vector<8x128xf32>
    %243 = arith.negf %242 : vector<8x128xf32>
    %244 = math.exp %243 : vector<8x128xf32>
    %cst_76 = arith.constant 1.000000e+00 : f32
    %245 = vector.broadcast %cst_76 : f32 to vector<8x128xf32>
    %246 = arith.addf %245, %244 : vector<8x128xf32>
    %247 = arith.divf %245, %246 : vector<8x128xf32>
    %248 = arith.mulf %239, %179 : vector<8x128xf32>
    %249 = arith.mulf %233, %241 : vector<8x128xf32>
    %250 = arith.addf %248, %249 : vector<8x128xf32>
    %251 = math.tanh %250 : vector<8x128xf32>
    %252 = arith.mulf %247, %251 : vector<8x128xf32>
    %253 = arith.index_cast %221 : i32 to index
    %c0_77 = arith.constant 0 : index
    %254 = vector.load %arg9[%253, %c0_77] : memref<64x256xf32, #tpu.memory_space<vmem>>, vector<8x128xf32>
    tpu.vector_store %arg9[%253, %c0_77], %252 {strides = array<i32>} : memref<64x256xf32, #tpu.memory_space<vmem>>, vector<8x128xf32>,
    %c7_i32_78 = arith.constant 7 : i32
    %255 = arith.subi %c7_i32_78, %c3_i32 : i32
    %c8_i32_79 = arith.constant 8 : i32
    %256 = arith.muli %255, %c8_i32_79 : i32
    %257 = tpu.assume_multiple %256, 8 : i32
    %258 = arith.index_cast %257 : i32 to index
    %c512_80 = arith.constant 512 : index
    %259 = vector.load %arg8[%258, %c512_80] : memref<64x1024xf32, #tpu.memory_space<vmem>>, vector<8x512xf32>
    %c0_81 = arith.constant 0 : index
    %c1_82 = arith.constant 1 : index
    %c0_83 = arith.constant 0 : index
    %c0_84 = arith.constant 0 : index
    %260 = vector.load %arg3[%c0_81, %c1_82, %c0_83, %c0_84] : memref<1x2x128x512xf32, #tpu.memory_space<vmem>>, vector<1x1x128x512xf32>
    %261 = vector.shape_cast %260 : vector<1x1x128x512xf32> to vector<128x512xf32>
    %cst_85 = arith.constant dense<0.000000e+00> : vector<8x512xf32>
    %262 = tpu.matmul %217, %261, %cst_85 {dimension_numbers = #tpu.dot_dimension_numbers<[1], [0], [0], [1], [0, 0, 1, 1], [], []>} : vector<8x128xf32>, vector<128x512xf32>, vector<8x512xf32> -> vector<8x512xf32>
    %263 = arith.addf %259, %262 : vector<8x512xf32>
    %264 = vector.extract_strided_slice %263 {offsets = [0, 0], sizes = [8, 128], strides = [1, 1]} : vector<8x512xf32> to vector<8x128xf32>
    %265 = arith.negf %264 : vector<8x128xf32>
    %266 = math.exp %265 : vector<8x128xf32>
    %cst_86 = arith.constant 1.000000e+00 : f32
    %267 = vector.broadcast %cst_86 : f32 to vector<8x128xf32>
    %268 = arith.addf %267, %266 : vector<8x128xf32>
    %269 = arith.divf %267, %268 : vector<8x128xf32>
    %270 = vector.extract_strided_slice %263 {offsets = [0, 128], sizes = [8, 128], strides = [1, 1]} : vector<8x512xf32> to vector<8x128xf32>
    %271 = arith.negf %270 : vector<8x128xf32>
    %272 = math.exp %271 : vector<8x128xf32>
    %cst_87 = arith.constant 1.000000e+00 : f32
    %273 = vector.broadcast %cst_87 : f32 to vector<8x128xf32>
    %274 = arith.addf %273, %272 : vector<8x128xf32>
    %275 = arith.divf %273, %274 : vector<8x128xf32>
    %276 = vector.extract_strided_slice %263 {offsets = [0, 256], sizes = [8, 128], strides = [1, 1]} : vector<8x512xf32> to vector<8x128xf32>
    %277 = math.tanh %276 : vector<8x128xf32>
    %278 = vector.extract_strided_slice %263 {offsets = [0, 384], sizes = [8, 128], strides = [1, 1]} : vector<8x512xf32> to vector<8x128xf32>
    %279 = arith.negf %278 : vector<8x128xf32>
    %280 = math.exp %279 : vector<8x128xf32>
    %cst_88 = arith.constant 1.000000e+00 : f32
    %281 = vector.broadcast %cst_88 : f32 to vector<8x128xf32>
    %282 = arith.addf %281, %280 : vector<8x128xf32>
    %283 = arith.divf %281, %282 : vector<8x128xf32>
    %284 = arith.mulf %275, %215 : vector<8x128xf32>
    %285 = arith.mulf %269, %277 : vector<8x128xf32>
    %286 = arith.addf %284, %285 : vector<8x128xf32>
    %287 = math.tanh %286 : vector<8x128xf32>
    %288 = arith.mulf %283, %287 : vector<8x128xf32>
    %289 = arith.index_cast %257 : i32 to index
    %c128_89 = arith.constant 128 : index
    %290 = vector.load %arg9[%289, %c128_89] : memref<64x256xf32, #tpu.memory_space<vmem>>, vector<8x128xf32>
    tpu.vector_store %arg9[%289, %c128_89], %288 {strides = array<i32>} : memref<64x256xf32, #tpu.memory_space<vmem>>, vector<8x128xf32>,
    %c4_i32 = arith.constant 4 : i32
    %c8_i32_90 = arith.constant 8 : i32
    %291 = arith.muli %c4_i32, %c8_i32_90 : i32
    %292 = tpu.assume_multiple %291, 8 : i32
    %293 = arith.index_cast %292 : i32 to index
    %c0_91 = arith.constant 0 : index
    %294 = vector.load %arg8[%293, %c0_91] : memref<64x1024xf32, #tpu.memory_space<vmem>>, vector<8x512xf32>
    %c0_92 = arith.constant 0 : index
    %c0_93 = arith.constant 0 : index
    %c0_94 = arith.constant 0 : index
    %c0_95 = arith.constant 0 : index
    %295 = vector.load %arg3[%c0_92, %c0_93, %c0_94, %c0_95] : memref<1x2x128x512xf32, #tpu.memory_space<vmem>>, vector<1x1x128x512xf32>
    %296 = vector.shape_cast %295 : vector<1x1x128x512xf32> to vector<128x512xf32>
    %cst_96 = arith.constant dense<0.000000e+00> : vector<8x512xf32>
    %297 = tpu.matmul %252, %296, %cst_96 {dimension_numbers = #tpu.dot_dimension_numbers<[1], [0], [0], [1], [0, 0, 1, 1], [], []>} : vector<8x128xf32>, vector<128x512xf32>, vector<8x512xf32> -> vector<8x512xf32>
    %298 = arith.addf %294, %297 : vector<8x512xf32>
    %299 = vector.extract_strided_slice %298 {offsets = [0, 0], sizes = [8, 128], strides = [1, 1]} : vector<8x512xf32> to vector<8x128xf32>
    %300 = arith.negf %299 : vector<8x128xf32>
    %301 = math.exp %300 : vector<8x128xf32>
    %cst_97 = arith.constant 1.000000e+00 : f32
    %302 = vector.broadcast %cst_97 : f32 to vector<8x128xf32>
    %303 = arith.addf %302, %301 : vector<8x128xf32>
    %304 = arith.divf %302, %303 : vector<8x128xf32>
    %305 = vector.extract_strided_slice %298 {offsets = [0, 128], sizes = [8, 128], strides = [1, 1]} : vector<8x512xf32> to vector<8x128xf32>
    %306 = arith.negf %305 : vector<8x128xf32>
    %307 = math.exp %306 : vector<8x128xf32>
    %cst_98 = arith.constant 1.000000e+00 : f32
    %308 = vector.broadcast %cst_98 : f32 to vector<8x128xf32>
    %309 = arith.addf %308, %307 : vector<8x128xf32>
    %310 = arith.divf %308, %309 : vector<8x128xf32>
    %311 = vector.extract_strided_slice %298 {offsets = [0, 256], sizes = [8, 128], strides = [1, 1]} : vector<8x512xf32> to vector<8x128xf32>
    %312 = math.tanh %311 : vector<8x128xf32>
    %313 = vector.extract_strided_slice %298 {offsets = [0, 384], sizes = [8, 128], strides = [1, 1]} : vector<8x512xf32> to vector<8x128xf32>
    %314 = arith.negf %313 : vector<8x128xf32>
    %315 = math.exp %314 : vector<8x128xf32>
    %cst_99 = arith.constant 1.000000e+00 : f32
    %316 = vector.broadcast %cst_99 : f32 to vector<8x128xf32>
    %317 = arith.addf %316, %315 : vector<8x128xf32>
    %318 = arith.divf %316, %317 : vector<8x128xf32>
    %319 = arith.mulf %310, %250 : vector<8x128xf32>
    %320 = arith.mulf %304, %312 : vector<8x128xf32>
    %321 = arith.addf %319, %320 : vector<8x128xf32>
    %322 = math.tanh %321 : vector<8x128xf32>
    %323 = arith.mulf %318, %322 : vector<8x128xf32>
    %324 = arith.index_cast %292 : i32 to index
    %c0_100 = arith.constant 0 : index
    %325 = vector.load %arg9[%324, %c0_100] : memref<64x256xf32, #tpu.memory_space<vmem>>, vector<8x128xf32>
    tpu.vector_store %arg9[%324, %c0_100], %323 {strides = array<i32>} : memref<64x256xf32, #tpu.memory_space<vmem>>, vector<8x128xf32>,
    %c7_i32_101 = arith.constant 7 : i32
    %326 = arith.subi %c7_i32_101, %c4_i32 : i32
    %c8_i32_102 = arith.constant 8 : i32
    %327 = arith.muli %326, %c8_i32_102 : i32
    %328 = tpu.assume_multiple %327, 8 : i32
    %329 = arith.index_cast %328 : i32 to index
    %c512_103 = arith.constant 512 : index
    %330 = vector.load %arg8[%329, %c512_103] : memref<64x1024xf32, #tpu.memory_space<vmem>>, vector<8x512xf32>
    %c0_104 = arith.constant 0 : index
    %c1_105 = arith.constant 1 : index
    %c0_106 = arith.constant 0 : index
    %c0_107 = arith.constant 0 : index
    %331 = vector.load %arg3[%c0_104, %c1_105, %c0_106, %c0_107] : memref<1x2x128x512xf32, #tpu.memory_space<vmem>>, vector<1x1x128x512xf32>
    %332 = vector.shape_cast %331 : vector<1x1x128x512xf32> to vector<128x512xf32>
    %cst_108 = arith.constant dense<0.000000e+00> : vector<8x512xf32>
    %333 = tpu.matmul %288, %332, %cst_108 {dimension_numbers = #tpu.dot_dimension_numbers<[1], [0], [0], [1], [0, 0, 1, 1], [], []>} : vector<8x128xf32>, vector<128x512xf32>, vector<8x512xf32> -> vector<8x512xf32>
    %334 = arith.addf %330, %333 : vector<8x512xf32>
    %335 = vector.extract_strided_slice %334 {offsets = [0, 0], sizes = [8, 128], strides = [1, 1]} : vector<8x512xf32> to vector<8x128xf32>
    %336 = arith.negf %335 : vector<8x128xf32>
    %337 = math.exp %336 : vector<8x128xf32>
    %cst_109 = arith.constant 1.000000e+00 : f32
    %338 = vector.broadcast %cst_109 : f32 to vector<8x128xf32>
    %339 = arith.addf %338, %337 : vector<8x128xf32>
    %340 = arith.divf %338, %339 : vector<8x128xf32>
    %341 = vector.extract_strided_slice %334 {offsets = [0, 128], sizes = [8, 128], strides = [1, 1]} : vector<8x512xf32> to vector<8x128xf32>
    %342 = arith.negf %341 : vector<8x128xf32>
    %343 = math.exp %342 : vector<8x128xf32>
    %cst_110 = arith.constant 1.000000e+00 : f32
    %344 = vector.broadcast %cst_110 : f32 to vector<8x128xf32>
    %345 = arith.addf %344, %343 : vector<8x128xf32>
    %346 = arith.divf %344, %345 : vector<8x128xf32>
    %347 = vector.extract_strided_slice %334 {offsets = [0, 256], sizes = [8, 128], strides = [1, 1]} : vector<8x512xf32> to vector<8x128xf32>
    %348 = math.tanh %347 : vector<8x128xf32>
    %349 = vector.extract_strided_slice %334 {offsets = [0, 384], sizes = [8, 128], strides = [1, 1]} : vector<8x512xf32> to vector<8x128xf32>
    %350 = arith.negf %349 : vector<8x128xf32>
    %351 = math.exp %350 : vector<8x128xf32>
    %cst_111 = arith.constant 1.000000e+00 : f32
    %352 = vector.broadcast %cst_111 : f32 to vector<8x128xf32>
    %353 = arith.addf %352, %351 : vector<8x128xf32>
    %354 = arith.divf %352, %353 : vector<8x128xf32>
    %355 = arith.mulf %346, %286 : vector<8x128xf32>
    %356 = arith.mulf %340, %348 : vector<8x128xf32>
    %357 = arith.addf %355, %356 : vector<8x128xf32>
    %358 = math.tanh %357 : vector<8x128xf32>
    %359 = arith.mulf %354, %358 : vector<8x128xf32>
    %360 = arith.index_cast %328 : i32 to index
    %c128_112 = arith.constant 128 : index
    %361 = vector.load %arg9[%360, %c128_112] : memref<64x256xf32, #tpu.memory_space<vmem>>, vector<8x128xf32>
    tpu.vector_store %arg9[%360, %c128_112], %359 {strides = array<i32>} : memref<64x256xf32, #tpu.memory_space<vmem>>, vector<8x128xf32>,
    %c5_i32 = arith.constant 5 : i32
    %c8_i32_113 = arith.constant 8 : i32
    %362 = arith.muli %c5_i32, %c8_i32_113 : i32
    %363 = tpu.assume_multiple %362, 8 : i32
    %364 = arith.index_cast %363 : i32 to index
    %c0_114 = arith.constant 0 : index
    %365 = vector.load %arg8[%364, %c0_114] : memref<64x1024xf32, #tpu.memory_space<vmem>>, vector<8x512xf32>
    %c0_115 = arith.constant 0 : index
    %c0_116 = arith.constant 0 : index
    %c0_117 = arith.constant 0 : index
    %c0_118 = arith.constant 0 : index
    %366 = vector.load %arg3[%c0_115, %c0_116, %c0_117, %c0_118] : memref<1x2x128x512xf32, #tpu.memory_space<vmem>>, vector<1x1x128x512xf32>
    %367 = vector.shape_cast %366 : vector<1x1x128x512xf32> to vector<128x512xf32>
    %cst_119 = arith.constant dense<0.000000e+00> : vector<8x512xf32>
    %368 = tpu.matmul %323, %367, %cst_119 {dimension_numbers = #tpu.dot_dimension_numbers<[1], [0], [0], [1], [0, 0, 1, 1], [], []>} : vector<8x128xf32>, vector<128x512xf32>, vector<8x512xf32> -> vector<8x512xf32>
    %369 = arith.addf %365, %368 : vector<8x512xf32>
    %370 = vector.extract_strided_slice %369 {offsets = [0, 0], sizes = [8, 128], strides = [1, 1]} : vector<8x512xf32> to vector<8x128xf32>
    %371 = arith.negf %370 : vector<8x128xf32>
    %372 = math.exp %371 : vector<8x128xf32>
    %cst_120 = arith.constant 1.000000e+00 : f32
    %373 = vector.broadcast %cst_120 : f32 to vector<8x128xf32>
    %374 = arith.addf %373, %372 : vector<8x128xf32>
    %375 = arith.divf %373, %374 : vector<8x128xf32>
    %376 = vector.extract_strided_slice %369 {offsets = [0, 128], sizes = [8, 128], strides = [1, 1]} : vector<8x512xf32> to vector<8x128xf32>
    %377 = arith.negf %376 : vector<8x128xf32>
    %378 = math.exp %377 : vector<8x128xf32>
    %cst_121 = arith.constant 1.000000e+00 : f32
    %379 = vector.broadcast %cst_121 : f32 to vector<8x128xf32>
    %380 = arith.addf %379, %378 : vector<8x128xf32>
    %381 = arith.divf %379, %380 : vector<8x128xf32>
    %382 = vector.extract_strided_slice %369 {offsets = [0, 256], sizes = [8, 128], strides = [1, 1]} : vector<8x512xf32> to vector<8x128xf32>
    %383 = math.tanh %382 : vector<8x128xf32>
    %384 = vector.extract_strided_slice %369 {offsets = [0, 384], sizes = [8, 128], strides = [1, 1]} : vector<8x512xf32> to vector<8x128xf32>
    %385 = arith.negf %384 : vector<8x128xf32>
    %386 = math.exp %385 : vector<8x128xf32>
    %cst_122 = arith.constant 1.000000e+00 : f32
    %387 = vector.broadcast %cst_122 : f32 to vector<8x128xf32>
    %388 = arith.addf %387, %386 : vector<8x128xf32>
    %389 = arith.divf %387, %388 : vector<8x128xf32>
    %390 = arith.mulf %381, %321 : vector<8x128xf32>
    %391 = arith.mulf %375, %383 : vector<8x128xf32>
    %392 = arith.addf %390, %391 : vector<8x128xf32>
    %393 = math.tanh %392 : vector<8x128xf32>
    %394 = arith.mulf %389, %393 : vector<8x128xf32>
    %395 = arith.index_cast %363 : i32 to index
    %c0_123 = arith.constant 0 : index
    %396 = vector.load %arg9[%395, %c0_123] : memref<64x256xf32, #tpu.memory_space<vmem>>, vector<8x128xf32>
    tpu.vector_store %arg9[%395, %c0_123], %394 {strides = array<i32>} : memref<64x256xf32, #tpu.memory_space<vmem>>, vector<8x128xf32>,
    %c7_i32_124 = arith.constant 7 : i32
    %397 = arith.subi %c7_i32_124, %c5_i32 : i32
    %c8_i32_125 = arith.constant 8 : i32
    %398 = arith.muli %397, %c8_i32_125 : i32
    %399 = tpu.assume_multiple %398, 8 : i32
    %400 = arith.index_cast %399 : i32 to index
    %c512_126 = arith.constant 512 : index
    %401 = vector.load %arg8[%400, %c512_126] : memref<64x1024xf32, #tpu.memory_space<vmem>>, vector<8x512xf32>
    %c0_127 = arith.constant 0 : index
    %c1_128 = arith.constant 1 : index
    %c0_129 = arith.constant 0 : index
    %c0_130 = arith.constant 0 : index
    %402 = vector.load %arg3[%c0_127, %c1_128, %c0_129, %c0_130] : memref<1x2x128x512xf32, #tpu.memory_space<vmem>>, vector<1x1x128x512xf32>
    %403 = vector.shape_cast %402 : vector<1x1x128x512xf32> to vector<128x512xf32>
    %cst_131 = arith.constant dense<0.000000e+00> : vector<8x512xf32>
    %404 = tpu.matmul %359, %403, %cst_131 {dimension_numbers = #tpu.dot_dimension_numbers<[1], [0], [0], [1], [0, 0, 1, 1], [], []>} : vector<8x128xf32>, vector<128x512xf32>, vector<8x512xf32> -> vector<8x512xf32>
    %405 = arith.addf %401, %404 : vector<8x512xf32>
    %406 = vector.extract_strided_slice %405 {offsets = [0, 0], sizes = [8, 128], strides = [1, 1]} : vector<8x512xf32> to vector<8x128xf32>
    %407 = arith.negf %406 : vector<8x128xf32>
    %408 = math.exp %407 : vector<8x128xf32>
    %cst_132 = arith.constant 1.000000e+00 : f32
    %409 = vector.broadcast %cst_132 : f32 to vector<8x128xf32>
    %410 = arith.addf %409, %408 : vector<8x128xf32>
    %411 = arith.divf %409, %410 : vector<8x128xf32>
    %412 = vector.extract_strided_slice %405 {offsets = [0, 128], sizes = [8, 128], strides = [1, 1]} : vector<8x512xf32> to vector<8x128xf32>
    %413 = arith.negf %412 : vector<8x128xf32>
    %414 = math.exp %413 : vector<8x128xf32>
    %cst_133 = arith.constant 1.000000e+00 : f32
    %415 = vector.broadcast %cst_133 : f32 to vector<8x128xf32>
    %416 = arith.addf %415, %414 : vector<8x128xf32>
    %417 = arith.divf %415, %416 : vector<8x128xf32>
    %418 = vector.extract_strided_slice %405 {offsets = [0, 256], sizes = [8, 128], strides = [1, 1]} : vector<8x512xf32> to vector<8x128xf32>
    %419 = math.tanh %418 : vector<8x128xf32>
    %420 = vector.extract_strided_slice %405 {offsets = [0, 384], sizes = [8, 128], strides = [1, 1]} : vector<8x512xf32> to vector<8x128xf32>
    %421 = arith.negf %420 : vector<8x128xf32>
    %422 = math.exp %421 : vector<8x128xf32>
    %cst_134 = arith.constant 1.000000e+00 : f32
    %423 = vector.broadcast %cst_134 : f32 to vector<8x128xf32>
    %424 = arith.addf %423, %422 : vector<8x128xf32>
    %425 = arith.divf %423, %424 : vector<8x128xf32>
    %426 = arith.mulf %417, %357 : vector<8x128xf32>
    %427 = arith.mulf %411, %419 : vector<8x128xf32>
    %428 = arith.addf %426, %427 : vector<8x128xf32>
    %429 = math.tanh %428 : vector<8x128xf32>
    %430 = arith.mulf %425, %429 : vector<8x128xf32>
    %431 = arith.index_cast %399 : i32 to index
    %c128_135 = arith.constant 128 : index
    %432 = vector.load %arg9[%431, %c128_135] : memref<64x256xf32, #tpu.memory_space<vmem>>, vector<8x128xf32>
    tpu.vector_store %arg9[%431, %c128_135], %430 {strides = array<i32>} : memref<64x256xf32, #tpu.memory_space<vmem>>, vector<8x128xf32>,
    %c6_i32 = arith.constant 6 : i32
    %c8_i32_136 = arith.constant 8 : i32
    %433 = arith.muli %c6_i32, %c8_i32_136 : i32
    %434 = tpu.assume_multiple %433, 8 : i32
    %435 = arith.index_cast %434 : i32 to index
    %c0_137 = arith.constant 0 : index
    %436 = vector.load %arg8[%435, %c0_137] : memref<64x1024xf32, #tpu.memory_space<vmem>>, vector<8x512xf32>
    %c0_138 = arith.constant 0 : index
    %c0_139 = arith.constant 0 : index
    %c0_140 = arith.constant 0 : index
    %c0_141 = arith.constant 0 : index
    %437 = vector.load %arg3[%c0_138, %c0_139, %c0_140, %c0_141] : memref<1x2x128x512xf32, #tpu.memory_space<vmem>>, vector<1x1x128x512xf32>
    %438 = vector.shape_cast %437 : vector<1x1x128x512xf32> to vector<128x512xf32>
    %cst_142 = arith.constant dense<0.000000e+00> : vector<8x512xf32>
    %439 = tpu.matmul %394, %438, %cst_142 {dimension_numbers = #tpu.dot_dimension_numbers<[1], [0], [0], [1], [0, 0, 1, 1], [], []>} : vector<8x128xf32>, vector<128x512xf32>, vector<8x512xf32> -> vector<8x512xf32>
    %440 = arith.addf %436, %439 : vector<8x512xf32>
    %441 = vector.extract_strided_slice %440 {offsets = [0, 0], sizes = [8, 128], strides = [1, 1]} : vector<8x512xf32> to vector<8x128xf32>
    %442 = arith.negf %441 : vector<8x128xf32>
    %443 = math.exp %442 : vector<8x128xf32>
    %cst_143 = arith.constant 1.000000e+00 : f32
    %444 = vector.broadcast %cst_143 : f32 to vector<8x128xf32>
    %445 = arith.addf %444, %443 : vector<8x128xf32>
    %446 = arith.divf %444, %445 : vector<8x128xf32>
    %447 = vector.extract_strided_slice %440 {offsets = [0, 128], sizes = [8, 128], strides = [1, 1]} : vector<8x512xf32> to vector<8x128xf32>
    %448 = arith.negf %447 : vector<8x128xf32>
    %449 = math.exp %448 : vector<8x128xf32>
    %cst_144 = arith.constant 1.000000e+00 : f32
    %450 = vector.broadcast %cst_144 : f32 to vector<8x128xf32>
    %451 = arith.addf %450, %449 : vector<8x128xf32>
    %452 = arith.divf %450, %451 : vector<8x128xf32>
    %453 = vector.extract_strided_slice %440 {offsets = [0, 256], sizes = [8, 128], strides = [1, 1]} : vector<8x512xf32> to vector<8x128xf32>
    %454 = math.tanh %453 : vector<8x128xf32>
    %455 = vector.extract_strided_slice %440 {offsets = [0, 384], sizes = [8, 128], strides = [1, 1]} : vector<8x512xf32> to vector<8x128xf32>
    %456 = arith.negf %455 : vector<8x128xf32>
    %457 = math.exp %456 : vector<8x128xf32>
    %cst_145 = arith.constant 1.000000e+00 : f32
    %458 = vector.broadcast %cst_145 : f32 to vector<8x128xf32>
    %459 = arith.addf %458, %457 : vector<8x128xf32>
    %460 = arith.divf %458, %459 : vector<8x128xf32>
    %461 = arith.mulf %452, %392 : vector<8x128xf32>
    %462 = arith.mulf %446, %454 : vector<8x128xf32>
    %463 = arith.addf %461, %462 : vector<8x128xf32>
    %464 = math.tanh %463 : vector<8x128xf32>
    %465 = arith.mulf %460, %464 : vector<8x128xf32>
    %466 = arith.index_cast %434 : i32 to index
    %c0_146 = arith.constant 0 : index
    %467 = vector.load %arg9[%466, %c0_146] : memref<64x256xf32, #tpu.memory_space<vmem>>, vector<8x128xf32>
    tpu.vector_store %arg9[%466, %c0_146], %465 {strides = array<i32>} : memref<64x256xf32, #tpu.memory_space<vmem>>, vector<8x128xf32>,
    %c7_i32_147 = arith.constant 7 : i32
    %468 = arith.subi %c7_i32_147, %c6_i32 : i32
    %c8_i32_148 = arith.constant 8 : i32
    %469 = arith.muli %468, %c8_i32_148 : i32
    %470 = tpu.assume_multiple %469, 8 : i32
    %471 = arith.index_cast %470 : i32 to index
    %c512_149 = arith.constant 512 : index
    %472 = vector.load %arg8[%471, %c512_149] : memref<64x1024xf32, #tpu.memory_space<vmem>>, vector<8x512xf32>
    %c0_150 = arith.constant 0 : index
    %c1_151 = arith.constant 1 : index
    %c0_152 = arith.constant 0 : index
    %c0_153 = arith.constant 0 : index
    %473 = vector.load %arg3[%c0_150, %c1_151, %c0_152, %c0_153] : memref<1x2x128x512xf32, #tpu.memory_space<vmem>>, vector<1x1x128x512xf32>
    %474 = vector.shape_cast %473 : vector<1x1x128x512xf32> to vector<128x512xf32>
    %cst_154 = arith.constant dense<0.000000e+00> : vector<8x512xf32>
    %475 = tpu.matmul %430, %474, %cst_154 {dimension_numbers = #tpu.dot_dimension_numbers<[1], [0], [0], [1], [0, 0, 1, 1], [], []>} : vector<8x128xf32>, vector<128x512xf32>, vector<8x512xf32> -> vector<8x512xf32>
    %476 = arith.addf %472, %475 : vector<8x512xf32>
    %477 = vector.extract_strided_slice %476 {offsets = [0, 0], sizes = [8, 128], strides = [1, 1]} : vector<8x512xf32> to vector<8x128xf32>
    %478 = arith.negf %477 : vector<8x128xf32>
    %479 = math.exp %478 : vector<8x128xf32>
    %cst_155 = arith.constant 1.000000e+00 : f32
    %480 = vector.broadcast %cst_155 : f32 to vector<8x128xf32>
    %481 = arith.addf %480, %479 : vector<8x128xf32>
    %482 = arith.divf %480, %481 : vector<8x128xf32>
    %483 = vector.extract_strided_slice %476 {offsets = [0, 128], sizes = [8, 128], strides = [1, 1]} : vector<8x512xf32> to vector<8x128xf32>
    %484 = arith.negf %483 : vector<8x128xf32>
    %485 = math.exp %484 : vector<8x128xf32>
    %cst_156 = arith.constant 1.000000e+00 : f32
    %486 = vector.broadcast %cst_156 : f32 to vector<8x128xf32>
    %487 = arith.addf %486, %485 : vector<8x128xf32>
    %488 = arith.divf %486, %487 : vector<8x128xf32>
    %489 = vector.extract_strided_slice %476 {offsets = [0, 256], sizes = [8, 128], strides = [1, 1]} : vector<8x512xf32> to vector<8x128xf32>
    %490 = math.tanh %489 : vector<8x128xf32>
    %491 = vector.extract_strided_slice %476 {offsets = [0, 384], sizes = [8, 128], strides = [1, 1]} : vector<8x512xf32> to vector<8x128xf32>
    %492 = arith.negf %491 : vector<8x128xf32>
    %493 = math.exp %492 : vector<8x128xf32>
    %cst_157 = arith.constant 1.000000e+00 : f32
    %494 = vector.broadcast %cst_157 : f32 to vector<8x128xf32>
    %495 = arith.addf %494, %493 : vector<8x128xf32>
    %496 = arith.divf %494, %495 : vector<8x128xf32>
    %497 = arith.mulf %488, %428 : vector<8x128xf32>
    %498 = arith.mulf %482, %490 : vector<8x128xf32>
    %499 = arith.addf %497, %498 : vector<8x128xf32>
    %500 = math.tanh %499 : vector<8x128xf32>
    %501 = arith.mulf %496, %500 : vector<8x128xf32>
    %502 = arith.index_cast %470 : i32 to index
    %c128_158 = arith.constant 128 : index
    %503 = vector.load %arg9[%502, %c128_158] : memref<64x256xf32, #tpu.memory_space<vmem>>, vector<8x128xf32>
    tpu.vector_store %arg9[%502, %c128_158], %501 {strides = array<i32>} : memref<64x256xf32, #tpu.memory_space<vmem>>, vector<8x128xf32>,
    %c7_i32_159 = arith.constant 7 : i32
    %c8_i32_160 = arith.constant 8 : i32
    %504 = arith.muli %c7_i32_159, %c8_i32_160 : i32
    %505 = tpu.assume_multiple %504, 8 : i32
    %506 = arith.index_cast %505 : i32 to index
    %c0_161 = arith.constant 0 : index
    %507 = vector.load %arg8[%506, %c0_161] : memref<64x1024xf32, #tpu.memory_space<vmem>>, vector<8x512xf32>
    %c0_162 = arith.constant 0 : index
    %c0_163 = arith.constant 0 : index
    %c0_164 = arith.constant 0 : index
    %c0_165 = arith.constant 0 : index
    %508 = vector.load %arg3[%c0_162, %c0_163, %c0_164, %c0_165] : memref<1x2x128x512xf32, #tpu.memory_space<vmem>>, vector<1x1x128x512xf32>
    %509 = vector.shape_cast %508 : vector<1x1x128x512xf32> to vector<128x512xf32>
    %cst_166 = arith.constant dense<0.000000e+00> : vector<8x512xf32>
    %510 = tpu.matmul %465, %509, %cst_166 {dimension_numbers = #tpu.dot_dimension_numbers<[1], [0], [0], [1], [0, 0, 1, 1], [], []>} : vector<8x128xf32>, vector<128x512xf32>, vector<8x512xf32> -> vector<8x512xf32>
    %511 = arith.addf %507, %510 : vector<8x512xf32>
    %512 = vector.extract_strided_slice %511 {offsets = [0, 0], sizes = [8, 128], strides = [1, 1]} : vector<8x512xf32> to vector<8x128xf32>
    %513 = arith.negf %512 : vector<8x128xf32>
    %514 = math.exp %513 : vector<8x128xf32>
    %cst_167 = arith.constant 1.000000e+00 : f32
    %515 = vector.broadcast %cst_167 : f32 to vector<8x128xf32>
    %516 = arith.addf %515, %514 : vector<8x128xf32>
    %517 = arith.divf %515, %516 : vector<8x128xf32>
    %518 = vector.extract_strided_slice %511 {offsets = [0, 128], sizes = [8, 128], strides = [1, 1]} : vector<8x512xf32> to vector<8x128xf32>
    %519 = arith.negf %518 : vector<8x128xf32>
    %520 = math.exp %519 : vector<8x128xf32>
    %cst_168 = arith.constant 1.000000e+00 : f32
    %521 = vector.broadcast %cst_168 : f32 to vector<8x128xf32>
    %522 = arith.addf %521, %520 : vector<8x128xf32>
    %523 = arith.divf %521, %522 : vector<8x128xf32>
    %524 = vector.extract_strided_slice %511 {offsets = [0, 256], sizes = [8, 128], strides = [1, 1]} : vector<8x512xf32> to vector<8x128xf32>
    %525 = math.tanh %524 : vector<8x128xf32>
    %526 = vector.extract_strided_slice %511 {offsets = [0, 384], sizes = [8, 128], strides = [1, 1]} : vector<8x512xf32> to vector<8x128xf32>
    %527 = arith.negf %526 : vector<8x128xf32>
    %528 = math.exp %527 : vector<8x128xf32>
    %cst_169 = arith.constant 1.000000e+00 : f32
    %529 = vector.broadcast %cst_169 : f32 to vector<8x128xf32>
    %530 = arith.addf %529, %528 : vector<8x128xf32>
    %531 = arith.divf %529, %530 : vector<8x128xf32>
    %532 = arith.mulf %523, %463 : vector<8x128xf32>
    %533 = arith.mulf %517, %525 : vector<8x128xf32>
    %534 = arith.addf %532, %533 : vector<8x128xf32>
    %535 = math.tanh %534 : vector<8x128xf32>
    %536 = arith.mulf %531, %535 : vector<8x128xf32>
    %537 = arith.index_cast %505 : i32 to index
    %c0_170 = arith.constant 0 : index
    %538 = vector.load %arg9[%537, %c0_170] : memref<64x256xf32, #tpu.memory_space<vmem>>, vector<8x128xf32>
    tpu.vector_store %arg9[%537, %c0_170], %536 {strides = array<i32>} : memref<64x256xf32, #tpu.memory_space<vmem>>, vector<8x128xf32>,
    %c7_i32_171 = arith.constant 7 : i32
    %539 = arith.subi %c7_i32_171, %c7_i32_159 : i32
    %c8_i32_172 = arith.constant 8 : i32
    %540 = arith.muli %539, %c8_i32_172 : i32
    %541 = tpu.assume_multiple %540, 8 : i32
    %542 = arith.index_cast %541 : i32 to index
    %c512_173 = arith.constant 512 : index
    %543 = vector.load %arg8[%542, %c512_173] : memref<64x1024xf32, #tpu.memory_space<vmem>>, vector<8x512xf32>
    %c0_174 = arith.constant 0 : index
    %c1_175 = arith.constant 1 : index
    %c0_176 = arith.constant 0 : index
    %c0_177 = arith.constant 0 : index
    %544 = vector.load %arg3[%c0_174, %c1_175, %c0_176, %c0_177] : memref<1x2x128x512xf32, #tpu.memory_space<vmem>>, vector<1x1x128x512xf32>
    %545 = vector.shape_cast %544 : vector<1x1x128x512xf32> to vector<128x512xf32>
    %cst_178 = arith.constant dense<0.000000e+00> : vector<8x512xf32>
    %546 = tpu.matmul %501, %545, %cst_178 {dimension_numbers = #tpu.dot_dimension_numbers<[1], [0], [0], [1], [0, 0, 1, 1], [], []>} : vector<8x128xf32>, vector<128x512xf32>, vector<8x512xf32> -> vector<8x512xf32>
    %547 = arith.addf %543, %546 : vector<8x512xf32>
    %548 = vector.extract_strided_slice %547 {offsets = [0, 0], sizes = [8, 128], strides = [1, 1]} : vector<8x512xf32> to vector<8x128xf32>
    %549 = arith.negf %548 : vector<8x128xf32>
    %550 = math.exp %549 : vector<8x128xf32>
    %cst_179 = arith.constant 1.000000e+00 : f32
    %551 = vector.broadcast %cst_179 : f32 to vector<8x128xf32>
    %552 = arith.addf %551, %550 : vector<8x128xf32>
    %553 = arith.divf %551, %552 : vector<8x128xf32>
    %554 = vector.extract_strided_slice %547 {offsets = [0, 128], sizes = [8, 128], strides = [1, 1]} : vector<8x512xf32> to vector<8x128xf32>
    %555 = arith.negf %554 : vector<8x128xf32>
    %556 = math.exp %555 : vector<8x128xf32>
    %cst_180 = arith.constant 1.000000e+00 : f32
    %557 = vector.broadcast %cst_180 : f32 to vector<8x128xf32>
    %558 = arith.addf %557, %556 : vector<8x128xf32>
    %559 = arith.divf %557, %558 : vector<8x128xf32>
    %560 = vector.extract_strided_slice %547 {offsets = [0, 256], sizes = [8, 128], strides = [1, 1]} : vector<8x512xf32> to vector<8x128xf32>
    %561 = math.tanh %560 : vector<8x128xf32>
    %562 = vector.extract_strided_slice %547 {offsets = [0, 384], sizes = [8, 128], strides = [1, 1]} : vector<8x512xf32> to vector<8x128xf32>
    %563 = arith.negf %562 : vector<8x128xf32>
    %564 = math.exp %563 : vector<8x128xf32>
    %cst_181 = arith.constant 1.000000e+00 : f32
    %565 = vector.broadcast %cst_181 : f32 to vector<8x128xf32>
    %566 = arith.addf %565, %564 : vector<8x128xf32>
    %567 = arith.divf %565, %566 : vector<8x128xf32>
    %568 = arith.mulf %559, %499 : vector<8x128xf32>
    %569 = arith.mulf %553, %561 : vector<8x128xf32>
    %570 = arith.addf %568, %569 : vector<8x128xf32>
    %571 = math.tanh %570 : vector<8x128xf32>
    %572 = arith.mulf %567, %571 : vector<8x128xf32>
    %573 = arith.index_cast %541 : i32 to index
    %c128_182 = arith.constant 128 : index
    %574 = vector.load %arg9[%573, %c128_182] : memref<64x256xf32, #tpu.memory_space<vmem>>, vector<8x128xf32>
    tpu.vector_store %arg9[%573, %c128_182], %572 {strides = array<i32>} : memref<64x256xf32, #tpu.memory_space<vmem>>, vector<8x128xf32>,
    %c8_i32_183 = arith.constant 8 : i32
    %c1_i32_184 = arith.constant 1 : i32
    %575 = arith.cmpi eq, %arg0, %c1_i32_184 : i32
    %576 = arith.extui %575 : i1 to i32
    %c0_i32_185 = arith.constant 0 : i32
    %577 = arith.cmpi ne, %576, %c0_i32_185 : i32
    scf.if %577 {
      %c0_186 = arith.constant 0 : index
      %c0_187 = arith.constant 0 : index
      %578 = vector.load %arg9[%c0_186, %c0_187] : memref<64x256xf32, #tpu.memory_space<vmem>>, vector<64x256xf32>
      %c0_188 = arith.constant 0 : index
      %c0_189 = arith.constant 0 : index
      %579 = vector.load %arg5[%c0_188, %c0_189] : memref<256x128xf32, #tpu.memory_space<vmem>>, vector<256x128xf32>
      %cst_190 = arith.constant dense<0.000000e+00> : vector<64x128xf32>
      %580 = tpu.matmul %578, %579, %cst_190 {dimension_numbers = #tpu.dot_dimension_numbers<[1], [0], [0], [1], [0, 0, 1, 1], [], []>} : vector<64x256xf32>, vector<256x128xf32>, vector<64x128xf32> -> vector<64x128xf32>
      %c0_191 = arith.constant 0 : index
      %c0_192 = arith.constant 0 : index
      %581 = vector.load %arg6[%c0_191, %c0_192] : memref<1x128xf32, #tpu.memory_space<vmem>>, vector<1x128xf32>
      %582 = vector.broadcast %581 : vector<1x128xf32> to vector<64x128xf32>
      %583 = arith.addf %580, %582 : vector<64x128xf32>
      %cst_193 = arith.constant 0.000000e+00 : f32
      %584 = vector.broadcast %cst_193 : f32 to vector<64x128xf32>
      %585 = arith.maximumf %583, %584 : vector<64x128xf32>
      %c0_194 = arith.constant 0 : index
      %c0_195 = arith.constant 0 : index
      %586 = vector.load %arg7[%c0_194, %c0_195] : memref<64x128xf32, #tpu.memory_space<vmem>>, vector<64x128xf32>
      tpu.vector_store %arg7[%c0_194, %c0_195], %585 {strides = array<i32>} : memref<64x128xf32, #tpu.memory_space<vmem>>, vector<64x128xf32>,
    } else {
    }
    return
  }
  func.func @transform_0(%arg0: i32) -> (i32, i32) {
    %c0_i32 = arith.constant 0 : i32
    %c0_i32_0 = arith.constant 0 : i32
    %c0_i32_1 = arith.constant 0 : i32
    return %c0_i32, %c0_i32_0 : i32, i32
  }
  func.func @transform_1(%arg0: i32) -> (i32, i32, i32) {
    %c0_i32 = arith.constant 0 : i32
    %c0_i32_0 = arith.constant 0 : i32
    %c0_i32_1 = arith.constant 0 : i32
    return %arg0, %c0_i32, %c0_i32_0 : i32, i32, i32
  }
  func.func @transform_2(%arg0: i32) -> (i32, i32, i32, i32) {
    %c0_i32 = arith.constant 0 : i32
    %c0_i32_0 = arith.constant 0 : i32
    %c0_i32_1 = arith.constant 0 : i32
    %c0_i32_2 = arith.constant 0 : i32
    return %arg0, %c0_i32, %c0_i32_0, %c0_i32_1 : i32, i32, i32, i32
  }
  func.func @transform_3(%arg0: i32) -> (i32, i32, i32) {
    %c0_i32 = arith.constant 0 : i32
    %c0_i32_0 = arith.constant 0 : i32
    %c0_i32_1 = arith.constant 0 : i32
    return %arg0, %c0_i32, %c0_i32_0 : i32, i32, i32
  }
  func.func @transform_4(%arg0: i32) -> (i32, i32) {
    %c0_i32 = arith.constant 0 : i32
    %c0_i32_0 = arith.constant 0 : i32
    %c0_i32_1 = arith.constant 0 : i32
    return %c0_i32, %c0_i32_0 : i32, i32
  }
  func.func @transform_5(%arg0: i32) -> (i32, i32) {
    %c0_i32 = arith.constant 0 : i32
    %c0_i32_0 = arith.constant 0 : i32
    %c0_i32_1 = arith.constant 0 : i32
    return %c0_i32, %c0_i32_0 : i32, i32
  }
  func.func @transform_6(%arg0: i32) -> (i32, i32) {
    %c0_i32 = arith.constant 0 : i32
    %c0_i32_0 = arith.constant 0 : i32
    %c0_i32_1 = arith.constant 0 : i32
    return %c0_i32, %c0_i32_0 : i32, i32
  }
}

</mosaic_0001>

<llo_original>
// kernel: simple_lstm_forward.1
$region0: #{simple_lstm_forward.1}
  #allocation0 [shape = 'u32[]', space=smem, size = 0x4, offset = 0x4, fixed_abs, tag = 'smem constant byte address 0x4 - core index']
  #allocation1 [shape = 'u32[144,128]{1,0:T(1,128)}', space=vmem, size = 0x12000, scoped, tag = 'internal scratch']
  #allocation2 [shape = 'f32[64,1024]{1,0:T(8,128)}', space=vmem, size = 0x40000, scoped, tag = 'scratch operand']
  #allocation3 [shape = 'f32[64,256]{1,0:T(8,128)}', space=vmem, size = 0x10000, scoped, tag = 'scratch operand']
  %s0 = inlined_call_operand.vmem [shape: f32[64,256], index: 0, kind: input, shape index: {}]
  %s1 = inlined_call_operand.hbm [shape: f32[2,256,1024], index: 1, kind: input, shape index: {}]
  %s2 = inlined_call_operand.hbm [shape: f32[2,2,128,512], index: 2, kind: input, shape index: {}]
  %s3 = inlined_call_operand.hbm [shape: f32[2,1,1024], index: 3, kind: input, shape index: {}]
  %s4 = inlined_call_operand.hbm [shape: f32[256,128], index: 4, kind: input, shape index: {}]
  %s5 = inlined_call_operand.hbm [shape: f32[1,128], index: 5, kind: input, shape index: {}]
  %s6 = inlined_call_operand.vmem [shape: f32[64,128], index: 6, kind: output, shape index: {}]
  %s7 = sld [smem:[#allocation0]]
  $region89: #{simple_lstm_forward.1} parent=0
    _
  %s9 = ssub.s32 1, %s7
  %s10 = scalar_select 0, %s9, %s7
  $region1: #{simple_lstm_forward.1} parent=0
    #allocation4 [shape = 'u8[2097152]{0}', space=vmem, size = 0x200000, scoped, tag = 'input window, operand 1']
    #allocation5 [shape = 's32[2]{0}', space=sflag, size = 0x8, scoped, tag = 'scoped memory for simple_lstm_forward.1']
    #allocation6 [shape = 'u8[1048576]{0}', space=vmem, size = 0x100000, scoped, tag = 'input window, operand 2']
    #allocation7 [shape = 's32[2]{0}', space=sflag, size = 0x8, scoped, tag = 'scoped memory for simple_lstm_forward.1']
    #allocation8 [shape = 'u8[8192]{0}', space=vmem, size = 0x2000, scoped, tag = 'input window, operand 3']
    #allocation9 [shape = 'u8[131072]{0}', space=vmem, size = 0x20000, scoped, tag = 'input window, operand 4, single buffered']
    #allocation10 [shape = 's32[1]{0}', space=sflag, size = 0x4, scoped, tag = 'scoped memory for simple_lstm_forward.1']
    #allocation11 [shape = 'u8[512]{0}', space=vmem, size = 0x400, scoped, tag = 'input window, operand 5, single buffered']
    %11 = vsyncpa [#allocation5], 0
    %s12 = scalar_lea.sflag [#allocation5], 1
    %13 = vsyncpa %s12, 0
    %14 = vsyncpa [#allocation7], 0
    %s15 = scalar_lea.sflag [#allocation7], 1
    %16 = vsyncpa %s15, 0
    %17 = vsyncpa [#allocation10], 0
    loop: start=0, step=1, limit=4
    $region2: #{simple_lstm_forward.1} parent=1 // loop_pre_header
      _
    $region3: #{simple_lstm_forward.1} parent=1 // loop_header
      %s19 = sphi 0, %s23
      %p20 = scmp.ge.s32.totalorder %s19, 4
      %s27 = sphi 0, %s27
      %s29 = sphi 0, %s27
      %s30 = sphi 0, %s29
      %s44 = sphi 0, %s30
      %s50 = sphi 0, %s52
      %s53 = sphi 0, %s50
      %s54 = sphi 0, %s53
      %s70 = sphi 0, %s54
      %s76 = sphi 0, %s78
      %s79 = sphi 0, %s76
      %s80 = sphi 0, %s79
      %s96 = sphi 0, %s80
      %s102 = sphi 0, %s104
      %s105 = sphi 0, %s102
      %s106 = sphi 0, %s105
      %s122 = sphi 0, %s106
      %s126 = sphi 0, %s126
      %s128 = sphi 0, %s126
      %s129 = sphi 0, %s128
      %s143 = sphi 0, %s129
      %s147 = sphi 0, %s147
      %s149 = sphi 0, %s147
      %s150 = sphi 0, %s149
      %s164 = sphi 0, %s150
      %s168 = sphi 0, %s168
      %s170 = sphi 0, %s168
      %s171 = sphi 0, %s170
      %s185 = sphi 0, %s171
    $region4: #{simple_lstm_forward.1} parent=1 // loop_header_branch
      %22 = sbr.rel (%p20) target = $region8
    $region5: #{simple_lstm_forward.1} parent=1 // loop_body
      %s24 = ssub.s32 %s19, 1
      %s25 = ssub.s32 %s19, 2
      %s26 = sadd.s32 %s19, 1
      %s28 = sadd.s32 %s27, 1
      %p31 = scmp.eq.s32.totalorder %s19, 1
      %p32 = scmp.ne.s32.totalorder %s27, %s29
      %p33 = scmp.eq.s32.totalorder %s19, 0
      %p34 = por %p32, %p33
      %p35 = scmp.ne.s32.totalorder %s27, %s29
      %p36 = scmp.eq.s32.totalorder %s24, 1
      %p37 = por %p35, %p36
      %p38 = scmp.ne.s32.totalorder %s29, %s30
      %p39 = scmp.eq.s32.totalorder %s24, 0
      %p40 = por %p38, %p39
      %p41 = scmp.ne.s32.totalorder %s29, %s30
      %p42 = scmp.eq.s32.totalorder %s25, 1
      %p43 = por %p41, %p42
      %p45 = scmp.ne.s32.totalorder %s30, %s44
      %p46 = scmp.eq.s32.totalorder %s25, 0
      %p47 = por %p45, %p46
      %s48 = ssub.s32 %s19, %s26
      %p49 = scmp.eq.s32.totalorder %s48, 0
      %s51 = sadd.s32 %s50, 1
      %s52 = scalar_select %p49, %s50, %s51
      %p55 = pneg %p49
      %p56 = scmp.eq.s32.totalorder %s19, 1
      %p57 = por %p55, %p56
      %p58 = scmp.ne.s32.totalorder %s50, %s53
      %p59 = scmp.eq.s32.totalorder %s19, 0
      %p60 = por %p58, %p59
      %p61 = scmp.ne.s32.totalorder %s50, %s53
      %p62 = scmp.eq.s32.totalorder %s24, 1
      %p63 = por %p61, %p62
      %p64 = scmp.ne.s32.totalorder %s53, %s54
      %p65 = scmp.eq.s32.totalorder %s24, 0
      %p66 = por %p64, %p65
      %p67 = scmp.ne.s32.totalorder %s53, %s54
      %p68 = scmp.eq.s32.totalorder %s25, 1
      %p69 = por %p67, %p68
      %p71 = scmp.ne.s32.totalorder %s54, %s70
      %p72 = scmp.eq.s32.totalorder %s25, 0
      %p73 = por %p71, %p72
      %s74 = ssub.s32 %s19, %s26
      %p75 = scmp.eq.s32.totalorder %s74, 0
      %s77 = sadd.s32 %s76, 1
      %s78 = scalar_select %p75, %s76, %s77
      %p81 = pneg %p75
      %p82 = scmp.eq.s32.totalorder %s19, 1
      %p83 = por %p81, %p82
      %p84 = scmp.ne.s32.totalorder %s76, %s79
      %p85 = scmp.eq.s32.totalorder %s19, 0
      %p86 = por %p84, %p85
      %p87 = scmp.ne.s32.totalorder %s76, %s79
      %p88 = scmp.eq.s32.totalorder %s24, 1
      %p89 = por %p87, %p88
      %p90 = scmp.ne.s32.totalorder %s79, %s80
      %p91 = scmp.eq.s32.totalorder %s24, 0
      %p92 = por %p90, %p91
      %p93 = scmp.ne.s32.totalorder %s79, %s80
      %p94 = scmp.eq.s32.totalorder %s25, 1
      %p95 = por %p93, %p94
      %p97 = scmp.ne.s32.totalorder %s80, %s96
      %p98 = scmp.eq.s32.totalorder %s25, 0
      %p99 = por %p97, %p98
      %s100 = ssub.s32 %s19, %s26
      %p101 = scmp.eq.s32.totalorder %s100, 0
      %s103 = sadd.s32 %s102, 1
      %s104 = scalar_select %p101, %s102, %s103
      %p107 = pneg %p101
      %p108 = scmp.eq.s32.totalorder %s19, 1
      %p109 = por %p107, %p108
      %p110 = scmp.ne.s32.totalorder %s102, %s105
      %p111 = scmp.eq.s32.totalorder %s19, 0
      %p112 = por %p110, %p111
      %p113 = scmp.ne.s32.totalorder %s102, %s105
      %p114 = scmp.eq.s32.totalorder %s24, 1
      %p115 = por %p113, %p114
      %p116 = scmp.ne.s32.totalorder %s105, %s106
      %p117 = scmp.eq.s32.totalorder %s24, 0
      %p118 = por %p116, %p117
      %p119 = scmp.ne.s32.totalorder %s105, %s106
      %p120 = scmp.eq.s32.totalorder %s25, 1
      %p121 = por %p119, %p120
      %p123 = scmp.ne.s32.totalorder %s106, %s122
      %p124 = scmp.eq.s32.totalorder %s25, 0
      %p125 = por %p123, %p124
      %s127 = sadd.s32 %s126, 1
      %p130 = scmp.eq.s32.totalorder %s19, 1
      %p131 = scmp.ne.s32.totalorder %s126, %s128
      %p132 = scmp.eq.s32.totalorder %s19, 0
      %p133 = por %p131, %p132
      %p134 = scmp.ne.s32.totalorder %s126, %s128
      %p135 = scmp.eq.s32.totalorder %s24, 1
      %p136 = por %p134, %p135
      %p137 = scmp.ne.s32.totalorder %s128, %s129
      %p138 = scmp.eq.s32.totalorder %s24, 0
      %p139 = por %p137, %p138
      %p140 = scmp.ne.s32.totalorder %s128, %s129
      %p141 = scmp.eq.s32.totalorder %s25, 1
      %p142 = por %p140, %p141
      %p144 = scmp.ne.s32.totalorder %s129, %s143
      %p145 = scmp.eq.s32.totalorder %s25, 0
      %p146 = por %p144, %p145
      %s148 = sadd.s32 %s147, 1
      %p151 = scmp.eq.s32.totalorder %s19, 1
      %p152 = scmp.ne.s32.totalorder %s147, %s149
      %p153 = scmp.eq.s32.totalorder %s19, 0
      %p154 = por %p152, %p153
      %p155 = scmp.ne.s32.totalorder %s147, %s149
      %p156 = scmp.eq.s32.totalorder %s24, 1
      %p157 = por %p155, %p156
      %p158 = scmp.ne.s32.totalorder %s149, %s150
      %p159 = scmp.eq.s32.totalorder %s24, 0
      %p160 = por %p158, %p159
      %p161 = scmp.ne.s32.totalorder %s149, %s150
      %p162 = scmp.eq.s32.totalorder %s25, 1
      %p163 = por %p161, %p162
      %p165 = scmp.ne.s32.totalorder %s150, %s164
      %p166 = scmp.eq.s32.totalorder %s25, 0
      %p167 = por %p165, %p166
      %s169 = sadd.s32 %s168, 1
      %p172 = scmp.eq.s32.totalorder %s19, 1
      %p173 = scmp.ne.s32.totalorder %s168, %s170
      %p174 = scmp.eq.s32.totalorder %s19, 0
      %p175 = por %p173, %p174
      %p176 = scmp.ne.s32.totalorder %s168, %s170
      %p177 = scmp.eq.s32.totalorder %s24, 1
      %p178 = por %p176, %p177
      %p179 = scmp.ne.s32.totalorder %s170, %s171
      %p180 = scmp.eq.s32.totalorder %s24, 0
      %p181 = por %p179, %p180
      %p182 = scmp.ne.s32.totalorder %s170, %s171
      %p183 = scmp.eq.s32.totalorder %s25, 1
      %p184 = por %p182, %p183
      %p186 = scmp.ne.s32.totalorder %s171, %s185
      %p187 = scmp.eq.s32.totalorder %s25, 0
      %p188 = por %p186, %p187
      %p189 = scmp.le.s32.totalorder 1, %s19
      %p190 = scmp.lt.s32.totalorder %s19, 3
      %p191 = pnand %p189, %p190
      %p192 = pneg %p191
      // Predicated region
      $region9: #{simple_lstm_forward.1} parent=5 // pred_check
        _
      $region10: #{simple_lstm_forward.1} parent=5 // pred_check_branch
        %194 = sbr.rel (%p191) target = $region12
      $region11: #{simple_lstm_forward.1} parent=5 // pred_region
        %s195 = ssub.s32 %s19, 1
        // Predicated region
        $region13: #{simple_lstm_forward.1} parent=11 // pred_check
          %p196 = pneg %p40
        $region14: #{simple_lstm_forward.1} parent=11 // pred_check_branch
          %198 = sbr.rel (%p196) target = $region16
        $region15: #{simple_lstm_forward.1} parent=11 // pred_region
          _
        $region16: #{simple_lstm_forward.1} parent=11 // pred_fallthru
          _
        // Predicated region
        $region17: #{simple_lstm_forward.1} parent=11 // pred_check
          %p199 = pneg %p139
        $region18: #{simple_lstm_forward.1} parent=11 // pred_check_branch
          %201 = sbr.rel (%p199) target = $region20
        $region19: #{simple_lstm_forward.1} parent=11 // pred_region
          %s203 = ssub.s32 4096, 4096
          %204 = vsyncadd [#allocation10], %s203
          %s205 = sshll.u32 [#allocation9], 4
          %s206 = int_to_ptr.vmem [resolvable:$true] %s205
          %211 = dma.hbm_to_vmem [thread:$0]  %s4, 4096, %s206, [#allocation10], 128, 128, 8
        $region20: #{simple_lstm_forward.1} parent=11 // pred_fallthru
          _
        // Predicated region
        $region21: #{simple_lstm_forward.1} parent=11 // pred_check
          %p212 = pneg %p160
        $region22: #{simple_lstm_forward.1} parent=11 // pred_check_branch
          %214 = sbr.rel (%p212) target = $region24
        $region23: #{simple_lstm_forward.1} parent=11 // pred_region
          %s216 = ssub.s32 16, 16
          %217 = vsyncadd [#allocation10], %s216
          %s219 = sshll.u32 [#allocation11], 4
          %s220 = int_to_ptr.vmem [resolvable:$true] %s219
          %222 = dma.hbm_to_vmem [thread:$0]  %s5, 16, %s220, [#allocation10]
        $region24: #{simple_lstm_forward.1} parent=11 // pred_fallthru
          _
      $region12: #{simple_lstm_forward.1} parent=5 // pred_fallthru
        _
      %p223 = scmp.lt.s32.totalorder %s19, 2
      // Predicated region
      $region25: #{simple_lstm_forward.1} parent=5 // pred_check
        %p224 = pneg %p223
      $region26: #{simple_lstm_forward.1} parent=5 // pred_check_branch
        %226 = sbr.rel (%p224) target = $region28
      $region27: #{simple_lstm_forward.1} parent=5 // pred_region
        // Predicated region
        $region29: #{simple_lstm_forward.1} parent=27 // pred_check
          %p227 = pneg %p60
        $region30: #{simple_lstm_forward.1} parent=27 // pred_check_branch
          %229 = sbr.rel (%p227) target = $region32
        $region31: #{simple_lstm_forward.1} parent=27 // pred_region
          %s230 = sand.u32 %s50, 1
          %s231 = scalar_lea.sflag [#allocation5], %s230
          %s232 = sand.u32 %s50, 1
          %s233 = smul.addr %s232, 2048
          %s234 = scalar_lea.vmem [#allocation4], %s233
          %s236 = ssub.s32 32768, 32768
          %237 = vsyncadd %s231, %s236
          %s238 = smul.addr %s19, 256
          %s239 = smul.addr %s238, 128
          %s240 = scalar_lea.hbm %s1, %s239
          %s241 = sshll.u32 %s234, 4
          %s242 = int_to_ptr.vmem [resolvable:$true] %s241
          %247 = dma.hbm_to_vmem [thread:$0]  %s240, 32768, %s242, %s231, 1024, 1024, 64
        $region32: #{simple_lstm_forward.1} parent=27 // pred_fallthru
          _
        // Predicated region
        $region33: #{simple_lstm_forward.1} parent=27 // pred_check
          %p248 = pneg %p86
        $region34: #{simple_lstm_forward.1} parent=27 // pred_check_branch
          %250 = sbr.rel (%p248) target = $region36
        $region35: #{simple_lstm_forward.1} parent=27 // pred_region
          %s251 = sand.u32 %s19, 1
          %s252 = scalar_lea.sflag [#allocation7], %s251
          %s253 = sand.u32 %s76, 1
          %s254 = smul.addr %s253, 1024
          %s255 = scalar_lea.vmem [#allocation6], %s254
          %s257 = ssub.s32 16384, 16384
          %258 = vsyncadd %s252, %s257
          %s259 = smul.addr %s19, 128
          %s260 = smul.addr %s259, 128
          %s261 = scalar_lea.hbm %s2, %s260
          %s262 = sshll.u32 %s255, 4
          %s263 = int_to_ptr.vmem [resolvable:$true] %s262
          %268 = dma.hbm_to_vmem [thread:$0]  %s261, 16384, %s263, %s252, 512, 512, 32
        $region36: #{simple_lstm_forward.1} parent=27 // pred_fallthru
          _
        // Predicated region
        $region37: #{simple_lstm_forward.1} parent=27 // pred_check
          %p269 = pneg %p112
        $region38: #{simple_lstm_forward.1} parent=27 // pred_check_branch
          %271 = sbr.rel (%p269) target = $region40
        $region39: #{simple_lstm_forward.1} parent=27 // pred_region
          %s272 = sand.u32 %s19, 1
          %s273 = scalar_lea.sflag [#allocation7], %s272
          %s274 = sand.u32 %s102, 1
          %s275 = smul.addr %s274, 8
          %s276 = scalar_lea.vmem [#allocation8], %s275
          %s278 = ssub.s32 128, 128
          %279 = vsyncadd %s273, %s278
          %s280 = smul.addr %s19, 8
          %s281 = smul.addr %s280, 16
          %s282 = scalar_lea.hbm %s3, %s281
          %s284 = sshll.u32 %s276, 4
          %s285 = int_to_ptr.vmem [resolvable:$true] %s284
          %287 = dma.hbm_to_vmem [thread:$0]  %s282, 128, %s285, %s273
        $region40: #{simple_lstm_forward.1} parent=27 // pred_fallthru
          _
      $region28: #{simple_lstm_forward.1} parent=5 // pred_fallthru
        _
      %p288 = scmp.le.s32.totalorder 1, %s19
      %p289 = scmp.lt.s32.totalorder %s19, 3
      %p290 = pnand %p288, %p289
      %p291 = pneg %p290
      // Predicated region
      $region41: #{simple_lstm_forward.1} parent=5 // pred_check
        _
      $region42: #{simple_lstm_forward.1} parent=5 // pred_check_branch
        %293 = sbr.rel (%p290) target = $region44
      $region43: #{simple_lstm_forward.1} parent=5 // pred_region
        %s294 = ssub.s32 %s19, 1
        %s295 = sand.u32 %s53, 1
        %s296 = scalar_lea.sflag [#allocation5], %s295
        %s297 = sand.u32 %s53, 1
        %s298 = smul.addr %s297, 2048
        %s299 = scalar_lea.vmem [#allocation4], %s298
        // Predicated region
        $region45: #{simple_lstm_forward.1} parent=43 // pred_check
          %p300 = pneg %p66
        $region46: #{simple_lstm_forward.1} parent=43 // pred_check_branch
          %302 = sbr.rel (%p300) target = $region48
        $region47: #{simple_lstm_forward.1} parent=43 // pred_region
          %303 = dma.done %s296, 32768
        $region48: #{simple_lstm_forward.1} parent=43 // pred_fallthru
          _
        %s304 = sand.u32 %s24, 1
        %s305 = scalar_lea.sflag [#allocation7], %s304
        %s306 = sand.u32 %s79, 1
        %s307 = smul.addr %s306, 1024
        %s308 = scalar_lea.vmem [#allocation6], %s307
        // Predicated region
        $region49: #{simple_lstm_forward.1} parent=43 // pred_check
          %p309 = pneg %p92
        $region50: #{simple_lstm_forward.1} parent=43 // pred_check_branch
          %311 = sbr.rel (%p309) target = $region52
        $region51: #{simple_lstm_forward.1} parent=43 // pred_region
          %312 = dma.done %s305, 16384
        $region52: #{simple_lstm_forward.1} parent=43 // pred_fallthru
          _
        %s313 = sand.u32 %s24, 1
        %s314 = scalar_lea.sflag [#allocation7], %s313
        %s315 = sand.u32 %s105, 1
        %s316 = smul.addr %s315, 8
        %s317 = scalar_lea.vmem [#allocation8], %s316
        // Predicated region
        $region53: #{simple_lstm_forward.1} parent=43 // pred_check
          %p318 = pneg %p118
        $region54: #{simple_lstm_forward.1} parent=43 // pred_check_branch
          %320 = sbr.rel (%p318) target = $region56
        $region55: #{simple_lstm_forward.1} parent=43 // pred_region
          %321 = dma.done %s314, 128
        $region56: #{simple_lstm_forward.1} parent=43 // pred_fallthru
          _
        // Predicated region
        $region57: #{simple_lstm_forward.1} parent=43 // pred_check
          %p322 = pneg %p139
        $region58: #{simple_lstm_forward.1} parent=43 // pred_check_branch
          %324 = sbr.rel (%p322) target = $region60
        $region59: #{simple_lstm_forward.1} parent=43 // pred_region
          %325 = dma.done [#allocation10], 4096
        $region60: #{simple_lstm_forward.1} parent=43 // pred_fallthru
          _
        // Predicated region
        $region61: #{simple_lstm_forward.1} parent=43 // pred_check
          %p326 = pneg %p160
        $region62: #{simple_lstm_forward.1} parent=43 // pred_check_branch
          %328 = sbr.rel (%p326) target = $region64
        $region63: #{simple_lstm_forward.1} parent=43 // pred_region
          %329 = dma.done [#allocation10], 16
        $region64: #{simple_lstm_forward.1} parent=43 // pred_fallthru
          _
        %p330 = pneg %p40
        %p331 = pneg %p37
        %s332 = sand.u32 %s53, 1
        %s333 = scalar_lea.sflag [#allocation5], %s332
        %s334 = sand.u32 %s53, 1
        %s335 = smul.addr %s334, 2048
        %s336 = scalar_lea.vmem [#allocation4], %s335
        %p337 = pneg %p66
        %p338 = pneg %p63
        %s339 = sand.u32 %s24, 1
        %s340 = scalar_lea.sflag [#allocation7], %s339
        %s341 = sand.u32 %s79, 1
        %s342 = smul.addr %s341, 1024
        %s343 = scalar_lea.vmem [#allocation6], %s342
        %p344 = pneg %p92
        %p345 = pneg %p89
        %s346 = sand.u32 %s24, 1
        %s347 = scalar_lea.sflag [#allocation7], %s346
        %s348 = sand.u32 %s105, 1
        %s349 = smul.addr %s348, 8
        %s350 = scalar_lea.vmem [#allocation8], %s349
        %p351 = pneg %p118
        %p352 = pneg %p115
        %p353 = pneg %p139
        %p354 = pneg %p136
        %p355 = pneg %p160
        %p356 = pneg %p157
        %p357 = pneg %p181
        %p358 = pneg %p178
        %p359 = scmp.eq.s32.totalorder %s24, 0
        // Predicated region
        $region65: #{simple_lstm_forward.1} parent=43 // pred_check
          %p360 = pneg %p359
        $region66: #{simple_lstm_forward.1} parent=43 // pred_check_branch
          %362 = sbr.rel (%p360) target = $region68
        $region67: #{simple_lstm_forward.1} parent=43 // pred_region
          %363 = vst [vmem:[#allocation3] sm:$0xff] 0.0
          %364 = vst [vmem:[#allocation3 + $0x8] sm:$0xff] 0.0
          %365 = vst [vmem:[#allocation3 + $0x10] sm:$0xff] 0.0
          %366 = vst [vmem:[#allocation3 + $0x18] sm:$0xff] 0.0
          %367 = vst [vmem:[#allocation3 + $0x20] sm:$0xff] 0.0
          %368 = vst [vmem:[#allocation3 + $0x28] sm:$0xff] 0.0
          %369 = vst [vmem:[#allocation3 + $0x30] sm:$0xff] 0.0
          %370 = vst [vmem:[#allocation3 + $0x38] sm:$0xff] 0.0
          %371 = vst [vmem:[#allocation3 + $0x40] sm:$0xff] 0.0
          %372 = vst [vmem:[#allocation3 + $0x48] sm:$0xff] 0.0
          %373 = vst [vmem:[#allocation3 + $0x50] sm:$0xff] 0.0
          %374 = vst [vmem:[#allocation3 + $0x58] sm:$0xff] 0.0
          %375 = vst [vmem:[#allocation3 + $0x60] sm:$0xff] 0.0
          %376 = vst [vmem:[#allocation3 + $0x68] sm:$0xff] 0.0
          %377 = vst [vmem:[#allocation3 + $0x70] sm:$0xff] 0.0
          %378 = vst [vmem:[#allocation3 + $0x78] sm:$0xff] 0.0
          %v379 = vld [vmem:[%s0] sm:$0xff]
          %v380 = vld [vmem:[%s0 + $0x8] sm:$0xff]
          %v381 = vld [vmem:[%s0 + $0x10] sm:$0xff]
          %v382 = vld [vmem:[%s0 + $0x18] sm:$0xff]
          %v383 = vld [vmem:[%s0 + $0x20] sm:$0xff]
          %v384 = vld [vmem:[%s0 + $0x28] sm:$0xff]
          %v385 = vld [vmem:[%s0 + $0x30] sm:$0xff]
          %v386 = vld [vmem:[%s0 + $0x38] sm:$0xff]
          %v387 = vld [vmem:[%s0 + $0x40] sm:$0xff]
          %v388 = vld [vmem:[%s0 + $0x48] sm:$0xff]
          %v389 = vld [vmem:[%s0 + $0x50] sm:$0xff]
          %v390 = vld [vmem:[%s0 + $0x58] sm:$0xff]
          %v391 = vld [vmem:[%s0 + $0x60] sm:$0xff]
          %v392 = vld [vmem:[%s0 + $0x68] sm:$0xff]
          %v393 = vld [vmem:[%s0 + $0x70] sm:$0xff]
          %v394 = vld [vmem:[%s0 + $0x78] sm:$0xff]
          %v395 = vld [vmem:[%s299] sm:$0xff]
          %v396 = vld [vmem:[%s299 + $0x8] sm:$0xff]
          %v397 = vld [vmem:[%s299 + $0x10] sm:$0xff]
          %v398 = vld [vmem:[%s299 + $0x18] sm:$0xff]
          %v399 = vld [vmem:[%s299 + $0x20] sm:$0xff]
          %v400 = vld [vmem:[%s299 + $0x28] sm:$0xff]
          %v401 = vld [vmem:[%s299 + $0x30] sm:$0xff]
          %v402 = vld [vmem:[%s299 + $0x38] sm:$0xff]
          %v403 = vld [vmem:[%s299 + $0x40] sm:$0xff]
          %v404 = vld [vmem:[%s299 + $0x48] sm:$0xff]
          %v405 = vld [vmem:[%s299 + $0x50] sm:$0xff]
          %v406 = vld [vmem:[%s299 + $0x58] sm:$0xff]
          %v407 = vld [vmem:[%s299 + $0x60] sm:$0xff]
          %v408 = vld [vmem:[%s299 + $0x68] sm:$0xff]
          %v409 = vld [vmem:[%s299 + $0x70] sm:$0xff]
          %v410 = vld [vmem:[%s299 + $0x78] sm:$0xff]
          %v411 = vld [vmem:[%s299 + $0x80] sm:$0xff]
          %v412 = vld [vmem:[%s299 + $0x88] sm:$0xff]
          %v413 = vld [vmem:[%s299 + $0x90] sm:$0xff]
          %v414 = vld [vmem:[%s299 + $0x98] sm:$0xff]
          %v415 = vld [vmem:[%s299 + $0xa0] sm:$0xff]
          %v416 = vld [vmem:[%s299 + $0xa8] sm:$0xff]
          %v417 = vld [vmem:[%s299 + $0xb0] sm:$0xff]
          %v418 = vld [vmem:[%s299 + $0xb8] sm:$0xff]
          %v419 = vld [vmem:[%s299 + $0xc0] sm:$0xff]
          %v420 = vld [vmem:[%s299 + $0xc8] sm:$0xff]
          %v421 = vld [vmem:[%s299 + $0xd0] sm:$0xff]
          %v422 = vld [vmem:[%s299 + $0xd8] sm:$0xff]
          %v423 = vld [vmem:[%s299 + $0xe0] sm:$0xff]
          %v424 = vld [vmem:[%s299 + $0xe8] sm:$0xff]
          %v425 = vld [vmem:[%s299 + $0xf0] sm:$0xff]
          %v426 = vld [vmem:[%s299 + $0xf8] sm:$0xff]
          %v427 = vld [vmem:[%s299 + $0x100] sm:$0xff]
          %v428 = vld [vmem:[%s299 + $0x108] sm:$0xff]
          %v429 = vld [vmem:[%s299 + $0x110] sm:$0xff]
          %v430 = vld [vmem:[%s299 + $0x118] sm:$0xff]
          %v431 = vld [vmem:[%s299 + $0x120] sm:$0xff]
          %v432 = vld [vmem:[%s299 + $0x128] sm:$0xff]
          %v433 = vld [vmem:[%s299 + $0x130] sm:$0xff]
          %v434 = vld [vmem:[%s299 + $0x138] sm:$0xff]
          %v435 = vld [vmem:[%s299 + $0x140] sm:$0xff]
          %v436 = vld [vmem:[%s299 + $0x148] sm:$0xff]
          %v437 = vld [vmem:[%s299 + $0x150] sm:$0xff]
          %v438 = vld [vmem:[%s299 + $0x158] sm:$0xff]
          %v439 = vld [vmem:[%s299 + $0x160] sm:$0xff]
          %v440 = vld [vmem:[%s299 + $0x168] sm:$0xff]
          %v441 = vld [vmem:[%s299 + $0x170] sm:$0xff]
          %v442 = vld [vmem:[%s299 + $0x178] sm:$0xff]
          %v443 = vld [vmem:[%s299 + $0x180] sm:$0xff]
          %v444 = vld [vmem:[%s299 + $0x188] sm:$0xff]
          %v445 = vld [vmem:[%s299 + $0x190] sm:$0xff]
          %v446 = vld [vmem:[%s299 + $0x198] sm:$0xff]
          %v447 = vld [vmem:[%s299 + $0x1a0] sm:$0xff]
          %v448 = vld [vmem:[%s299 + $0x1a8] sm:$0xff]
          %v449 = vld [vmem:[%s299 + $0x1b0] sm:$0xff]
          %v450 = vld [vmem:[%s299 + $0x1b8] sm:$0xff]
          %v451 = vld [vmem:[%s299 + $0x1c0] sm:$0xff]
          %v452 = vld [vmem:[%s299 + $0x1c8] sm:$0xff]
          %v453 = vld [vmem:[%s299 + $0x1d0] sm:$0xff]
          %v454 = vld [vmem:[%s299 + $0x1d8] sm:$0xff]
          %v455 = vld [vmem:[%s299 + $0x1e0] sm:$0xff]
          %v456 = vld [vmem:[%s299 + $0x1e8] sm:$0xff]
          %v457 = vld [vmem:[%s299 + $0x1f0] sm:$0xff]
          %v458 = vld [vmem:[%s299 + $0x1f8] sm:$0xff]
          %v459 = vld [vmem:[%s299 + $0x200] sm:$0xff]
          %v460 = vld [vmem:[%s299 + $0x208] sm:$0xff]
          %v461 = vld [vmem:[%s299 + $0x210] sm:$0xff]
          %v462 = vld [vmem:[%s299 + $0x218] sm:$0xff]
          %v463 = vld [vmem:[%s299 + $0x220] sm:$0xff]
          %v464 = vld [vmem:[%s299 + $0x228] sm:$0xff]
          %v465 = vld [vmem:[%s299 + $0x230] sm:$0xff]
          %v466 = vld [vmem:[%s299 + $0x238] sm:$0xff]
          %v467 = vld [vmem:[%s299 + $0x240] sm:$0xff]
          %v468 = vld [vmem:[%s299 + $0x248] sm:$0xff]
          %v469 = vld [vmem:[%s299 + $0x250] sm:$0xff]
          %v470 = vld [vmem:[%s299 + $0x258] sm:$0xff]
          %v471 = vld [vmem:[%s299 + $0x260] sm:$0xff]
          %v472 = vld [vmem:[%s299 + $0x268] sm:$0xff]
          %v473 = vld [vmem:[%s299 + $0x270] sm:$0xff]
          %v474 = vld [vmem:[%s299 + $0x278] sm:$0xff]
          %v475 = vld [vmem:[%s299 + $0x280] sm:$0xff]
          %v476 = vld [vmem:[%s299 + $0x288] sm:$0xff]
          %v477 = vld [vmem:[%s299 + $0x290] sm:$0xff]
          %v478 = vld [vmem:[%s299 + $0x298] sm:$0xff]
          %v479 = vld [vmem:[%s299 + $0x2a0] sm:$0xff]
          %v480 = vld [vmem:[%s299 + $0x2a8] sm:$0xff]
          %v481 = vld [vmem:[%s299 + $0x2b0] sm:$0xff]
          %v482 = vld [vmem:[%s299 + $0x2b8] sm:$0xff]
          %v483 = vld [vmem:[%s299 + $0x2c0] sm:$0xff]
          %v484 = vld [vmem:[%s299 + $0x2c8] sm:$0xff]
          %v485 = vld [vmem:[%s299 + $0x2d0] sm:$0xff]
          %v486 = vld [vmem:[%s299 + $0x2d8] sm:$0xff]
          %v487 = vld [vmem:[%s299 + $0x2e0] sm:$0xff]
          %v488 = vld [vmem:[%s299 + $0x2e8] sm:$0xff]
          %v489 = vld [vmem:[%s299 + $0x2f0] sm:$0xff]
          %v490 = vld [vmem:[%s299 + $0x2f8] sm:$0xff]
          %v491 = vld [vmem:[%s299 + $0x300] sm:$0xff]
          %v492 = vld [vmem:[%s299 + $0x308] sm:$0xff]
          %v493 = vld [vmem:[%s299 + $0x310] sm:$0xff]
          %v494 = vld [vmem:[%s299 + $0x318] sm:$0xff]
          %v495 = vld [vmem:[%s299 + $0x320] sm:$0xff]
          %v496 = vld [vmem:[%s299 + $0x328] sm:$0xff]
          %v497 = vld [vmem:[%s299 + $0x330] sm:$0xff]
          %v498 = vld [vmem:[%s299 + $0x338] sm:$0xff]
          %v499 = vld [vmem:[%s299 + $0x340] sm:$0xff]
          %v500 = vld [vmem:[%s299 + $0x348] sm:$0xff]
          %v501 = vld [vmem:[%s299 + $0x350] sm:$0xff]
          %v502 = vld [vmem:[%s299 + $0x358] sm:$0xff]
          %v503 = vld [vmem:[%s299 + $0x360] sm:$0xff]
          %v504 = vld [vmem:[%s299 + $0x368] sm:$0xff]
          %v505 = vld [vmem:[%s299 + $0x370] sm:$0xff]
          %v506 = vld [vmem:[%s299 + $0x378] sm:$0xff]
          %v507 = vld [vmem:[%s299 + $0x380] sm:$0xff]
          %v508 = vld [vmem:[%s299 + $0x388] sm:$0xff]
          %v509 = vld [vmem:[%s299 + $0x390] sm:$0xff]
          %v510 = vld [vmem:[%s299 + $0x398] sm:$0xff]
          %v511 = vld [vmem:[%s299 + $0x3a0] sm:$0xff]
          %v512 = vld [vmem:[%s299 + $0x3a8] sm:$0xff]
          %v513 = vld [vmem:[%s299 + $0x3b0] sm:$0xff]
          %v514 = vld [vmem:[%s299 + $0x3b8] sm:$0xff]
          %v515 = vld [vmem:[%s299 + $0x3c0] sm:$0xff]
          %v516 = vld [vmem:[%s299 + $0x3c8] sm:$0xff]
          %v517 = vld [vmem:[%s299 + $0x3d0] sm:$0xff]
          %v518 = vld [vmem:[%s299 + $0x3d8] sm:$0xff]
          %v519 = vld [vmem:[%s299 + $0x3e0] sm:$0xff]
          %v520 = vld [vmem:[%s299 + $0x3e8] sm:$0xff]
          %v521 = vld [vmem:[%s299 + $0x3f0] sm:$0xff]
          %v522 = vld [vmem:[%s299 + $0x3f8] sm:$0xff]
          %v523 = vld [vmem:[%s299 + $0x400] sm:$0xff]
          %v524 = vld [vmem:[%s299 + $0x408] sm:$0xff]
          %v525 = vld [vmem:[%s299 + $0x410] sm:$0xff]
          %v526 = vld [vmem:[%s299 + $0x418] sm:$0xff]
          %v527 = vld [vmem:[%s299 + $0x420] sm:$0xff]
          %v528 = vld [vmem:[%s299 + $0x428] sm:$0xff]
          %v529 = vld [vmem:[%s299 + $0x430] sm:$0xff]
          %v530 = vld [vmem:[%s299 + $0x438] sm:$0xff]
          %v531 = vld [vmem:[%s299 + $0x440] sm:$0xff]
          %v532 = vld [vmem:[%s299 + $0x448] sm:$0xff]
          %v533 = vld [vmem:[%s299 + $0x450] sm:$0xff]
          %v534 = vld [vmem:[%s299 + $0x458] sm:$0xff]
          %v535 = vld [vmem:[%s299 + $0x460] sm:$0xff]
          %v536 = vld [vmem:[%s299 + $0x468] sm:$0xff]
          %v537 = vld [vmem:[%s299 + $0x470] sm:$0xff]
          %v538 = vld [vmem:[%s299 + $0x478] sm:$0xff]
          %v539 = vld [vmem:[%s299 + $0x480] sm:$0xff]
          %v540 = vld [vmem:[%s299 + $0x488] sm:$0xff]
          %v541 = vld [vmem:[%s299 + $0x490] sm:$0xff]
          %v542 = vld [vmem:[%s299 + $0x498] sm:$0xff]
          %v543 = vld [vmem:[%s299 + $0x4a0] sm:$0xff]
          %v544 = vld [vmem:[%s299 + $0x4a8] sm:$0xff]
          %v545 = vld [vmem:[%s299 + $0x4b0] sm:$0xff]
          %v546 = vld [vmem:[%s299 + $0x4b8] sm:$0xff]
          %v547 = vld [vmem:[%s299 + $0x4c0] sm:$0xff]
          %v548 = vld [vmem:[%s299 + $0x4c8] sm:$0xff]
          %v549 = vld [vmem:[%s299 + $0x4d0] sm:$0xff]
          %v550 = vld [vmem:[%s299 + $0x4d8] sm:$0xff]
          %v551 = vld [vmem:[%s299 + $0x4e0] sm:$0xff]
          %v552 = vld [vmem:[%s299 + $0x4e8] sm:$0xff]
          %v553 = vld [vmem:[%s299 + $0x4f0] sm:$0xff]
          %v554 = vld [vmem:[%s299 + $0x4f8] sm:$0xff]
          %v555 = vld [vmem:[%s299 + $0x500] sm:$0xff]
          %v556 = vld [vmem:[%s299 + $0x508] sm:$0xff]
          %v557 = vld [vmem:[%s299 + $0x510] sm:$0xff]
          %v558 = vld [vmem:[%s299 + $0x518] sm:$0xff]
          %v559 = vld [vmem:[%s299 + $0x520] sm:$0xff]
          %v560 = vld [vmem:[%s299 + $0x528] sm:$0xff]
          %v561 = vld [vmem:[%s299 + $0x530] sm:$0xff]
          %v562 = vld [vmem:[%s299 + $0x538] sm:$0xff]
          %v563 = vld [vmem:[%s299 + $0x540] sm:$0xff]
          %v564 = vld [vmem:[%s299 + $0x548] sm:$0xff]
          %v565 = vld [vmem:[%s299 + $0x550] sm:$0xff]
          %v566 = vld [vmem:[%s299 + $0x558] sm:$0xff]
          %v567 = vld [vmem:[%s299 + $0x560] sm:$0xff]
          %v568 = vld [vmem:[%s299 + $0x568] sm:$0xff]
          %v569 = vld [vmem:[%s299 + $0x570] sm:$0xff]
          %v570 = vld [vmem:[%s299 + $0x578] sm:$0xff]
          %v571 = vld [vmem:[%s299 + $0x580] sm:$0xff]
          %v572 = vld [vmem:[%s299 + $0x588] sm:$0xff]
          %v573 = vld [vmem:[%s299 + $0x590] sm:$0xff]
          %v574 = vld [vmem:[%s299 + $0x598] sm:$0xff]
          %v575 = vld [vmem:[%s299 + $0x5a0] sm:$0xff]
          %v576 = vld [vmem:[%s299 + $0x5a8] sm:$0xff]
          %v577 = vld [vmem:[%s299 + $0x5b0] sm:$0xff]
          %v578 = vld [vmem:[%s299 + $0x5b8] sm:$0xff]
          %v579 = vld [vmem:[%s299 + $0x5c0] sm:$0xff]
          %v580 = vld [vmem:[%s299 + $0x5c8] sm:$0xff]
          %v581 = vld [vmem:[%s299 + $0x5d0] sm:$0xff]
          %v582 = vld [vmem:[%s299 + $0x5d8] sm:$0xff]
          %v583 = vld [vmem:[%s299 + $0x5e0] sm:$0xff]
          %v584 = vld [vmem:[%s299 + $0x5e8] sm:$0xff]
          %v585 = vld [vmem:[%s299 + $0x5f0] sm:$0xff]
          %v586 = vld [vmem:[%s299 + $0x5f8] sm:$0xff]
          %v587 = vld [vmem:[%s299 + $0x600] sm:$0xff]
          %v588 = vld [vmem:[%s299 + $0x608] sm:$0xff]
          %v589 = vld [vmem:[%s299 + $0x610] sm:$0xff]
          %v590 = vld [vmem:[%s299 + $0x618] sm:$0xff]
          %v591 = vld [vmem:[%s299 + $0x620] sm:$0xff]
          %v592 = vld [vmem:[%s299 + $0x628] sm:$0xff]
          %v593 = vld [vmem:[%s299 + $0x630] sm:$0xff]
          %v594 = vld [vmem:[%s299 + $0x638] sm:$0xff]
          %v595 = vld [vmem:[%s299 + $0x640] sm:$0xff]
          %v596 = vld [vmem:[%s299 + $0x648] sm:$0xff]
          %v597 = vld [vmem:[%s299 + $0x650] sm:$0xff]
          %v598 = vld [vmem:[%s299 + $0x658] sm:$0xff]
          %v599 = vld [vmem:[%s299 + $0x660] sm:$0xff]
          %v600 = vld [vmem:[%s299 + $0x668] sm:$0xff]
          %v601 = vld [vmem:[%s299 + $0x670] sm:$0xff]
          %v602 = vld [vmem:[%s299 + $0x678] sm:$0xff]
          %v603 = vld [vmem:[%s299 + $0x680] sm:$0xff]
          %v604 = vld [vmem:[%s299 + $0x688] sm:$0xff]
          %v605 = vld [vmem:[%s299 + $0x690] sm:$0xff]
          %v606 = vld [vmem:[%s299 + $0x698] sm:$0xff]
          %v607 = vld [vmem:[%s299 + $0x6a0] sm:$0xff]
          %v608 = vld [vmem:[%s299 + $0x6a8] sm:$0xff]
          %v609 = vld [vmem:[%s299 + $0x6b0] sm:$0xff]
          %v610 = vld [vmem:[%s299 + $0x6b8] sm:$0xff]
          %v611 = vld [vmem:[%s299 + $0x6c0] sm:$0xff]
          %v612 = vld [vmem:[%s299 + $0x6c8] sm:$0xff]
          %v613 = vld [vmem:[%s299 + $0x6d0] sm:$0xff]
          %v614 = vld [vmem:[%s299 + $0x6d8] sm:$0xff]
          %v615 = vld [vmem:[%s299 + $0x6e0] sm:$0xff]
          %v616 = vld [vmem:[%s299 + $0x6e8] sm:$0xff]
          %v617 = vld [vmem:[%s299 + $0x6f0] sm:$0xff]
          %v618 = vld [vmem:[%s299 + $0x6f8] sm:$0xff]
          %v619 = vld [vmem:[%s299 + $0x700] sm:$0xff]
          %v620 = vld [vmem:[%s299 + $0x708] sm:$0xff]
          %v621 = vld [vmem:[%s299 + $0x710] sm:$0xff]
          %v622 = vld [vmem:[%s299 + $0x718] sm:$0xff]
          %v623 = vld [vmem:[%s299 + $0x720] sm:$0xff]
          %v624 = vld [vmem:[%s299 + $0x728] sm:$0xff]
          %v625 = vld [vmem:[%s299 + $0x730] sm:$0xff]
          %v626 = vld [vmem:[%s299 + $0x738] sm:$0xff]
          %v627 = vld [vmem:[%s299 + $0x740] sm:$0xff]
          %v628 = vld [vmem:[%s299 + $0x748] sm:$0xff]
          %v629 = vld [vmem:[%s299 + $0x750] sm:$0xff]
          %v630 = vld [vmem:[%s299 + $0x758] sm:$0xff]
          %v631 = vld [vmem:[%s299 + $0x760] sm:$0xff]
          %v632 = vld [vmem:[%s299 + $0x768] sm:$0xff]
          %v633 = vld [vmem:[%s299 + $0x770] sm:$0xff]
          %v634 = vld [vmem:[%s299 + $0x778] sm:$0xff]
          %v635 = vld [vmem:[%s299 + $0x780] sm:$0xff]
          %v636 = vld [vmem:[%s299 + $0x788] sm:$0xff]
          %v637 = vld [vmem:[%s299 + $0x790] sm:$0xff]
          %v638 = vld [vmem:[%s299 + $0x798] sm:$0xff]
          %v639 = vld [vmem:[%s299 + $0x7a0] sm:$0xff]
          %v640 = vld [vmem:[%s299 + $0x7a8] sm:$0xff]
          %v641 = vld [vmem:[%s299 + $0x7b0] sm:$0xff]
          %v642 = vld [vmem:[%s299 + $0x7b8] sm:$0xff]
          %v643 = vld [vmem:[%s299 + $0x7c0] sm:$0xff]
          %v644 = vld [vmem:[%s299 + $0x7c8] sm:$0xff]
          %v645 = vld [vmem:[%s299 + $0x7d0] sm:$0xff]
          %v646 = vld [vmem:[%s299 + $0x7d8] sm:$0xff]
          %v647 = vld [vmem:[%s299 + $0x7e0] sm:$0xff]
          %v648 = vld [vmem:[%s299 + $0x7e8] sm:$0xff]
          %v649 = vld [vmem:[%s299 + $0x7f0] sm:$0xff]
          %v650 = vld [vmem:[%s299 + $0x7f8] sm:$0xff]
          %v651 = vld [vmem:[%s317] sm:$0xff]
          %v653 = vlaneseq
          %v654 = vshrl.u32 %v653, 7
          %v655 = vsub.s32 0, %v654
          %v656 = vrot.slane %v651, %v655
          %v657 = vlaneseq
          %v658 = vshrl.u32 %v657, 7
          %v659 = vsub.s32 1, %v658
          %v660 = vrot.slane %v651, %v659
          %v661 = vlaneseq
          %v662 = vshrl.u32 %v661, 7
          %v663 = vsub.s32 2, %v662
          %v664 = vrot.slane %v651, %v663
          %v665 = vlaneseq
          %v666 = vshrl.u32 %v665, 7
          %v667 = vsub.s32 3, %v666
          %v668 = vrot.slane %v651, %v667
          %v669 = vlaneseq
          %v670 = vshrl.u32 %v669, 7
          %v671 = vsub.s32 4, %v670
          %v672 = vrot.slane %v651, %v671
          %v673 = vlaneseq
          %v674 = vshrl.u32 %v673, 7
          %v675 = vsub.s32 5, %v674
          %v676 = vrot.slane %v651, %v675
          %v677 = vlaneseq
          %v678 = vshrl.u32 %v677, 7
          %v679 = vsub.s32 6, %v678
          %v680 = vrot.slane %v651, %v679
          %v681 = vlaneseq
          %v682 = vshrl.u32 %v681, 7
          %v683 = vsub.s32 7, %v682
          %v684 = vrot.slane %v651, %v683
          %693 = vmatprep.subr.mxu0 %v396
          %694 = vmatpush1.msra.mxu0 %v395
          %695 = vmatprep.subr.mxu0 %v404
          %696 = vmatpush1.msra.mxu0 %v403
          %697 = vmatprep.subr.mxu0 %v412
          %698 = vmatpush1.msra.mxu0 %v411
          %699 = vmatprep.subr.mxu0 %v420
          %700 = vmatpush1.msra.mxu0 %v419
          %701 = vmatprep.subr.mxu0 %v428
          %702 = vmatpush1.msra.mxu0 %v427
          %703 = vmatprep.subr.mxu0 %v436
          %704 = vmatpush1.msra.mxu0 %v435
          %705 = vmatprep.subr.mxu0 %v444
          %706 = vmatpush1.msra.mxu0 %v443
          %707 = vmatprep.subr.mxu0 %v452
          %708 = vmatpush1.msra.mxu0 %v451
          %709 = vmatprep.subr.mxu0 %v460
          %710 = vmatpush1.msra.mxu0 %v459
          %711 = vmatprep.subr.mxu0 %v468
          %712 = vmatpush1.msra.mxu0 %v467
          %713 = vmatprep.subr.mxu0 %v476
          %714 = vmatpush1.msra.mxu0 %v475
          %715 = vmatprep.subr.mxu0 %v484
          %716 = vmatpush1.msra.mxu0 %v483
          %717 = vmatprep.subr.mxu0 %v492
          %718 = vmatpush1.msra.mxu0 %v491
          %719 = vmatprep.subr.mxu0 %v500
          %720 = vmatpush1.msra.mxu0 %v499
          %721 = vmatprep.subr.mxu0 %v508
          %722 = vmatpush1.msra.mxu0 %v507
          %723 = vmatprep.subr.mxu0 %v516
          %724 = vmatpush1.msra.mxu0 %v515
          %725 = vmatprep.subr.mxu0 %v524
          %726 = vmatpush1.msra.mxu0 %v523
          %727 = vmatprep.subr.mxu0 %v532
          %728 = vmatpush1.msra.mxu0 %v531
          %729 = vmatprep.subr.mxu0 %v540
          %730 = vmatpush1.msra.mxu0 %v539
          %731 = vmatprep.subr.mxu0 %v548
          %732 = vmatpush1.msra.mxu0 %v547
          %733 = vmatprep.subr.mxu0 %v556
          %734 = vmatpush1.msra.mxu0 %v555
          %735 = vmatprep.subr.mxu0 %v564
          %736 = vmatpush1.msra.mxu0 %v563
          %737 = vmatprep.subr.mxu0 %v572
          %738 = vmatpush1.msra.mxu0 %v571
          %739 = vmatprep.subr.mxu0 %v580
          %740 = vmatpush1.msra.mxu0 %v579
          %741 = vmatprep.subr.mxu0 %v588
          %742 = vmatpush1.msra.mxu0 %v587
          %743 = vmatprep.subr.mxu0 %v596
          %744 = vmatpush1.msra.mxu0 %v595
          %745 = vmatprep.subr.mxu0 %v604
          %746 = vmatpush1.msra.mxu0 %v603
          %747 = vmatprep.subr.mxu0 %v612
          %748 = vmatpush1.msra.mxu0 %v611
          %749 = vmatprep.subr.mxu0 %v620
          %750 = vmatpush1.msra.mxu0 %v619
          %751 = vmatprep.subr.mxu0 %v628
          %752 = vmatpush1.msra.mxu0 %v627
          %753 = vmatprep.subr.mxu0 %v636
          %754 = vmatpush1.msra.mxu0 %v635
          %755 = vmatprep.subr.mxu0 %v644
          %756 = vmatpush1.msra.mxu0 %v643
          %757 = vmatprep.mubr.f32.mxu0 %v380
          %758 = vmatmul.mubr.f32.gmra.mrb[0].mxu0 %v379
          %v759 = vpop.f32.mrb[0].mxu0
          %v760 = vadd.f32 %v656, %v759
          %v761 = vpop.f32.mrb[0].mxu0
          %v762 = vadd.f32 %v660, %v761
          %763 = vmatprep.mubr.f32.mxu0 %v382
          %764 = vmatmul.mubr.f32.gmra.mrb[0].mxu0 %v381
          %v765 = vpop.f32.mrb[0].mxu0
          %v766 = vadd.f32 %v656, %v765
          %v767 = vpop.f32.mrb[0].mxu0
          %v768 = vadd.f32 %v660, %v767
          %769 = vmatprep.mubr.f32.mxu0 %v384
          %770 = vmatmul.mubr.f32.gmra.mrb[0].mxu0 %v383
          %v771 = vpop.f32.mrb[0].mxu0
          %v772 = vadd.f32 %v656, %v771
          %v773 = vpop.f32.mrb[0].mxu0
          %v774 = vadd.f32 %v660, %v773
          %775 = vmatprep.mubr.f32.mxu0 %v386
          %776 = vmatmul.mubr.f32.gmra.mrb[0].mxu0 %v385
          %v777 = vpop.f32.mrb[0].mxu0
          %v778 = vadd.f32 %v656, %v777
          %v779 = vpop.f32.mrb[0].mxu0
          %v780 = vadd.f32 %v660, %v779
          %781 = vmatprep.mubr.f32.mxu0 %v388
          %782 = vmatmul.mubr.f32.gmra.mrb[0].mxu0 %v387
          %v783 = vpop.f32.mrb[0].mxu0
          %v784 = vadd.f32 %v656, %v783
          %v785 = vpop.f32.mrb[0].mxu0
          %v786 = vadd.f32 %v660, %v785
          %787 = vmatprep.mubr.f32.mxu0 %v390
          %788 = vmatmul.mubr.f32.gmra.mrb[0].mxu0 %v389
          %v789 = vpop.f32.mrb[0].mxu0
          %v790 = vadd.f32 %v656, %v789
          %v791 = vpop.f32.mrb[0].mxu0
          %v792 = vadd.f32 %v660, %v791
          %793 = vmatprep.mubr.f32.mxu0 %v392
          %794 = vmatmul.mubr.f32.gmra.mrb[0].mxu0 %v391
          %v795 = vpop.f32.mrb[0].mxu0
          %v796 = vadd.f32 %v656, %v795
          %v797 = vpop.f32.mrb[0].mxu0
          %v798 = vadd.f32 %v660, %v797
          %799 = vmatprep.mubr.f32.mxu0 %v394
          %800 = vmatmul.mubr.f32.gmra.mrb[0].mxu0 %v393
          %v801 = vpop.f32.mrb[0].mxu0
          %v802 = vadd.f32 %v656, %v801
          %v803 = vpop.f32.mrb[0].mxu0
          %v804 = vadd.f32 %v660, %v803
          %805 = vdwg.mxu0
          %806 = vmatprep.subr.mxu0 %v398
          %807 = vmatpush1.msra.mxu0 %v397
          %808 = vmatprep.subr.mxu0 %v406
          %809 = vmatpush1.msra.mxu0 %v405
          %810 = vmatprep.subr.mxu0 %v414
          %811 = vmatpush1.msra.mxu0 %v413
          %812 = vmatprep.subr.mxu0 %v422
          %813 = vmatpush1.msra.mxu0 %v421
          %814 = vmatprep.subr.mxu0 %v430
          %815 = vmatpush1.msra.mxu0 %v429
          %816 = vmatprep.subr.mxu0 %v438
          %817 = vmatpush1.msra.mxu0 %v437
          %818 = vmatprep.subr.mxu0 %v446
          %819 = vmatpush1.msra.mxu0 %v445
          %820 = vmatprep.subr.mxu0 %v454
          %821 = vmatpush1.msra.mxu0 %v453
          %822 = vmatprep.subr.mxu0 %v462
          %823 = vmatpush1.msra.mxu0 %v461
          %824 = vmatprep.subr.mxu0 %v470
          %825 = vmatpush1.msra.mxu0 %v469
          %826 = vmatprep.subr.mxu0 %v478
          %827 = vmatpush1.msra.mxu0 %v477
          %828 = vmatprep.subr.mxu0 %v486
          %829 = vmatpush1.msra.mxu0 %v485
          %830 = vmatprep.subr.mxu0 %v494
          %831 = vmatpush1.msra.mxu0 %v493
          %832 = vmatprep.subr.mxu0 %v502
          %833 = vmatpush1.msra.mxu0 %v501
          %834 = vmatprep.subr.mxu0 %v510
          %835 = vmatpush1.msra.mxu0 %v509
          %836 = vmatprep.subr.mxu0 %v518
          %837 = vmatpush1.msra.mxu0 %v517
          %838 = vmatprep.subr.mxu0 %v526
          %839 = vmatpush1.msra.mxu0 %v525
          %840 = vmatprep.subr.mxu0 %v534
          %841 = vmatpush1.msra.mxu0 %v533
          %842 = vmatprep.subr.mxu0 %v542
          %843 = vmatpush1.msra.mxu0 %v541
          %844 = vmatprep.subr.mxu0 %v550
          %845 = vmatpush1.msra.mxu0 %v549
          %846 = vmatprep.subr.mxu0 %v558
          %847 = vmatpush1.msra.mxu0 %v557
          %848 = vmatprep.subr.mxu0 %v566
          %849 = vmatpush1.msra.mxu0 %v565
          %850 = vmatprep.subr.mxu0 %v574
          %851 = vmatpush1.msra.mxu0 %v573
          %852 = vmatprep.subr.mxu0 %v582
          %853 = vmatpush1.msra.mxu0 %v581
          %854 = vmatprep.subr.mxu0 %v590
          %855 = vmatpush1.msra.mxu0 %v589
          %856 = vmatprep.subr.mxu0 %v598
          %857 = vmatpush1.msra.mxu0 %v597
          %858 = vmatprep.subr.mxu0 %v606
          %859 = vmatpush1.msra.mxu0 %v605
          %860 = vmatprep.subr.mxu0 %v614
          %861 = vmatpush1.msra.mxu0 %v613
          %862 = vmatprep.subr.mxu0 %v622
          %863 = vmatpush1.msra.mxu0 %v621
          %864 = vmatprep.subr.mxu0 %v630
          %865 = vmatpush1.msra.mxu0 %v629
          %866 = vmatprep.subr.mxu0 %v638
          %867 = vmatpush1.msra.mxu0 %v637
          %868 = vmatprep.subr.mxu0 %v646
          %869 = vmatpush1.msra.mxu0 %v645
          %870 = vmatprep.mubr.f32.mxu0 %v380
          %871 = vmatmul.mubr.f32.gmra.mrb[0].mxu0 %v379
          %v872 = vpop.f32.mrb[0].mxu0
          %v873 = vadd.f32 %v664, %v872
          %v874 = vpop.f32.mrb[0].mxu0
          %v875 = vadd.f32 %v668, %v874
          %876 = vmatprep.mubr.f32.mxu0 %v382
          %877 = vmatmul.mubr.f32.gmra.mrb[0].mxu0 %v381
          %v878 = vpop.f32.mrb[0].mxu0
          %v879 = vadd.f32 %v664, %v878
          %v880 = vpop.f32.mrb[0].mxu0
          %v881 = vadd.f32 %v668, %v880
          %882 = vmatprep.mubr.f32.mxu0 %v384
          %883 = vmatmul.mubr.f32.gmra.mrb[0].mxu0 %v383
          %v884 = vpop.f32.mrb[0].mxu0
          %v885 = vadd.f32 %v664, %v884
          %v886 = vpop.f32.mrb[0].mxu0
          %v887 = vadd.f32 %v668, %v886
          %888 = vmatprep.mubr.f32.mxu0 %v386
          %889 = vmatmul.mubr.f32.gmra.mrb[0].mxu0 %v385
          %v890 = vpop.f32.mrb[0].mxu0
          %v891 = vadd.f32 %v664, %v890
          %v892 = vpop.f32.mrb[0].mxu0
          %v893 = vadd.f32 %v668, %v892
          %894 = vmatprep.mubr.f32.mxu0 %v388
          %895 = vmatmul.mubr.f32.gmra.mrb[0].mxu0 %v387
          %v896 = vpop.f32.mrb[0].mxu0
          %v897 = vadd.f32 %v664, %v896
          %v898 = vpop.f32.mrb[0].mxu0
          %v899 = vadd.f32 %v668, %v898
          %900 = vmatprep.mubr.f32.mxu0 %v390
          %901 = vmatmul.mubr.f32.gmra.mrb[0].mxu0 %v389
          %v902 = vpop.f32.mrb[0].mxu0
          %v903 = vadd.f32 %v664, %v902
          %v904 = vpop.f32.mrb[0].mxu0
          %v905 = vadd.f32 %v668, %v904
          %906 = vmatprep.mubr.f32.mxu0 %v392
          %907 = vmatmul.mubr.f32.gmra.mrb[0].mxu0 %v391
          %v908 = vpop.f32.mrb[0].mxu0
          %v909 = vadd.f32 %v664, %v908
          %v910 = vpop.f32.mrb[0].mxu0
          %v911 = vadd.f32 %v668, %v910
          %912 = vmatprep.mubr.f32.mxu0 %v394
          %913 = vmatmul.mubr.f32.gmra.mrb[0].mxu0 %v393
          %v914 = vpop.f32.mrb[0].mxu0
          %v915 = vadd.f32 %v664, %v914
          %v916 = vpop.f32.mrb[0].mxu0
          %v917 = vadd.f32 %v668, %v916
          %918 = vdwg.mxu0
          %919 = vmatprep.subr.mxu0 %v400
          %920 = vmatpush1.msra.mxu0 %v399
          %921 = vmatprep.subr.mxu0 %v408
          %922 = vmatpush1.msra.mxu0 %v407
          %923 = vmatprep.subr.mxu0 %v416
          %924 = vmatpush1.msra.mxu0 %v415
          %925 = vmatprep.subr.mxu0 %v424
          %926 = vmatpush1.msra.mxu0 %v423
          %927 = vmatprep.subr.mxu0 %v432
          %928 = vmatpush1.msra.mxu0 %v431
          %929 = vmatprep.subr.mxu0 %v440
          %930 = vmatpush1.msra.mxu0 %v439
          %931 = vmatprep.subr.mxu0 %v448
          %932 = vmatpush1.msra.mxu0 %v447
          %933 = vmatprep.subr.mxu0 %v456
          %934 = vmatpush1.msra.mxu0 %v455
          %935 = vmatprep.subr.mxu0 %v464
          %936 = vmatpush1.msra.mxu0 %v463
          %937 = vmatprep.subr.mxu0 %v472
          %938 = vmatpush1.msra.mxu0 %v471
          %939 = vmatprep.subr.mxu0 %v480
          %940 = vmatpush1.msra.mxu0 %v479
          %941 = vmatprep.subr.mxu0 %v488
          %942 = vmatpush1.msra.mxu0 %v487
          %943 = vmatprep.subr.mxu0 %v496
          %944 = vmatpush1.msra.mxu0 %v495
          %945 = vmatprep.subr.mxu0 %v504
          %946 = vmatpush1.msra.mxu0 %v503
          %947 = vmatprep.subr.mxu0 %v512
          %948 = vmatpush1.msra.mxu0 %v511
          %949 = vmatprep.subr.mxu0 %v520
          %950 = vmatpush1.msra.mxu0 %v519
          %951 = vmatprep.subr.mxu0 %v528
          %952 = vmatpush1.msra.mxu0 %v527
          %953 = vmatprep.subr.mxu0 %v536
          %954 = vmatpush1.msra.mxu0 %v535
          %955 = vmatprep.subr.mxu0 %v544
          %956 = vmatpush1.msra.mxu0 %v543
          %957 = vmatprep.subr.mxu0 %v552
          %958 = vmatpush1.msra.mxu0 %v551
          %959 = vmatprep.subr.mxu0 %v560
          %960 = vmatpush1.msra.mxu0 %v559
          %961 = vmatprep.subr.mxu0 %v568
          %962 = vmatpush1.msra.mxu0 %v567
          %963 = vmatprep.subr.mxu0 %v576
          %964 = vmatpush1.msra.mxu0 %v575
          %965 = vmatprep.subr.mxu0 %v584
          %966 = vmatpush1.msra.mxu0 %v583
          %967 = vmatprep.subr.mxu0 %v592
          %968 = vmatpush1.msra.mxu0 %v591
          %969 = vmatprep.subr.mxu0 %v600
          %970 = vmatpush1.msra.mxu0 %v599
          %971 = vmatprep.subr.mxu0 %v608
          %972 = vmatpush1.msra.mxu0 %v607
          %973 = vmatprep.subr.mxu0 %v616
          %974 = vmatpush1.msra.mxu0 %v615
          %975 = vmatprep.subr.mxu0 %v624
          %976 = vmatpush1.msra.mxu0 %v623
          %977 = vmatprep.subr.mxu0 %v632
          %978 = vmatpush1.msra.mxu0 %v631
          %979 = vmatprep.subr.mxu0 %v640
          %980 = vmatpush1.msra.mxu0 %v639
          %981 = vmatprep.subr.mxu0 %v648
          %982 = vmatpush1.msra.mxu0 %v647
          %983 = vmatprep.mubr.f32.mxu0 %v380
          %984 = vmatmul.mubr.f32.gmra.mrb[0].mxu0 %v379
          %v985 = vpop.f32.mrb[0].mxu0
          %v986 = vadd.f32 %v672, %v985
          %v987 = vpop.f32.mrb[0].mxu0
          %v988 = vadd.f32 %v676, %v987
          %989 = vmatprep.mubr.f32.mxu0 %v382
          %990 = vmatmul.mubr.f32.gmra.mrb[0].mxu0 %v381
          %v991 = vpop.f32.mrb[0].mxu0
          %v992 = vadd.f32 %v672, %v991
          %v993 = vpop.f32.mrb[0].mxu0
          %v994 = vadd.f32 %v676, %v993
          %995 = vmatprep.mubr.f32.mxu0 %v384
          %996 = vmatmul.mubr.f32.gmra.mrb[0].mxu0 %v383
          %v997 = vpop.f32.mrb[0].mxu0
          %v998 = vadd.f32 %v672, %v997
          %v999 = vpop.f32.mrb[0].mxu0
          %v1000 = vadd.f32 %v676, %v999
          %1001 = vmatprep.mubr.f32.mxu0 %v386
          %1002 = vmatmul.mubr.f32.gmra.mrb[0].mxu0 %v385
          %v1003 = vpop.f32.mrb[0].mxu0
          %v1004 = vadd.f32 %v672, %v1003
          %v1005 = vpop.f32.mrb[0].mxu0
          %v1006 = vadd.f32 %v676, %v1005
          %1007 = vmatprep.mubr.f32.mxu0 %v388
          %1008 = vmatmul.mubr.f32.gmra.mrb[0].mxu0 %v387
          %v1009 = vpop.f32.mrb[0].mxu0
          %v1010 = vadd.f32 %v672, %v1009
          %v1011 = vpop.f32.mrb[0].mxu0
          %v1012 = vadd.f32 %v676, %v1011
          %1013 = vmatprep.mubr.f32.mxu0 %v390
          %1014 = vmatmul.mubr.f32.gmra.mrb[0].mxu0 %v389
          %v1015 = vpop.f32.mrb[0].mxu0
          %v1016 = vadd.f32 %v672, %v1015
          %v1017 = vpop.f32.mrb[0].mxu0
          %v1018 = vadd.f32 %v676, %v1017
          %1019 = vmatprep.mubr.f32.mxu0 %v392
          %1020 = vmatmul.mubr.f32.gmra.mrb[0].mxu0 %v391
          %v1021 = vpop.f32.mrb[0].mxu0
          %v1022 = vadd.f32 %v672, %v1021
          %v1023 = vpop.f32.mrb[0].mxu0
          %v1024 = vadd.f32 %v676, %v1023
          %1025 = vmatprep.mubr.f32.mxu0 %v394
          %1026 = vmatmul.mubr.f32.gmra.mrb[0].mxu0 %v393
          %v1027 = vpop.f32.mrb[0].mxu0
          %v1028 = vadd.f32 %v672, %v1027
          %v1029 = vpop.f32.mrb[0].mxu0
          %v1030 = vadd.f32 %v676, %v1029
          %1031 = vdwg.mxu0
          %1032 = vmatprep.subr.mxu0 %v402
          %1033 = vmatpush1.msra.mxu0 %v401
          %1034 = vmatprep.subr.mxu0 %v410
          %1035 = vmatpush1.msra.mxu0 %v409
          %1036 = vmatprep.subr.mxu0 %v418
          %1037 = vmatpush1.msra.mxu0 %v417
          %1038 = vmatprep.subr.mxu0 %v426
          %1039 = vmatpush1.msra.mxu0 %v425
          %1040 = vmatprep.subr.mxu0 %v434
          %1041 = vmatpush1.msra.mxu0 %v433
          %1042 = vmatprep.subr.mxu0 %v442
          %1043 = vmatpush1.msra.mxu0 %v441
          %1044 = vmatprep.subr.mxu0 %v450
          %1045 = vmatpush1.msra.mxu0 %v449
          %1046 = vmatprep.subr.mxu0 %v458
          %1047 = vmatpush1.msra.mxu0 %v457
          %1048 = vmatprep.subr.mxu0 %v466
          %1049 = vmatpush1.msra.mxu0 %v465
          %1050 = vmatprep.subr.mxu0 %v474
          %1051 = vmatpush1.msra.mxu0 %v473
          %1052 = vmatprep.subr.mxu0 %v482
          %1053 = vmatpush1.msra.mxu0 %v481
          %1054 = vmatprep.subr.mxu0 %v490
          %1055 = vmatpush1.msra.mxu0 %v489
          %1056 = vmatprep.subr.mxu0 %v498
          %1057 = vmatpush1.msra.mxu0 %v497
          %1058 = vmatprep.subr.mxu0 %v506
          %1059 = vmatpush1.msra.mxu0 %v505
          %1060 = vmatprep.subr.mxu0 %v514
          %1061 = vmatpush1.msra.mxu0 %v513
          %1062 = vmatprep.subr.mxu0 %v522
          %1063 = vmatpush1.msra.mxu0 %v521
          %1064 = vmatprep.subr.mxu0 %v530
          %1065 = vmatpush1.msra.mxu0 %v529
          %1066 = vmatprep.subr.mxu0 %v538
          %1067 = vmatpush1.msra.mxu0 %v537
          %1068 = vmatprep.subr.mxu0 %v546
          %1069 = vmatpush1.msra.mxu0 %v545
          %1070 = vmatprep.subr.mxu0 %v554
          %1071 = vmatpush1.msra.mxu0 %v553
          %1072 = vmatprep.subr.mxu0 %v562
          %1073 = vmatpush1.msra.mxu0 %v561
          %1074 = vmatprep.subr.mxu0 %v570
          %1075 = vmatpush1.msra.mxu0 %v569
          %1076 = vmatprep.subr.mxu0 %v578
          %1077 = vmatpush1.msra.mxu0 %v577
          %1078 = vmatprep.subr.mxu0 %v586
          %1079 = vmatpush1.msra.mxu0 %v585
          %1080 = vmatprep.subr.mxu0 %v594
          %1081 = vmatpush1.msra.mxu0 %v593
          %1082 = vmatprep.subr.mxu0 %v602
          %1083 = vmatpush1.msra.mxu0 %v601
          %1084 = vmatprep.subr.mxu0 %v610
          %1085 = vmatpush1.msra.mxu0 %v609
          %1086 = vmatprep.subr.mxu0 %v618
          %1087 = vmatpush1.msra.mxu0 %v617
          %1088 = vmatprep.subr.mxu0 %v626
          %1089 = vmatpush1.msra.mxu0 %v625
          %1090 = vmatprep.subr.mxu0 %v634
          %1091 = vmatpush1.msra.mxu0 %v633
          %1092 = vmatprep.subr.mxu0 %v642
          %1093 = vmatpush1.msra.mxu0 %v641
          %1094 = vmatprep.subr.mxu0 %v650
          %1095 = vmatpush1.msra.mxu0 %v649
          %1096 = vmatprep.mubr.f32.mxu0 %v380
          %1097 = vmatmul.mubr.f32.gmra.mrb[0].mxu0 %v379
          %v1098 = vpop.f32.mrb[0].mxu0
          %v1099 = vadd.f32 %v680, %v1098
          %v1100 = vpop.f32.mrb[0].mxu0
          %v1101 = vadd.f32 %v684, %v1100
          %1102 = vmatprep.mubr.f32.mxu0 %v382
          %1103 = vmatmul.mubr.f32.gmra.mrb[0].mxu0 %v381
          %v1104 = vpop.f32.mrb[0].mxu0
          %v1105 = vadd.f32 %v680, %v1104
          %v1106 = vpop.f32.mrb[0].mxu0
          %v1107 = vadd.f32 %v684, %v1106
          %1108 = vmatprep.mubr.f32.mxu0 %v384
          %1109 = vmatmul.mubr.f32.gmra.mrb[0].mxu0 %v383
          %v1110 = vpop.f32.mrb[0].mxu0
          %v1111 = vadd.f32 %v680, %v1110
          %v1112 = vpop.f32.mrb[0].mxu0
          %v1113 = vadd.f32 %v684, %v1112
          %1114 = vmatprep.mubr.f32.mxu0 %v386
          %1115 = vmatmul.mubr.f32.gmra.mrb[0].mxu0 %v385
          %v1116 = vpop.f32.mrb[0].mxu0
          %v1117 = vadd.f32 %v680, %v1116
          %v1118 = vpop.f32.mrb[0].mxu0
          %v1119 = vadd.f32 %v684, %v1118
          %1120 = vmatprep.mubr.f32.mxu0 %v388
          %1121 = vmatmul.mubr.f32.gmra.mrb[0].mxu0 %v387
          %v1122 = vpop.f32.mrb[0].mxu0
          %v1123 = vadd.f32 %v680, %v1122
          %v1124 = vpop.f32.mrb[0].mxu0
          %v1125 = vadd.f32 %v684, %v1124
          %1126 = vmatprep.mubr.f32.mxu0 %v390
          %1127 = vmatmul.mubr.f32.gmra.mrb[0].mxu0 %v389
          %v1128 = vpop.f32.mrb[0].mxu0
          %v1129 = vadd.f32 %v680, %v1128
          %v1130 = vpop.f32.mrb[0].mxu0
          %v1131 = vadd.f32 %v684, %v1130
          %1132 = vmatprep.mubr.f32.mxu0 %v392
          %1133 = vmatmul.mubr.f32.gmra.mrb[0].mxu0 %v391
          %v1134 = vpop.f32.mrb[0].mxu0
          %v1135 = vadd.f32 %v680, %v1134
          %v1136 = vpop.f32.mrb[0].mxu0
          %v1137 = vadd.f32 %v684, %v1136
          %1138 = vmatprep.mubr.f32.mxu0 %v394
          %1139 = vmatmul.mubr.f32.gmra.mrb[0].mxu0 %v393
          %v1140 = vpop.f32.mrb[0].mxu0
          %v1141 = vadd.f32 %v680, %v1140
          %v1142 = vpop.f32.mrb[0].mxu0
          %v1143 = vadd.f32 %v684, %v1142
          %1144 = vdwg.mxu0
          %1145 = vst [vmem:[#allocation2] sm:$0xff] %v760
          %1146 = vst [vmem:[#allocation2 + $0x8] sm:$0xff] %v762
          %1147 = vst [vmem:[#allocation2 + $0x10] sm:$0xff] %v873
          %1148 = vst [vmem:[#allocation2 + $0x18] sm:$0xff] %v875
          %1149 = vst [vmem:[#allocation2 + $0x20] sm:$0xff] %v986
          %1150 = vst [vmem:[#allocation2 + $0x28] sm:$0xff] %v988
          %1151 = vst [vmem:[#allocation2 + $0x30] sm:$0xff] %v1099
          %1152 = vst [vmem:[#allocation2 + $0x38] sm:$0xff] %v1101
          %1153 = vst [vmem:[#allocation2 + $0x40] sm:$0xff] %v766
          %1154 = vst [vmem:[#allocation2 + $0x48] sm:$0xff] %v768
          %1155 = vst [vmem:[#allocation2 + $0x50] sm:$0xff] %v879
          %1156 = vst [vmem:[#allocation2 + $0x58] sm:$0xff] %v881
          %1157 = vst [vmem:[#allocation2 + $0x60] sm:$0xff] %v992
          %1158 = vst [vmem:[#allocation2 + $0x68] sm:$0xff] %v994
          %1159 = vst [vmem:[#allocation2 + $0x70] sm:$0xff] %v1105
          %1160 = vst [vmem:[#allocation2 + $0x78] sm:$0xff] %v1107
          %1161 = vst [vmem:[#allocation2 + $0x80] sm:$0xff] %v772
          %1162 = vst [vmem:[#allocation2 + $0x88] sm:$0xff] %v774
          %1163 = vst [vmem:[#allocation2 + $0x90] sm:$0xff] %v885
          %1164 = vst [vmem:[#allocation2 + $0x98] sm:$0xff] %v887
          %1165 = vst [vmem:[#allocation2 + $0xa0] sm:$0xff] %v998
          %1166 = vst [vmem:[#allocation2 + $0xa8] sm:$0xff] %v1000
          %1167 = vst [vmem:[#allocation2 + $0xb0] sm:$0xff] %v1111
          %1168 = vst [vmem:[#allocation2 + $0xb8] sm:$0xff] %v1113
          %1169 = vst [vmem:[#allocation2 + $0xc0] sm:$0xff] %v778
          %1170 = vst [vmem:[#allocation2 + $0xc8] sm:$0xff] %v780
          %1171 = vst [vmem:[#allocation2 + $0xd0] sm:$0xff] %v891
          %1172 = vst [vmem:[#allocation2 + $0xd8] sm:$0xff] %v893
          %1173 = vst [vmem:[#allocation2 + $0xe0] sm:$0xff] %v1004
          %1174 = vst [vmem:[#allocation2 + $0xe8] sm:$0xff] %v1006
          %1175 = vst [vmem:[#allocation2 + $0xf0] sm:$0xff] %v1117
          %1176 = vst [vmem:[#allocation2 + $0xf8] sm:$0xff] %v1119
          %1177 = vst [vmem:[#allocation2 + $0x100] sm:$0xff] %v784
          %1178 = vst [vmem:[#allocation2 + $0x108] sm:$0xff] %v786
          %1179 = vst [vmem:[#allocation2 + $0x110] sm:$0xff] %v897
          %1180 = vst [vmem:[#allocation2 + $0x118] sm:$0xff] %v899
          %1181 = vst [vmem:[#allocation2 + $0x120] sm:$0xff] %v1010
          %1182 = vst [vmem:[#allocation2 + $0x128] sm:$0xff] %v1012
          %1183 = vst [vmem:[#allocation2 + $0x130] sm:$0xff] %v1123
          %1184 = vst [vmem:[#allocation2 + $0x138] sm:$0xff] %v1125
          %1185 = vst [vmem:[#allocation2 + $0x140] sm:$0xff] %v790
          %1186 = vst [vmem:[#allocation2 + $0x148] sm:$0xff] %v792
          %1187 = vst [vmem:[#allocation2 + $0x150] sm:$0xff] %v903
          %1188 = vst [vmem:[#allocation2 + $0x158] sm:$0xff] %v905
          %1189 = vst [vmem:[#allocation2 + $0x160] sm:$0xff] %v1016
          %1190 = vst [vmem:[#allocation2 + $0x168] sm:$0xff] %v1018
          %1191 = vst [vmem:[#allocation2 + $0x170] sm:$0xff] %v1129
          %1192 = vst [vmem:[#allocation2 + $0x178] sm:$0xff] %v1131
          %1193 = vst [vmem:[#allocation2 + $0x180] sm:$0xff] %v796
          %1194 = vst [vmem:[#allocation2 + $0x188] sm:$0xff] %v798
          %1195 = vst [vmem:[#allocation2 + $0x190] sm:$0xff] %v909
          %1196 = vst [vmem:[#allocation2 + $0x198] sm:$0xff] %v911
          %1197 = vst [vmem:[#allocation2 + $0x1a0] sm:$0xff] %v1022
          %1198 = vst [vmem:[#allocation2 + $0x1a8] sm:$0xff] %v1024
          %1199 = vst [vmem:[#allocation2 + $0x1b0] sm:$0xff] %v1135
          %1200 = vst [vmem:[#allocation2 + $0x1b8] sm:$0xff] %v1137
          %1201 = vst [vmem:[#allocation2 + $0x1c0] sm:$0xff] %v802
          %1202 = vst [vmem:[#allocation2 + $0x1c8] sm:$0xff] %v804
          %1203 = vst [vmem:[#allocation2 + $0x1d0] sm:$0xff] %v915
          %1204 = vst [vmem:[#allocation2 + $0x1d8] sm:$0xff] %v917
          %1205 = vst [vmem:[#allocation2 + $0x1e0] sm:$0xff] %v1028
          %1206 = vst [vmem:[#allocation2 + $0x1e8] sm:$0xff] %v1030
          %1207 = vst [vmem:[#allocation2 + $0x1f0] sm:$0xff] %v1141
          %1208 = vst [vmem:[#allocation2 + $0x1f8] sm:$0xff] %v1143
        $region68: #{simple_lstm_forward.1} parent=43 // pred_fallthru
          _
        %p1209 = scmp.gt.s32.totalorder %s24, 0
        // Predicated region
        $region69: #{simple_lstm_forward.1} parent=43 // pred_check
          %p1210 = pneg %p1209
        $region70: #{simple_lstm_forward.1} parent=43 // pred_check_branch
          %1212 = sbr.rel (%p1210) target = $region72
        $region71: #{simple_lstm_forward.1} parent=43 // pred_region
          %v1213 = vld [vmem:[#allocation3] sm:$0xff]
          %v1214 = vld [vmem:[#allocation3 + $0x8] sm:$0xff]
          %v1215 = vld [vmem:[#allocation3 + $0x10] sm:$0xff]
          %v1216 = vld [vmem:[#allocation3 + $0x18] sm:$0xff]
          %v1217 = vld [vmem:[#allocation3 + $0x20] sm:$0xff]
          %v1218 = vld [vmem:[#allocation3 + $0x28] sm:$0xff]
          %v1219 = vld [vmem:[#allocation3 + $0x30] sm:$0xff]
          %v1220 = vld [vmem:[#allocation3 + $0x38] sm:$0xff]
          %v1221 = vld [vmem:[#allocation3 + $0x40] sm:$0xff]
          %v1222 = vld [vmem:[#allocation3 + $0x48] sm:$0xff]
          %v1223 = vld [vmem:[#allocation3 + $0x50] sm:$0xff]
          %v1224 = vld [vmem:[#allocation3 + $0x58] sm:$0xff]
          %v1225 = vld [vmem:[#allocation3 + $0x60] sm:$0xff]
          %v1226 = vld [vmem:[#allocation3 + $0x68] sm:$0xff]
          %v1227 = vld [vmem:[#allocation3 + $0x70] sm:$0xff]
          %v1228 = vld [vmem:[#allocation3 + $0x78] sm:$0xff]
          %v1229 = vld [vmem:[%s299] sm:$0xff]
          %v1230 = vld [vmem:[%s299 + $0x8] sm:$0xff]
          %v1231 = vld [vmem:[%s299 + $0x10] sm:$0xff]
          %v1232 = vld [vmem:[%s299 + $0x18] sm:$0xff]
          %v1233 = vld [vmem:[%s299 + $0x20] sm:$0xff]
          %v1234 = vld [vmem:[%s299 + $0x28] sm:$0xff]
          %v1235 = vld [vmem:[%s299 + $0x30] sm:$0xff]
          %v1236 = vld [vmem:[%s299 + $0x38] sm:$0xff]
          %v1237 = vld [vmem:[%s299 + $0x40] sm:$0xff]
          %v1238 = vld [vmem:[%s299 + $0x48] sm:$0xff]
          %v1239 = vld [vmem:[%s299 + $0x50] sm:$0xff]
          %v1240 = vld [vmem:[%s299 + $0x58] sm:$0xff]
          %v1241 = vld [vmem:[%s299 + $0x60] sm:$0xff]
          %v1242 = vld [vmem:[%s299 + $0x68] sm:$0xff]
          %v1243 = vld [vmem:[%s299 + $0x70] sm:$0xff]
          %v1244 = vld [vmem:[%s299 + $0x78] sm:$0xff]
          %v1245 = vld [vmem:[%s299 + $0x80] sm:$0xff]
          %v1246 = vld [vmem:[%s299 + $0x88] sm:$0xff]
          %v1247 = vld [vmem:[%s299 + $0x90] sm:$0xff]
          %v1248 = vld [vmem:[%s299 + $0x98] sm:$0xff]
          %v1249 = vld [vmem:[%s299 + $0xa0] sm:$0xff]
          %v1250 = vld [vmem:[%s299 + $0xa8] sm:$0xff]
          %v1251 = vld [vmem:[%s299 + $0xb0] sm:$0xff]
          %v1252 = vld [vmem:[%s299 + $0xb8] sm:$0xff]
          %v1253 = vld [vmem:[%s299 + $0xc0] sm:$0xff]
          %v1254 = vld [vmem:[%s299 + $0xc8] sm:$0xff]
          %v1255 = vld [vmem:[%s299 + $0xd0] sm:$0xff]
          %v1256 = vld [vmem:[%s299 + $0xd8] sm:$0xff]
          %v1257 = vld [vmem:[%s299 + $0xe0] sm:$0xff]
          %v1258 = vld [vmem:[%s299 + $0xe8] sm:$0xff]
          %v1259 = vld [vmem:[%s299 + $0xf0] sm:$0xff]
          %v1260 = vld [vmem:[%s299 + $0xf8] sm:$0xff]
          %v1261 = vld [vmem:[%s299 + $0x100] sm:$0xff]
          %v1262 = vld [vmem:[%s299 + $0x108] sm:$0xff]
          %v1263 = vld [vmem:[%s299 + $0x110] sm:$0xff]
          %v1264 = vld [vmem:[%s299 + $0x118] sm:$0xff]
          %v1265 = vld [vmem:[%s299 + $0x120] sm:$0xff]
          %v1266 = vld [vmem:[%s299 + $0x128] sm:$0xff]
          %v1267 = vld [vmem:[%s299 + $0x130] sm:$0xff]
          %v1268 = vld [vmem:[%s299 + $0x138] sm:$0xff]
          %v1269 = vld [vmem:[%s299 + $0x140] sm:$0xff]
          %v1270 = vld [vmem:[%s299 + $0x148] sm:$0xff]
          %v1271 = vld [vmem:[%s299 + $0x150] sm:$0xff]
          %v1272 = vld [vmem:[%s299 + $0x158] sm:$0xff]
          %v1273 = vld [vmem:[%s299 + $0x160] sm:$0xff]
          %v1274 = vld [vmem:[%s299 + $0x168] sm:$0xff]
          %v1275 = vld [vmem:[%s299 + $0x170] sm:$0xff]
          %v1276 = vld [vmem:[%s299 + $0x178] sm:$0xff]
          %v1277 = vld [vmem:[%s299 + $0x180] sm:$0xff]
          %v1278 = vld [vmem:[%s299 + $0x188] sm:$0xff]
          %v1279 = vld [vmem:[%s299 + $0x190] sm:$0xff]
          %v1280 = vld [vmem:[%s299 + $0x198] sm:$0xff]
          %v1281 = vld [vmem:[%s299 + $0x1a0] sm:$0xff]
          %v1282 = vld [vmem:[%s299 + $0x1a8] sm:$0xff]
          %v1283 = vld [vmem:[%s299 + $0x1b0] sm:$0xff]
          %v1284 = vld [vmem:[%s299 + $0x1b8] sm:$0xff]
          %v1285 = vld [vmem:[%s299 + $0x1c0] sm:$0xff]
          %v1286 = vld [vmem:[%s299 + $0x1c8] sm:$0xff]
          %v1287 = vld [vmem:[%s299 + $0x1d0] sm:$0xff]
          %v1288 = vld [vmem:[%s299 + $0x1d8] sm:$0xff]
          %v1289 = vld [vmem:[%s299 + $0x1e0] sm:$0xff]
          %v1290 = vld [vmem:[%s299 + $0x1e8] sm:$0xff]
          %v1291 = vld [vmem:[%s299 + $0x1f0] sm:$0xff]
          %v1292 = vld [vmem:[%s299 + $0x1f8] sm:$0xff]
          %v1293 = vld [vmem:[%s299 + $0x200] sm:$0xff]
          %v1294 = vld [vmem:[%s299 + $0x208] sm:$0xff]
          %v1295 = vld [vmem:[%s299 + $0x210] sm:$0xff]
          %v1296 = vld [vmem:[%s299 + $0x218] sm:$0xff]
          %v1297 = vld [vmem:[%s299 + $0x220] sm:$0xff]
          %v1298 = vld [vmem:[%s299 + $0x228] sm:$0xff]
          %v1299 = vld [vmem:[%s299 + $0x230] sm:$0xff]
          %v1300 = vld [vmem:[%s299 + $0x238] sm:$0xff]
          %v1301 = vld [vmem:[%s299 + $0x240] sm:$0xff]
          %v1302 = vld [vmem:[%s299 + $0x248] sm:$0xff]
          %v1303 = vld [vmem:[%s299 + $0x250] sm:$0xff]
          %v1304 = vld [vmem:[%s299 + $0x258] sm:$0xff]
          %v1305 = vld [vmem:[%s299 + $0x260] sm:$0xff]
          %v1306 = vld [vmem:[%s299 + $0x268] sm:$0xff]
          %v1307 = vld [vmem:[%s299 + $0x270] sm:$0xff]
          %v1308 = vld [vmem:[%s299 + $0x278] sm:$0xff]
          %v1309 = vld [vmem:[%s299 + $0x280] sm:$0xff]
          %v1310 = vld [vmem:[%s299 + $0x288] sm:$0xff]
          %v1311 = vld [vmem:[%s299 + $0x290] sm:$0xff]
          %v1312 = vld [vmem:[%s299 + $0x298] sm:$0xff]
          %v1313 = vld [vmem:[%s299 + $0x2a0] sm:$0xff]
          %v1314 = vld [vmem:[%s299 + $0x2a8] sm:$0xff]
          %v1315 = vld [vmem:[%s299 + $0x2b0] sm:$0xff]
          %v1316 = vld [vmem:[%s299 + $0x2b8] sm:$0xff]
          %v1317 = vld [vmem:[%s299 + $0x2c0] sm:$0xff]
          %v1318 = vld [vmem:[%s299 + $0x2c8] sm:$0xff]
          %v1319 = vld [vmem:[%s299 + $0x2d0] sm:$0xff]
          %v1320 = vld [vmem:[%s299 + $0x2d8] sm:$0xff]
          %v1321 = vld [vmem:[%s299 + $0x2e0] sm:$0xff]
          %v1322 = vld [vmem:[%s299 + $0x2e8] sm:$0xff]
          %v1323 = vld [vmem:[%s299 + $0x2f0] sm:$0xff]
          %v1324 = vld [vmem:[%s299 + $0x2f8] sm:$0xff]
          %v1325 = vld [vmem:[%s299 + $0x300] sm:$0xff]
          %v1326 = vld [vmem:[%s299 + $0x308] sm:$0xff]
          %v1327 = vld [vmem:[%s299 + $0x310] sm:$0xff]
          %v1328 = vld [vmem:[%s299 + $0x318] sm:$0xff]
          %v1329 = vld [vmem:[%s299 + $0x320] sm:$0xff]
          %v1330 = vld [vmem:[%s299 + $0x328] sm:$0xff]
          %v1331 = vld [vmem:[%s299 + $0x330] sm:$0xff]
          %v1332 = vld [vmem:[%s299 + $0x338] sm:$0xff]
          %v1333 = vld [vmem:[%s299 + $0x340] sm:$0xff]
          %v1334 = vld [vmem:[%s299 + $0x348] sm:$0xff]
          %v1335 = vld [vmem:[%s299 + $0x350] sm:$0xff]
          %v1336 = vld [vmem:[%s299 + $0x358] sm:$0xff]
          %v1337 = vld [vmem:[%s299 + $0x360] sm:$0xff]
          %v1338 = vld [vmem:[%s299 + $0x368] sm:$0xff]
          %v1339 = vld [vmem:[%s299 + $0x370] sm:$0xff]
          %v1340 = vld [vmem:[%s299 + $0x378] sm:$0xff]
          %v1341 = vld [vmem:[%s299 + $0x380] sm:$0xff]
          %v1342 = vld [vmem:[%s299 + $0x388] sm:$0xff]
          %v1343 = vld [vmem:[%s299 + $0x390] sm:$0xff]
          %v1344 = vld [vmem:[%s299 + $0x398] sm:$0xff]
          %v1345 = vld [vmem:[%s299 + $0x3a0] sm:$0xff]
          %v1346 = vld [vmem:[%s299 + $0x3a8] sm:$0xff]
          %v1347 = vld [vmem:[%s299 + $0x3b0] sm:$0xff]
          %v1348 = vld [vmem:[%s299 + $0x3b8] sm:$0xff]
          %v1349 = vld [vmem:[%s299 + $0x3c0] sm:$0xff]
          %v1350 = vld [vmem:[%s299 + $0x3c8] sm:$0xff]
          %v1351 = vld [vmem:[%s299 + $0x3d0] sm:$0xff]
          %v1352 = vld [vmem:[%s299 + $0x3d8] sm:$0xff]
          %v1353 = vld [vmem:[%s299 + $0x3e0] sm:$0xff]
          %v1354 = vld [vmem:[%s299 + $0x3e8] sm:$0xff]
          %v1355 = vld [vmem:[%s299 + $0x3f0] sm:$0xff]
          %v1356 = vld [vmem:[%s299 + $0x3f8] sm:$0xff]
          %v1357 = vld [vmem:[%s299 + $0x400] sm:$0xff]
          %v1358 = vld [vmem:[%s299 + $0x408] sm:$0xff]
          %v1359 = vld [vmem:[%s299 + $0x410] sm:$0xff]
          %v1360 = vld [vmem:[%s299 + $0x418] sm:$0xff]
          %v1361 = vld [vmem:[%s299 + $0x420] sm:$0xff]
          %v1362 = vld [vmem:[%s299 + $0x428] sm:$0xff]
          %v1363 = vld [vmem:[%s299 + $0x430] sm:$0xff]
          %v1364 = vld [vmem:[%s299 + $0x438] sm:$0xff]
          %v1365 = vld [vmem:[%s299 + $0x440] sm:$0xff]
          %v1366 = vld [vmem:[%s299 + $0x448] sm:$0xff]
          %v1367 = vld [vmem:[%s299 + $0x450] sm:$0xff]
          %v1368 = vld [vmem:[%s299 + $0x458] sm:$0xff]
          %v1369 = vld [vmem:[%s299 + $0x460] sm:$0xff]
          %v1370 = vld [vmem:[%s299 + $0x468] sm:$0xff]
          %v1371 = vld [vmem:[%s299 + $0x470] sm:$0xff]
          %v1372 = vld [vmem:[%s299 + $0x478] sm:$0xff]
          %v1373 = vld [vmem:[%s299 + $0x480] sm:$0xff]
          %v1374 = vld [vmem:[%s299 + $0x488] sm:$0xff]
          %v1375 = vld [vmem:[%s299 + $0x490] sm:$0xff]
          %v1376 = vld [vmem:[%s299 + $0x498] sm:$0xff]
          %v1377 = vld [vmem:[%s299 + $0x4a0] sm:$0xff]
          %v1378 = vld [vmem:[%s299 + $0x4a8] sm:$0xff]
          %v1379 = vld [vmem:[%s299 + $0x4b0] sm:$0xff]
          %v1380 = vld [vmem:[%s299 + $0x4b8] sm:$0xff]
          %v1381 = vld [vmem:[%s299 + $0x4c0] sm:$0xff]
          %v1382 = vld [vmem:[%s299 + $0x4c8] sm:$0xff]
          %v1383 = vld [vmem:[%s299 + $0x4d0] sm:$0xff]
          %v1384 = vld [vmem:[%s299 + $0x4d8] sm:$0xff]
          %v1385 = vld [vmem:[%s299 + $0x4e0] sm:$0xff]
          %v1386 = vld [vmem:[%s299 + $0x4e8] sm:$0xff]
          %v1387 = vld [vmem:[%s299 + $0x4f0] sm:$0xff]
          %v1388 = vld [vmem:[%s299 + $0x4f8] sm:$0xff]
          %v1389 = vld [vmem:[%s299 + $0x500] sm:$0xff]
          %v1390 = vld [vmem:[%s299 + $0x508] sm:$0xff]
          %v1391 = vld [vmem:[%s299 + $0x510] sm:$0xff]
          %v1392 = vld [vmem:[%s299 + $0x518] sm:$0xff]
          %v1393 = vld [vmem:[%s299 + $0x520] sm:$0xff]
          %v1394 = vld [vmem:[%s299 + $0x528] sm:$0xff]
          %v1395 = vld [vmem:[%s299 + $0x530] sm:$0xff]
          %v1396 = vld [vmem:[%s299 + $0x538] sm:$0xff]
          %v1397 = vld [vmem:[%s299 + $0x540] sm:$0xff]
          %v1398 = vld [vmem:[%s299 + $0x548] sm:$0xff]
          %v1399 = vld [vmem:[%s299 + $0x550] sm:$0xff]
          %v1400 = vld [vmem:[%s299 + $0x558] sm:$0xff]
          %v1401 = vld [vmem:[%s299 + $0x560] sm:$0xff]
          %v1402 = vld [vmem:[%s299 + $0x568] sm:$0xff]
          %v1403 = vld [vmem:[%s299 + $0x570] sm:$0xff]
          %v1404 = vld [vmem:[%s299 + $0x578] sm:$0xff]
          %v1405 = vld [vmem:[%s299 + $0x580] sm:$0xff]
          %v1406 = vld [vmem:[%s299 + $0x588] sm:$0xff]
          %v1407 = vld [vmem:[%s299 + $0x590] sm:$0xff]
          %v1408 = vld [vmem:[%s299 + $0x598] sm:$0xff]
          %v1409 = vld [vmem:[%s299 + $0x5a0] sm:$0xff]
          %v1410 = vld [vmem:[%s299 + $0x5a8] sm:$0xff]
          %v1411 = vld [vmem:[%s299 + $0x5b0] sm:$0xff]
          %v1412 = vld [vmem:[%s299 + $0x5b8] sm:$0xff]
          %v1413 = vld [vmem:[%s299 + $0x5c0] sm:$0xff]
          %v1414 = vld [vmem:[%s299 + $0x5c8] sm:$0xff]
          %v1415 = vld [vmem:[%s299 + $0x5d0] sm:$0xff]
          %v1416 = vld [vmem:[%s299 + $0x5d8] sm:$0xff]
          %v1417 = vld [vmem:[%s299 + $0x5e0] sm:$0xff]
          %v1418 = vld [vmem:[%s299 + $0x5e8] sm:$0xff]
          %v1419 = vld [vmem:[%s299 + $0x5f0] sm:$0xff]
          %v1420 = vld [vmem:[%s299 + $0x5f8] sm:$0xff]
          %v1421 = vld [vmem:[%s299 + $0x600] sm:$0xff]
          %v1422 = vld [vmem:[%s299 + $0x608] sm:$0xff]
          %v1423 = vld [vmem:[%s299 + $0x610] sm:$0xff]
          %v1424 = vld [vmem:[%s299 + $0x618] sm:$0xff]
          %v1425 = vld [vmem:[%s299 + $0x620] sm:$0xff]
          %v1426 = vld [vmem:[%s299 + $0x628] sm:$0xff]
          %v1427 = vld [vmem:[%s299 + $0x630] sm:$0xff]
          %v1428 = vld [vmem:[%s299 + $0x638] sm:$0xff]
          %v1429 = vld [vmem:[%s299 + $0x640] sm:$0xff]
          %v1430 = vld [vmem:[%s299 + $0x648] sm:$0xff]
          %v1431 = vld [vmem:[%s299 + $0x650] sm:$0xff]
          %v1432 = vld [vmem:[%s299 + $0x658] sm:$0xff]
          %v1433 = vld [vmem:[%s299 + $0x660] sm:$0xff]
          %v1434 = vld [vmem:[%s299 + $0x668] sm:$0xff]
          %v1435 = vld [vmem:[%s299 + $0x670] sm:$0xff]
          %v1436 = vld [vmem:[%s299 + $0x678] sm:$0xff]
          %v1437 = vld [vmem:[%s299 + $0x680] sm:$0xff]
          %v1438 = vld [vmem:[%s299 + $0x688] sm:$0xff]
          %v1439 = vld [vmem:[%s299 + $0x690] sm:$0xff]
          %v1440 = vld [vmem:[%s299 + $0x698] sm:$0xff]
          %v1441 = vld [vmem:[%s299 + $0x6a0] sm:$0xff]
          %v1442 = vld [vmem:[%s299 + $0x6a8] sm:$0xff]
          %v1443 = vld [vmem:[%s299 + $0x6b0] sm:$0xff]
          %v1444 = vld [vmem:[%s299 + $0x6b8] sm:$0xff]
          %v1445 = vld [vmem:[%s299 + $0x6c0] sm:$0xff]
          %v1446 = vld [vmem:[%s299 + $0x6c8] sm:$0xff]
          %v1447 = vld [vmem:[%s299 + $0x6d0] sm:$0xff]
          %v1448 = vld [vmem:[%s299 + $0x6d8] sm:$0xff]
          %v1449 = vld [vmem:[%s299 + $0x6e0] sm:$0xff]
          %v1450 = vld [vmem:[%s299 + $0x6e8] sm:$0xff]
          %v1451 = vld [vmem:[%s299 + $0x6f0] sm:$0xff]
          %v1452 = vld [vmem:[%s299 + $0x6f8] sm:$0xff]
          %v1453 = vld [vmem:[%s299 + $0x700] sm:$0xff]
          %v1454 = vld [vmem:[%s299 + $0x708] sm:$0xff]
          %v1455 = vld [vmem:[%s299 + $0x710] sm:$0xff]
          %v1456 = vld [vmem:[%s299 + $0x718] sm:$0xff]
          %v1457 = vld [vmem:[%s299 + $0x720] sm:$0xff]
          %v1458 = vld [vmem:[%s299 + $0x728] sm:$0xff]
          %v1459 = vld [vmem:[%s299 + $0x730] sm:$0xff]
          %v1460 = vld [vmem:[%s299 + $0x738] sm:$0xff]
          %v1461 = vld [vmem:[%s299 + $0x740] sm:$0xff]
          %v1462 = vld [vmem:[%s299 + $0x748] sm:$0xff]
          %v1463 = vld [vmem:[%s299 + $0x750] sm:$0xff]
          %v1464 = vld [vmem:[%s299 + $0x758] sm:$0xff]
          %v1465 = vld [vmem:[%s299 + $0x760] sm:$0xff]
          %v1466 = vld [vmem:[%s299 + $0x768] sm:$0xff]
          %v1467 = vld [vmem:[%s299 + $0x770] sm:$0xff]
          %v1468 = vld [vmem:[%s299 + $0x778] sm:$0xff]
          %v1469 = vld [vmem:[%s299 + $0x780] sm:$0xff]
          %v1470 = vld [vmem:[%s299 + $0x788] sm:$0xff]
          %v1471 = vld [vmem:[%s299 + $0x790] sm:$0xff]
          %v1472 = vld [vmem:[%s299 + $0x798] sm:$0xff]
          %v1473 = vld [vmem:[%s299 + $0x7a0] sm:$0xff]
          %v1474 = vld [vmem:[%s299 + $0x7a8] sm:$0xff]
          %v1475 = vld [vmem:[%s299 + $0x7b0] sm:$0xff]
          %v1476 = vld [vmem:[%s299 + $0x7b8] sm:$0xff]
          %v1477 = vld [vmem:[%s299 + $0x7c0] sm:$0xff]
          %v1478 = vld [vmem:[%s299 + $0x7c8] sm:$0xff]
          %v1479 = vld [vmem:[%s299 + $0x7d0] sm:$0xff]
          %v1480 = vld [vmem:[%s299 + $0x7d8] sm:$0xff]
          %v1481 = vld [vmem:[%s299 + $0x7e0] sm:$0xff]
          %v1482 = vld [vmem:[%s299 + $0x7e8] sm:$0xff]
          %v1483 = vld [vmem:[%s299 + $0x7f0] sm:$0xff]
          %v1484 = vld [vmem:[%s299 + $0x7f8] sm:$0xff]
          %v1485 = vld [vmem:[%s317] sm:$0xff]
          %v1487 = vlaneseq
          %v1488 = vshrl.u32 %v1487, 7
          %v1489 = vsub.s32 0, %v1488
          %v1490 = vrot.slane %v1485, %v1489
          %v1491 = vlaneseq
          %v1492 = vshrl.u32 %v1491, 7
          %v1493 = vsub.s32 1, %v1492
          %v1494 = vrot.slane %v1485, %v1493
          %v1495 = vlaneseq
          %v1496 = vshrl.u32 %v1495, 7
          %v1497 = vsub.s32 2, %v1496
          %v1498 = vrot.slane %v1485, %v1497
          %v1499 = vlaneseq
          %v1500 = vshrl.u32 %v1499, 7
          %v1501 = vsub.s32 3, %v1500
          %v1502 = vrot.slane %v1485, %v1501
          %v1503 = vlaneseq
          %v1504 = vshrl.u32 %v1503, 7
          %v1505 = vsub.s32 4, %v1504
          %v1506 = vrot.slane %v1485, %v1505
          %v1507 = vlaneseq
          %v1508 = vshrl.u32 %v1507, 7
          %v1509 = vsub.s32 5, %v1508
          %v1510 = vrot.slane %v1485, %v1509
          %v1511 = vlaneseq
          %v1512 = vshrl.u32 %v1511, 7
          %v1513 = vsub.s32 6, %v1512
          %v1514 = vrot.slane %v1485, %v1513
          %v1515 = vlaneseq
          %v1516 = vshrl.u32 %v1515, 7
          %v1517 = vsub.s32 7, %v1516
          %v1518 = vrot.slane %v1485, %v1517
          %1527 = vmatprep.subr.mxu0 %v1230
          %1528 = vmatpush1.msra.mxu0 %v1229
          %1529 = vmatprep.subr.mxu0 %v1238
          %1530 = vmatpush1.msra.mxu0 %v1237
          %1531 = vmatprep.subr.mxu0 %v1246
          %1532 = vmatpush1.msra.mxu0 %v1245
          %1533 = vmatprep.subr.mxu0 %v1254
          %1534 = vmatpush1.msra.mxu0 %v1253
          %1535 = vmatprep.subr.mxu0 %v1262
          %1536 = vmatpush1.msra.mxu0 %v1261
          %1537 = vmatprep.subr.mxu0 %v1270
          %1538 = vmatpush1.msra.mxu0 %v1269
          %1539 = vmatprep.subr.mxu0 %v1278
          %1540 = vmatpush1.msra.mxu0 %v1277
          %1541 = vmatprep.subr.mxu0 %v1286
          %1542 = vmatpush1.msra.mxu0 %v1285
          %1543 = vmatprep.subr.mxu0 %v1294
          %1544 = vmatpush1.msra.mxu0 %v1293
          %1545 = vmatprep.subr.mxu0 %v1302
          %1546 = vmatpush1.msra.mxu0 %v1301
          %1547 = vmatprep.subr.mxu0 %v1310
          %1548 = vmatpush1.msra.mxu0 %v1309
          %1549 = vmatprep.subr.mxu0 %v1318
          %1550 = vmatpush1.msra.mxu0 %v1317
          %1551 = vmatprep.subr.mxu0 %v1326
          %1552 = vmatpush1.msra.mxu0 %v1325
          %1553 = vmatprep.subr.mxu0 %v1334
          %1554 = vmatpush1.msra.mxu0 %v1333
          %1555 = vmatprep.subr.mxu0 %v1342
          %1556 = vmatpush1.msra.mxu0 %v1341
          %1557 = vmatprep.subr.mxu0 %v1350
          %1558 = vmatpush1.msra.mxu0 %v1349
          %1559 = vmatprep.subr.mxu0 %v1358
          %1560 = vmatpush1.msra.mxu0 %v1357
          %1561 = vmatprep.subr.mxu0 %v1366
          %1562 = vmatpush1.msra.mxu0 %v1365
          %1563 = vmatprep.subr.mxu0 %v1374
          %1564 = vmatpush1.msra.mxu0 %v1373
          %1565 = vmatprep.subr.mxu0 %v1382
          %1566 = vmatpush1.msra.mxu0 %v1381
          %1567 = vmatprep.subr.mxu0 %v1390
          %1568 = vmatpush1.msra.mxu0 %v1389
          %1569 = vmatprep.subr.mxu0 %v1398
          %1570 = vmatpush1.msra.mxu0 %v1397
          %1571 = vmatprep.subr.mxu0 %v1406
          %1572 = vmatpush1.msra.mxu0 %v1405
          %1573 = vmatprep.subr.mxu0 %v1414
          %1574 = vmatpush1.msra.mxu0 %v1413
          %1575 = vmatprep.subr.mxu0 %v1422
          %1576 = vmatpush1.msra.mxu0 %v1421
          %1577 = vmatprep.subr.mxu0 %v1430
          %1578 = vmatpush1.msra.mxu0 %v1429
          %1579 = vmatprep.subr.mxu0 %v1438
          %1580 = vmatpush1.msra.mxu0 %v1437
          %1581 = vmatprep.subr.mxu0 %v1446
          %1582 = vmatpush1.msra.mxu0 %v1445
          %1583 = vmatprep.subr.mxu0 %v1454
          %1584 = vmatpush1.msra.mxu0 %v1453
          %1585 = vmatprep.subr.mxu0 %v1462
          %1586 = vmatpush1.msra.mxu0 %v1461
          %1587 = vmatprep.subr.mxu0 %v1470
          %1588 = vmatpush1.msra.mxu0 %v1469
          %1589 = vmatprep.subr.mxu0 %v1478
          %1590 = vmatpush1.msra.mxu0 %v1477
          %1591 = vmatprep.mubr.f32.mxu0 %v1214
          %1592 = vmatmul.mubr.f32.gmra.mrb[0].mxu0 %v1213
          %v1593 = vpop.f32.mrb[0].mxu0
          %v1594 = vadd.f32 %v1490, %v1593
          %v1595 = vpop.f32.mrb[0].mxu0
          %v1596 = vadd.f32 %v1494, %v1595
          %1597 = vmatprep.mubr.f32.mxu0 %v1216
          %1598 = vmatmul.mubr.f32.gmra.mrb[0].mxu0 %v1215
          %v1599 = vpop.f32.mrb[0].mxu0
          %v1600 = vadd.f32 %v1490, %v1599
          %v1601 = vpop.f32.mrb[0].mxu0
          %v1602 = vadd.f32 %v1494, %v1601
          %1603 = vmatprep.mubr.f32.mxu0 %v1218
          %1604 = vmatmul.mubr.f32.gmra.mrb[0].mxu0 %v1217
          %v1605 = vpop.f32.mrb[0].mxu0
          %v1606 = vadd.f32 %v1490, %v1605
          %v1607 = vpop.f32.mrb[0].mxu0
          %v1608 = vadd.f32 %v1494, %v1607
          %1609 = vmatprep.mubr.f32.mxu0 %v1220
          %1610 = vmatmul.mubr.f32.gmra.mrb[0].mxu0 %v1219
          %v1611 = vpop.f32.mrb[0].mxu0
          %v1612 = vadd.f32 %v1490, %v1611
          %v1613 = vpop.f32.mrb[0].mxu0
          %v1614 = vadd.f32 %v1494, %v1613
          %1615 = vmatprep.mubr.f32.mxu0 %v1222
          %1616 = vmatmul.mubr.f32.gmra.mrb[0].mxu0 %v1221
          %v1617 = vpop.f32.mrb[0].mxu0
          %v1618 = vadd.f32 %v1490, %v1617
          %v1619 = vpop.f32.mrb[0].mxu0
          %v1620 = vadd.f32 %v1494, %v1619
          %1621 = vmatprep.mubr.f32.mxu0 %v1224
          %1622 = vmatmul.mubr.f32.gmra.mrb[0].mxu0 %v1223
          %v1623 = vpop.f32.mrb[0].mxu0
          %v1624 = vadd.f32 %v1490, %v1623
          %v1625 = vpop.f32.mrb[0].mxu0
          %v1626 = vadd.f32 %v1494, %v1625
          %1627 = vmatprep.mubr.f32.mxu0 %v1226
          %1628 = vmatmul.mubr.f32.gmra.mrb[0].mxu0 %v1225
          %v1629 = vpop.f32.mrb[0].mxu0
          %v1630 = vadd.f32 %v1490, %v1629
          %v1631 = vpop.f32.mrb[0].mxu0
          %v1632 = vadd.f32 %v1494, %v1631
          %1633 = vmatprep.mubr.f32.mxu0 %v1228
          %1634 = vmatmul.mubr.f32.gmra.mrb[0].mxu0 %v1227
          %v1635 = vpop.f32.mrb[0].mxu0
          %v1636 = vadd.f32 %v1490, %v1635
          %v1637 = vpop.f32.mrb[0].mxu0
          %v1638 = vadd.f32 %v1494, %v1637
          %1639 = vdwg.mxu0
          %1640 = vmatprep.subr.mxu0 %v1232
          %1641 = vmatpush1.msra.mxu0 %v1231
          %1642 = vmatprep.subr.mxu0 %v1240
          %1643 = vmatpush1.msra.mxu0 %v1239
          %1644 = vmatprep.subr.mxu0 %v1248
          %1645 = vmatpush1.msra.mxu0 %v1247
          %1646 = vmatprep.subr.mxu0 %v1256
          %1647 = vmatpush1.msra.mxu0 %v1255
          %1648 = vmatprep.subr.mxu0 %v1264
          %1649 = vmatpush1.msra.mxu0 %v1263
          %1650 = vmatprep.subr.mxu0 %v1272
          %1651 = vmatpush1.msra.mxu0 %v1271
          %1652 = vmatprep.subr.mxu0 %v1280
          %1653 = vmatpush1.msra.mxu0 %v1279
          %1654 = vmatprep.subr.mxu0 %v1288
          %1655 = vmatpush1.msra.mxu0 %v1287
          %1656 = vmatprep.subr.mxu0 %v1296
          %1657 = vmatpush1.msra.mxu0 %v1295
          %1658 = vmatprep.subr.mxu0 %v1304
          %1659 = vmatpush1.msra.mxu0 %v1303
          %1660 = vmatprep.subr.mxu0 %v1312
          %1661 = vmatpush1.msra.mxu0 %v1311
          %1662 = vmatprep.subr.mxu0 %v1320
          %1663 = vmatpush1.msra.mxu0 %v1319
          %1664 = vmatprep.subr.mxu0 %v1328
          %1665 = vmatpush1.msra.mxu0 %v1327
          %1666 = vmatprep.subr.mxu0 %v1336
          %1667 = vmatpush1.msra.mxu0 %v1335
          %1668 = vmatprep.subr.mxu0 %v1344
          %1669 = vmatpush1.msra.mxu0 %v1343
          %1670 = vmatprep.subr.mxu0 %v1352
          %1671 = vmatpush1.msra.mxu0 %v1351
          %1672 = vmatprep.subr.mxu0 %v1360
          %1673 = vmatpush1.msra.mxu0 %v1359
          %1674 = vmatprep.subr.mxu0 %v1368
          %1675 = vmatpush1.msra.mxu0 %v1367
          %1676 = vmatprep.subr.mxu0 %v1376
          %1677 = vmatpush1.msra.mxu0 %v1375
          %1678 = vmatprep.subr.mxu0 %v1384
          %1679 = vmatpush1.msra.mxu0 %v1383
          %1680 = vmatprep.subr.mxu0 %v1392
          %1681 = vmatpush1.msra.mxu0 %v1391
          %1682 = vmatprep.subr.mxu0 %v1400
          %1683 = vmatpush1.msra.mxu0 %v1399
          %1684 = vmatprep.subr.mxu0 %v1408
          %1685 = vmatpush1.msra.mxu0 %v1407
          %1686 = vmatprep.subr.mxu0 %v1416
          %1687 = vmatpush1.msra.mxu0 %v1415
          %1688 = vmatprep.subr.mxu0 %v1424
          %1689 = vmatpush1.msra.mxu0 %v1423
          %1690 = vmatprep.subr.mxu0 %v1432
          %1691 = vmatpush1.msra.mxu0 %v1431
          %1692 = vmatprep.subr.mxu0 %v1440
          %1693 = vmatpush1.msra.mxu0 %v1439
          %1694 = vmatprep.subr.mxu0 %v1448
          %1695 = vmatpush1.msra.mxu0 %v1447
          %1696 = vmatprep.subr.mxu0 %v1456
          %1697 = vmatpush1.msra.mxu0 %v1455
          %1698 = vmatprep.subr.mxu0 %v1464
          %1699 = vmatpush1.msra.mxu0 %v1463
          %1700 = vmatprep.subr.mxu0 %v1472
          %1701 = vmatpush1.msra.mxu0 %v1471
          %1702 = vmatprep.subr.mxu0 %v1480
          %1703 = vmatpush1.msra.mxu0 %v1479
          %1704 = vmatprep.mubr.f32.mxu0 %v1214
          %1705 = vmatmul.mubr.f32.gmra.mrb[0].mxu0 %v1213
          %v1706 = vpop.f32.mrb[0].mxu0
          %v1707 = vadd.f32 %v1498, %v1706
          %v1708 = vpop.f32.mrb[0].mxu0
          %v1709 = vadd.f32 %v1502, %v1708
          %1710 = vmatprep.mubr.f32.mxu0 %v1216
          %1711 = vmatmul.mubr.f32.gmra.mrb[0].mxu0 %v1215
          %v1712 = vpop.f32.mrb[0].mxu0
          %v1713 = vadd.f32 %v1498, %v1712
          %v1714 = vpop.f32.mrb[0].mxu0
          %v1715 = vadd.f32 %v1502, %v1714
          %1716 = vmatprep.mubr.f32.mxu0 %v1218
          %1717 = vmatmul.mubr.f32.gmra.mrb[0].mxu0 %v1217
          %v1718 = vpop.f32.mrb[0].mxu0
          %v1719 = vadd.f32 %v1498, %v1718
          %v1720 = vpop.f32.mrb[0].mxu0
          %v1721 = vadd.f32 %v1502, %v1720
          %1722 = vmatprep.mubr.f32.mxu0 %v1220
          %1723 = vmatmul.mubr.f32.gmra.mrb[0].mxu0 %v1219
          %v1724 = vpop.f32.mrb[0].mxu0
          %v1725 = vadd.f32 %v1498, %v1724
          %v1726 = vpop.f32.mrb[0].mxu0
          %v1727 = vadd.f32 %v1502, %v1726
          %1728 = vmatprep.mubr.f32.mxu0 %v1222
          %1729 = vmatmul.mubr.f32.gmra.mrb[0].mxu0 %v1221
          %v1730 = vpop.f32.mrb[0].mxu0
          %v1731 = vadd.f32 %v1498, %v1730
          %v1732 = vpop.f32.mrb[0].mxu0
          %v1733 = vadd.f32 %v1502, %v1732
          %1734 = vmatprep.mubr.f32.mxu0 %v1224
          %1735 = vmatmul.mubr.f32.gmra.mrb[0].mxu0 %v1223
          %v1736 = vpop.f32.mrb[0].mxu0
          %v1737 = vadd.f32 %v1498, %v1736
          %v1738 = vpop.f32.mrb[0].mxu0
          %v1739 = vadd.f32 %v1502, %v1738
          %1740 = vmatprep.mubr.f32.mxu0 %v1226
          %1741 = vmatmul.mubr.f32.gmra.mrb[0].mxu0 %v1225
          %v1742 = vpop.f32.mrb[0].mxu0
          %v1743 = vadd.f32 %v1498, %v1742
          %v1744 = vpop.f32.mrb[0].mxu0
          %v1745 = vadd.f32 %v1502, %v1744
          %1746 = vmatprep.mubr.f32.mxu0 %v1228
          %1747 = vmatmul.mubr.f32.gmra.mrb[0].mxu0 %v1227
          %v1748 = vpop.f32.mrb[0].mxu0
          %v1749 = vadd.f32 %v1498, %v1748
          %v1750 = vpop.f32.mrb[0].mxu0
          %v1751 = vadd.f32 %v1502, %v1750
          %1752 = vdwg.mxu0
          %1753 = vmatprep.subr.mxu0 %v1234
          %1754 = vmatpush1.msra.mxu0 %v1233
          %1755 = vmatprep.subr.mxu0 %v1242
          %1756 = vmatpush1.msra.mxu0 %v1241
          %1757 = vmatprep.subr.mxu0 %v1250
          %1758 = vmatpush1.msra.mxu0 %v1249
          %1759 = vmatprep.subr.mxu0 %v1258
          %1760 = vmatpush1.msra.mxu0 %v1257
          %1761 = vmatprep.subr.mxu0 %v1266
          %1762 = vmatpush1.msra.mxu0 %v1265
          %1763 = vmatprep.subr.mxu0 %v1274
          %1764 = vmatpush1.msra.mxu0 %v1273
          %1765 = vmatprep.subr.mxu0 %v1282
          %1766 = vmatpush1.msra.mxu0 %v1281
          %1767 = vmatprep.subr.mxu0 %v1290
          %1768 = vmatpush1.msra.mxu0 %v1289
          %1769 = vmatprep.subr.mxu0 %v1298
          %1770 = vmatpush1.msra.mxu0 %v1297
          %1771 = vmatprep.subr.mxu0 %v1306
          %1772 = vmatpush1.msra.mxu0 %v1305
          %1773 = vmatprep.subr.mxu0 %v1314
          %1774 = vmatpush1.msra.mxu0 %v1313
          %1775 = vmatprep.subr.mxu0 %v1322
          %1776 = vmatpush1.msra.mxu0 %v1321
          %1777 = vmatprep.subr.mxu0 %v1330
          %1778 = vmatpush1.msra.mxu0 %v1329
          %1779 = vmatprep.subr.mxu0 %v1338
          %1780 = vmatpush1.msra.mxu0 %v1337
          %1781 = vmatprep.subr.mxu0 %v1346
          %1782 = vmatpush1.msra.mxu0 %v1345
          %1783 = vmatprep.subr.mxu0 %v1354
          %1784 = vmatpush1.msra.mxu0 %v1353
          %1785 = vmatprep.subr.mxu0 %v1362
          %1786 = vmatpush1.msra.mxu0 %v1361
          %1787 = vmatprep.subr.mxu0 %v1370
          %1788 = vmatpush1.msra.mxu0 %v1369
          %1789 = vmatprep.subr.mxu0 %v1378
          %1790 = vmatpush1.msra.mxu0 %v1377
          %1791 = vmatprep.subr.mxu0 %v1386
          %1792 = vmatpush1.msra.mxu0 %v1385
          %1793 = vmatprep.subr.mxu0 %v1394
          %1794 = vmatpush1.msra.mxu0 %v1393
          %1795 = vmatprep.subr.mxu0 %v1402
          %1796 = vmatpush1.msra.mxu0 %v1401
          %1797 = vmatprep.subr.mxu0 %v1410
          %1798 = vmatpush1.msra.mxu0 %v1409
          %1799 = vmatprep.subr.mxu0 %v1418
          %1800 = vmatpush1.msra.mxu0 %v1417
          %1801 = vmatprep.subr.mxu0 %v1426
          %1802 = vmatpush1.msra.mxu0 %v1425
          %1803 = vmatprep.subr.mxu0 %v1434
          %1804 = vmatpush1.msra.mxu0 %v1433
          %1805 = vmatprep.subr.mxu0 %v1442
          %1806 = vmatpush1.msra.mxu0 %v1441
          %1807 = vmatprep.subr.mxu0 %v1450
          %1808 = vmatpush1.msra.mxu0 %v1449
          %1809 = vmatprep.subr.mxu0 %v1458
          %1810 = vmatpush1.msra.mxu0 %v1457
          %1811 = vmatprep.subr.mxu0 %v1466
          %1812 = vmatpush1.msra.mxu0 %v1465
          %1813 = vmatprep.subr.mxu0 %v1474
          %1814 = vmatpush1.msra.mxu0 %v1473
          %1815 = vmatprep.subr.mxu0 %v1482
          %1816 = vmatpush1.msra.mxu0 %v1481
          %1817 = vmatprep.mubr.f32.mxu0 %v1214
          %1818 = vmatmul.mubr.f32.gmra.mrb[0].mxu0 %v1213
          %v1819 = vpop.f32.mrb[0].mxu0
          %v1820 = vadd.f32 %v1506, %v1819
          %v1821 = vpop.f32.mrb[0].mxu0
          %v1822 = vadd.f32 %v1510, %v1821
          %1823 = vmatprep.mubr.f32.mxu0 %v1216
          %1824 = vmatmul.mubr.f32.gmra.mrb[0].mxu0 %v1215
          %v1825 = vpop.f32.mrb[0].mxu0
          %v1826 = vadd.f32 %v1506, %v1825
          %v1827 = vpop.f32.mrb[0].mxu0
          %v1828 = vadd.f32 %v1510, %v1827
          %1829 = vmatprep.mubr.f32.mxu0 %v1218
          %1830 = vmatmul.mubr.f32.gmra.mrb[0].mxu0 %v1217
          %v1831 = vpop.f32.mrb[0].mxu0
          %v1832 = vadd.f32 %v1506, %v1831
          %v1833 = vpop.f32.mrb[0].mxu0
          %v1834 = vadd.f32 %v1510, %v1833
          %1835 = vmatprep.mubr.f32.mxu0 %v1220
          %1836 = vmatmul.mubr.f32.gmra.mrb[0].mxu0 %v1219
          %v1837 = vpop.f32.mrb[0].mxu0
          %v1838 = vadd.f32 %v1506, %v1837
          %v1839 = vpop.f32.mrb[0].mxu0
          %v1840 = vadd.f32 %v1510, %v1839
          %1841 = vmatprep.mubr.f32.mxu0 %v1222
          %1842 = vmatmul.mubr.f32.gmra.mrb[0].mxu0 %v1221
          %v1843 = vpop.f32.mrb[0].mxu0
          %v1844 = vadd.f32 %v1506, %v1843
          %v1845 = vpop.f32.mrb[0].mxu0
          %v1846 = vadd.f32 %v1510, %v1845
          %1847 = vmatprep.mubr.f32.mxu0 %v1224
          %1848 = vmatmul.mubr.f32.gmra.mrb[0].mxu0 %v1223
          %v1849 = vpop.f32.mrb[0].mxu0
          %v1850 = vadd.f32 %v1506, %v1849
          %v1851 = vpop.f32.mrb[0].mxu0
          %v1852 = vadd.f32 %v1510, %v1851
          %1853 = vmatprep.mubr.f32.mxu0 %v1226
          %1854 = vmatmul.mubr.f32.gmra.mrb[0].mxu0 %v1225
          %v1855 = vpop.f32.mrb[0].mxu0
          %v1856 = vadd.f32 %v1506, %v1855
          %v1857 = vpop.f32.mrb[0].mxu0
          %v1858 = vadd.f32 %v1510, %v1857
          %1859 = vmatprep.mubr.f32.mxu0 %v1228
          %1860 = vmatmul.mubr.f32.gmra.mrb[0].mxu0 %v1227
          %v1861 = vpop.f32.mrb[0].mxu0
          %v1862 = vadd.f32 %v1506, %v1861
          %v1863 = vpop.f32.mrb[0].mxu0
          %v1864 = vadd.f32 %v1510, %v1863
          %1865 = vdwg.mxu0
          %1866 = vmatprep.subr.mxu0 %v1236
          %1867 = vmatpush1.msra.mxu0 %v1235
          %1868 = vmatprep.subr.mxu0 %v1244
          %1869 = vmatpush1.msra.mxu0 %v1243
          %1870 = vmatprep.subr.mxu0 %v1252
          %1871 = vmatpush1.msra.mxu0 %v1251
          %1872 = vmatprep.subr.mxu0 %v1260
          %1873 = vmatpush1.msra.mxu0 %v1259
          %1874 = vmatprep.subr.mxu0 %v1268
          %1875 = vmatpush1.msra.mxu0 %v1267
          %1876 = vmatprep.subr.mxu0 %v1276
          %1877 = vmatpush1.msra.mxu0 %v1275
          %1878 = vmatprep.subr.mxu0 %v1284
          %1879 = vmatpush1.msra.mxu0 %v1283
          %1880 = vmatprep.subr.mxu0 %v1292
          %1881 = vmatpush1.msra.mxu0 %v1291
          %1882 = vmatprep.subr.mxu0 %v1300
          %1883 = vmatpush1.msra.mxu0 %v1299
          %1884 = vmatprep.subr.mxu0 %v1308
          %1885 = vmatpush1.msra.mxu0 %v1307
          %1886 = vmatprep.subr.mxu0 %v1316
          %1887 = vmatpush1.msra.mxu0 %v1315
          %1888 = vmatprep.subr.mxu0 %v1324
          %1889 = vmatpush1.msra.mxu0 %v1323
          %1890 = vmatprep.subr.mxu0 %v1332
          %1891 = vmatpush1.msra.mxu0 %v1331
          %1892 = vmatprep.subr.mxu0 %v1340
          %1893 = vmatpush1.msra.mxu0 %v1339
          %1894 = vmatprep.subr.mxu0 %v1348
          %1895 = vmatpush1.msra.mxu0 %v1347
          %1896 = vmatprep.subr.mxu0 %v1356
          %1897 = vmatpush1.msra.mxu0 %v1355
          %1898 = vmatprep.subr.mxu0 %v1364
          %1899 = vmatpush1.msra.mxu0 %v1363
          %1900 = vmatprep.subr.mxu0 %v1372
          %1901 = vmatpush1.msra.mxu0 %v1371
          %1902 = vmatprep.subr.mxu0 %v1380
          %1903 = vmatpush1.msra.mxu0 %v1379
          %1904 = vmatprep.subr.mxu0 %v1388
          %1905 = vmatpush1.msra.mxu0 %v1387
          %1906 = vmatprep.subr.mxu0 %v1396
          %1907 = vmatpush1.msra.mxu0 %v1395
          %1908 = vmatprep.subr.mxu0 %v1404
          %1909 = vmatpush1.msra.mxu0 %v1403
          %1910 = vmatprep.subr.mxu0 %v1412
          %1911 = vmatpush1.msra.mxu0 %v1411
          %1912 = vmatprep.subr.mxu0 %v1420
          %1913 = vmatpush1.msra.mxu0 %v1419
          %1914 = vmatprep.subr.mxu0 %v1428
          %1915 = vmatpush1.msra.mxu0 %v1427
          %1916 = vmatprep.subr.mxu0 %v1436
          %1917 = vmatpush1.msra.mxu0 %v1435
          %1918 = vmatprep.subr.mxu0 %v1444
          %1919 = vmatpush1.msra.mxu0 %v1443
          %1920 = vmatprep.subr.mxu0 %v1452
          %1921 = vmatpush1.msra.mxu0 %v1451
          %1922 = vmatprep.subr.mxu0 %v1460
          %1923 = vmatpush1.msra.mxu0 %v1459
          %1924 = vmatprep.subr.mxu0 %v1468
          %1925 = vmatpush1.msra.mxu0 %v1467
          %1926 = vmatprep.subr.mxu0 %v1476
          %1927 = vmatpush1.msra.mxu0 %v1475
          %1928 = vmatprep.subr.mxu0 %v1484
          %1929 = vmatpush1.msra.mxu0 %v1483
          %1930 = vmatprep.mubr.f32.mxu0 %v1214
          %1931 = vmatmul.mubr.f32.gmra.mrb[0].mxu0 %v1213
          %v1932 = vpop.f32.mrb[0].mxu0
          %v1933 = vadd.f32 %v1514, %v1932
          %v1934 = vpop.f32.mrb[0].mxu0
          %v1935 = vadd.f32 %v1518, %v1934
          %1936 = vmatprep.mubr.f32.mxu0 %v1216
          %1937 = vmatmul.mubr.f32.gmra.mrb[0].mxu0 %v1215
          %v1938 = vpop.f32.mrb[0].mxu0
          %v1939 = vadd.f32 %v1514, %v1938
          %v1940 = vpop.f32.mrb[0].mxu0
          %v1941 = vadd.f32 %v1518, %v1940
          %1942 = vmatprep.mubr.f32.mxu0 %v1218
          %1943 = vmatmul.mubr.f32.gmra.mrb[0].mxu0 %v1217
          %v1944 = vpop.f32.mrb[0].mxu0
          %v1945 = vadd.f32 %v1514, %v1944
          %v1946 = vpop.f32.mrb[0].mxu0
          %v1947 = vadd.f32 %v1518, %v1946
          %1948 = vmatprep.mubr.f32.mxu0 %v1220
          %1949 = vmatmul.mubr.f32.gmra.mrb[0].mxu0 %v1219
          %v1950 = vpop.f32.mrb[0].mxu0
          %v1951 = vadd.f32 %v1514, %v1950
          %v1952 = vpop.f32.mrb[0].mxu0
          %v1953 = vadd.f32 %v1518, %v1952
          %1954 = vmatprep.mubr.f32.mxu0 %v1222
          %1955 = vmatmul.mubr.f32.gmra.mrb[0].mxu0 %v1221
          %v1956 = vpop.f32.mrb[0].mxu0
          %v1957 = vadd.f32 %v1514, %v1956
          %v1958 = vpop.f32.mrb[0].mxu0
          %v1959 = vadd.f32 %v1518, %v1958
          %1960 = vmatprep.mubr.f32.mxu0 %v1224
          %1961 = vmatmul.mubr.f32.gmra.mrb[0].mxu0 %v1223
          %v1962 = vpop.f32.mrb[0].mxu0
          %v1963 = vadd.f32 %v1514, %v1962
          %v1964 = vpop.f32.mrb[0].mxu0
          %v1965 = vadd.f32 %v1518, %v1964
          %1966 = vmatprep.mubr.f32.mxu0 %v1226
          %1967 = vmatmul.mubr.f32.gmra.mrb[0].mxu0 %v1225
          %v1968 = vpop.f32.mrb[0].mxu0
          %v1969 = vadd.f32 %v1514, %v1968
          %v1970 = vpop.f32.mrb[0].mxu0
          %v1971 = vadd.f32 %v1518, %v1970
          %1972 = vmatprep.mubr.f32.mxu0 %v1228
          %1973 = vmatmul.mubr.f32.gmra.mrb[0].mxu0 %v1227
          %v1974 = vpop.f32.mrb[0].mxu0
          %v1975 = vadd.f32 %v1514, %v1974
          %v1976 = vpop.f32.mrb[0].mxu0
          %v1977 = vadd.f32 %v1518, %v1976
          %1978 = vdwg.mxu0
          %1979 = vst [vmem:[#allocation2] sm:$0xff] %v1594
          %1980 = vst [vmem:[#allocation2 + $0x8] sm:$0xff] %v1596
          %1981 = vst [vmem:[#allocation2 + $0x10] sm:$0xff] %v1707
          %1982 = vst [vmem:[#allocation2 + $0x18] sm:$0xff] %v1709
          %1983 = vst [vmem:[#allocation2 + $0x20] sm:$0xff] %v1820
          %1984 = vst [vmem:[#allocation2 + $0x28] sm:$0xff] %v1822
          %1985 = vst [vmem:[#allocation2 + $0x30] sm:$0xff] %v1933
          %1986 = vst [vmem:[#allocation2 + $0x38] sm:$0xff] %v1935
          %1987 = vst [vmem:[#allocation2 + $0x40] sm:$0xff] %v1600
          %1988 = vst [vmem:[#allocation2 + $0x48] sm:$0xff] %v1602
          %1989 = vst [vmem:[#allocation2 + $0x50] sm:$0xff] %v1713
          %1990 = vst [vmem:[#allocation2 + $0x58] sm:$0xff] %v1715
          %1991 = vst [vmem:[#allocation2 + $0x60] sm:$0xff] %v1826
          %1992 = vst [vmem:[#allocation2 + $0x68] sm:$0xff] %v1828
          %1993 = vst [vmem:[#allocation2 + $0x70] sm:$0xff] %v1939
          %1994 = vst [vmem:[#allocation2 + $0x78] sm:$0xff] %v1941
          %1995 = vst [vmem:[#allocation2 + $0x80] sm:$0xff] %v1606
          %1996 = vst [vmem:[#allocation2 + $0x88] sm:$0xff] %v1608
          %1997 = vst [vmem:[#allocation2 + $0x90] sm:$0xff] %v1719
          %1998 = vst [vmem:[#allocation2 + $0x98] sm:$0xff] %v1721
          %1999 = vst [vmem:[#allocation2 + $0xa0] sm:$0xff] %v1832
          %2000 = vst [vmem:[#allocation2 + $0xa8] sm:$0xff] %v1834
          %2001 = vst [vmem:[#allocation2 + $0xb0] sm:$0xff] %v1945
          %2002 = vst [vmem:[#allocation2 + $0xb8] sm:$0xff] %v1947
          %2003 = vst [vmem:[#allocation2 + $0xc0] sm:$0xff] %v1612
          %2004 = vst [vmem:[#allocation2 + $0xc8] sm:$0xff] %v1614
          %2005 = vst [vmem:[#allocation2 + $0xd0] sm:$0xff] %v1725
          %2006 = vst [vmem:[#allocation2 + $0xd8] sm:$0xff] %v1727
          %2007 = vst [vmem:[#allocation2 + $0xe0] sm:$0xff] %v1838
          %2008 = vst [vmem:[#allocation2 + $0xe8] sm:$0xff] %v1840
          %2009 = vst [vmem:[#allocation2 + $0xf0] sm:$0xff] %v1951
          %2010 = vst [vmem:[#allocation2 + $0xf8] sm:$0xff] %v1953
          %2011 = vst [vmem:[#allocation2 + $0x100] sm:$0xff] %v1618
          %2012 = vst [vmem:[#allocation2 + $0x108] sm:$0xff] %v1620
          %2013 = vst [vmem:[#allocation2 + $0x110] sm:$0xff] %v1731
          %2014 = vst [vmem:[#allocation2 + $0x118] sm:$0xff] %v1733
          %2015 = vst [vmem:[#allocation2 + $0x120] sm:$0xff] %v1844
          %2016 = vst [vmem:[#allocation2 + $0x128] sm:$0xff] %v1846
          %2017 = vst [vmem:[#allocation2 + $0x130] sm:$0xff] %v1957
          %2018 = vst [vmem:[#allocation2 + $0x138] sm:$0xff] %v1959
          %2019 = vst [vmem:[#allocation2 + $0x140] sm:$0xff] %v1624
          %2020 = vst [vmem:[#allocation2 + $0x148] sm:$0xff] %v1626
          %2021 = vst [vmem:[#allocation2 + $0x150] sm:$0xff] %v1737
          %2022 = vst [vmem:[#allocation2 + $0x158] sm:$0xff] %v1739
          %2023 = vst [vmem:[#allocation2 + $0x160] sm:$0xff] %v1850
          %2024 = vst [vmem:[#allocation2 + $0x168] sm:$0xff] %v1852
          %2025 = vst [vmem:[#allocation2 + $0x170] sm:$0xff] %v1963
          %2026 = vst [vmem:[#allocation2 + $0x178] sm:$0xff] %v1965
          %2027 = vst [vmem:[#allocation2 + $0x180] sm:$0xff] %v1630
          %2028 = vst [vmem:[#allocation2 + $0x188] sm:$0xff] %v1632
          %2029 = vst [vmem:[#allocation2 + $0x190] sm:$0xff] %v1743
          %2030 = vst [vmem:[#allocation2 + $0x198] sm:$0xff] %v1745
          %2031 = vst [vmem:[#allocation2 + $0x1a0] sm:$0xff] %v1856
          %2032 = vst [vmem:[#allocation2 + $0x1a8] sm:$0xff] %v1858
          %2033 = vst [vmem:[#allocation2 + $0x1b0] sm:$0xff] %v1969
          %2034 = vst [vmem:[#allocation2 + $0x1b8] sm:$0xff] %v1971
          %2035 = vst [vmem:[#allocation2 + $0x1c0] sm:$0xff] %v1636
          %2036 = vst [vmem:[#allocation2 + $0x1c8] sm:$0xff] %v1638
          %2037 = vst [vmem:[#allocation2 + $0x1d0] sm:$0xff] %v1749
          %2038 = vst [vmem:[#allocation2 + $0x1d8] sm:$0xff] %v1751
          %2039 = vst [vmem:[#allocation2 + $0x1e0] sm:$0xff] %v1862
          %2040 = vst [vmem:[#allocation2 + $0x1e8] sm:$0xff] %v1864
          %2041 = vst [vmem:[#allocation2 + $0x1f0] sm:$0xff] %v1975
          %2042 = vst [vmem:[#allocation2 + $0x1f8] sm:$0xff] %v1977
        $region72: #{simple_lstm_forward.1} parent=43 // pred_fallthru
          _
        %s2043 = smul.u32 0, 8
        %s2044 = smul.addr %s2043, 8
        %s2045 = scalar_lea.vmem [#allocation2], %s2044
        %v2046 = vld [vmem:[%s2045] sm:$0xff]
        %v2047 = vld [vmem:[%s2045 + $0x8] sm:$0xff]
        %v2048 = vld [vmem:[%s2045 + $0x10] sm:$0xff]
        %v2049 = vld [vmem:[%s2045 + $0x18] sm:$0xff]
        %v2050 = vld [vmem:[%s308] sm:$0xff]
        %v2051 = vld [vmem:[%s308 + $0x8] sm:$0xff]
        %v2052 = vld [vmem:[%s308 + $0x10] sm:$0xff]
        %v2053 = vld [vmem:[%s308 + $0x18] sm:$0xff]
        %v2054 = vld [vmem:[%s308 + $0x20] sm:$0xff]
        %v2055 = vld [vmem:[%s308 + $0x28] sm:$0xff]
        %v2056 = vld [vmem:[%s308 + $0x30] sm:$0xff]
        %v2057 = vld [vmem:[%s308 + $0x38] sm:$0xff]
        %v2058 = vld [vmem:[%s308 + $0x40] sm:$0xff]
        %v2059 = vld [vmem:[%s308 + $0x48] sm:$0xff]
        %v2060 = vld [vmem:[%s308 + $0x50] sm:$0xff]
        %v2061 = vld [vmem:[%s308 + $0x58] sm:$0xff]
        %v2062 = vld [vmem:[%s308 + $0x60] sm:$0xff]
        %v2063 = vld [vmem:[%s308 + $0x68] sm:$0xff]
        %v2064 = vld [vmem:[%s308 + $0x70] sm:$0xff]
        %v2065 = vld [vmem:[%s308 + $0x78] sm:$0xff]
        %v2066 = vld [vmem:[%s308 + $0x80] sm:$0xff]
        %v2067 = vld [vmem:[%s308 + $0x88] sm:$0xff]
        %v2068 = vld [vmem:[%s308 + $0x90] sm:$0xff]
        %v2069 = vld [vmem:[%s308 + $0x98] sm:$0xff]
        %v2070 = vld [vmem:[%s308 + $0xa0] sm:$0xff]
        %v2071 = vld [vmem:[%s308 + $0xa8] sm:$0xff]
        %v2072 = vld [vmem:[%s308 + $0xb0] sm:$0xff]
        %v2073 = vld [vmem:[%s308 + $0xb8] sm:$0xff]
        %v2074 = vld [vmem:[%s308 + $0xc0] sm:$0xff]
        %v2075 = vld [vmem:[%s308 + $0xc8] sm:$0xff]
        %v2076 = vld [vmem:[%s308 + $0xd0] sm:$0xff]
        %v2077 = vld [vmem:[%s308 + $0xd8] sm:$0xff]
        %v2078 = vld [vmem:[%s308 + $0xe0] sm:$0xff]
        %v2079 = vld [vmem:[%s308 + $0xe8] sm:$0xff]
        %v2080 = vld [vmem:[%s308 + $0xf0] sm:$0xff]
        %v2081 = vld [vmem:[%s308 + $0xf8] sm:$0xff]
        %v2082 = vld [vmem:[%s308 + $0x100] sm:$0xff]
        %v2083 = vld [vmem:[%s308 + $0x108] sm:$0xff]
        %v2084 = vld [vmem:[%s308 + $0x110] sm:$0xff]
        %v2085 = vld [vmem:[%s308 + $0x118] sm:$0xff]
        %v2086 = vld [vmem:[%s308 + $0x120] sm:$0xff]
        %v2087 = vld [vmem:[%s308 + $0x128] sm:$0xff]
        %v2088 = vld [vmem:[%s308 + $0x130] sm:$0xff]
        %v2089 = vld [vmem:[%s308 + $0x138] sm:$0xff]
        %v2090 = vld [vmem:[%s308 + $0x140] sm:$0xff]
        %v2091 = vld [vmem:[%s308 + $0x148] sm:$0xff]
        %v2092 = vld [vmem:[%s308 + $0x150] sm:$0xff]
        %v2093 = vld [vmem:[%s308 + $0x158] sm:$0xff]
        %v2094 = vld [vmem:[%s308 + $0x160] sm:$0xff]
        %v2095 = vld [vmem:[%s308 + $0x168] sm:$0xff]
        %v2096 = vld [vmem:[%s308 + $0x170] sm:$0xff]
        %v2097 = vld [vmem:[%s308 + $0x178] sm:$0xff]
        %v2098 = vld [vmem:[%s308 + $0x180] sm:$0xff]
        %v2099 = vld [vmem:[%s308 + $0x188] sm:$0xff]
        %v2100 = vld [vmem:[%s308 + $0x190] sm:$0xff]
        %v2101 = vld [vmem:[%s308 + $0x198] sm:$0xff]
        %v2102 = vld [vmem:[%s308 + $0x1a0] sm:$0xff]
        %v2103 = vld [vmem:[%s308 + $0x1a8] sm:$0xff]
        %v2104 = vld [vmem:[%s308 + $0x1b0] sm:$0xff]
        %v2105 = vld [vmem:[%s308 + $0x1b8] sm:$0xff]
        %v2106 = vld [vmem:[%s308 + $0x1c0] sm:$0xff]
        %v2107 = vld [vmem:[%s308 + $0x1c8] sm:$0xff]
        %v2108 = vld [vmem:[%s308 + $0x1d0] sm:$0xff]
        %v2109 = vld [vmem:[%s308 + $0x1d8] sm:$0xff]
        %v2110 = vld [vmem:[%s308 + $0x1e0] sm:$0xff]
        %v2111 = vld [vmem:[%s308 + $0x1e8] sm:$0xff]
        %v2112 = vld [vmem:[%s308 + $0x1f0] sm:$0xff]
        %v2113 = vld [vmem:[%s308 + $0x1f8] sm:$0xff]
        %2114 = vmatprep.subr.mxu0 %v2051
        %2115 = vmatpush1.msra.mxu0 %v2050
        %2116 = vmatprep.subr.mxu0 %v2055
        %2117 = vmatpush1.msra.mxu0 %v2054
        %2118 = vmatprep.subr.mxu0 %v2059
        %2119 = vmatpush1.msra.mxu0 %v2058
        %2120 = vmatprep.subr.mxu0 %v2063
        %2121 = vmatpush1.msra.mxu0 %v2062
        %2122 = vmatprep.subr.mxu0 %v2067
        %2123 = vmatpush1.msra.mxu0 %v2066
        %2124 = vmatprep.subr.mxu0 %v2071
        %2125 = vmatpush1.msra.mxu0 %v2070
        %2126 = vmatprep.subr.mxu0 %v2075
        %2127 = vmatpush1.msra.mxu0 %v2074
        %2128 = vmatprep.subr.mxu0 %v2079
        %2129 = vmatpush1.msra.mxu0 %v2078
        %2130 = vmatprep.subr.mxu0 %v2083
        %2131 = vmatpush1.msra.mxu0 %v2082
        %2132 = vmatprep.subr.mxu0 %v2087
        %2133 = vmatpush1.msra.mxu0 %v2086
        %2134 = vmatprep.subr.mxu0 %v2091
        %2135 = vmatpush1.msra.mxu0 %v2090
        %2136 = vmatprep.subr.mxu0 %v2095
        %2137 = vmatpush1.msra.mxu0 %v2094
        %2138 = vmatprep.subr.mxu0 %v2099
        %2139 = vmatpush1.msra.mxu0 %v2098
        %2140 = vmatprep.subr.mxu0 %v2103
        %2141 = vmatpush1.msra.mxu0 %v2102
        %2142 = vmatprep.subr.mxu0 %v2107
        %2143 = vmatpush1.msra.mxu0 %v2106
        %2144 = vmatprep.subr.mxu0 %v2111
        %2145 = vmatpush1.msra.mxu0 %v2110
        %2146 = vmatprep.subr.mxu0 0.0
        %2147 = vmatpush1.msra.mxu0 0.0
        %2148 = vmatprep.subr.mxu0 0.0
        %2149 = vmatpush1.msra.mxu0 0.0
        %2150 = vmatprep.subr.mxu0 0.0
        %2151 = vmatpush1.msra.mxu0 0.0
        %2152 = vmatprep.subr.mxu0 0.0
        %2153 = vmatpush1.msra.mxu0 0.0
        %2154 = vmatprep.subr.mxu0 0.0
        %2155 = vmatpush1.msra.mxu0 0.0
        %2156 = vmatprep.subr.mxu0 0.0
        %2157 = vmatpush1.msra.mxu0 0.0
        %2158 = vmatprep.subr.mxu0 0.0
        %2159 = vmatpush1.msra.mxu0 0.0
        %2160 = vmatprep.subr.mxu0 0.0
        %2161 = vmatpush1.msra.mxu0 0.0
        %2162 = vmatprep.subr.mxu0 0.0
        %2163 = vmatpush1.msra.mxu0 0.0
        %2164 = vmatprep.subr.mxu0 0.0
        %2165 = vmatpush1.msra.mxu0 0.0
        %2166 = vmatprep.subr.mxu0 0.0
        %2167 = vmatpush1.msra.mxu0 0.0
        %2168 = vmatprep.subr.mxu0 0.0
        %2169 = vmatpush1.msra.mxu0 0.0
        %2170 = vmatprep.subr.mxu0 0.0
        %2171 = vmatpush1.msra.mxu0 0.0
        %2172 = vmatprep.subr.mxu0 0.0
        %2173 = vmatpush1.msra.mxu0 0.0
        %2174 = vmatprep.subr.mxu0 0.0
        %2175 = vmatpush1.msra.mxu0 0.0
        %2176 = vmatprep.subr.mxu0 0.0
        %2177 = vmatpush1.msra.mxu0 0.0
        %2178 = vmatprep.mubr.f32.mxu0 0.0
        %2179 = vmatmul.mubr.f32.gmra.mrb[0].mxu0 0.0
        %v2180 = vpop.f32.mrb[0].mxu0
        %v2181 = vadd.f32 0.0, %v2180
        %v2182 = vpop.f32.mrb[0].mxu0
        %v2183 = vadd.f32 0.0, %v2182
        %2184 = vdwg.mxu0
        %2185 = vmatprep.subr.mxu0 %v2053
        %2186 = vmatpush1.msra.mxu0 %v2052
        %2187 = vmatprep.subr.mxu0 %v2057
        %2188 = vmatpush1.msra.mxu0 %v2056
        %2189 = vmatprep.subr.mxu0 %v2061
        %2190 = vmatpush1.msra.mxu0 %v2060
        %2191 = vmatprep.subr.mxu0 %v2065
        %2192 = vmatpush1.msra.mxu0 %v2064
        %2193 = vmatprep.subr.mxu0 %v2069
        %2194 = vmatpush1.msra.mxu0 %v2068
        %2195 = vmatprep.subr.mxu0 %v2073
        %2196 = vmatpush1.msra.mxu0 %v2072
        %2197 = vmatprep.subr.mxu0 %v2077
        %2198 = vmatpush1.msra.mxu0 %v2076
        %2199 = vmatprep.subr.mxu0 %v2081
        %2200 = vmatpush1.msra.mxu0 %v2080
        %2201 = vmatprep.subr.mxu0 %v2085
        %2202 = vmatpush1.msra.mxu0 %v2084
        %2203 = vmatprep.subr.mxu0 %v2089
        %2204 = vmatpush1.msra.mxu0 %v2088
        %2205 = vmatprep.subr.mxu0 %v2093
        %2206 = vmatpush1.msra.mxu0 %v2092
        %2207 = vmatprep.subr.mxu0 %v2097
        %2208 = vmatpush1.msra.mxu0 %v2096
        %2209 = vmatprep.subr.mxu0 %v2101
        %2210 = vmatpush1.msra.mxu0 %v2100
        %2211 = vmatprep.subr.mxu0 %v2105
        %2212 = vmatpush1.msra.mxu0 %v2104
        %2213 = vmatprep.subr.mxu0 %v2109
        %2214 = vmatpush1.msra.mxu0 %v2108
        %2215 = vmatprep.subr.mxu0 %v2113
        %2216 = vmatpush1.msra.mxu0 %v2112
        %2217 = vmatprep.subr.mxu0 0.0
        %2218 = vmatpush1.msra.mxu0 0.0
        %2219 = vmatprep.subr.mxu0 0.0
        %2220 = vmatpush1.msra.mxu0 0.0
        %2221 = vmatprep.subr.mxu0 0.0
        %2222 = vmatpush1.msra.mxu0 0.0
        %2223 = vmatprep.subr.mxu0 0.0
        %2224 = vmatpush1.msra.mxu0 0.0
        %2225 = vmatprep.subr.mxu0 0.0
        %2226 = vmatpush1.msra.mxu0 0.0
        %2227 = vmatprep.subr.mxu0 0.0
        %2228 = vmatpush1.msra.mxu0 0.0
        %2229 = vmatprep.subr.mxu0 0.0
        %2230 = vmatpush1.msra.mxu0 0.0
        %2231 = vmatprep.subr.mxu0 0.0
        %2232 = vmatpush1.msra.mxu0 0.0
        %2233 = vmatprep.subr.mxu0 0.0
        %2234 = vmatpush1.msra.mxu0 0.0
        %2235 = vmatprep.subr.mxu0 0.0
        %2236 = vmatpush1.msra.mxu0 0.0
        %2237 = vmatprep.subr.mxu0 0.0
        %2238 = vmatpush1.msra.mxu0 0.0
        %2239 = vmatprep.subr.mxu0 0.0
        %2240 = vmatpush1.msra.mxu0 0.0
        %2241 = vmatprep.subr.mxu0 0.0
        %2242 = vmatpush1.msra.mxu0 0.0
        %2243 = vmatprep.subr.mxu0 0.0
        %2244 = vmatpush1.msra.mxu0 0.0
        %2245 = vmatprep.subr.mxu0 0.0
        %2246 = vmatpush1.msra.mxu0 0.0
        %2247 = vmatprep.subr.mxu0 0.0
        %2248 = vmatpush1.msra.mxu0 0.0
        %2249 = vmatprep.mubr.f32.mxu0 0.0
        %2250 = vmatmul.mubr.f32.gmra.mrb[0].mxu0 0.0
        %v2251 = vpop.f32.mrb[0].mxu0
        %v2252 = vadd.f32 0.0, %v2251
        %v2253 = vpop.f32.mrb[0].mxu0
        %v2254 = vadd.f32 0.0, %v2253
        %2255 = vdwg.mxu0
        %v2256 = vadd.f32 %v2046, %v2181
        %v2257 = vadd.f32 %v2047, %v2183
        %v2258 = vadd.f32 %v2048, %v2252
        %v2259 = vadd.f32 %v2049, %v2254
        %v2260 = vxor.u32 %v2256, 2147483648
        %v2261 = vmul.f32 %v2260, 1.442695
        %v2262 = vpow.pop %v2261
        %v2263 = vadd.f32 %v2262, 1.0
        %v2264 = vrcp.pop %v2263
        %v2265 = vmul.f32 1.0, %v2264
        %v2266 = vxor.u32 %v2257, 2147483648
        %v2267 = vmul.f32 %v2266, 1.442695
        %v2268 = vpow.pop %v2267
        %v2269 = vadd.f32 %v2268, 1.0
        %v2270 = vrcp.pop %v2269
        %v2271 = vmul.f32 1.0, %v2270
        %v2272 = vtanh.pop %v2258
        %v2273 = vxor.u32 %v2259, 2147483648
        %v2274 = vmul.f32 %v2273, 1.442695
        %v2275 = vpow.pop %v2274
        %v2276 = vadd.f32 %v2275, 1.0
        %v2277 = vrcp.pop %v2276
        %v2278 = vmul.f32 1.0, %v2277
        %v2279 = vmul.f32 %v2271, 0.0
        %v2280 = vmul.f32 %v2265, %v2272
        %v2281 = vadd.f32 %v2279, %v2280
        %v2282 = vtanh.pop %v2281
        %v2283 = vmul.f32 %v2278, %v2282
        %s2284 = smul.u32 0, 2
        %s2285 = smul.addr %s2284, 8
        %s2286 = scalar_lea.vmem [#allocation3], %s2285
        %2287 = vst [vmem:[%s2286] sm:$0xff] %v2283
        %s2288 = smul.u32 7, 8
        %s2289 = smul.addr %s2288, 8
        %s2290 = scalar_lea.vmem [#allocation2], %s2289
        %v2291 = vld [vmem:[%s2290 + $0x20] sm:$0xff]
        %v2292 = vld [vmem:[%s2290 + $0x28] sm:$0xff]
        %v2293 = vld [vmem:[%s2290 + $0x30] sm:$0xff]
        %v2294 = vld [vmem:[%s2290 + $0x38] sm:$0xff]
        %s2295 = scalar_lea.vmem %s308, 512 [#allocation6]
        %v2296 = vld [vmem:[%s2295] sm:$0xff]
        %v2297 = vld [vmem:[%s2295 + $0x8] sm:$0xff]
        %v2298 = vld [vmem:[%s2295 + $0x10] sm:$0xff]
        %v2299 = vld [vmem:[%s2295 + $0x18] sm:$0xff]
        %v2300 = vld [vmem:[%s2295 + $0x20] sm:$0xff]
        %v2301 = vld [vmem:[%s2295 + $0x28] sm:$0xff]
        %v2302 = vld [vmem:[%s2295 + $0x30] sm:$0xff]
        %v2303 = vld [vmem:[%s2295 + $0x38] sm:$0xff]
        %v2304 = vld [vmem:[%s2295 + $0x40] sm:$0xff]
        %v2305 = vld [vmem:[%s2295 + $0x48] sm:$0xff]
        %v2306 = vld [vmem:[%s2295 + $0x50] sm:$0xff]
        %v2307 = vld [vmem:[%s2295 + $0x58] sm:$0xff]
        %v2308 = vld [vmem:[%s2295 + $0x60] sm:$0xff]
        %v2309 = vld [vmem:[%s2295 + $0x68] sm:$0xff]
        %v2310 = vld [vmem:[%s2295 + $0x70] sm:$0xff]
        %v2311 = vld [vmem:[%s2295 + $0x78] sm:$0xff]
        %v2312 = vld [vmem:[%s2295 + $0x80] sm:$0xff]
        %v2313 = vld [vmem:[%s2295 + $0x88] sm:$0xff]
        %v2314 = vld [vmem:[%s2295 + $0x90] sm:$0xff]
        %v2315 = vld [vmem:[%s2295 + $0x98] sm:$0xff]
        %v2316 = vld [vmem:[%s2295 + $0xa0] sm:$0xff]
        %v2317 = vld [vmem:[%s2295 + $0xa8] sm:$0xff]
        %v2318 = vld [vmem:[%s2295 + $0xb0] sm:$0xff]
        %v2319 = vld [vmem:[%s2295 + $0xb8] sm:$0xff]
        %v2320 = vld [vmem:[%s2295 + $0xc0] sm:$0xff]
        %v2321 = vld [vmem:[%s2295 + $0xc8] sm:$0xff]
        %v2322 = vld [vmem:[%s2295 + $0xd0] sm:$0xff]
        %v2323 = vld [vmem:[%s2295 + $0xd8] sm:$0xff]
        %v2324 = vld [vmem:[%s2295 + $0xe0] sm:$0xff]
        %v2325 = vld [vmem:[%s2295 + $0xe8] sm:$0xff]
        %v2326 = vld [vmem:[%s2295 + $0xf0] sm:$0xff]
        %v2327 = vld [vmem:[%s2295 + $0xf8] sm:$0xff]
        %v2328 = vld [vmem:[%s2295 + $0x100] sm:$0xff]
        %v2329 = vld [vmem:[%s2295 + $0x108] sm:$0xff]
        %v2330 = vld [vmem:[%s2295 + $0x110] sm:$0xff]
        %v2331 = vld [vmem:[%s2295 + $0x118] sm:$0xff]
        %v2332 = vld [vmem:[%s2295 + $0x120] sm:$0xff]
        %v2333 = vld [vmem:[%s2295 + $0x128] sm:$0xff]
        %v2334 = vld [vmem:[%s2295 + $0x130] sm:$0xff]
        %v2335 = vld [vmem:[%s2295 + $0x138] sm:$0xff]
        %v2336 = vld [vmem:[%s2295 + $0x140] sm:$0xff]
        %v2337 = vld [vmem:[%s2295 + $0x148] sm:$0xff]
        %v2338 = vld [vmem:[%s2295 + $0x150] sm:$0xff]
        %v2339 = vld [vmem:[%s2295 + $0x158] sm:$0xff]
        %v2340 = vld [vmem:[%s2295 + $0x160] sm:$0xff]
        %v2341 = vld [vmem:[%s2295 + $0x168] sm:$0xff]
        %v2342 = vld [vmem:[%s2295 + $0x170] sm:$0xff]
        %v2343 = vld [vmem:[%s2295 + $0x178] sm:$0xff]
        %v2344 = vld [vmem:[%s2295 + $0x180] sm:$0xff]
        %v2345 = vld [vmem:[%s2295 + $0x188] sm:$0xff]
        %v2346 = vld [vmem:[%s2295 + $0x190] sm:$0xff]
        %v2347 = vld [vmem:[%s2295 + $0x198] sm:$0xff]
        %v2348 = vld [vmem:[%s2295 + $0x1a0] sm:$0xff]
        %v2349 = vld [vmem:[%s2295 + $0x1a8] sm:$0xff]
        %v2350 = vld [vmem:[%s2295 + $0x1b0] sm:$0xff]
        %v2351 = vld [vmem:[%s2295 + $0x1b8] sm:$0xff]
        %v2352 = vld [vmem:[%s2295 + $0x1c0] sm:$0xff]
        %v2353 = vld [vmem:[%s2295 + $0x1c8] sm:$0xff]
        %v2354 = vld [vmem:[%s2295 + $0x1d0] sm:$0xff]
        %v2355 = vld [vmem:[%s2295 + $0x1d8] sm:$0xff]
        %v2356 = vld [vmem:[%s2295 + $0x1e0] sm:$0xff]
        %v2357 = vld [vmem:[%s2295 + $0x1e8] sm:$0xff]
        %v2358 = vld [vmem:[%s2295 + $0x1f0] sm:$0xff]
        %v2359 = vld [vmem:[%s2295 + $0x1f8] sm:$0xff]
        %2360 = vmatprep.subr.mxu0 %v2297
        %2361 = vmatpush1.msra.mxu0 %v2296
        %2362 = vmatprep.subr.mxu0 %v2301
        %2363 = vmatpush1.msra.mxu0 %v2300
        %2364 = vmatprep.subr.mxu0 %v2305
        %2365 = vmatpush1.msra.mxu0 %v2304
        %2366 = vmatprep.subr.mxu0 %v2309
        %2367 = vmatpush1.msra.mxu0 %v2308
        %2368 = vmatprep.subr.mxu0 %v2313
        %2369 = vmatpush1.msra.mxu0 %v2312
        %2370 = vmatprep.subr.mxu0 %v2317
        %2371 = vmatpush1.msra.mxu0 %v2316
        %2372 = vmatprep.subr.mxu0 %v2321
        %2373 = vmatpush1.msra.mxu0 %v2320
        %2374 = vmatprep.subr.mxu0 %v2325
        %2375 = vmatpush1.msra.mxu0 %v2324
        %2376 = vmatprep.subr.mxu0 %v2329
        %2377 = vmatpush1.msra.mxu0 %v2328
        %2378 = vmatprep.subr.mxu0 %v2333
        %2379 = vmatpush1.msra.mxu0 %v2332
        %2380 = vmatprep.subr.mxu0 %v2337
        %2381 = vmatpush1.msra.mxu0 %v2336
        %2382 = vmatprep.subr.mxu0 %v2341
        %2383 = vmatpush1.msra.mxu0 %v2340
        %2384 = vmatprep.subr.mxu0 %v2345
        %2385 = vmatpush1.msra.mxu0 %v2344
        %2386 = vmatprep.subr.mxu0 %v2349
        %2387 = vmatpush1.msra.mxu0 %v2348
        %2388 = vmatprep.subr.mxu0 %v2353
        %2389 = vmatpush1.msra.mxu0 %v2352
        %2390 = vmatprep.subr.mxu0 %v2357
        %2391 = vmatpush1.msra.mxu0 %v2356
        %2392 = vmatprep.subr.mxu0 0.0
        %2393 = vmatpush1.msra.mxu0 0.0
        %2394 = vmatprep.subr.mxu0 0.0
        %2395 = vmatpush1.msra.mxu0 0.0
        %2396 = vmatprep.subr.mxu0 0.0
        %2397 = vmatpush1.msra.mxu0 0.0
        %2398 = vmatprep.subr.mxu0 0.0
        %2399 = vmatpush1.msra.mxu0 0.0
        %2400 = vmatprep.subr.mxu0 0.0
        %2401 = vmatpush1.msra.mxu0 0.0
        %2402 = vmatprep.subr.mxu0 0.0
        %2403 = vmatpush1.msra.mxu0 0.0
        %2404 = vmatprep.subr.mxu0 0.0
        %2405 = vmatpush1.msra.mxu0 0.0
        %2406 = vmatprep.subr.mxu0 0.0
        %2407 = vmatpush1.msra.mxu0 0.0
        %2408 = vmatprep.subr.mxu0 0.0
        %2409 = vmatpush1.msra.mxu0 0.0
        %2410 = vmatprep.subr.mxu0 0.0
        %2411 = vmatpush1.msra.mxu0 0.0
        %2412 = vmatprep.subr.mxu0 0.0
        %2413 = vmatpush1.msra.mxu0 0.0
        %2414 = vmatprep.subr.mxu0 0.0
        %2415 = vmatpush1.msra.mxu0 0.0
        %2416 = vmatprep.subr.mxu0 0.0
        %2417 = vmatpush1.msra.mxu0 0.0
        %2418 = vmatprep.subr.mxu0 0.0
        %2419 = vmatpush1.msra.mxu0 0.0
        %2420 = vmatprep.subr.mxu0 0.0
        %2421 = vmatpush1.msra.mxu0 0.0
        %2422 = vmatprep.subr.mxu0 0.0
        %2423 = vmatpush1.msra.mxu0 0.0
        %2424 = vmatprep.mubr.f32.mxu0 0.0
        %2425 = vmatmul.mubr.f32.gmra.mrb[0].mxu0 0.0
        %v2426 = vpop.f32.mrb[0].mxu0
        %v2427 = vadd.f32 0.0, %v2426
        %v2428 = vpop.f32.mrb[0].mxu0
        %v2429 = vadd.f32 0.0, %v2428
        %2430 = vdwg.mxu0
        %2431 = vmatprep.subr.mxu0 %v2299
        %2432 = vmatpush1.msra.mxu0 %v2298
        %2433 = vmatprep.subr.mxu0 %v2303
        %2434 = vmatpush1.msra.mxu0 %v2302
        %2435 = vmatprep.subr.mxu0 %v2307
        %2436 = vmatpush1.msra.mxu0 %v2306
        %2437 = vmatprep.subr.mxu0 %v2311
        %2438 = vmatpush1.msra.mxu0 %v2310
        %2439 = vmatprep.subr.mxu0 %v2315
        %2440 = vmatpush1.msra.mxu0 %v2314
        %2441 = vmatprep.subr.mxu0 %v2319
        %2442 = vmatpush1.msra.mxu0 %v2318
        %2443 = vmatprep.subr.mxu0 %v2323
        %2444 = vmatpush1.msra.mxu0 %v2322
        %2445 = vmatprep.subr.mxu0 %v2327
        %2446 = vmatpush1.msra.mxu0 %v2326
        %2447 = vmatprep.subr.mxu0 %v2331
        %2448 = vmatpush1.msra.mxu0 %v2330
        %2449 = vmatprep.subr.mxu0 %v2335
        %2450 = vmatpush1.msra.mxu0 %v2334
        %2451 = vmatprep.subr.mxu0 %v2339
        %2452 = vmatpush1.msra.mxu0 %v2338
        %2453 = vmatprep.subr.mxu0 %v2343
        %2454 = vmatpush1.msra.mxu0 %v2342
        %2455 = vmatprep.subr.mxu0 %v2347
        %2456 = vmatpush1.msra.mxu0 %v2346
        %2457 = vmatprep.subr.mxu0 %v2351
        %2458 = vmatpush1.msra.mxu0 %v2350
        %2459 = vmatprep.subr.mxu0 %v2355
        %2460 = vmatpush1.msra.mxu0 %v2354
        %2461 = vmatprep.subr.mxu0 %v2359
        %2462 = vmatpush1.msra.mxu0 %v2358
        %2463 = vmatprep.subr.mxu0 0.0
        %2464 = vmatpush1.msra.mxu0 0.0
        %2465 = vmatprep.subr.mxu0 0.0
        %2466 = vmatpush1.msra.mxu0 0.0
        %2467 = vmatprep.subr.mxu0 0.0
        %2468 = vmatpush1.msra.mxu0 0.0
        %2469 = vmatprep.subr.mxu0 0.0
        %2470 = vmatpush1.msra.mxu0 0.0
        %2471 = vmatprep.subr.mxu0 0.0
        %2472 = vmatpush1.msra.mxu0 0.0
        %2473 = vmatprep.subr.mxu0 0.0
        %2474 = vmatpush1.msra.mxu0 0.0
        %2475 = vmatprep.subr.mxu0 0.0
        %2476 = vmatpush1.msra.mxu0 0.0
        %2477 = vmatprep.subr.mxu0 0.0
        %2478 = vmatpush1.msra.mxu0 0.0
        %2479 = vmatprep.subr.mxu0 0.0
        %2480 = vmatpush1.msra.mxu0 0.0
        %2481 = vmatprep.subr.mxu0 0.0
        %2482 = vmatpush1.msra.mxu0 0.0
        %2483 = vmatprep.subr.mxu0 0.0
        %2484 = vmatpush1.msra.mxu0 0.0
        %2485 = vmatprep.subr.mxu0 0.0
        %2486 = vmatpush1.msra.mxu0 0.0
        %2487 = vmatprep.subr.mxu0 0.0
        %2488 = vmatpush1.msra.mxu0 0.0
        %2489 = vmatprep.subr.mxu0 0.0
        %2490 = vmatpush1.msra.mxu0 0.0
        %2491 = vmatprep.subr.mxu0 0.0
        %2492 = vmatpush1.msra.mxu0 0.0
        %2493 = vmatprep.subr.mxu0 0.0
        %2494 = vmatpush1.msra.mxu0 0.0
        %2495 = vmatprep.mubr.f32.mxu0 0.0
        %2496 = vmatmul.mubr.f32.gmra.mrb[0].mxu0 0.0
        %v2497 = vpop.f32.mrb[0].mxu0
        %v2498 = vadd.f32 0.0, %v2497
        %v2499 = vpop.f32.mrb[0].mxu0
        %v2500 = vadd.f32 0.0, %v2499
        %2501 = vdwg.mxu0
        %v2502 = vadd.f32 %v2291, %v2427
        %v2503 = vadd.f32 %v2292, %v2429
        %v2504 = vadd.f32 %v2293, %v2498
        %v2505 = vadd.f32 %v2294, %v2500
        %v2506 = vxor.u32 %v2502, 2147483648
        %v2507 = vmul.f32 %v2506, 1.442695
        %v2508 = vpow.pop %v2507
        %v2509 = vadd.f32 %v2508, 1.0
        %v2510 = vrcp.pop %v2509
        %v2511 = vmul.f32 1.0, %v2510
        %v2512 = vxor.u32 %v2503, 2147483648
        %v2513 = vmul.f32 %v2512, 1.442695
        %v2514 = vpow.pop %v2513
        %v2515 = vadd.f32 %v2514, 1.0
        %v2516 = vrcp.pop %v2515
        %v2517 = vmul.f32 1.0, %v2516
        %v2518 = vtanh.pop %v2504
        %v2519 = vxor.u32 %v2505, 2147483648
        %v2520 = vmul.f32 %v2519, 1.442695
        %v2521 = vpow.pop %v2520
        %v2522 = vadd.f32 %v2521, 1.0
        %v2523 = vrcp.pop %v2522
        %v2524 = vmul.f32 1.0, %v2523
        %v2525 = vmul.f32 %v2517, 0.0
        %v2526 = vmul.f32 %v2511, %v2518
        %v2527 = vadd.f32 %v2525, %v2526
        %v2528 = vtanh.pop %v2527
        %v2529 = vmul.f32 %v2524, %v2528
        %s2530 = smul.u32 7, 2
        %s2531 = smul.addr %s2530, 8
        %s2532 = scalar_lea.vmem [#allocation3], %s2531
        %2533 = vst [vmem:[%s2532 + $0x8] sm:$0xff] %v2529
        %s2534 = smul.u32 1, 8
        %s2535 = smul.addr %s2534, 8
        %s2536 = scalar_lea.vmem [#allocation2], %s2535
        %v2537 = vld [vmem:[%s2536] sm:$0xff]
        %v2538 = vld [vmem:[%s2536 + $0x8] sm:$0xff]
        %v2539 = vld [vmem:[%s2536 + $0x10] sm:$0xff]
        %v2540 = vld [vmem:[%s2536 + $0x18] sm:$0xff]
        %v2541 = vld [vmem:[%s308] sm:$0xff]
        %v2542 = vld [vmem:[%s308 + $0x8] sm:$0xff]
        %v2543 = vld [vmem:[%s308 + $0x10] sm:$0xff]
        %v2544 = vld [vmem:[%s308 + $0x18] sm:$0xff]
        %v2545 = vld [vmem:[%s308 + $0x20] sm:$0xff]
        %v2546 = vld [vmem:[%s308 + $0x28] sm:$0xff]
        %v2547 = vld [vmem:[%s308 + $0x30] sm:$0xff]
        %v2548 = vld [vmem:[%s308 + $0x38] sm:$0xff]
        %v2549 = vld [vmem:[%s308 + $0x40] sm:$0xff]
        %v2550 = vld [vmem:[%s308 + $0x48] sm:$0xff]
        %v2551 = vld [vmem:[%s308 + $0x50] sm:$0xff]
        %v2552 = vld [vmem:[%s308 + $0x58] sm:$0xff]
        %v2553 = vld [vmem:[%s308 + $0x60] sm:$0xff]
        %v2554 = vld [vmem:[%s308 + $0x68] sm:$0xff]
        %v2555 = vld [vmem:[%s308 + $0x70] sm:$0xff]
        %v2556 = vld [vmem:[%s308 + $0x78] sm:$0xff]
        %v2557 = vld [vmem:[%s308 + $0x80] sm:$0xff]
        %v2558 = vld [vmem:[%s308 + $0x88] sm:$0xff]
        %v2559 = vld [vmem:[%s308 + $0x90] sm:$0xff]
        %v2560 = vld [vmem:[%s308 + $0x98] sm:$0xff]
        %v2561 = vld [vmem:[%s308 + $0xa0] sm:$0xff]
        %v2562 = vld [vmem:[%s308 + $0xa8] sm:$0xff]
        %v2563 = vld [vmem:[%s308 + $0xb0] sm:$0xff]
        %v2564 = vld [vmem:[%s308 + $0xb8] sm:$0xff]
        %v2565 = vld [vmem:[%s308 + $0xc0] sm:$0xff]
        %v2566 = vld [vmem:[%s308 + $0xc8] sm:$0xff]
        %v2567 = vld [vmem:[%s308 + $0xd0] sm:$0xff]
        %v2568 = vld [vmem:[%s308 + $0xd8] sm:$0xff]
        %v2569 = vld [vmem:[%s308 + $0xe0] sm:$0xff]
        %v2570 = vld [vmem:[%s308 + $0xe8] sm:$0xff]
        %v2571 = vld [vmem:[%s308 + $0xf0] sm:$0xff]
        %v2572 = vld [vmem:[%s308 + $0xf8] sm:$0xff]
        %v2573 = vld [vmem:[%s308 + $0x100] sm:$0xff]
        %v2574 = vld [vmem:[%s308 + $0x108] sm:$0xff]
        %v2575 = vld [vmem:[%s308 + $0x110] sm:$0xff]
        %v2576 = vld [vmem:[%s308 + $0x118] sm:$0xff]
        %v2577 = vld [vmem:[%s308 + $0x120] sm:$0xff]
        %v2578 = vld [vmem:[%s308 + $0x128] sm:$0xff]
        %v2579 = vld [vmem:[%s308 + $0x130] sm:$0xff]
        %v2580 = vld [vmem:[%s308 + $0x138] sm:$0xff]
        %v2581 = vld [vmem:[%s308 + $0x140] sm:$0xff]
        %v2582 = vld [vmem:[%s308 + $0x148] sm:$0xff]
        %v2583 = vld [vmem:[%s308 + $0x150] sm:$0xff]
        %v2584 = vld [vmem:[%s308 + $0x158] sm:$0xff]
        %v2585 = vld [vmem:[%s308 + $0x160] sm:$0xff]
        %v2586 = vld [vmem:[%s308 + $0x168] sm:$0xff]
        %v2587 = vld [vmem:[%s308 + $0x170] sm:$0xff]
        %v2588 = vld [vmem:[%s308 + $0x178] sm:$0xff]
        %v2589 = vld [vmem:[%s308 + $0x180] sm:$0xff]
        %v2590 = vld [vmem:[%s308 + $0x188] sm:$0xff]
        %v2591 = vld [vmem:[%s308 + $0x190] sm:$0xff]
        %v2592 = vld [vmem:[%s308 + $0x198] sm:$0xff]
        %v2593 = vld [vmem:[%s308 + $0x1a0] sm:$0xff]
        %v2594 = vld [vmem:[%s308 + $0x1a8] sm:$0xff]
        %v2595 = vld [vmem:[%s308 + $0x1b0] sm:$0xff]
        %v2596 = vld [vmem:[%s308 + $0x1b8] sm:$0xff]
        %v2597 = vld [vmem:[%s308 + $0x1c0] sm:$0xff]
        %v2598 = vld [vmem:[%s308 + $0x1c8] sm:$0xff]
        %v2599 = vld [vmem:[%s308 + $0x1d0] sm:$0xff]
        %v2600 = vld [vmem:[%s308 + $0x1d8] sm:$0xff]
        %v2601 = vld [vmem:[%s308 + $0x1e0] sm:$0xff]
        %v2602 = vld [vmem:[%s308 + $0x1e8] sm:$0xff]
        %v2603 = vld [vmem:[%s308 + $0x1f0] sm:$0xff]
        %v2604 = vld [vmem:[%s308 + $0x1f8] sm:$0xff]
        %2605 = vmatprep.subr.mxu0 %v2542
        %2606 = vmatpush1.msra.mxu0 %v2541
        %2607 = vmatprep.subr.mxu0 %v2546
        %2608 = vmatpush1.msra.mxu0 %v2545
        %2609 = vmatprep.subr.mxu0 %v2550
        %2610 = vmatpush1.msra.mxu0 %v2549
        %2611 = vmatprep.subr.mxu0 %v2554
        %2612 = vmatpush1.msra.mxu0 %v2553
        %2613 = vmatprep.subr.mxu0 %v2558
        %2614 = vmatpush1.msra.mxu0 %v2557
        %2615 = vmatprep.subr.mxu0 %v2562
        %2616 = vmatpush1.msra.mxu0 %v2561
        %2617 = vmatprep.subr.mxu0 %v2566
        %2618 = vmatpush1.msra.mxu0 %v2565
        %2619 = vmatprep.subr.mxu0 %v2570
        %2620 = vmatpush1.msra.mxu0 %v2569
        %2621 = vmatprep.subr.mxu0 %v2574
        %2622 = vmatpush1.msra.mxu0 %v2573
        %2623 = vmatprep.subr.mxu0 %v2578
        %2624 = vmatpush1.msra.mxu0 %v2577
        %2625 = vmatprep.subr.mxu0 %v2582
        %2626 = vmatpush1.msra.mxu0 %v2581
        %2627 = vmatprep.subr.mxu0 %v2586
        %2628 = vmatpush1.msra.mxu0 %v2585
        %2629 = vmatprep.subr.mxu0 %v2590
        %2630 = vmatpush1.msra.mxu0 %v2589
        %2631 = vmatprep.subr.mxu0 %v2594
        %2632 = vmatpush1.msra.mxu0 %v2593
        %2633 = vmatprep.subr.mxu0 %v2598
        %2634 = vmatpush1.msra.mxu0 %v2597
        %2635 = vmatprep.subr.mxu0 %v2602
        %2636 = vmatpush1.msra.mxu0 %v2601
        %2637 = vmatprep.subr.mxu0 0.0
        %2638 = vmatpush1.msra.mxu0 0.0
        %2639 = vmatprep.subr.mxu0 0.0
        %2640 = vmatpush1.msra.mxu0 0.0
        %2641 = vmatprep.subr.mxu0 0.0
        %2642 = vmatpush1.msra.mxu0 0.0
        %2643 = vmatprep.subr.mxu0 0.0
        %2644 = vmatpush1.msra.mxu0 0.0
        %2645 = vmatprep.subr.mxu0 0.0
        %2646 = vmatpush1.msra.mxu0 0.0
        %2647 = vmatprep.subr.mxu0 0.0
        %2648 = vmatpush1.msra.mxu0 0.0
        %2649 = vmatprep.subr.mxu0 0.0
        %2650 = vmatpush1.msra.mxu0 0.0
        %2651 = vmatprep.subr.mxu0 0.0
        %2652 = vmatpush1.msra.mxu0 0.0
        %2653 = vmatprep.subr.mxu0 0.0
        %2654 = vmatpush1.msra.mxu0 0.0
        %2655 = vmatprep.subr.mxu0 0.0
        %2656 = vmatpush1.msra.mxu0 0.0
        %2657 = vmatprep.subr.mxu0 0.0
        %2658 = vmatpush1.msra.mxu0 0.0
        %2659 = vmatprep.subr.mxu0 0.0
        %2660 = vmatpush1.msra.mxu0 0.0
        %2661 = vmatprep.subr.mxu0 0.0
        %2662 = vmatpush1.msra.mxu0 0.0
        %2663 = vmatprep.subr.mxu0 0.0
        %2664 = vmatpush1.msra.mxu0 0.0
        %2665 = vmatprep.subr.mxu0 0.0
        %2666 = vmatpush1.msra.mxu0 0.0
        %2667 = vmatprep.subr.mxu0 0.0
        %2668 = vmatpush1.msra.mxu0 0.0
        %2669 = vmatprep.mubr.f32.mxu0 0.0
        %2670 = vmatmul.mubr.f32.gmra.mrb[0].mxu0 %v2283
        %v2671 = vpop.f32.mrb[0].mxu0
        %v2672 = vadd.f32 0.0, %v2671
        %v2673 = vpop.f32.mrb[0].mxu0
        %v2674 = vadd.f32 0.0, %v2673
        %2675 = vdwg.mxu0
        %2676 = vmatprep.subr.mxu0 %v2544
        %2677 = vmatpush1.msra.mxu0 %v2543
        %2678 = vmatprep.subr.mxu0 %v2548
        %2679 = vmatpush1.msra.mxu0 %v2547
        %2680 = vmatprep.subr.mxu0 %v2552
        %2681 = vmatpush1.msra.mxu0 %v2551
        %2682 = vmatprep.subr.mxu0 %v2556
        %2683 = vmatpush1.msra.mxu0 %v2555
        %2684 = vmatprep.subr.mxu0 %v2560
        %2685 = vmatpush1.msra.mxu0 %v2559
        %2686 = vmatprep.subr.mxu0 %v2564
        %2687 = vmatpush1.msra.mxu0 %v2563
        %2688 = vmatprep.subr.mxu0 %v2568
        %2689 = vmatpush1.msra.mxu0 %v2567
        %2690 = vmatprep.subr.mxu0 %v2572
        %2691 = vmatpush1.msra.mxu0 %v2571
        %2692 = vmatprep.subr.mxu0 %v2576
        %2693 = vmatpush1.msra.mxu0 %v2575
        %2694 = vmatprep.subr.mxu0 %v2580
        %2695 = vmatpush1.msra.mxu0 %v2579
        %2696 = vmatprep.subr.mxu0 %v2584
        %2697 = vmatpush1.msra.mxu0 %v2583
        %2698 = vmatprep.subr.mxu0 %v2588
        %2699 = vmatpush1.msra.mxu0 %v2587
        %2700 = vmatprep.subr.mxu0 %v2592
        %2701 = vmatpush1.msra.mxu0 %v2591
        %2702 = vmatprep.subr.mxu0 %v2596
        %2703 = vmatpush1.msra.mxu0 %v2595
        %2704 = vmatprep.subr.mxu0 %v2600
        %2705 = vmatpush1.msra.mxu0 %v2599
        %2706 = vmatprep.subr.mxu0 %v2604
        %2707 = vmatpush1.msra.mxu0 %v2603
        %2708 = vmatprep.subr.mxu0 0.0
        %2709 = vmatpush1.msra.mxu0 0.0
        %2710 = vmatprep.subr.mxu0 0.0
        %2711 = vmatpush1.msra.mxu0 0.0
        %2712 = vmatprep.subr.mxu0 0.0
        %2713 = vmatpush1.msra.mxu0 0.0
        %2714 = vmatprep.subr.mxu0 0.0
        %2715 = vmatpush1.msra.mxu0 0.0
        %2716 = vmatprep.subr.mxu0 0.0
        %2717 = vmatpush1.msra.mxu0 0.0
        %2718 = vmatprep.subr.mxu0 0.0
        %2719 = vmatpush1.msra.mxu0 0.0
        %2720 = vmatprep.subr.mxu0 0.0
        %2721 = vmatpush1.msra.mxu0 0.0
        %2722 = vmatprep.subr.mxu0 0.0
        %2723 = vmatpush1.msra.mxu0 0.0
        %2724 = vmatprep.subr.mxu0 0.0
        %2725 = vmatpush1.msra.mxu0 0.0
        %2726 = vmatprep.subr.mxu0 0.0
        %2727 = vmatpush1.msra.mxu0 0.0
        %2728 = vmatprep.subr.mxu0 0.0
        %2729 = vmatpush1.msra.mxu0 0.0
        %2730 = vmatprep.subr.mxu0 0.0
        %2731 = vmatpush1.msra.mxu0 0.0
        %2732 = vmatprep.subr.mxu0 0.0
        %2733 = vmatpush1.msra.mxu0 0.0
        %2734 = vmatprep.subr.mxu0 0.0
        %2735 = vmatpush1.msra.mxu0 0.0
        %2736 = vmatprep.subr.mxu0 0.0
        %2737 = vmatpush1.msra.mxu0 0.0
        %2738 = vmatprep.subr.mxu0 0.0
        %2739 = vmatpush1.msra.mxu0 0.0
        %2740 = vmatprep.mubr.f32.mxu0 0.0
        %2741 = vmatmul.mubr.f32.gmra.mrb[0].mxu0 %v2283
        %v2742 = vpop.f32.mrb[0].mxu0
        %v2743 = vadd.f32 0.0, %v2742
        %v2744 = vpop.f32.mrb[0].mxu0
        %v2745 = vadd.f32 0.0, %v2744
        %2746 = vdwg.mxu0
        %v2747 = vadd.f32 %v2537, %v2672
        %v2748 = vadd.f32 %v2538, %v2674
        %v2749 = vadd.f32 %v2539, %v2743
        %v2750 = vadd.f32 %v2540, %v2745
        %v2751 = vxor.u32 %v2747, 2147483648
        %v2752 = vmul.f32 %v2751, 1.442695
        %v2753 = vpow.pop %v2752
        %v2754 = vadd.f32 %v2753, 1.0
        %v2755 = vrcp.pop %v2754
        %v2756 = vmul.f32 1.0, %v2755
        %v2757 = vxor.u32 %v2748, 2147483648
        %v2758 = vmul.f32 %v2757, 1.442695
        %v2759 = vpow.pop %v2758
        %v2760 = vadd.f32 %v2759, 1.0
        %v2761 = vrcp.pop %v2760
        %v2762 = vmul.f32 1.0, %v2761
        %v2763 = vtanh.pop %v2749
        %v2764 = vxor.u32 %v2750, 2147483648
        %v2765 = vmul.f32 %v2764, 1.442695
        %v2766 = vpow.pop %v2765
        %v2767 = vadd.f32 %v2766, 1.0
        %v2768 = vrcp.pop %v2767
        %v2769 = vmul.f32 1.0, %v2768
        %v2770 = vmul.f32 %v2762, %v2281
        %v2771 = vmul.f32 %v2756, %v2763
        %v2772 = vadd.f32 %v2770, %v2771
        %v2773 = vtanh.pop %v2772
        %v2774 = vmul.f32 %v2769, %v2773
        %s2775 = smul.u32 1, 2
        %s2776 = smul.addr %s2775, 8
        %s2777 = scalar_lea.vmem [#allocation3], %s2776
        %2778 = vst [vmem:[%s2777] sm:$0xff] %v2774
        %s2779 = smul.u32 6, 8
        %s2780 = smul.addr %s2779, 8
        %s2781 = scalar_lea.vmem [#allocation2], %s2780
        %v2782 = vld [vmem:[%s2781 + $0x20] sm:$0xff]
        %v2783 = vld [vmem:[%s2781 + $0x28] sm:$0xff]
        %v2784 = vld [vmem:[%s2781 + $0x30] sm:$0xff]
        %v2785 = vld [vmem:[%s2781 + $0x38] sm:$0xff]
        %v2786 = vld [vmem:[%s2295] sm:$0xff]
        %v2787 = vld [vmem:[%s2295 + $0x8] sm:$0xff]
        %v2788 = vld [vmem:[%s2295 + $0x10] sm:$0xff]
        %v2789 = vld [vmem:[%s2295 + $0x18] sm:$0xff]
        %v2790 = vld [vmem:[%s2295 + $0x20] sm:$0xff]
        %v2791 = vld [vmem:[%s2295 + $0x28] sm:$0xff]
        %v2792 = vld [vmem:[%s2295 + $0x30] sm:$0xff]
        %v2793 = vld [vmem:[%s2295 + $0x38] sm:$0xff]
        %v2794 = vld [vmem:[%s2295 + $0x40] sm:$0xff]
        %v2795 = vld [vmem:[%s2295 + $0x48] sm:$0xff]
        %v2796 = vld [vmem:[%s2295 + $0x50] sm:$0xff]
        %v2797 = vld [vmem:[%s2295 + $0x58] sm:$0xff]
        %v2798 = vld [vmem:[%s2295 + $0x60] sm:$0xff]
        %v2799 = vld [vmem:[%s2295 + $0x68] sm:$0xff]
        %v2800 = vld [vmem:[%s2295 + $0x70] sm:$0xff]
        %v2801 = vld [vmem:[%s2295 + $0x78] sm:$0xff]
        %v2802 = vld [vmem:[%s2295 + $0x80] sm:$0xff]
        %v2803 = vld [vmem:[%s2295 + $0x88] sm:$0xff]
        %v2804 = vld [vmem:[%s2295 + $0x90] sm:$0xff]
        %v2805 = vld [vmem:[%s2295 + $0x98] sm:$0xff]
        %v2806 = vld [vmem:[%s2295 + $0xa0] sm:$0xff]
        %v2807 = vld [vmem:[%s2295 + $0xa8] sm:$0xff]
        %v2808 = vld [vmem:[%s2295 + $0xb0] sm:$0xff]
        %v2809 = vld [vmem:[%s2295 + $0xb8] sm:$0xff]
        %v2810 = vld [vmem:[%s2295 + $0xc0] sm:$0xff]
        %v2811 = vld [vmem:[%s2295 + $0xc8] sm:$0xff]
        %v2812 = vld [vmem:[%s2295 + $0xd0] sm:$0xff]
        %v2813 = vld [vmem:[%s2295 + $0xd8] sm:$0xff]
        %v2814 = vld [vmem:[%s2295 + $0xe0] sm:$0xff]
        %v2815 = vld [vmem:[%s2295 + $0xe8] sm:$0xff]
        %v2816 = vld [vmem:[%s2295 + $0xf0] sm:$0xff]
        %v2817 = vld [vmem:[%s2295 + $0xf8] sm:$0xff]
        %v2818 = vld [vmem:[%s2295 + $0x100] sm:$0xff]
        %v2819 = vld [vmem:[%s2295 + $0x108] sm:$0xff]
        %v2820 = vld [vmem:[%s2295 + $0x110] sm:$0xff]
        %v2821 = vld [vmem:[%s2295 + $0x118] sm:$0xff]
        %v2822 = vld [vmem:[%s2295 + $0x120] sm:$0xff]
        %v2823 = vld [vmem:[%s2295 + $0x128] sm:$0xff]
        %v2824 = vld [vmem:[%s2295 + $0x130] sm:$0xff]
        %v2825 = vld [vmem:[%s2295 + $0x138] sm:$0xff]
        %v2826 = vld [vmem:[%s2295 + $0x140] sm:$0xff]
        %v2827 = vld [vmem:[%s2295 + $0x148] sm:$0xff]
        %v2828 = vld [vmem:[%s2295 + $0x150] sm:$0xff]
        %v2829 = vld [vmem:[%s2295 + $0x158] sm:$0xff]
        %v2830 = vld [vmem:[%s2295 + $0x160] sm:$0xff]
        %v2831 = vld [vmem:[%s2295 + $0x168] sm:$0xff]
        %v2832 = vld [vmem:[%s2295 + $0x170] sm:$0xff]
        %v2833 = vld [vmem:[%s2295 + $0x178] sm:$0xff]
        %v2834 = vld [vmem:[%s2295 + $0x180] sm:$0xff]
        %v2835 = vld [vmem:[%s2295 + $0x188] sm:$0xff]
        %v2836 = vld [vmem:[%s2295 + $0x190] sm:$0xff]
        %v2837 = vld [vmem:[%s2295 + $0x198] sm:$0xff]
        %v2838 = vld [vmem:[%s2295 + $0x1a0] sm:$0xff]
        %v2839 = vld [vmem:[%s2295 + $0x1a8] sm:$0xff]
        %v2840 = vld [vmem:[%s2295 + $0x1b0] sm:$0xff]
        %v2841 = vld [vmem:[%s2295 + $0x1b8] sm:$0xff]
        %v2842 = vld [vmem:[%s2295 + $0x1c0] sm:$0xff]
        %v2843 = vld [vmem:[%s2295 + $0x1c8] sm:$0xff]
        %v2844 = vld [vmem:[%s2295 + $0x1d0] sm:$0xff]
        %v2845 = vld [vmem:[%s2295 + $0x1d8] sm:$0xff]
        %v2846 = vld [vmem:[%s2295 + $0x1e0] sm:$0xff]
        %v2847 = vld [vmem:[%s2295 + $0x1e8] sm:$0xff]
        %v2848 = vld [vmem:[%s2295 + $0x1f0] sm:$0xff]
        %v2849 = vld [vmem:[%s2295 + $0x1f8] sm:$0xff]
        %2850 = vmatprep.subr.mxu0 %v2787
        %2851 = vmatpush1.msra.mxu0 %v2786
        %2852 = vmatprep.subr.mxu0 %v2791
        %2853 = vmatpush1.msra.mxu0 %v2790
        %2854 = vmatprep.subr.mxu0 %v2795
        %2855 = vmatpush1.msra.mxu0 %v2794
        %2856 = vmatprep.subr.mxu0 %v2799
        %2857 = vmatpush1.msra.mxu0 %v2798
        %2858 = vmatprep.subr.mxu0 %v2803
        %2859 = vmatpush1.msra.mxu0 %v2802
        %2860 = vmatprep.subr.mxu0 %v2807
        %2861 = vmatpush1.msra.mxu0 %v2806
        %2862 = vmatprep.subr.mxu0 %v2811
        %2863 = vmatpush1.msra.mxu0 %v2810
        %2864 = vmatprep.subr.mxu0 %v2815
        %2865 = vmatpush1.msra.mxu0 %v2814
        %2866 = vmatprep.subr.mxu0 %v2819
        %2867 = vmatpush1.msra.mxu0 %v2818
        %2868 = vmatprep.subr.mxu0 %v2823
        %2869 = vmatpush1.msra.mxu0 %v2822
        %2870 = vmatprep.subr.mxu0 %v2827
        %2871 = vmatpush1.msra.mxu0 %v2826
        %2872 = vmatprep.subr.mxu0 %v2831
        %2873 = vmatpush1.msra.mxu0 %v2830
        %2874 = vmatprep.subr.mxu0 %v2835
        %2875 = vmatpush1.msra.mxu0 %v2834
        %2876 = vmatprep.subr.mxu0 %v2839
        %2877 = vmatpush1.msra.mxu0 %v2838
        %2878 = vmatprep.subr.mxu0 %v2843
        %2879 = vmatpush1.msra.mxu0 %v2842
        %2880 = vmatprep.subr.mxu0 %v2847
        %2881 = vmatpush1.msra.mxu0 %v2846
        %2882 = vmatprep.subr.mxu0 0.0
        %2883 = vmatpush1.msra.mxu0 0.0
        %2884 = vmatprep.subr.mxu0 0.0
        %2885 = vmatpush1.msra.mxu0 0.0
        %2886 = vmatprep.subr.mxu0 0.0
        %2887 = vmatpush1.msra.mxu0 0.0
        %2888 = vmatprep.subr.mxu0 0.0
        %2889 = vmatpush1.msra.mxu0 0.0
        %2890 = vmatprep.subr.mxu0 0.0
        %2891 = vmatpush1.msra.mxu0 0.0
        %2892 = vmatprep.subr.mxu0 0.0
        %2893 = vmatpush1.msra.mxu0 0.0
        %2894 = vmatprep.subr.mxu0 0.0
        %2895 = vmatpush1.msra.mxu0 0.0
        %2896 = vmatprep.subr.mxu0 0.0
        %2897 = vmatpush1.msra.mxu0 0.0
        %2898 = vmatprep.subr.mxu0 0.0
        %2899 = vmatpush1.msra.mxu0 0.0
        %2900 = vmatprep.subr.mxu0 0.0
        %2901 = vmatpush1.msra.mxu0 0.0
        %2902 = vmatprep.subr.mxu0 0.0
        %2903 = vmatpush1.msra.mxu0 0.0
        %2904 = vmatprep.subr.mxu0 0.0
        %2905 = vmatpush1.msra.mxu0 0.0
        %2906 = vmatprep.subr.mxu0 0.0
        %2907 = vmatpush1.msra.mxu0 0.0
        %2908 = vmatprep.subr.mxu0 0.0
        %2909 = vmatpush1.msra.mxu0 0.0
        %2910 = vmatprep.subr.mxu0 0.0
        %2911 = vmatpush1.msra.mxu0 0.0
        %2912 = vmatprep.subr.mxu0 0.0
        %2913 = vmatpush1.msra.mxu0 0.0
        %2914 = vmatprep.mubr.f32.mxu0 0.0
        %2915 = vmatmul.mubr.f32.gmra.mrb[0].mxu0 %v2529
        %v2916 = vpop.f32.mrb[0].mxu0
        %v2917 = vadd.f32 0.0, %v2916
        %v2918 = vpop.f32.mrb[0].mxu0
        %v2919 = vadd.f32 0.0, %v2918
        %2920 = vdwg.mxu0
        %2921 = vmatprep.subr.mxu0 %v2789
        %2922 = vmatpush1.msra.mxu0 %v2788
        %2923 = vmatprep.subr.mxu0 %v2793
        %2924 = vmatpush1.msra.mxu0 %v2792
        %2925 = vmatprep.subr.mxu0 %v2797
        %2926 = vmatpush1.msra.mxu0 %v2796
        %2927 = vmatprep.subr.mxu0 %v2801
        %2928 = vmatpush1.msra.mxu0 %v2800
        %2929 = vmatprep.subr.mxu0 %v2805
        %2930 = vmatpush1.msra.mxu0 %v2804
        %2931 = vmatprep.subr.mxu0 %v2809
        %2932 = vmatpush1.msra.mxu0 %v2808
        %2933 = vmatprep.subr.mxu0 %v2813
        %2934 = vmatpush1.msra.mxu0 %v2812
        %2935 = vmatprep.subr.mxu0 %v2817
        %2936 = vmatpush1.msra.mxu0 %v2816
        %2937 = vmatprep.subr.mxu0 %v2821
        %2938 = vmatpush1.msra.mxu0 %v2820
        %2939 = vmatprep.subr.mxu0 %v2825
        %2940 = vmatpush1.msra.mxu0 %v2824
        %2941 = vmatprep.subr.mxu0 %v2829
        %2942 = vmatpush1.msra.mxu0 %v2828
        %2943 = vmatprep.subr.mxu0 %v2833
        %2944 = vmatpush1.msra.mxu0 %v2832
        %2945 = vmatprep.subr.mxu0 %v2837
        %2946 = vmatpush1.msra.mxu0 %v2836
        %2947 = vmatprep.subr.mxu0 %v2841
        %2948 = vmatpush1.msra.mxu0 %v2840
        %2949 = vmatprep.subr.mxu0 %v2845
        %2950 = vmatpush1.msra.mxu0 %v2844
        %2951 = vmatprep.subr.mxu0 %v2849
        %2952 = vmatpush1.msra.mxu0 %v2848
        %2953 = vmatprep.subr.mxu0 0.0
        %2954 = vmatpush1.msra.mxu0 0.0
        %2955 = vmatprep.subr.mxu0 0.0
        %2956 = vmatpush1.msra.mxu0 0.0
        %2957 = vmatprep.subr.mxu0 0.0
        %2958 = vmatpush1.msra.mxu0 0.0
        %2959 = vmatprep.subr.mxu0 0.0
        %2960 = vmatpush1.msra.mxu0 0.0
        %2961 = vmatprep.subr.mxu0 0.0
        %2962 = vmatpush1.msra.mxu0 0.0
        %2963 = vmatprep.subr.mxu0 0.0
        %2964 = vmatpush1.msra.mxu0 0.0
        %2965 = vmatprep.subr.mxu0 0.0
        %2966 = vmatpush1.msra.mxu0 0.0
        %2967 = vmatprep.subr.mxu0 0.0
        %2968 = vmatpush1.msra.mxu0 0.0
        %2969 = vmatprep.subr.mxu0 0.0
        %2970 = vmatpush1.msra.mxu0 0.0
        %2971 = vmatprep.subr.mxu0 0.0
        %2972 = vmatpush1.msra.mxu0 0.0
        %2973 = vmatprep.subr.mxu0 0.0
        %2974 = vmatpush1.msra.mxu0 0.0
        %2975 = vmatprep.subr.mxu0 0.0
        %2976 = vmatpush1.msra.mxu0 0.0
        %2977 = vmatprep.subr.mxu0 0.0
        %2978 = vmatpush1.msra.mxu0 0.0
        %2979 = vmatprep.subr.mxu0 0.0
        %2980 = vmatpush1.msra.mxu0 0.0
        %2981 = vmatprep.subr.mxu0 0.0
        %2982 = vmatpush1.msra.mxu0 0.0
        %2983 = vmatprep.subr.mxu0 0.0
        %2984 = vmatpush1.msra.mxu0 0.0
        %2985 = vmatprep.mubr.f32.mxu0 0.0
        %2986 = vmatmul.mubr.f32.gmra.mrb[0].mxu0 %v2529
        %v2987 = vpop.f32.mrb[0].mxu0
        %v2988 = vadd.f32 0.0, %v2987
        %v2989 = vpop.f32.mrb[0].mxu0
        %v2990 = vadd.f32 0.0, %v2989
        %2991 = vdwg.mxu0
        %v2992 = vadd.f32 %v2782, %v2917
        %v2993 = vadd.f32 %v2783, %v2919
        %v2994 = vadd.f32 %v2784, %v2988
        %v2995 = vadd.f32 %v2785, %v2990
        %v2996 = vxor.u32 %v2992, 2147483648
        %v2997 = vmul.f32 %v2996, 1.442695
        %v2998 = vpow.pop %v2997
        %v2999 = vadd.f32 %v2998, 1.0
        %v3000 = vrcp.pop %v2999
        %v3001 = vmul.f32 1.0, %v3000
        %v3002 = vxor.u32 %v2993, 2147483648
        %v3003 = vmul.f32 %v3002, 1.442695
        %v3004 = vpow.pop %v3003
        %v3005 = vadd.f32 %v3004, 1.0
        %v3006 = vrcp.pop %v3005
        %v3007 = vmul.f32 1.0, %v3006
        %v3008 = vtanh.pop %v2994
        %v3009 = vxor.u32 %v2995, 2147483648
        %v3010 = vmul.f32 %v3009, 1.442695
        %v3011 = vpow.pop %v3010
        %v3012 = vadd.f32 %v3011, 1.0
        %v3013 = vrcp.pop %v3012
        %v3014 = vmul.f32 1.0, %v3013
        %v3015 = vmul.f32 %v3007, %v2527
        %v3016 = vmul.f32 %v3001, %v3008
        %v3017 = vadd.f32 %v3015, %v3016
        %v3018 = vtanh.pop %v3017
        %v3019 = vmul.f32 %v3014, %v3018
        %s3020 = smul.u32 6, 2
        %s3021 = smul.addr %s3020, 8
        %s3022 = scalar_lea.vmem [#allocation3], %s3021
        %3023 = vst [vmem:[%s3022 + $0x8] sm:$0xff] %v3019
        %s3024 = smul.u32 2, 8
        %s3025 = smul.addr %s3024, 8
        %s3026 = scalar_lea.vmem [#allocation2], %s3025
        %v3027 = vld [vmem:[%s3026] sm:$0xff]
        %v3028 = vld [vmem:[%s3026 + $0x8] sm:$0xff]
        %v3029 = vld [vmem:[%s3026 + $0x10] sm:$0xff]
        %v3030 = vld [vmem:[%s3026 + $0x18] sm:$0xff]
        %v3031 = vld [vmem:[%s308] sm:$0xff]
        %v3032 = vld [vmem:[%s308 + $0x8] sm:$0xff]
        %v3033 = vld [vmem:[%s308 + $0x10] sm:$0xff]
        %v3034 = vld [vmem:[%s308 + $0x18] sm:$0xff]
        %v3035 = vld [vmem:[%s308 + $0x20] sm:$0xff]
        %v3036 = vld [vmem:[%s308 + $0x28] sm:$0xff]
        %v3037 = vld [vmem:[%s308 + $0x30] sm:$0xff]
        %v3038 = vld [vmem:[%s308 + $0x38] sm:$0xff]
        %v3039 = vld [vmem:[%s308 + $0x40] sm:$0xff]
        %v3040 = vld [vmem:[%s308 + $0x48] sm:$0xff]
        %v3041 = vld [vmem:[%s308 + $0x50] sm:$0xff]
        %v3042 = vld [vmem:[%s308 + $0x58] sm:$0xff]
        %v3043 = vld [vmem:[%s308 + $0x60] sm:$0xff]
        %v3044 = vld [vmem:[%s308 + $0x68] sm:$0xff]
        %v3045 = vld [vmem:[%s308 + $0x70] sm:$0xff]
        %v3046 = vld [vmem:[%s308 + $0x78] sm:$0xff]
        %v3047 = vld [vmem:[%s308 + $0x80] sm:$0xff]
        %v3048 = vld [vmem:[%s308 + $0x88] sm:$0xff]
        %v3049 = vld [vmem:[%s308 + $0x90] sm:$0xff]
        %v3050 = vld [vmem:[%s308 + $0x98] sm:$0xff]
        %v3051 = vld [vmem:[%s308 + $0xa0] sm:$0xff]
        %v3052 = vld [vmem:[%s308 + $0xa8] sm:$0xff]
        %v3053 = vld [vmem:[%s308 + $0xb0] sm:$0xff]
        %v3054 = vld [vmem:[%s308 + $0xb8] sm:$0xff]
        %v3055 = vld [vmem:[%s308 + $0xc0] sm:$0xff]
        %v3056 = vld [vmem:[%s308 + $0xc8] sm:$0xff]
        %v3057 = vld [vmem:[%s308 + $0xd0] sm:$0xff]
        %v3058 = vld [vmem:[%s308 + $0xd8] sm:$0xff]
        %v3059 = vld [vmem:[%s308 + $0xe0] sm:$0xff]
        %v3060 = vld [vmem:[%s308 + $0xe8] sm:$0xff]
        %v3061 = vld [vmem:[%s308 + $0xf0] sm:$0xff]
        %v3062 = vld [vmem:[%s308 + $0xf8] sm:$0xff]
        %v3063 = vld [vmem:[%s308 + $0x100] sm:$0xff]
        %v3064 = vld [vmem:[%s308 + $0x108] sm:$0xff]
        %v3065 = vld [vmem:[%s308 + $0x110] sm:$0xff]
        %v3066 = vld [vmem:[%s308 + $0x118] sm:$0xff]
        %v3067 = vld [vmem:[%s308 + $0x120] sm:$0xff]
        %v3068 = vld [vmem:[%s308 + $0x128] sm:$0xff]
        %v3069 = vld [vmem:[%s308 + $0x130] sm:$0xff]
        %v3070 = vld [vmem:[%s308 + $0x138] sm:$0xff]
        %v3071 = vld [vmem:[%s308 + $0x140] sm:$0xff]
        %v3072 = vld [vmem:[%s308 + $0x148] sm:$0xff]
        %v3073 = vld [vmem:[%s308 + $0x150] sm:$0xff]
        %v3074 = vld [vmem:[%s308 + $0x158] sm:$0xff]
        %v3075 = vld [vmem:[%s308 + $0x160] sm:$0xff]
        %v3076 = vld [vmem:[%s308 + $0x168] sm:$0xff]
        %v3077 = vld [vmem:[%s308 + $0x170] sm:$0xff]
        %v3078 = vld [vmem:[%s308 + $0x178] sm:$0xff]
        %v3079 = vld [vmem:[%s308 + $0x180] sm:$0xff]
        %v3080 = vld [vmem:[%s308 + $0x188] sm:$0xff]
        %v3081 = vld [vmem:[%s308 + $0x190] sm:$0xff]
        %v3082 = vld [vmem:[%s308 + $0x198] sm:$0xff]
        %v3083 = vld [vmem:[%s308 + $0x1a0] sm:$0xff]
        %v3084 = vld [vmem:[%s308 + $0x1a8] sm:$0xff]
        %v3085 = vld [vmem:[%s308 + $0x1b0] sm:$0xff]
        %v3086 = vld [vmem:[%s308 + $0x1b8] sm:$0xff]
        %v3087 = vld [vmem:[%s308 + $0x1c0] sm:$0xff]
        %v3088 = vld [vmem:[%s308 + $0x1c8] sm:$0xff]
        %v3089 = vld [vmem:[%s308 + $0x1d0] sm:$0xff]
        %v3090 = vld [vmem:[%s308 + $0x1d8] sm:$0xff]
        %v3091 = vld [vmem:[%s308 + $0x1e0] sm:$0xff]
        %v3092 = vld [vmem:[%s308 + $0x1e8] sm:$0xff]
        %v3093 = vld [vmem:[%s308 + $0x1f0] sm:$0xff]
        %v3094 = vld [vmem:[%s308 + $0x1f8] sm:$0xff]
        %3095 = vmatprep.subr.mxu0 %v3032
        %3096 = vmatpush1.msra.mxu0 %v3031
        %3097 = vmatprep.subr.mxu0 %v3036
        %3098 = vmatpush1.msra.mxu0 %v3035
        %3099 = vmatprep.subr.mxu0 %v3040
        %3100 = vmatpush1.msra.mxu0 %v3039
        %3101 = vmatprep.subr.mxu0 %v3044
        %3102 = vmatpush1.msra.mxu0 %v3043
        %3103 = vmatprep.subr.mxu0 %v3048
        %3104 = vmatpush1.msra.mxu0 %v3047
        %3105 = vmatprep.subr.mxu0 %v3052
        %3106 = vmatpush1.msra.mxu0 %v3051
        %3107 = vmatprep.subr.mxu0 %v3056
        %3108 = vmatpush1.msra.mxu0 %v3055
        %3109 = vmatprep.subr.mxu0 %v3060
        %3110 = vmatpush1.msra.mxu0 %v3059
        %3111 = vmatprep.subr.mxu0 %v3064
        %3112 = vmatpush1.msra.mxu0 %v3063
        %3113 = vmatprep.subr.mxu0 %v3068
        %3114 = vmatpush1.msra.mxu0 %v3067
        %3115 = vmatprep.subr.mxu0 %v3072
        %3116 = vmatpush1.msra.mxu0 %v3071
        %3117 = vmatprep.subr.mxu0 %v3076
        %3118 = vmatpush1.msra.mxu0 %v3075
        %3119 = vmatprep.subr.mxu0 %v3080
        %3120 = vmatpush1.msra.mxu0 %v3079
        %3121 = vmatprep.subr.mxu0 %v3084
        %3122 = vmatpush1.msra.mxu0 %v3083
        %3123 = vmatprep.subr.mxu0 %v3088
        %3124 = vmatpush1.msra.mxu0 %v3087
        %3125 = vmatprep.subr.mxu0 %v3092
        %3126 = vmatpush1.msra.mxu0 %v3091
        %3127 = vmatprep.subr.mxu0 0.0
        %3128 = vmatpush1.msra.mxu0 0.0
        %3129 = vmatprep.subr.mxu0 0.0
        %3130 = vmatpush1.msra.mxu0 0.0
        %3131 = vmatprep.subr.mxu0 0.0
        %3132 = vmatpush1.msra.mxu0 0.0
        %3133 = vmatprep.subr.mxu0 0.0
        %3134 = vmatpush1.msra.mxu0 0.0
        %3135 = vmatprep.subr.mxu0 0.0
        %3136 = vmatpush1.msra.mxu0 0.0
        %3137 = vmatprep.subr.mxu0 0.0
        %3138 = vmatpush1.msra.mxu0 0.0
        %3139 = vmatprep.subr.mxu0 0.0
        %3140 = vmatpush1.msra.mxu0 0.0
        %3141 = vmatprep.subr.mxu0 0.0
        %3142 = vmatpush1.msra.mxu0 0.0
        %3143 = vmatprep.subr.mxu0 0.0
        %3144 = vmatpush1.msra.mxu0 0.0
        %3145 = vmatprep.subr.mxu0 0.0
        %3146 = vmatpush1.msra.mxu0 0.0
        %3147 = vmatprep.subr.mxu0 0.0
        %3148 = vmatpush1.msra.mxu0 0.0
        %3149 = vmatprep.subr.mxu0 0.0
        %3150 = vmatpush1.msra.mxu0 0.0
        %3151 = vmatprep.subr.mxu0 0.0
        %3152 = vmatpush1.msra.mxu0 0.0
        %3153 = vmatprep.subr.mxu0 0.0
        %3154 = vmatpush1.msra.mxu0 0.0
        %3155 = vmatprep.subr.mxu0 0.0
        %3156 = vmatpush1.msra.mxu0 0.0
        %3157 = vmatprep.subr.mxu0 0.0
        %3158 = vmatpush1.msra.mxu0 0.0
        %3159 = vmatprep.mubr.f32.mxu0 0.0
        %3160 = vmatmul.mubr.f32.gmra.mrb[0].mxu0 %v2774
        %v3161 = vpop.f32.mrb[0].mxu0
        %v3162 = vadd.f32 0.0, %v3161
        %v3163 = vpop.f32.mrb[0].mxu0
        %v3164 = vadd.f32 0.0, %v3163
        %3165 = vdwg.mxu0
        %3166 = vmatprep.subr.mxu0 %v3034
        %3167 = vmatpush1.msra.mxu0 %v3033
        %3168 = vmatprep.subr.mxu0 %v3038
        %3169 = vmatpush1.msra.mxu0 %v3037
        %3170 = vmatprep.subr.mxu0 %v3042
        %3171 = vmatpush1.msra.mxu0 %v3041
        %3172 = vmatprep.subr.mxu0 %v3046
        %3173 = vmatpush1.msra.mxu0 %v3045
        %3174 = vmatprep.subr.mxu0 %v3050
        %3175 = vmatpush1.msra.mxu0 %v3049
        %3176 = vmatprep.subr.mxu0 %v3054
        %3177 = vmatpush1.msra.mxu0 %v3053
        %3178 = vmatprep.subr.mxu0 %v3058
        %3179 = vmatpush1.msra.mxu0 %v3057
        %3180 = vmatprep.subr.mxu0 %v3062
        %3181 = vmatpush1.msra.mxu0 %v3061
        %3182 = vmatprep.subr.mxu0 %v3066
        %3183 = vmatpush1.msra.mxu0 %v3065
        %3184 = vmatprep.subr.mxu0 %v3070
        %3185 = vmatpush1.msra.mxu0 %v3069
        %3186 = vmatprep.subr.mxu0 %v3074
        %3187 = vmatpush1.msra.mxu0 %v3073
        %3188 = vmatprep.subr.mxu0 %v3078
        %3189 = vmatpush1.msra.mxu0 %v3077
        %3190 = vmatprep.subr.mxu0 %v3082
        %3191 = vmatpush1.msra.mxu0 %v3081
        %3192 = vmatprep.subr.mxu0 %v3086
        %3193 = vmatpush1.msra.mxu0 %v3085
        %3194 = vmatprep.subr.mxu0 %v3090
        %3195 = vmatpush1.msra.mxu0 %v3089
        %3196 = vmatprep.subr.mxu0 %v3094
        %3197 = vmatpush1.msra.mxu0 %v3093
        %3198 = vmatprep.subr.mxu0 0.0
        %3199 = vmatpush1.msra.mxu0 0.0
        %3200 = vmatprep.subr.mxu0 0.0
        %3201 = vmatpush1.msra.mxu0 0.0
        %3202 = vmatprep.subr.mxu0 0.0
        %3203 = vmatpush1.msra.mxu0 0.0
        %3204 = vmatprep.subr.mxu0 0.0
        %3205 = vmatpush1.msra.mxu0 0.0
        %3206 = vmatprep.subr.mxu0 0.0
        %3207 = vmatpush1.msra.mxu0 0.0
        %3208 = vmatprep.subr.mxu0 0.0
        %3209 = vmatpush1.msra.mxu0 0.0
        %3210 = vmatprep.subr.mxu0 0.0
        %3211 = vmatpush1.msra.mxu0 0.0
        %3212 = vmatprep.subr.mxu0 0.0
        %3213 = vmatpush1.msra.mxu0 0.0
        %3214 = vmatprep.subr.mxu0 0.0
        %3215 = vmatpush1.msra.mxu0 0.0
        %3216 = vmatprep.subr.mxu0 0.0
        %3217 = vmatpush1.msra.mxu0 0.0
        %3218 = vmatprep.subr.mxu0 0.0
        %3219 = vmatpush1.msra.mxu0 0.0
        %3220 = vmatprep.subr.mxu0 0.0
        %3221 = vmatpush1.msra.mxu0 0.0
        %3222 = vmatprep.subr.mxu0 0.0
        %3223 = vmatpush1.msra.mxu0 0.0
        %3224 = vmatprep.subr.mxu0 0.0
        %3225 = vmatpush1.msra.mxu0 0.0
        %3226 = vmatprep.subr.mxu0 0.0
        %3227 = vmatpush1.msra.mxu0 0.0
        %3228 = vmatprep.subr.mxu0 0.0
        %3229 = vmatpush1.msra.mxu0 0.0
        %3230 = vmatprep.mubr.f32.mxu0 0.0
        %3231 = vmatmul.mubr.f32.gmra.mrb[0].mxu0 %v2774
        %v3232 = vpop.f32.mrb[0].mxu0
        %v3233 = vadd.f32 0.0, %v3232
        %v3234 = vpop.f32.mrb[0].mxu0
        %v3235 = vadd.f32 0.0, %v3234
        %3236 = vdwg.mxu0
        %v3237 = vadd.f32 %v3027, %v3162
        %v3238 = vadd.f32 %v3028, %v3164
        %v3239 = vadd.f32 %v3029, %v3233
        %v3240 = vadd.f32 %v3030, %v3235
        %v3241 = vxor.u32 %v3237, 2147483648
        %v3242 = vmul.f32 %v3241, 1.442695
        %v3243 = vpow.pop %v3242
        %v3244 = vadd.f32 %v3243, 1.0
        %v3245 = vrcp.pop %v3244
        %v3246 = vmul.f32 1.0, %v3245
        %v3247 = vxor.u32 %v3238, 2147483648
        %v3248 = vmul.f32 %v3247, 1.442695
        %v3249 = vpow.pop %v3248
        %v3250 = vadd.f32 %v3249, 1.0
        %v3251 = vrcp.pop %v3250
        %v3252 = vmul.f32 1.0, %v3251
        %v3253 = vtanh.pop %v3239
        %v3254 = vxor.u32 %v3240, 2147483648
        %v3255 = vmul.f32 %v3254, 1.442695
        %v3256 = vpow.pop %v3255
        %v3257 = vadd.f32 %v3256, 1.0
        %v3258 = vrcp.pop %v3257
        %v3259 = vmul.f32 1.0, %v3258
        %v3260 = vmul.f32 %v3252, %v2772
        %v3261 = vmul.f32 %v3246, %v3253
        %v3262 = vadd.f32 %v3260, %v3261
        %v3263 = vtanh.pop %v3262
        %v3264 = vmul.f32 %v3259, %v3263
        %s3265 = smul.u32 2, 2
        %s3266 = smul.addr %s3265, 8
        %s3267 = scalar_lea.vmem [#allocation3], %s3266
        %3268 = vst [vmem:[%s3267] sm:$0xff] %v3264
        %s3269 = smul.u32 5, 8
        %s3270 = smul.addr %s3269, 8
        %s3271 = scalar_lea.vmem [#allocation2], %s3270
        %v3272 = vld [vmem:[%s3271 + $0x20] sm:$0xff]
        %v3273 = vld [vmem:[%s3271 + $0x28] sm:$0xff]
        %v3274 = vld [vmem:[%s3271 + $0x30] sm:$0xff]
        %v3275 = vld [vmem:[%s3271 + $0x38] sm:$0xff]
        %v3276 = vld [vmem:[%s2295] sm:$0xff]
        %v3277 = vld [vmem:[%s2295 + $0x8] sm:$0xff]
        %v3278 = vld [vmem:[%s2295 + $0x10] sm:$0xff]
        %v3279 = vld [vmem:[%s2295 + $0x18] sm:$0xff]
        %v3280 = vld [vmem:[%s2295 + $0x20] sm:$0xff]
        %v3281 = vld [vmem:[%s2295 + $0x28] sm:$0xff]
        %v3282 = vld [vmem:[%s2295 + $0x30] sm:$0xff]
        %v3283 = vld [vmem:[%s2295 + $0x38] sm:$0xff]
        %v3284 = vld [vmem:[%s2295 + $0x40] sm:$0xff]
        %v3285 = vld [vmem:[%s2295 + $0x48] sm:$0xff]
        %v3286 = vld [vmem:[%s2295 + $0x50] sm:$0xff]
        %v3287 = vld [vmem:[%s2295 + $0x58] sm:$0xff]
        %v3288 = vld [vmem:[%s2295 + $0x60] sm:$0xff]
        %v3289 = vld [vmem:[%s2295 + $0x68] sm:$0xff]
        %v3290 = vld [vmem:[%s2295 + $0x70] sm:$0xff]
        %v3291 = vld [vmem:[%s2295 + $0x78] sm:$0xff]
        %v3292 = vld [vmem:[%s2295 + $0x80] sm:$0xff]
        %v3293 = vld [vmem:[%s2295 + $0x88] sm:$0xff]
        %v3294 = vld [vmem:[%s2295 + $0x90] sm:$0xff]
        %v3295 = vld [vmem:[%s2295 + $0x98] sm:$0xff]
        %v3296 = vld [vmem:[%s2295 + $0xa0] sm:$0xff]
        %v3297 = vld [vmem:[%s2295 + $0xa8] sm:$0xff]
        %v3298 = vld [vmem:[%s2295 + $0xb0] sm:$0xff]
        %v3299 = vld [vmem:[%s2295 + $0xb8] sm:$0xff]
        %v3300 = vld [vmem:[%s2295 + $0xc0] sm:$0xff]
        %v3301 = vld [vmem:[%s2295 + $0xc8] sm:$0xff]
        %v3302 = vld [vmem:[%s2295 + $0xd0] sm:$0xff]
        %v3303 = vld [vmem:[%s2295 + $0xd8] sm:$0xff]
        %v3304 = vld [vmem:[%s2295 + $0xe0] sm:$0xff]
        %v3305 = vld [vmem:[%s2295 + $0xe8] sm:$0xff]
        %v3306 = vld [vmem:[%s2295 + $0xf0] sm:$0xff]
        %v3307 = vld [vmem:[%s2295 + $0xf8] sm:$0xff]
        %v3308 = vld [vmem:[%s2295 + $0x100] sm:$0xff]
        %v3309 = vld [vmem:[%s2295 + $0x108] sm:$0xff]
        %v3310 = vld [vmem:[%s2295 + $0x110] sm:$0xff]
        %v3311 = vld [vmem:[%s2295 + $0x118] sm:$0xff]
        %v3312 = vld [vmem:[%s2295 + $0x120] sm:$0xff]
        %v3313 = vld [vmem:[%s2295 + $0x128] sm:$0xff]
        %v3314 = vld [vmem:[%s2295 + $0x130] sm:$0xff]
        %v3315 = vld [vmem:[%s2295 + $0x138] sm:$0xff]
        %v3316 = vld [vmem:[%s2295 + $0x140] sm:$0xff]
        %v3317 = vld [vmem:[%s2295 + $0x148] sm:$0xff]
        %v3318 = vld [vmem:[%s2295 + $0x150] sm:$0xff]
        %v3319 = vld [vmem:[%s2295 + $0x158] sm:$0xff]
        %v3320 = vld [vmem:[%s2295 + $0x160] sm:$0xff]
        %v3321 = vld [vmem:[%s2295 + $0x168] sm:$0xff]
        %v3322 = vld [vmem:[%s2295 + $0x170] sm:$0xff]
        %v3323 = vld [vmem:[%s2295 + $0x178] sm:$0xff]
        %v3324 = vld [vmem:[%s2295 + $0x180] sm:$0xff]
        %v3325 = vld [vmem:[%s2295 + $0x188] sm:$0xff]
        %v3326 = vld [vmem:[%s2295 + $0x190] sm:$0xff]
        %v3327 = vld [vmem:[%s2295 + $0x198] sm:$0xff]
        %v3328 = vld [vmem:[%s2295 + $0x1a0] sm:$0xff]
        %v3329 = vld [vmem:[%s2295 + $0x1a8] sm:$0xff]
        %v3330 = vld [vmem:[%s2295 + $0x1b0] sm:$0xff]
        %v3331 = vld [vmem:[%s2295 + $0x1b8] sm:$0xff]
        %v3332 = vld [vmem:[%s2295 + $0x1c0] sm:$0xff]
        %v3333 = vld [vmem:[%s2295 + $0x1c8] sm:$0xff]
        %v3334 = vld [vmem:[%s2295 + $0x1d0] sm:$0xff]
        %v3335 = vld [vmem:[%s2295 + $0x1d8] sm:$0xff]
        %v3336 = vld [vmem:[%s2295 + $0x1e0] sm:$0xff]
        %v3337 = vld [vmem:[%s2295 + $0x1e8] sm:$0xff]
        %v3338 = vld [vmem:[%s2295 + $0x1f0] sm:$0xff]
        %v3339 = vld [vmem:[%s2295 + $0x1f8] sm:$0xff]
        %3340 = vmatprep.subr.mxu0 %v3277
        %3341 = vmatpush1.msra.mxu0 %v3276
        %3342 = vmatprep.subr.mxu0 %v3281
        %3343 = vmatpush1.msra.mxu0 %v3280
        %3344 = vmatprep.subr.mxu0 %v3285
        %3345 = vmatpush1.msra.mxu0 %v3284
        %3346 = vmatprep.subr.mxu0 %v3289
        %3347 = vmatpush1.msra.mxu0 %v3288
        %3348 = vmatprep.subr.mxu0 %v3293
        %3349 = vmatpush1.msra.mxu0 %v3292
        %3350 = vmatprep.subr.mxu0 %v3297
        %3351 = vmatpush1.msra.mxu0 %v3296
        %3352 = vmatprep.subr.mxu0 %v3301
        %3353 = vmatpush1.msra.mxu0 %v3300
        %3354 = vmatprep.subr.mxu0 %v3305
        %3355 = vmatpush1.msra.mxu0 %v3304
        %3356 = vmatprep.subr.mxu0 %v3309
        %3357 = vmatpush1.msra.mxu0 %v3308
        %3358 = vmatprep.subr.mxu0 %v3313
        %3359 = vmatpush1.msra.mxu0 %v3312
        %3360 = vmatprep.subr.mxu0 %v3317
        %3361 = vmatpush1.msra.mxu0 %v3316
        %3362 = vmatprep.subr.mxu0 %v3321
        %3363 = vmatpush1.msra.mxu0 %v3320
        %3364 = vmatprep.subr.mxu0 %v3325
        %3365 = vmatpush1.msra.mxu0 %v3324
        %3366 = vmatprep.subr.mxu0 %v3329
        %3367 = vmatpush1.msra.mxu0 %v3328
        %3368 = vmatprep.subr.mxu0 %v3333
        %3369 = vmatpush1.msra.mxu0 %v3332
        %3370 = vmatprep.subr.mxu0 %v3337
        %3371 = vmatpush1.msra.mxu0 %v3336
        %3372 = vmatprep.subr.mxu0 0.0
        %3373 = vmatpush1.msra.mxu0 0.0
        %3374 = vmatprep.subr.mxu0 0.0
        %3375 = vmatpush1.msra.mxu0 0.0
        %3376 = vmatprep.subr.mxu0 0.0
        %3377 = vmatpush1.msra.mxu0 0.0
        %3378 = vmatprep.subr.mxu0 0.0
        %3379 = vmatpush1.msra.mxu0 0.0
        %3380 = vmatprep.subr.mxu0 0.0
        %3381 = vmatpush1.msra.mxu0 0.0
        %3382 = vmatprep.subr.mxu0 0.0
        %3383 = vmatpush1.msra.mxu0 0.0
        %3384 = vmatprep.subr.mxu0 0.0
        %3385 = vmatpush1.msra.mxu0 0.0
        %3386 = vmatprep.subr.mxu0 0.0
        %3387 = vmatpush1.msra.mxu0 0.0
        %3388 = vmatprep.subr.mxu0 0.0
        %3389 = vmatpush1.msra.mxu0 0.0
        %3390 = vmatprep.subr.mxu0 0.0
        %3391 = vmatpush1.msra.mxu0 0.0
        %3392 = vmatprep.subr.mxu0 0.0
        %3393 = vmatpush1.msra.mxu0 0.0
        %3394 = vmatprep.subr.mxu0 0.0
        %3395 = vmatpush1.msra.mxu0 0.0
        %3396 = vmatprep.subr.mxu0 0.0
        %3397 = vmatpush1.msra.mxu0 0.0
        %3398 = vmatprep.subr.mxu0 0.0
        %3399 = vmatpush1.msra.mxu0 0.0
        %3400 = vmatprep.subr.mxu0 0.0
        %3401 = vmatpush1.msra.mxu0 0.0
        %3402 = vmatprep.subr.mxu0 0.0
        %3403 = vmatpush1.msra.mxu0 0.0
        %3404 = vmatprep.mubr.f32.mxu0 0.0
        %3405 = vmatmul.mubr.f32.gmra.mrb[0].mxu0 %v3019
        %v3406 = vpop.f32.mrb[0].mxu0
        %v3407 = vadd.f32 0.0, %v3406
        %v3408 = vpop.f32.mrb[0].mxu0
        %v3409 = vadd.f32 0.0, %v3408
        %3410 = vdwg.mxu0
        %3411 = vmatprep.subr.mxu0 %v3279
        %3412 = vmatpush1.msra.mxu0 %v3278
        %3413 = vmatprep.subr.mxu0 %v3283
        %3414 = vmatpush1.msra.mxu0 %v3282
        %3415 = vmatprep.subr.mxu0 %v3287
        %3416 = vmatpush1.msra.mxu0 %v3286
        %3417 = vmatprep.subr.mxu0 %v3291
        %3418 = vmatpush1.msra.mxu0 %v3290
        %3419 = vmatprep.subr.mxu0 %v3295
        %3420 = vmatpush1.msra.mxu0 %v3294
        %3421 = vmatprep.subr.mxu0 %v3299
        %3422 = vmatpush1.msra.mxu0 %v3298
        %3423 = vmatprep.subr.mxu0 %v3303
        %3424 = vmatpush1.msra.mxu0 %v3302
        %3425 = vmatprep.subr.mxu0 %v3307
        %3426 = vmatpush1.msra.mxu0 %v3306
        %3427 = vmatprep.subr.mxu0 %v3311
        %3428 = vmatpush1.msra.mxu0 %v3310
        %3429 = vmatprep.subr.mxu0 %v3315
        %3430 = vmatpush1.msra.mxu0 %v3314
        %3431 = vmatprep.subr.mxu0 %v3319
        %3432 = vmatpush1.msra.mxu0 %v3318
        %3433 = vmatprep.subr.mxu0 %v3323
        %3434 = vmatpush1.msra.mxu0 %v3322
        %3435 = vmatprep.subr.mxu0 %v3327
        %3436 = vmatpush1.msra.mxu0 %v3326
        %3437 = vmatprep.subr.mxu0 %v3331
        %3438 = vmatpush1.msra.mxu0 %v3330
        %3439 = vmatprep.subr.mxu0 %v3335
        %3440 = vmatpush1.msra.mxu0 %v3334
        %3441 = vmatprep.subr.mxu0 %v3339
        %3442 = vmatpush1.msra.mxu0 %v3338
        %3443 = vmatprep.subr.mxu0 0.0
        %3444 = vmatpush1.msra.mxu0 0.0
        %3445 = vmatprep.subr.mxu0 0.0
        %3446 = vmatpush1.msra.mxu0 0.0
        %3447 = vmatprep.subr.mxu0 0.0
        %3448 = vmatpush1.msra.mxu0 0.0
        %3449 = vmatprep.subr.mxu0 0.0
        %3450 = vmatpush1.msra.mxu0 0.0
        %3451 = vmatprep.subr.mxu0 0.0
        %3452 = vmatpush1.msra.mxu0 0.0
        %3453 = vmatprep.subr.mxu0 0.0
        %3454 = vmatpush1.msra.mxu0 0.0
        %3455 = vmatprep.subr.mxu0 0.0
        %3456 = vmatpush1.msra.mxu0 0.0
        %3457 = vmatprep.subr.mxu0 0.0
        %3458 = vmatpush1.msra.mxu0 0.0
        %3459 = vmatprep.subr.mxu0 0.0
        %3460 = vmatpush1.msra.mxu0 0.0
        %3461 = vmatprep.subr.mxu0 0.0
        %3462 = vmatpush1.msra.mxu0 0.0
        %3463 = vmatprep.subr.mxu0 0.0
        %3464 = vmatpush1.msra.mxu0 0.0
        %3465 = vmatprep.subr.mxu0 0.0
        %3466 = vmatpush1.msra.mxu0 0.0
        %3467 = vmatprep.subr.mxu0 0.0
        %3468 = vmatpush1.msra.mxu0 0.0
        %3469 = vmatprep.subr.mxu0 0.0
        %3470 = vmatpush1.msra.mxu0 0.0
        %3471 = vmatprep.subr.mxu0 0.0
        %3472 = vmatpush1.msra.mxu0 0.0
        %3473 = vmatprep.subr.mxu0 0.0
        %3474 = vmatpush1.msra.mxu0 0.0
        %3475 = vmatprep.mubr.f32.mxu0 0.0
        %3476 = vmatmul.mubr.f32.gmra.mrb[0].mxu0 %v3019
        %v3477 = vpop.f32.mrb[0].mxu0
        %v3478 = vadd.f32 0.0, %v3477
        %v3479 = vpop.f32.mrb[0].mxu0
        %v3480 = vadd.f32 0.0, %v3479
        %3481 = vdwg.mxu0
        %v3482 = vadd.f32 %v3272, %v3407
        %v3483 = vadd.f32 %v3273, %v3409
        %v3484 = vadd.f32 %v3274, %v3478
        %v3485 = vadd.f32 %v3275, %v3480
        %v3486 = vxor.u32 %v3482, 2147483648
        %v3487 = vmul.f32 %v3486, 1.442695
        %v3488 = vpow.pop %v3487
        %v3489 = vadd.f32 %v3488, 1.0
        %v3490 = vrcp.pop %v3489
        %v3491 = vmul.f32 1.0, %v3490
        %v3492 = vxor.u32 %v3483, 2147483648
        %v3493 = vmul.f32 %v3492, 1.442695
        %v3494 = vpow.pop %v3493
        %v3495 = vadd.f32 %v3494, 1.0
        %v3496 = vrcp.pop %v3495
        %v3497 = vmul.f32 1.0, %v3496
        %v3498 = vtanh.pop %v3484
        %v3499 = vxor.u32 %v3485, 2147483648
        %v3500 = vmul.f32 %v3499, 1.442695
        %v3501 = vpow.pop %v3500
        %v3502 = vadd.f32 %v3501, 1.0
        %v3503 = vrcp.pop %v3502
        %v3504 = vmul.f32 1.0, %v3503
        %v3505 = vmul.f32 %v3497, %v3017
        %v3506 = vmul.f32 %v3491, %v3498
        %v3507 = vadd.f32 %v3505, %v3506
        %v3508 = vtanh.pop %v3507
        %v3509 = vmul.f32 %v3504, %v3508
        %s3510 = smul.u32 5, 2
        %s3511 = smul.addr %s3510, 8
        %s3512 = scalar_lea.vmem [#allocation3], %s3511
        %3513 = vst [vmem:[%s3512 + $0x8] sm:$0xff] %v3509
        %s3514 = smul.u32 3, 8
        %s3515 = smul.addr %s3514, 8
        %s3516 = scalar_lea.vmem [#allocation2], %s3515
        %v3517 = vld [vmem:[%s3516] sm:$0xff]
        %v3518 = vld [vmem:[%s3516 + $0x8] sm:$0xff]
        %v3519 = vld [vmem:[%s3516 + $0x10] sm:$0xff]
        %v3520 = vld [vmem:[%s3516 + $0x18] sm:$0xff]
        %v3521 = vld [vmem:[%s308] sm:$0xff]
        %v3522 = vld [vmem:[%s308 + $0x8] sm:$0xff]
        %v3523 = vld [vmem:[%s308 + $0x10] sm:$0xff]
        %v3524 = vld [vmem:[%s308 + $0x18] sm:$0xff]
        %v3525 = vld [vmem:[%s308 + $0x20] sm:$0xff]
        %v3526 = vld [vmem:[%s308 + $0x28] sm:$0xff]
        %v3527 = vld [vmem:[%s308 + $0x30] sm:$0xff]
        %v3528 = vld [vmem:[%s308 + $0x38] sm:$0xff]
        %v3529 = vld [vmem:[%s308 + $0x40] sm:$0xff]
        %v3530 = vld [vmem:[%s308 + $0x48] sm:$0xff]
        %v3531 = vld [vmem:[%s308 + $0x50] sm:$0xff]
        %v3532 = vld [vmem:[%s308 + $0x58] sm:$0xff]
        %v3533 = vld [vmem:[%s308 + $0x60] sm:$0xff]
        %v3534 = vld [vmem:[%s308 + $0x68] sm:$0xff]
        %v3535 = vld [vmem:[%s308 + $0x70] sm:$0xff]
        %v3536 = vld [vmem:[%s308 + $0x78] sm:$0xff]
        %v3537 = vld [vmem:[%s308 + $0x80] sm:$0xff]
        %v3538 = vld [vmem:[%s308 + $0x88] sm:$0xff]
        %v3539 = vld [vmem:[%s308 + $0x90] sm:$0xff]
        %v3540 = vld [vmem:[%s308 + $0x98] sm:$0xff]
        %v3541 = vld [vmem:[%s308 + $0xa0] sm:$0xff]
        %v3542 = vld [vmem:[%s308 + $0xa8] sm:$0xff]
        %v3543 = vld [vmem:[%s308 + $0xb0] sm:$0xff]
        %v3544 = vld [vmem:[%s308 + $0xb8] sm:$0xff]
        %v3545 = vld [vmem:[%s308 + $0xc0] sm:$0xff]
        %v3546 = vld [vmem:[%s308 + $0xc8] sm:$0xff]
        %v3547 = vld [vmem:[%s308 + $0xd0] sm:$0xff]
        %v3548 = vld [vmem:[%s308 + $0xd8] sm:$0xff]
        %v3549 = vld [vmem:[%s308 + $0xe0] sm:$0xff]
        %v3550 = vld [vmem:[%s308 + $0xe8] sm:$0xff]
        %v3551 = vld [vmem:[%s308 + $0xf0] sm:$0xff]
        %v3552 = vld [vmem:[%s308 + $0xf8] sm:$0xff]
        %v3553 = vld [vmem:[%s308 + $0x100] sm:$0xff]
        %v3554 = vld [vmem:[%s308 + $0x108] sm:$0xff]
        %v3555 = vld [vmem:[%s308 + $0x110] sm:$0xff]
        %v3556 = vld [vmem:[%s308 + $0x118] sm:$0xff]
        %v3557 = vld [vmem:[%s308 + $0x120] sm:$0xff]
        %v3558 = vld [vmem:[%s308 + $0x128] sm:$0xff]
        %v3559 = vld [vmem:[%s308 + $0x130] sm:$0xff]
        %v3560 = vld [vmem:[%s308 + $0x138] sm:$0xff]
        %v3561 = vld [vmem:[%s308 + $0x140] sm:$0xff]
        %v3562 = vld [vmem:[%s308 + $0x148] sm:$0xff]
        %v3563 = vld [vmem:[%s308 + $0x150] sm:$0xff]
        %v3564 = vld [vmem:[%s308 + $0x158] sm:$0xff]
        %v3565 = vld [vmem:[%s308 + $0x160] sm:$0xff]
        %v3566 = vld [vmem:[%s308 + $0x168] sm:$0xff]
        %v3567 = vld [vmem:[%s308 + $0x170] sm:$0xff]
        %v3568 = vld [vmem:[%s308 + $0x178] sm:$0xff]
        %v3569 = vld [vmem:[%s308 + $0x180] sm:$0xff]
        %v3570 = vld [vmem:[%s308 + $0x188] sm:$0xff]
        %v3571 = vld [vmem:[%s308 + $0x190] sm:$0xff]
        %v3572 = vld [vmem:[%s308 + $0x198] sm:$0xff]
        %v3573 = vld [vmem:[%s308 + $0x1a0] sm:$0xff]
        %v3574 = vld [vmem:[%s308 + $0x1a8] sm:$0xff]
        %v3575 = vld [vmem:[%s308 + $0x1b0] sm:$0xff]
        %v3576 = vld [vmem:[%s308 + $0x1b8] sm:$0xff]
        %v3577 = vld [vmem:[%s308 + $0x1c0] sm:$0xff]
        %v3578 = vld [vmem:[%s308 + $0x1c8] sm:$0xff]
        %v3579 = vld [vmem:[%s308 + $0x1d0] sm:$0xff]
        %v3580 = vld [vmem:[%s308 + $0x1d8] sm:$0xff]
        %v3581 = vld [vmem:[%s308 + $0x1e0] sm:$0xff]
        %v3582 = vld [vmem:[%s308 + $0x1e8] sm:$0xff]
        %v3583 = vld [vmem:[%s308 + $0x1f0] sm:$0xff]
        %v3584 = vld [vmem:[%s308 + $0x1f8] sm:$0xff]
        %3585 = vmatprep.subr.mxu0 %v3522
        %3586 = vmatpush1.msra.mxu0 %v3521
        %3587 = vmatprep.subr.mxu0 %v3526
        %3588 = vmatpush1.msra.mxu0 %v3525
        %3589 = vmatprep.subr.mxu0 %v3530
        %3590 = vmatpush1.msra.mxu0 %v3529
        %3591 = vmatprep.subr.mxu0 %v3534
        %3592 = vmatpush1.msra.mxu0 %v3533
        %3593 = vmatprep.subr.mxu0 %v3538
        %3594 = vmatpush1.msra.mxu0 %v3537
        %3595 = vmatprep.subr.mxu0 %v3542
        %3596 = vmatpush1.msra.mxu0 %v3541
        %3597 = vmatprep.subr.mxu0 %v3546
        %3598 = vmatpush1.msra.mxu0 %v3545
        %3599 = vmatprep.subr.mxu0 %v3550
        %3600 = vmatpush1.msra.mxu0 %v3549
        %3601 = vmatprep.subr.mxu0 %v3554
        %3602 = vmatpush1.msra.mxu0 %v3553
        %3603 = vmatprep.subr.mxu0 %v3558
        %3604 = vmatpush1.msra.mxu0 %v3557
        %3605 = vmatprep.subr.mxu0 %v3562
        %3606 = vmatpush1.msra.mxu0 %v3561
        %3607 = vmatprep.subr.mxu0 %v3566
        %3608 = vmatpush1.msra.mxu0 %v3565
        %3609 = vmatprep.subr.mxu0 %v3570
        %3610 = vmatpush1.msra.mxu0 %v3569
        %3611 = vmatprep.subr.mxu0 %v3574
        %3612 = vmatpush1.msra.mxu0 %v3573
        %3613 = vmatprep.subr.mxu0 %v3578
        %3614 = vmatpush1.msra.mxu0 %v3577
        %3615 = vmatprep.subr.mxu0 %v3582
        %3616 = vmatpush1.msra.mxu0 %v3581
        %3617 = vmatprep.subr.mxu0 0.0
        %3618 = vmatpush1.msra.mxu0 0.0
        %3619 = vmatprep.subr.mxu0 0.0
        %3620 = vmatpush1.msra.mxu0 0.0
        %3621 = vmatprep.subr.mxu0 0.0
        %3622 = vmatpush1.msra.mxu0 0.0
        %3623 = vmatprep.subr.mxu0 0.0
        %3624 = vmatpush1.msra.mxu0 0.0
        %3625 = vmatprep.subr.mxu0 0.0
        %3626 = vmatpush1.msra.mxu0 0.0
        %3627 = vmatprep.subr.mxu0 0.0
        %3628 = vmatpush1.msra.mxu0 0.0
        %3629 = vmatprep.subr.mxu0 0.0
        %3630 = vmatpush1.msra.mxu0 0.0
        %3631 = vmatprep.subr.mxu0 0.0
        %3632 = vmatpush1.msra.mxu0 0.0
        %3633 = vmatprep.subr.mxu0 0.0
        %3634 = vmatpush1.msra.mxu0 0.0
        %3635 = vmatprep.subr.mxu0 0.0
        %3636 = vmatpush1.msra.mxu0 0.0
        %3637 = vmatprep.subr.mxu0 0.0
        %3638 = vmatpush1.msra.mxu0 0.0
        %3639 = vmatprep.subr.mxu0 0.0
        %3640 = vmatpush1.msra.mxu0 0.0
        %3641 = vmatprep.subr.mxu0 0.0
        %3642 = vmatpush1.msra.mxu0 0.0
        %3643 = vmatprep.subr.mxu0 0.0
        %3644 = vmatpush1.msra.mxu0 0.0
        %3645 = vmatprep.subr.mxu0 0.0
        %3646 = vmatpush1.msra.mxu0 0.0
        %3647 = vmatprep.subr.mxu0 0.0
        %3648 = vmatpush1.msra.mxu0 0.0
        %3649 = vmatprep.mubr.f32.mxu0 0.0
        %3650 = vmatmul.mubr.f32.gmra.mrb[0].mxu0 %v3264
        %v3651 = vpop.f32.mrb[0].mxu0
        %v3652 = vadd.f32 0.0, %v3651
        %v3653 = vpop.f32.mrb[0].mxu0
        %v3654 = vadd.f32 0.0, %v3653
        %3655 = vdwg.mxu0
        %3656 = vmatprep.subr.mxu0 %v3524
        %3657 = vmatpush1.msra.mxu0 %v3523
        %3658 = vmatprep.subr.mxu0 %v3528
        %3659 = vmatpush1.msra.mxu0 %v3527
        %3660 = vmatprep.subr.mxu0 %v3532
        %3661 = vmatpush1.msra.mxu0 %v3531
        %3662 = vmatprep.subr.mxu0 %v3536
        %3663 = vmatpush1.msra.mxu0 %v3535
        %3664 = vmatprep.subr.mxu0 %v3540
        %3665 = vmatpush1.msra.mxu0 %v3539
        %3666 = vmatprep.subr.mxu0 %v3544
        %3667 = vmatpush1.msra.mxu0 %v3543
        %3668 = vmatprep.subr.mxu0 %v3548
        %3669 = vmatpush1.msra.mxu0 %v3547
        %3670 = vmatprep.subr.mxu0 %v3552
        %3671 = vmatpush1.msra.mxu0 %v3551
        %3672 = vmatprep.subr.mxu0 %v3556
        %3673 = vmatpush1.msra.mxu0 %v3555
        %3674 = vmatprep.subr.mxu0 %v3560
        %3675 = vmatpush1.msra.mxu0 %v3559
        %3676 = vmatprep.subr.mxu0 %v3564
        %3677 = vmatpush1.msra.mxu0 %v3563
        %3678 = vmatprep.subr.mxu0 %v3568
        %3679 = vmatpush1.msra.mxu0 %v3567
        %3680 = vmatprep.subr.mxu0 %v3572
        %3681 = vmatpush1.msra.mxu0 %v3571
        %3682 = vmatprep.subr.mxu0 %v3576
        %3683 = vmatpush1.msra.mxu0 %v3575
        %3684 = vmatprep.subr.mxu0 %v3580
        %3685 = vmatpush1.msra.mxu0 %v3579
        %3686 = vmatprep.subr.mxu0 %v3584
        %3687 = vmatpush1.msra.mxu0 %v3583
        %3688 = vmatprep.subr.mxu0 0.0
        %3689 = vmatpush1.msra.mxu0 0.0
        %3690 = vmatprep.subr.mxu0 0.0
        %3691 = vmatpush1.msra.mxu0 0.0
        %3692 = vmatprep.subr.mxu0 0.0
        %3693 = vmatpush1.msra.mxu0 0.0
        %3694 = vmatprep.subr.mxu0 0.0
        %3695 = vmatpush1.msra.mxu0 0.0
        %3696 = vmatprep.subr.mxu0 0.0
        %3697 = vmatpush1.msra.mxu0 0.0
        %3698 = vmatprep.subr.mxu0 0.0
        %3699 = vmatpush1.msra.mxu0 0.0
        %3700 = vmatprep.subr.mxu0 0.0
        %3701 = vmatpush1.msra.mxu0 0.0
        %3702 = vmatprep.subr.mxu0 0.0
        %3703 = vmatpush1.msra.mxu0 0.0
        %3704 = vmatprep.subr.mxu0 0.0
        %3705 = vmatpush1.msra.mxu0 0.0
        %3706 = vmatprep.subr.mxu0 0.0
        %3707 = vmatpush1.msra.mxu0 0.0
        %3708 = vmatprep.subr.mxu0 0.0
        %3709 = vmatpush1.msra.mxu0 0.0
        %3710 = vmatprep.subr.mxu0 0.0
        %3711 = vmatpush1.msra.mxu0 0.0
        %3712 = vmatprep.subr.mxu0 0.0
        %3713 = vmatpush1.msra.mxu0 0.0
        %3714 = vmatprep.subr.mxu0 0.0
        %3715 = vmatpush1.msra.mxu0 0.0
        %3716 = vmatprep.subr.mxu0 0.0
        %3717 = vmatpush1.msra.mxu0 0.0
        %3718 = vmatprep.subr.mxu0 0.0
        %3719 = vmatpush1.msra.mxu0 0.0
        %3720 = vmatprep.mubr.f32.mxu0 0.0
        %3721 = vmatmul.mubr.f32.gmra.mrb[0].mxu0 %v3264
        %v3722 = vpop.f32.mrb[0].mxu0
        %v3723 = vadd.f32 0.0, %v3722
        %v3724 = vpop.f32.mrb[0].mxu0
        %v3725 = vadd.f32 0.0, %v3724
        %3726 = vdwg.mxu0
        %v3727 = vadd.f32 %v3517, %v3652
        %v3728 = vadd.f32 %v3518, %v3654
        %v3729 = vadd.f32 %v3519, %v3723
        %v3730 = vadd.f32 %v3520, %v3725
        %v3731 = vxor.u32 %v3727, 2147483648
        %v3732 = vmul.f32 %v3731, 1.442695
        %v3733 = vpow.pop %v3732
        %v3734 = vadd.f32 %v3733, 1.0
        %v3735 = vrcp.pop %v3734
        %v3736 = vmul.f32 1.0, %v3735
        %v3737 = vxor.u32 %v3728, 2147483648
        %v3738 = vmul.f32 %v3737, 1.442695
        %v3739 = vpow.pop %v3738
        %v3740 = vadd.f32 %v3739, 1.0
        %v3741 = vrcp.pop %v3740
        %v3742 = vmul.f32 1.0, %v3741
        %v3743 = vtanh.pop %v3729
        %v3744 = vxor.u32 %v3730, 2147483648
        %v3745 = vmul.f32 %v3744, 1.442695
        %v3746 = vpow.pop %v3745
        %v3747 = vadd.f32 %v3746, 1.0
        %v3748 = vrcp.pop %v3747
        %v3749 = vmul.f32 1.0, %v3748
        %v3750 = vmul.f32 %v3742, %v3262
        %v3751 = vmul.f32 %v3736, %v3743
        %v3752 = vadd.f32 %v3750, %v3751
        %v3753 = vtanh.pop %v3752
        %v3754 = vmul.f32 %v3749, %v3753
        %s3755 = smul.u32 3, 2
        %s3756 = smul.addr %s3755, 8
        %s3757 = scalar_lea.vmem [#allocation3], %s3756
        %3758 = vst [vmem:[%s3757] sm:$0xff] %v3754
        %s3759 = smul.u32 4, 8
        %s3760 = smul.addr %s3759, 8
        %s3761 = scalar_lea.vmem [#allocation2], %s3760
        %v3762 = vld [vmem:[%s3761 + $0x20] sm:$0xff]
        %v3763 = vld [vmem:[%s3761 + $0x28] sm:$0xff]
        %v3764 = vld [vmem:[%s3761 + $0x30] sm:$0xff]
        %v3765 = vld [vmem:[%s3761 + $0x38] sm:$0xff]
        %v3766 = vld [vmem:[%s2295] sm:$0xff]
        %v3767 = vld [vmem:[%s2295 + $0x8] sm:$0xff]
        %v3768 = vld [vmem:[%s2295 + $0x10] sm:$0xff]
        %v3769 = vld [vmem:[%s2295 + $0x18] sm:$0xff]
        %v3770 = vld [vmem:[%s2295 + $0x20] sm:$0xff]
        %v3771 = vld [vmem:[%s2295 + $0x28] sm:$0xff]
        %v3772 = vld [vmem:[%s2295 + $0x30] sm:$0xff]
        %v3773 = vld [vmem:[%s2295 + $0x38] sm:$0xff]
        %v3774 = vld [vmem:[%s2295 + $0x40] sm:$0xff]
        %v3775 = vld [vmem:[%s2295 + $0x48] sm:$0xff]
        %v3776 = vld [vmem:[%s2295 + $0x50] sm:$0xff]
        %v3777 = vld [vmem:[%s2295 + $0x58] sm:$0xff]
        %v3778 = vld [vmem:[%s2295 + $0x60] sm:$0xff]
        %v3779 = vld [vmem:[%s2295 + $0x68] sm:$0xff]
        %v3780 = vld [vmem:[%s2295 + $0x70] sm:$0xff]
        %v3781 = vld [vmem:[%s2295 + $0x78] sm:$0xff]
        %v3782 = vld [vmem:[%s2295 + $0x80] sm:$0xff]
        %v3783 = vld [vmem:[%s2295 + $0x88] sm:$0xff]
        %v3784 = vld [vmem:[%s2295 + $0x90] sm:$0xff]
        %v3785 = vld [vmem:[%s2295 + $0x98] sm:$0xff]
        %v3786 = vld [vmem:[%s2295 + $0xa0] sm:$0xff]
        %v3787 = vld [vmem:[%s2295 + $0xa8] sm:$0xff]
        %v3788 = vld [vmem:[%s2295 + $0xb0] sm:$0xff]
        %v3789 = vld [vmem:[%s2295 + $0xb8] sm:$0xff]
        %v3790 = vld [vmem:[%s2295 + $0xc0] sm:$0xff]
        %v3791 = vld [vmem:[%s2295 + $0xc8] sm:$0xff]
        %v3792 = vld [vmem:[%s2295 + $0xd0] sm:$0xff]
        %v3793 = vld [vmem:[%s2295 + $0xd8] sm:$0xff]
        %v3794 = vld [vmem:[%s2295 + $0xe0] sm:$0xff]
        %v3795 = vld [vmem:[%s2295 + $0xe8] sm:$0xff]
        %v3796 = vld [vmem:[%s2295 + $0xf0] sm:$0xff]
        %v3797 = vld [vmem:[%s2295 + $0xf8] sm:$0xff]
        %v3798 = vld [vmem:[%s2295 + $0x100] sm:$0xff]
        %v3799 = vld [vmem:[%s2295 + $0x108] sm:$0xff]
        %v3800 = vld [vmem:[%s2295 + $0x110] sm:$0xff]
        %v3801 = vld [vmem:[%s2295 + $0x118] sm:$0xff]
        %v3802 = vld [vmem:[%s2295 + $0x120] sm:$0xff]
        %v3803 = vld [vmem:[%s2295 + $0x128] sm:$0xff]
        %v3804 = vld [vmem:[%s2295 + $0x130] sm:$0xff]
        %v3805 = vld [vmem:[%s2295 + $0x138] sm:$0xff]
        %v3806 = vld [vmem:[%s2295 + $0x140] sm:$0xff]
        %v3807 = vld [vmem:[%s2295 + $0x148] sm:$0xff]
        %v3808 = vld [vmem:[%s2295 + $0x150] sm:$0xff]
        %v3809 = vld [vmem:[%s2295 + $0x158] sm:$0xff]
        %v3810 = vld [vmem:[%s2295 + $0x160] sm:$0xff]
        %v3811 = vld [vmem:[%s2295 + $0x168] sm:$0xff]
        %v3812 = vld [vmem:[%s2295 + $0x170] sm:$0xff]
        %v3813 = vld [vmem:[%s2295 + $0x178] sm:$0xff]
        %v3814 = vld [vmem:[%s2295 + $0x180] sm:$0xff]
        %v3815 = vld [vmem:[%s2295 + $0x188] sm:$0xff]
        %v3816 = vld [vmem:[%s2295 + $0x190] sm:$0xff]
        %v3817 = vld [vmem:[%s2295 + $0x198] sm:$0xff]
        %v3818 = vld [vmem:[%s2295 + $0x1a0] sm:$0xff]
        %v3819 = vld [vmem:[%s2295 + $0x1a8] sm:$0xff]
        %v3820 = vld [vmem:[%s2295 + $0x1b0] sm:$0xff]
        %v3821 = vld [vmem:[%s2295 + $0x1b8] sm:$0xff]
        %v3822 = vld [vmem:[%s2295 + $0x1c0] sm:$0xff]
        %v3823 = vld [vmem:[%s2295 + $0x1c8] sm:$0xff]
        %v3824 = vld [vmem:[%s2295 + $0x1d0] sm:$0xff]
        %v3825 = vld [vmem:[%s2295 + $0x1d8] sm:$0xff]
        %v3826 = vld [vmem:[%s2295 + $0x1e0] sm:$0xff]
        %v3827 = vld [vmem:[%s2295 + $0x1e8] sm:$0xff]
        %v3828 = vld [vmem:[%s2295 + $0x1f0] sm:$0xff]
        %v3829 = vld [vmem:[%s2295 + $0x1f8] sm:$0xff]
        %3830 = vmatprep.subr.mxu0 %v3767
        %3831 = vmatpush1.msra.mxu0 %v3766
        %3832 = vmatprep.subr.mxu0 %v3771
        %3833 = vmatpush1.msra.mxu0 %v3770
        %3834 = vmatprep.subr.mxu0 %v3775
        %3835 = vmatpush1.msra.mxu0 %v3774
        %3836 = vmatprep.subr.mxu0 %v3779
        %3837 = vmatpush1.msra.mxu0 %v3778
        %3838 = vmatprep.subr.mxu0 %v3783
        %3839 = vmatpush1.msra.mxu0 %v3782
        %3840 = vmatprep.subr.mxu0 %v3787
        %3841 = vmatpush1.msra.mxu0 %v3786
        %3842 = vmatprep.subr.mxu0 %v3791
        %3843 = vmatpush1.msra.mxu0 %v3790
        %3844 = vmatprep.subr.mxu0 %v3795
        %3845 = vmatpush1.msra.mxu0 %v3794
        %3846 = vmatprep.subr.mxu0 %v3799
        %3847 = vmatpush1.msra.mxu0 %v3798
        %3848 = vmatprep.subr.mxu0 %v3803
        %3849 = vmatpush1.msra.mxu0 %v3802
        %3850 = vmatprep.subr.mxu0 %v3807
        %3851 = vmatpush1.msra.mxu0 %v3806
        %3852 = vmatprep.subr.mxu0 %v3811
        %3853 = vmatpush1.msra.mxu0 %v3810
        %3854 = vmatprep.subr.mxu0 %v3815
        %3855 = vmatpush1.msra.mxu0 %v3814
        %3856 = vmatprep.subr.mxu0 %v3819
        %3857 = vmatpush1.msra.mxu0 %v3818
        %3858 = vmatprep.subr.mxu0 %v3823
        %3859 = vmatpush1.msra.mxu0 %v3822
        %3860 = vmatprep.subr.mxu0 %v3827
        %3861 = vmatpush1.msra.mxu0 %v3826
        %3862 = vmatprep.subr.mxu0 0.0
        %3863 = vmatpush1.msra.mxu0 0.0
        %3864 = vmatprep.subr.mxu0 0.0
        %3865 = vmatpush1.msra.mxu0 0.0
        %3866 = vmatprep.subr.mxu0 0.0
        %3867 = vmatpush1.msra.mxu0 0.0
        %3868 = vmatprep.subr.mxu0 0.0
        %3869 = vmatpush1.msra.mxu0 0.0
        %3870 = vmatprep.subr.mxu0 0.0
        %3871 = vmatpush1.msra.mxu0 0.0
        %3872 = vmatprep.subr.mxu0 0.0
        %3873 = vmatpush1.msra.mxu0 0.0
        %3874 = vmatprep.subr.mxu0 0.0
        %3875 = vmatpush1.msra.mxu0 0.0
        %3876 = vmatprep.subr.mxu0 0.0
        %3877 = vmatpush1.msra.mxu0 0.0
        %3878 = vmatprep.subr.mxu0 0.0
        %3879 = vmatpush1.msra.mxu0 0.0
        %3880 = vmatprep.subr.mxu0 0.0
        %3881 = vmatpush1.msra.mxu0 0.0
        %3882 = vmatprep.subr.mxu0 0.0
        %3883 = vmatpush1.msra.mxu0 0.0
        %3884 = vmatprep.subr.mxu0 0.0
        %3885 = vmatpush1.msra.mxu0 0.0
        %3886 = vmatprep.subr.mxu0 0.0
        %3887 = vmatpush1.msra.mxu0 0.0
        %3888 = vmatprep.subr.mxu0 0.0
        %3889 = vmatpush1.msra.mxu0 0.0
        %3890 = vmatprep.subr.mxu0 0.0
        %3891 = vmatpush1.msra.mxu0 0.0
        %3892 = vmatprep.subr.mxu0 0.0
        %3893 = vmatpush1.msra.mxu0 0.0
        %3894 = vmatprep.mubr.f32.mxu0 0.0
        %3895 = vmatmul.mubr.f32.gmra.mrb[0].mxu0 %v3509
        %v3896 = vpop.f32.mrb[0].mxu0
        %v3897 = vadd.f32 0.0, %v3896
        %v3898 = vpop.f32.mrb[0].mxu0
        %v3899 = vadd.f32 0.0, %v3898
        %3900 = vdwg.mxu0
        %3901 = vmatprep.subr.mxu0 %v3769
        %3902 = vmatpush1.msra.mxu0 %v3768
        %3903 = vmatprep.subr.mxu0 %v3773
        %3904 = vmatpush1.msra.mxu0 %v3772
        %3905 = vmatprep.subr.mxu0 %v3777
        %3906 = vmatpush1.msra.mxu0 %v3776
        %3907 = vmatprep.subr.mxu0 %v3781
        %3908 = vmatpush1.msra.mxu0 %v3780
        %3909 = vmatprep.subr.mxu0 %v3785
        %3910 = vmatpush1.msra.mxu0 %v3784
        %3911 = vmatprep.subr.mxu0 %v3789
        %3912 = vmatpush1.msra.mxu0 %v3788
        %3913 = vmatprep.subr.mxu0 %v3793
        %3914 = vmatpush1.msra.mxu0 %v3792
        %3915 = vmatprep.subr.mxu0 %v3797
        %3916 = vmatpush1.msra.mxu0 %v3796
        %3917 = vmatprep.subr.mxu0 %v3801
        %3918 = vmatpush1.msra.mxu0 %v3800
        %3919 = vmatprep.subr.mxu0 %v3805
        %3920 = vmatpush1.msra.mxu0 %v3804
        %3921 = vmatprep.subr.mxu0 %v3809
        %3922 = vmatpush1.msra.mxu0 %v3808
        %3923 = vmatprep.subr.mxu0 %v3813
        %3924 = vmatpush1.msra.mxu0 %v3812
        %3925 = vmatprep.subr.mxu0 %v3817
        %3926 = vmatpush1.msra.mxu0 %v3816
        %3927 = vmatprep.subr.mxu0 %v3821
        %3928 = vmatpush1.msra.mxu0 %v3820
        %3929 = vmatprep.subr.mxu0 %v3825
        %3930 = vmatpush1.msra.mxu0 %v3824
        %3931 = vmatprep.subr.mxu0 %v3829
        %3932 = vmatpush1.msra.mxu0 %v3828
        %3933 = vmatprep.subr.mxu0 0.0
        %3934 = vmatpush1.msra.mxu0 0.0
        %3935 = vmatprep.subr.mxu0 0.0
        %3936 = vmatpush1.msra.mxu0 0.0
        %3937 = vmatprep.subr.mxu0 0.0
        %3938 = vmatpush1.msra.mxu0 0.0
        %3939 = vmatprep.subr.mxu0 0.0
        %3940 = vmatpush1.msra.mxu0 0.0
        %3941 = vmatprep.subr.mxu0 0.0
        %3942 = vmatpush1.msra.mxu0 0.0
        %3943 = vmatprep.subr.mxu0 0.0
        %3944 = vmatpush1.msra.mxu0 0.0
        %3945 = vmatprep.subr.mxu0 0.0
        %3946 = vmatpush1.msra.mxu0 0.0
        %3947 = vmatprep.subr.mxu0 0.0
        %3948 = vmatpush1.msra.mxu0 0.0
        %3949 = vmatprep.subr.mxu0 0.0
        %3950 = vmatpush1.msra.mxu0 0.0
        %3951 = vmatprep.subr.mxu0 0.0
        %3952 = vmatpush1.msra.mxu0 0.0
        %3953 = vmatprep.subr.mxu0 0.0
        %3954 = vmatpush1.msra.mxu0 0.0
        %3955 = vmatprep.subr.mxu0 0.0
        %3956 = vmatpush1.msra.mxu0 0.0
        %3957 = vmatprep.subr.mxu0 0.0
        %3958 = vmatpush1.msra.mxu0 0.0
        %3959 = vmatprep.subr.mxu0 0.0
        %3960 = vmatpush1.msra.mxu0 0.0
        %3961 = vmatprep.subr.mxu0 0.0
        %3962 = vmatpush1.msra.mxu0 0.0
        %3963 = vmatprep.subr.mxu0 0.0
        %3964 = vmatpush1.msra.mxu0 0.0
        %3965 = vmatprep.mubr.f32.mxu0 0.0
        %3966 = vmatmul.mubr.f32.gmra.mrb[0].mxu0 %v3509
        %v3967 = vpop.f32.mrb[0].mxu0
        %v3968 = vadd.f32 0.0, %v3967
        %v3969 = vpop.f32.mrb[0].mxu0
        %v3970 = vadd.f32 0.0, %v3969
        %3971 = vdwg.mxu0
        %v3972 = vadd.f32 %v3762, %v3897
        %v3973 = vadd.f32 %v3763, %v3899
        %v3974 = vadd.f32 %v3764, %v3968
        %v3975 = vadd.f32 %v3765, %v3970
        %v3976 = vxor.u32 %v3972, 2147483648
        %v3977 = vmul.f32 %v3976, 1.442695
        %v3978 = vpow.pop %v3977
        %v3979 = vadd.f32 %v3978, 1.0
        %v3980 = vrcp.pop %v3979
        %v3981 = vmul.f32 1.0, %v3980
        %v3982 = vxor.u32 %v3973, 2147483648
        %v3983 = vmul.f32 %v3982, 1.442695
        %v3984 = vpow.pop %v3983
        %v3985 = vadd.f32 %v3984, 1.0
        %v3986 = vrcp.pop %v3985
        %v3987 = vmul.f32 1.0, %v3986
        %v3988 = vtanh.pop %v3974
        %v3989 = vxor.u32 %v3975, 2147483648
        %v3990 = vmul.f32 %v3989, 1.442695
        %v3991 = vpow.pop %v3990
        %v3992 = vadd.f32 %v3991, 1.0
        %v3993 = vrcp.pop %v3992
        %v3994 = vmul.f32 1.0, %v3993
        %v3995 = vmul.f32 %v3987, %v3507
        %v3996 = vmul.f32 %v3981, %v3988
        %v3997 = vadd.f32 %v3995, %v3996
        %v3998 = vtanh.pop %v3997
        %v3999 = vmul.f32 %v3994, %v3998
        %s4000 = smul.u32 4, 2
        %s4001 = smul.addr %s4000, 8
        %s4002 = scalar_lea.vmem [#allocation3], %s4001
        %4003 = vst [vmem:[%s4002 + $0x8] sm:$0xff] %v3999
        %v4004 = vld [vmem:[%s3761] sm:$0xff]
        %v4005 = vld [vmem:[%s3761 + $0x8] sm:$0xff]
        %v4006 = vld [vmem:[%s3761 + $0x10] sm:$0xff]
        %v4007 = vld [vmem:[%s3761 + $0x18] sm:$0xff]
        %v4008 = vld [vmem:[%s308] sm:$0xff]
        %v4009 = vld [vmem:[%s308 + $0x8] sm:$0xff]
        %v4010 = vld [vmem:[%s308 + $0x10] sm:$0xff]
        %v4011 = vld [vmem:[%s308 + $0x18] sm:$0xff]
        %v4012 = vld [vmem:[%s308 + $0x20] sm:$0xff]
        %v4013 = vld [vmem:[%s308 + $0x28] sm:$0xff]
        %v4014 = vld [vmem:[%s308 + $0x30] sm:$0xff]
        %v4015 = vld [vmem:[%s308 + $0x38] sm:$0xff]
        %v4016 = vld [vmem:[%s308 + $0x40] sm:$0xff]
        %v4017 = vld [vmem:[%s308 + $0x48] sm:$0xff]
        %v4018 = vld [vmem:[%s308 + $0x50] sm:$0xff]
        %v4019 = vld [vmem:[%s308 + $0x58] sm:$0xff]
        %v4020 = vld [vmem:[%s308 + $0x60] sm:$0xff]
        %v4021 = vld [vmem:[%s308 + $0x68] sm:$0xff]
        %v4022 = vld [vmem:[%s308 + $0x70] sm:$0xff]
        %v4023 = vld [vmem:[%s308 + $0x78] sm:$0xff]
        %v4024 = vld [vmem:[%s308 + $0x80] sm:$0xff]
        %v4025 = vld [vmem:[%s308 + $0x88] sm:$0xff]
        %v4026 = vld [vmem:[%s308 + $0x90] sm:$0xff]
        %v4027 = vld [vmem:[%s308 + $0x98] sm:$0xff]
        %v4028 = vld [vmem:[%s308 + $0xa0] sm:$0xff]
        %v4029 = vld [vmem:[%s308 + $0xa8] sm:$0xff]
        %v4030 = vld [vmem:[%s308 + $0xb0] sm:$0xff]
        %v4031 = vld [vmem:[%s308 + $0xb8] sm:$0xff]
        %v4032 = vld [vmem:[%s308 + $0xc0] sm:$0xff]
        %v4033 = vld [vmem:[%s308 + $0xc8] sm:$0xff]
        %v4034 = vld [vmem:[%s308 + $0xd0] sm:$0xff]
        %v4035 = vld [vmem:[%s308 + $0xd8] sm:$0xff]
        %v4036 = vld [vmem:[%s308 + $0xe0] sm:$0xff]
        %v4037 = vld [vmem:[%s308 + $0xe8] sm:$0xff]
        %v4038 = vld [vmem:[%s308 + $0xf0] sm:$0xff]
        %v4039 = vld [vmem:[%s308 + $0xf8] sm:$0xff]
        %v4040 = vld [vmem:[%s308 + $0x100] sm:$0xff]
        %v4041 = vld [vmem:[%s308 + $0x108] sm:$0xff]
        %v4042 = vld [vmem:[%s308 + $0x110] sm:$0xff]
        %v4043 = vld [vmem:[%s308 + $0x118] sm:$0xff]
        %v4044 = vld [vmem:[%s308 + $0x120] sm:$0xff]
        %v4045 = vld [vmem:[%s308 + $0x128] sm:$0xff]
        %v4046 = vld [vmem:[%s308 + $0x130] sm:$0xff]
        %v4047 = vld [vmem:[%s308 + $0x138] sm:$0xff]
        %v4048 = vld [vmem:[%s308 + $0x140] sm:$0xff]
        %v4049 = vld [vmem:[%s308 + $0x148] sm:$0xff]
        %v4050 = vld [vmem:[%s308 + $0x150] sm:$0xff]
        %v4051 = vld [vmem:[%s308 + $0x158] sm:$0xff]
        %v4052 = vld [vmem:[%s308 + $0x160] sm:$0xff]
        %v4053 = vld [vmem:[%s308 + $0x168] sm:$0xff]
        %v4054 = vld [vmem:[%s308 + $0x170] sm:$0xff]
        %v4055 = vld [vmem:[%s308 + $0x178] sm:$0xff]
        %v4056 = vld [vmem:[%s308 + $0x180] sm:$0xff]
        %v4057 = vld [vmem:[%s308 + $0x188] sm:$0xff]
        %v4058 = vld [vmem:[%s308 + $0x190] sm:$0xff]
        %v4059 = vld [vmem:[%s308 + $0x198] sm:$0xff]
        %v4060 = vld [vmem:[%s308 + $0x1a0] sm:$0xff]
        %v4061 = vld [vmem:[%s308 + $0x1a8] sm:$0xff]
        %v4062 = vld [vmem:[%s308 + $0x1b0] sm:$0xff]
        %v4063 = vld [vmem:[%s308 + $0x1b8] sm:$0xff]
        %v4064 = vld [vmem:[%s308 + $0x1c0] sm:$0xff]
        %v4065 = vld [vmem:[%s308 + $0x1c8] sm:$0xff]
        %v4066 = vld [vmem:[%s308 + $0x1d0] sm:$0xff]
        %v4067 = vld [vmem:[%s308 + $0x1d8] sm:$0xff]
        %v4068 = vld [vmem:[%s308 + $0x1e0] sm:$0xff]
        %v4069 = vld [vmem:[%s308 + $0x1e8] sm:$0xff]
        %v4070 = vld [vmem:[%s308 + $0x1f0] sm:$0xff]
        %v4071 = vld [vmem:[%s308 + $0x1f8] sm:$0xff]
        %4072 = vmatprep.subr.mxu0 %v4009
        %4073 = vmatpush1.msra.mxu0 %v4008
        %4074 = vmatprep.subr.mxu0 %v4013
        %4075 = vmatpush1.msra.mxu0 %v4012
        %4076 = vmatprep.subr.mxu0 %v4017
        %4077 = vmatpush1.msra.mxu0 %v4016
        %4078 = vmatprep.subr.mxu0 %v4021
        %4079 = vmatpush1.msra.mxu0 %v4020
        %4080 = vmatprep.subr.mxu0 %v4025
        %4081 = vmatpush1.msra.mxu0 %v4024
        %4082 = vmatprep.subr.mxu0 %v4029
        %4083 = vmatpush1.msra.mxu0 %v4028
        %4084 = vmatprep.subr.mxu0 %v4033
        %4085 = vmatpush1.msra.mxu0 %v4032
        %4086 = vmatprep.subr.mxu0 %v4037
        %4087 = vmatpush1.msra.mxu0 %v4036
        %4088 = vmatprep.subr.mxu0 %v4041
        %4089 = vmatpush1.msra.mxu0 %v4040
        %4090 = vmatprep.subr.mxu0 %v4045
        %4091 = vmatpush1.msra.mxu0 %v4044
        %4092 = vmatprep.subr.mxu0 %v4049
        %4093 = vmatpush1.msra.mxu0 %v4048
        %4094 = vmatprep.subr.mxu0 %v4053
        %4095 = vmatpush1.msra.mxu0 %v4052
        %4096 = vmatprep.subr.mxu0 %v4057
        %4097 = vmatpush1.msra.mxu0 %v4056
        %4098 = vmatprep.subr.mxu0 %v4061
        %4099 = vmatpush1.msra.mxu0 %v4060
        %4100 = vmatprep.subr.mxu0 %v4065
        %4101 = vmatpush1.msra.mxu0 %v4064
        %4102 = vmatprep.subr.mxu0 %v4069
        %4103 = vmatpush1.msra.mxu0 %v4068
        %4104 = vmatprep.subr.mxu0 0.0
        %4105 = vmatpush1.msra.mxu0 0.0
        %4106 = vmatprep.subr.mxu0 0.0
        %4107 = vmatpush1.msra.mxu0 0.0
        %4108 = vmatprep.subr.mxu0 0.0
        %4109 = vmatpush1.msra.mxu0 0.0
        %4110 = vmatprep.subr.mxu0 0.0
        %4111 = vmatpush1.msra.mxu0 0.0
        %4112 = vmatprep.subr.mxu0 0.0
        %4113 = vmatpush1.msra.mxu0 0.0
        %4114 = vmatprep.subr.mxu0 0.0
        %4115 = vmatpush1.msra.mxu0 0.0
        %4116 = vmatprep.subr.mxu0 0.0
        %4117 = vmatpush1.msra.mxu0 0.0
        %4118 = vmatprep.subr.mxu0 0.0
        %4119 = vmatpush1.msra.mxu0 0.0
        %4120 = vmatprep.subr.mxu0 0.0
        %4121 = vmatpush1.msra.mxu0 0.0
        %4122 = vmatprep.subr.mxu0 0.0
        %4123 = vmatpush1.msra.mxu0 0.0
        %4124 = vmatprep.subr.mxu0 0.0
        %4125 = vmatpush1.msra.mxu0 0.0
        %4126 = vmatprep.subr.mxu0 0.0
        %4127 = vmatpush1.msra.mxu0 0.0
        %4128 = vmatprep.subr.mxu0 0.0
        %4129 = vmatpush1.msra.mxu0 0.0
        %4130 = vmatprep.subr.mxu0 0.0
        %4131 = vmatpush1.msra.mxu0 0.0
        %4132 = vmatprep.subr.mxu0 0.0
        %4133 = vmatpush1.msra.mxu0 0.0
        %4134 = vmatprep.subr.mxu0 0.0
        %4135 = vmatpush1.msra.mxu0 0.0
        %4136 = vmatprep.mubr.f32.mxu0 0.0
        %4137 = vmatmul.mubr.f32.gmra.mrb[0].mxu0 %v3754
        %v4138 = vpop.f32.mrb[0].mxu0
        %v4139 = vadd.f32 0.0, %v4138
        %v4140 = vpop.f32.mrb[0].mxu0
        %v4141 = vadd.f32 0.0, %v4140
        %4142 = vdwg.mxu0
        %4143 = vmatprep.subr.mxu0 %v4011
        %4144 = vmatpush1.msra.mxu0 %v4010
        %4145 = vmatprep.subr.mxu0 %v4015
        %4146 = vmatpush1.msra.mxu0 %v4014
        %4147 = vmatprep.subr.mxu0 %v4019
        %4148 = vmatpush1.msra.mxu0 %v4018
        %4149 = vmatprep.subr.mxu0 %v4023
        %4150 = vmatpush1.msra.mxu0 %v4022
        %4151 = vmatprep.subr.mxu0 %v4027
        %4152 = vmatpush1.msra.mxu0 %v4026
        %4153 = vmatprep.subr.mxu0 %v4031
        %4154 = vmatpush1.msra.mxu0 %v4030
        %4155 = vmatprep.subr.mxu0 %v4035
        %4156 = vmatpush1.msra.mxu0 %v4034
        %4157 = vmatprep.subr.mxu0 %v4039
        %4158 = vmatpush1.msra.mxu0 %v4038
        %4159 = vmatprep.subr.mxu0 %v4043
        %4160 = vmatpush1.msra.mxu0 %v4042
        %4161 = vmatprep.subr.mxu0 %v4047
        %4162 = vmatpush1.msra.mxu0 %v4046
        %4163 = vmatprep.subr.mxu0 %v4051
        %4164 = vmatpush1.msra.mxu0 %v4050
        %4165 = vmatprep.subr.mxu0 %v4055
        %4166 = vmatpush1.msra.mxu0 %v4054
        %4167 = vmatprep.subr.mxu0 %v4059
        %4168 = vmatpush1.msra.mxu0 %v4058
        %4169 = vmatprep.subr.mxu0 %v4063
        %4170 = vmatpush1.msra.mxu0 %v4062
        %4171 = vmatprep.subr.mxu0 %v4067
        %4172 = vmatpush1.msra.mxu0 %v4066
        %4173 = vmatprep.subr.mxu0 %v4071
        %4174 = vmatpush1.msra.mxu0 %v4070
        %4175 = vmatprep.subr.mxu0 0.0
        %4176 = vmatpush1.msra.mxu0 0.0
        %4177 = vmatprep.subr.mxu0 0.0
        %4178 = vmatpush1.msra.mxu0 0.0
        %4179 = vmatprep.subr.mxu0 0.0
        %4180 = vmatpush1.msra.mxu0 0.0
        %4181 = vmatprep.subr.mxu0 0.0
        %4182 = vmatpush1.msra.mxu0 0.0
        %4183 = vmatprep.subr.mxu0 0.0
        %4184 = vmatpush1.msra.mxu0 0.0
        %4185 = vmatprep.subr.mxu0 0.0
        %4186 = vmatpush1.msra.mxu0 0.0
        %4187 = vmatprep.subr.mxu0 0.0
        %4188 = vmatpush1.msra.mxu0 0.0
        %4189 = vmatprep.subr.mxu0 0.0
        %4190 = vmatpush1.msra.mxu0 0.0
        %4191 = vmatprep.subr.mxu0 0.0
        %4192 = vmatpush1.msra.mxu0 0.0
        %4193 = vmatprep.subr.mxu0 0.0
        %4194 = vmatpush1.msra.mxu0 0.0
        %4195 = vmatprep.subr.mxu0 0.0
        %4196 = vmatpush1.msra.mxu0 0.0
        %4197 = vmatprep.subr.mxu0 0.0
        %4198 = vmatpush1.msra.mxu0 0.0
        %4199 = vmatprep.subr.mxu0 0.0
        %4200 = vmatpush1.msra.mxu0 0.0
        %4201 = vmatprep.subr.mxu0 0.0
        %4202 = vmatpush1.msra.mxu0 0.0
        %4203 = vmatprep.subr.mxu0 0.0
        %4204 = vmatpush1.msra.mxu0 0.0
        %4205 = vmatprep.subr.mxu0 0.0
        %4206 = vmatpush1.msra.mxu0 0.0
        %4207 = vmatprep.mubr.f32.mxu0 0.0
        %4208 = vmatmul.mubr.f32.gmra.mrb[0].mxu0 %v3754
        %v4209 = vpop.f32.mrb[0].mxu0
        %v4210 = vadd.f32 0.0, %v4209
        %v4211 = vpop.f32.mrb[0].mxu0
        %v4212 = vadd.f32 0.0, %v4211
        %4213 = vdwg.mxu0
        %v4214 = vadd.f32 %v4004, %v4139
        %v4215 = vadd.f32 %v4005, %v4141
        %v4216 = vadd.f32 %v4006, %v4210
        %v4217 = vadd.f32 %v4007, %v4212
        %v4218 = vxor.u32 %v4214, 2147483648
        %v4219 = vmul.f32 %v4218, 1.442695
        %v4220 = vpow.pop %v4219
        %v4221 = vadd.f32 %v4220, 1.0
        %v4222 = vrcp.pop %v4221
        %v4223 = vmul.f32 1.0, %v4222
        %v4224 = vxor.u32 %v4215, 2147483648
        %v4225 = vmul.f32 %v4224, 1.442695
        %v4226 = vpow.pop %v4225
        %v4227 = vadd.f32 %v4226, 1.0
        %v4228 = vrcp.pop %v4227
        %v4229 = vmul.f32 1.0, %v4228
        %v4230 = vtanh.pop %v4216
        %v4231 = vxor.u32 %v4217, 2147483648
        %v4232 = vmul.f32 %v4231, 1.442695
        %v4233 = vpow.pop %v4232
        %v4234 = vadd.f32 %v4233, 1.0
        %v4235 = vrcp.pop %v4234
        %v4236 = vmul.f32 1.0, %v4235
        %v4237 = vmul.f32 %v4229, %v3752
        %v4238 = vmul.f32 %v4223, %v4230
        %v4239 = vadd.f32 %v4237, %v4238
        %v4240 = vtanh.pop %v4239
        %v4241 = vmul.f32 %v4236, %v4240
        %4242 = vst [vmem:[%s4002] sm:$0xff] %v4241
        %v4243 = vld [vmem:[%s3516 + $0x20] sm:$0xff]
        %v4244 = vld [vmem:[%s3516 + $0x28] sm:$0xff]
        %v4245 = vld [vmem:[%s3516 + $0x30] sm:$0xff]
        %v4246 = vld [vmem:[%s3516 + $0x38] sm:$0xff]
        %v4247 = vld [vmem:[%s2295] sm:$0xff]
        %v4248 = vld [vmem:[%s2295 + $0x8] sm:$0xff]
        %v4249 = vld [vmem:[%s2295 + $0x10] sm:$0xff]
        %v4250 = vld [vmem:[%s2295 + $0x18] sm:$0xff]
        %v4251 = vld [vmem:[%s2295 + $0x20] sm:$0xff]
        %v4252 = vld [vmem:[%s2295 + $0x28] sm:$0xff]
        %v4253 = vld [vmem:[%s2295 + $0x30] sm:$0xff]
        %v4254 = vld [vmem:[%s2295 + $0x38] sm:$0xff]
        %v4255 = vld [vmem:[%s2295 + $0x40] sm:$0xff]
        %v4256 = vld [vmem:[%s2295 + $0x48] sm:$0xff]
        %v4257 = vld [vmem:[%s2295 + $0x50] sm:$0xff]
        %v4258 = vld [vmem:[%s2295 + $0x58] sm:$0xff]
        %v4259 = vld [vmem:[%s2295 + $0x60] sm:$0xff]
        %v4260 = vld [vmem:[%s2295 + $0x68] sm:$0xff]
        %v4261 = vld [vmem:[%s2295 + $0x70] sm:$0xff]
        %v4262 = vld [vmem:[%s2295 + $0x78] sm:$0xff]
        %v4263 = vld [vmem:[%s2295 + $0x80] sm:$0xff]
        %v4264 = vld [vmem:[%s2295 + $0x88] sm:$0xff]
        %v4265 = vld [vmem:[%s2295 + $0x90] sm:$0xff]
        %v4266 = vld [vmem:[%s2295 + $0x98] sm:$0xff]
        %v4267 = vld [vmem:[%s2295 + $0xa0] sm:$0xff]
        %v4268 = vld [vmem:[%s2295 + $0xa8] sm:$0xff]
        %v4269 = vld [vmem:[%s2295 + $0xb0] sm:$0xff]
        %v4270 = vld [vmem:[%s2295 + $0xb8] sm:$0xff]
        %v4271 = vld [vmem:[%s2295 + $0xc0] sm:$0xff]
        %v4272 = vld [vmem:[%s2295 + $0xc8] sm:$0xff]
        %v4273 = vld [vmem:[%s2295 + $0xd0] sm:$0xff]
        %v4274 = vld [vmem:[%s2295 + $0xd8] sm:$0xff]
        %v4275 = vld [vmem:[%s2295 + $0xe0] sm:$0xff]
        %v4276 = vld [vmem:[%s2295 + $0xe8] sm:$0xff]
        %v4277 = vld [vmem:[%s2295 + $0xf0] sm:$0xff]
        %v4278 = vld [vmem:[%s2295 + $0xf8] sm:$0xff]
        %v4279 = vld [vmem:[%s2295 + $0x100] sm:$0xff]
        %v4280 = vld [vmem:[%s2295 + $0x108] sm:$0xff]
        %v4281 = vld [vmem:[%s2295 + $0x110] sm:$0xff]
        %v4282 = vld [vmem:[%s2295 + $0x118] sm:$0xff]
        %v4283 = vld [vmem:[%s2295 + $0x120] sm:$0xff]
        %v4284 = vld [vmem:[%s2295 + $0x128] sm:$0xff]
        %v4285 = vld [vmem:[%s2295 + $0x130] sm:$0xff]
        %v4286 = vld [vmem:[%s2295 + $0x138] sm:$0xff]
        %v4287 = vld [vmem:[%s2295 + $0x140] sm:$0xff]
        %v4288 = vld [vmem:[%s2295 + $0x148] sm:$0xff]
        %v4289 = vld [vmem:[%s2295 + $0x150] sm:$0xff]
        %v4290 = vld [vmem:[%s2295 + $0x158] sm:$0xff]
        %v4291 = vld [vmem:[%s2295 + $0x160] sm:$0xff]
        %v4292 = vld [vmem:[%s2295 + $0x168] sm:$0xff]
        %v4293 = vld [vmem:[%s2295 + $0x170] sm:$0xff]
        %v4294 = vld [vmem:[%s2295 + $0x178] sm:$0xff]
        %v4295 = vld [vmem:[%s2295 + $0x180] sm:$0xff]
        %v4296 = vld [vmem:[%s2295 + $0x188] sm:$0xff]
        %v4297 = vld [vmem:[%s2295 + $0x190] sm:$0xff]
        %v4298 = vld [vmem:[%s2295 + $0x198] sm:$0xff]
        %v4299 = vld [vmem:[%s2295 + $0x1a0] sm:$0xff]
        %v4300 = vld [vmem:[%s2295 + $0x1a8] sm:$0xff]
        %v4301 = vld [vmem:[%s2295 + $0x1b0] sm:$0xff]
        %v4302 = vld [vmem:[%s2295 + $0x1b8] sm:$0xff]
        %v4303 = vld [vmem:[%s2295 + $0x1c0] sm:$0xff]
        %v4304 = vld [vmem:[%s2295 + $0x1c8] sm:$0xff]
        %v4305 = vld [vmem:[%s2295 + $0x1d0] sm:$0xff]
        %v4306 = vld [vmem:[%s2295 + $0x1d8] sm:$0xff]
        %v4307 = vld [vmem:[%s2295 + $0x1e0] sm:$0xff]
        %v4308 = vld [vmem:[%s2295 + $0x1e8] sm:$0xff]
        %v4309 = vld [vmem:[%s2295 + $0x1f0] sm:$0xff]
        %v4310 = vld [vmem:[%s2295 + $0x1f8] sm:$0xff]
        %4311 = vmatprep.subr.mxu0 %v4248
        %4312 = vmatpush1.msra.mxu0 %v4247
        %4313 = vmatprep.subr.mxu0 %v4252
        %4314 = vmatpush1.msra.mxu0 %v4251
        %4315 = vmatprep.subr.mxu0 %v4256
        %4316 = vmatpush1.msra.mxu0 %v4255
        %4317 = vmatprep.subr.mxu0 %v4260
        %4318 = vmatpush1.msra.mxu0 %v4259
        %4319 = vmatprep.subr.mxu0 %v4264
        %4320 = vmatpush1.msra.mxu0 %v4263
        %4321 = vmatprep.subr.mxu0 %v4268
        %4322 = vmatpush1.msra.mxu0 %v4267
        %4323 = vmatprep.subr.mxu0 %v4272
        %4324 = vmatpush1.msra.mxu0 %v4271
        %4325 = vmatprep.subr.mxu0 %v4276
        %4326 = vmatpush1.msra.mxu0 %v4275
        %4327 = vmatprep.subr.mxu0 %v4280
        %4328 = vmatpush1.msra.mxu0 %v4279
        %4329 = vmatprep.subr.mxu0 %v4284
        %4330 = vmatpush1.msra.mxu0 %v4283
        %4331 = vmatprep.subr.mxu0 %v4288
        %4332 = vmatpush1.msra.mxu0 %v4287
        %4333 = vmatprep.subr.mxu0 %v4292
        %4334 = vmatpush1.msra.mxu0 %v4291
        %4335 = vmatprep.subr.mxu0 %v4296
        %4336 = vmatpush1.msra.mxu0 %v4295
        %4337 = vmatprep.subr.mxu0 %v4300
        %4338 = vmatpush1.msra.mxu0 %v4299
        %4339 = vmatprep.subr.mxu0 %v4304
        %4340 = vmatpush1.msra.mxu0 %v4303
        %4341 = vmatprep.subr.mxu0 %v4308
        %4342 = vmatpush1.msra.mxu0 %v4307
        %4343 = vmatprep.subr.mxu0 0.0
        %4344 = vmatpush1.msra.mxu0 0.0
        %4345 = vmatprep.subr.mxu0 0.0
        %4346 = vmatpush1.msra.mxu0 0.0
        %4347 = vmatprep.subr.mxu0 0.0
        %4348 = vmatpush1.msra.mxu0 0.0
        %4349 = vmatprep.subr.mxu0 0.0
        %4350 = vmatpush1.msra.mxu0 0.0
        %4351 = vmatprep.subr.mxu0 0.0
        %4352 = vmatpush1.msra.mxu0 0.0
        %4353 = vmatprep.subr.mxu0 0.0
        %4354 = vmatpush1.msra.mxu0 0.0
        %4355 = vmatprep.subr.mxu0 0.0
        %4356 = vmatpush1.msra.mxu0 0.0
        %4357 = vmatprep.subr.mxu0 0.0
        %4358 = vmatpush1.msra.mxu0 0.0
        %4359 = vmatprep.subr.mxu0 0.0
        %4360 = vmatpush1.msra.mxu0 0.0
        %4361 = vmatprep.subr.mxu0 0.0
        %4362 = vmatpush1.msra.mxu0 0.0
        %4363 = vmatprep.subr.mxu0 0.0
        %4364 = vmatpush1.msra.mxu0 0.0
        %4365 = vmatprep.subr.mxu0 0.0
        %4366 = vmatpush1.msra.mxu0 0.0
        %4367 = vmatprep.subr.mxu0 0.0
        %4368 = vmatpush1.msra.mxu0 0.0
        %4369 = vmatprep.subr.mxu0 0.0
        %4370 = vmatpush1.msra.mxu0 0.0
        %4371 = vmatprep.subr.mxu0 0.0
        %4372 = vmatpush1.msra.mxu0 0.0
        %4373 = vmatprep.subr.mxu0 0.0
        %4374 = vmatpush1.msra.mxu0 0.0
        %4375 = vmatprep.mubr.f32.mxu0 0.0
        %4376 = vmatmul.mubr.f32.gmra.mrb[0].mxu0 %v3999
        %v4377 = vpop.f32.mrb[0].mxu0
        %v4378 = vadd.f32 0.0, %v4377
        %v4379 = vpop.f32.mrb[0].mxu0
        %v4380 = vadd.f32 0.0, %v4379
        %4381 = vdwg.mxu0
        %4382 = vmatprep.subr.mxu0 %v4250
        %4383 = vmatpush1.msra.mxu0 %v4249
        %4384 = vmatprep.subr.mxu0 %v4254
        %4385 = vmatpush1.msra.mxu0 %v4253
        %4386 = vmatprep.subr.mxu0 %v4258
        %4387 = vmatpush1.msra.mxu0 %v4257
        %4388 = vmatprep.subr.mxu0 %v4262
        %4389 = vmatpush1.msra.mxu0 %v4261
        %4390 = vmatprep.subr.mxu0 %v4266
        %4391 = vmatpush1.msra.mxu0 %v4265
        %4392 = vmatprep.subr.mxu0 %v4270
        %4393 = vmatpush1.msra.mxu0 %v4269
        %4394 = vmatprep.subr.mxu0 %v4274
        %4395 = vmatpush1.msra.mxu0 %v4273
        %4396 = vmatprep.subr.mxu0 %v4278
        %4397 = vmatpush1.msra.mxu0 %v4277
        %4398 = vmatprep.subr.mxu0 %v4282
        %4399 = vmatpush1.msra.mxu0 %v4281
        %4400 = vmatprep.subr.mxu0 %v4286
        %4401 = vmatpush1.msra.mxu0 %v4285
        %4402 = vmatprep.subr.mxu0 %v4290
        %4403 = vmatpush1.msra.mxu0 %v4289
        %4404 = vmatprep.subr.mxu0 %v4294
        %4405 = vmatpush1.msra.mxu0 %v4293
        %4406 = vmatprep.subr.mxu0 %v4298
        %4407 = vmatpush1.msra.mxu0 %v4297
        %4408 = vmatprep.subr.mxu0 %v4302
        %4409 = vmatpush1.msra.mxu0 %v4301
        %4410 = vmatprep.subr.mxu0 %v4306
        %4411 = vmatpush1.msra.mxu0 %v4305
        %4412 = vmatprep.subr.mxu0 %v4310
        %4413 = vmatpush1.msra.mxu0 %v4309
        %4414 = vmatprep.subr.mxu0 0.0
        %4415 = vmatpush1.msra.mxu0 0.0
        %4416 = vmatprep.subr.mxu0 0.0
        %4417 = vmatpush1.msra.mxu0 0.0
        %4418 = vmatprep.subr.mxu0 0.0
        %4419 = vmatpush1.msra.mxu0 0.0
        %4420 = vmatprep.subr.mxu0 0.0
        %4421 = vmatpush1.msra.mxu0 0.0
        %4422 = vmatprep.subr.mxu0 0.0
        %4423 = vmatpush1.msra.mxu0 0.0
        %4424 = vmatprep.subr.mxu0 0.0
        %4425 = vmatpush1.msra.mxu0 0.0
        %4426 = vmatprep.subr.mxu0 0.0
        %4427 = vmatpush1.msra.mxu0 0.0
        %4428 = vmatprep.subr.mxu0 0.0
        %4429 = vmatpush1.msra.mxu0 0.0
        %4430 = vmatprep.subr.mxu0 0.0
        %4431 = vmatpush1.msra.mxu0 0.0
        %4432 = vmatprep.subr.mxu0 0.0
        %4433 = vmatpush1.msra.mxu0 0.0
        %4434 = vmatprep.subr.mxu0 0.0
        %4435 = vmatpush1.msra.mxu0 0.0
        %4436 = vmatprep.subr.mxu0 0.0
        %4437 = vmatpush1.msra.mxu0 0.0
        %4438 = vmatprep.subr.mxu0 0.0
        %4439 = vmatpush1.msra.mxu0 0.0
        %4440 = vmatprep.subr.mxu0 0.0
        %4441 = vmatpush1.msra.mxu0 0.0
        %4442 = vmatprep.subr.mxu0 0.0
        %4443 = vmatpush1.msra.mxu0 0.0
        %4444 = vmatprep.subr.mxu0 0.0
        %4445 = vmatpush1.msra.mxu0 0.0
        %4446 = vmatprep.mubr.f32.mxu0 0.0
        %4447 = vmatmul.mubr.f32.gmra.mrb[0].mxu0 %v3999
        %v4448 = vpop.f32.mrb[0].mxu0
        %v4449 = vadd.f32 0.0, %v4448
        %v4450 = vpop.f32.mrb[0].mxu0
        %v4451 = vadd.f32 0.0, %v4450
        %4452 = vdwg.mxu0
        %v4453 = vadd.f32 %v4243, %v4378
        %v4454 = vadd.f32 %v4244, %v4380
        %v4455 = vadd.f32 %v4245, %v4449
        %v4456 = vadd.f32 %v4246, %v4451
        %v4457 = vxor.u32 %v4453, 2147483648
        %v4458 = vmul.f32 %v4457, 1.442695
        %v4459 = vpow.pop %v4458
        %v4460 = vadd.f32 %v4459, 1.0
        %v4461 = vrcp.pop %v4460
        %v4462 = vmul.f32 1.0, %v4461
        %v4463 = vxor.u32 %v4454, 2147483648
        %v4464 = vmul.f32 %v4463, 1.442695
        %v4465 = vpow.pop %v4464
        %v4466 = vadd.f32 %v4465, 1.0
        %v4467 = vrcp.pop %v4466
        %v4468 = vmul.f32 1.0, %v4467
        %v4469 = vtanh.pop %v4455
        %v4470 = vxor.u32 %v4456, 2147483648
        %v4471 = vmul.f32 %v4470, 1.442695
        %v4472 = vpow.pop %v4471
        %v4473 = vadd.f32 %v4472, 1.0
        %v4474 = vrcp.pop %v4473
        %v4475 = vmul.f32 1.0, %v4474
        %v4476 = vmul.f32 %v4468, %v3997
        %v4477 = vmul.f32 %v4462, %v4469
        %v4478 = vadd.f32 %v4476, %v4477
        %v4479 = vtanh.pop %v4478
        %v4480 = vmul.f32 %v4475, %v4479
        %4481 = vst [vmem:[%s3757 + $0x8] sm:$0xff] %v4480
        %v4482 = vld [vmem:[%s3271] sm:$0xff]
        %v4483 = vld [vmem:[%s3271 + $0x8] sm:$0xff]
        %v4484 = vld [vmem:[%s3271 + $0x10] sm:$0xff]
        %v4485 = vld [vmem:[%s3271 + $0x18] sm:$0xff]
        %v4486 = vld [vmem:[%s308] sm:$0xff]
        %v4487 = vld [vmem:[%s308 + $0x8] sm:$0xff]
        %v4488 = vld [vmem:[%s308 + $0x10] sm:$0xff]
        %v4489 = vld [vmem:[%s308 + $0x18] sm:$0xff]
        %v4490 = vld [vmem:[%s308 + $0x20] sm:$0xff]
        %v4491 = vld [vmem:[%s308 + $0x28] sm:$0xff]
        %v4492 = vld [vmem:[%s308 + $0x30] sm:$0xff]
        %v4493 = vld [vmem:[%s308 + $0x38] sm:$0xff]
        %v4494 = vld [vmem:[%s308 + $0x40] sm:$0xff]
        %v4495 = vld [vmem:[%s308 + $0x48] sm:$0xff]
        %v4496 = vld [vmem:[%s308 + $0x50] sm:$0xff]
        %v4497 = vld [vmem:[%s308 + $0x58] sm:$0xff]
        %v4498 = vld [vmem:[%s308 + $0x60] sm:$0xff]
        %v4499 = vld [vmem:[%s308 + $0x68] sm:$0xff]
        %v4500 = vld [vmem:[%s308 + $0x70] sm:$0xff]
        %v4501 = vld [vmem:[%s308 + $0x78] sm:$0xff]
        %v4502 = vld [vmem:[%s308 + $0x80] sm:$0xff]
        %v4503 = vld [vmem:[%s308 + $0x88] sm:$0xff]
        %v4504 = vld [vmem:[%s308 + $0x90] sm:$0xff]
        %v4505 = vld [vmem:[%s308 + $0x98] sm:$0xff]
        %v4506 = vld [vmem:[%s308 + $0xa0] sm:$0xff]
        %v4507 = vld [vmem:[%s308 + $0xa8] sm:$0xff]
        %v4508 = vld [vmem:[%s308 + $0xb0] sm:$0xff]
        %v4509 = vld [vmem:[%s308 + $0xb8] sm:$0xff]
        %v4510 = vld [vmem:[%s308 + $0xc0] sm:$0xff]
        %v4511 = vld [vmem:[%s308 + $0xc8] sm:$0xff]
        %v4512 = vld [vmem:[%s308 + $0xd0] sm:$0xff]
        %v4513 = vld [vmem:[%s308 + $0xd8] sm:$0xff]
        %v4514 = vld [vmem:[%s308 + $0xe0] sm:$0xff]
        %v4515 = vld [vmem:[%s308 + $0xe8] sm:$0xff]
        %v4516 = vld [vmem:[%s308 + $0xf0] sm:$0xff]
        %v4517 = vld [vmem:[%s308 + $0xf8] sm:$0xff]
        %v4518 = vld [vmem:[%s308 + $0x100] sm:$0xff]
        %v4519 = vld [vmem:[%s308 + $0x108] sm:$0xff]
        %v4520 = vld [vmem:[%s308 + $0x110] sm:$0xff]
        %v4521 = vld [vmem:[%s308 + $0x118] sm:$0xff]
        %v4522 = vld [vmem:[%s308 + $0x120] sm:$0xff]
        %v4523 = vld [vmem:[%s308 + $0x128] sm:$0xff]
        %v4524 = vld [vmem:[%s308 + $0x130] sm:$0xff]
        %v4525 = vld [vmem:[%s308 + $0x138] sm:$0xff]
        %v4526 = vld [vmem:[%s308 + $0x140] sm:$0xff]
        %v4527 = vld [vmem:[%s308 + $0x148] sm:$0xff]
        %v4528 = vld [vmem:[%s308 + $0x150] sm:$0xff]
        %v4529 = vld [vmem:[%s308 + $0x158] sm:$0xff]
        %v4530 = vld [vmem:[%s308 + $0x160] sm:$0xff]
        %v4531 = vld [vmem:[%s308 + $0x168] sm:$0xff]
        %v4532 = vld [vmem:[%s308 + $0x170] sm:$0xff]
        %v4533 = vld [vmem:[%s308 + $0x178] sm:$0xff]
        %v4534 = vld [vmem:[%s308 + $0x180] sm:$0xff]
        %v4535 = vld [vmem:[%s308 + $0x188] sm:$0xff]
        %v4536 = vld [vmem:[%s308 + $0x190] sm:$0xff]
        %v4537 = vld [vmem:[%s308 + $0x198] sm:$0xff]
        %v4538 = vld [vmem:[%s308 + $0x1a0] sm:$0xff]
        %v4539 = vld [vmem:[%s308 + $0x1a8] sm:$0xff]
        %v4540 = vld [vmem:[%s308 + $0x1b0] sm:$0xff]
        %v4541 = vld [vmem:[%s308 + $0x1b8] sm:$0xff]
        %v4542 = vld [vmem:[%s308 + $0x1c0] sm:$0xff]
        %v4543 = vld [vmem:[%s308 + $0x1c8] sm:$0xff]
        %v4544 = vld [vmem:[%s308 + $0x1d0] sm:$0xff]
        %v4545 = vld [vmem:[%s308 + $0x1d8] sm:$0xff]
        %v4546 = vld [vmem:[%s308 + $0x1e0] sm:$0xff]
        %v4547 = vld [vmem:[%s308 + $0x1e8] sm:$0xff]
        %v4548 = vld [vmem:[%s308 + $0x1f0] sm:$0xff]
        %v4549 = vld [vmem:[%s308 + $0x1f8] sm:$0xff]
        %4550 = vmatprep.subr.mxu0 %v4487
        %4551 = vmatpush1.msra.mxu0 %v4486
        %4552 = vmatprep.subr.mxu0 %v4491
        %4553 = vmatpush1.msra.mxu0 %v4490
        %4554 = vmatprep.subr.mxu0 %v4495
        %4555 = vmatpush1.msra.mxu0 %v4494
        %4556 = vmatprep.subr.mxu0 %v4499
        %4557 = vmatpush1.msra.mxu0 %v4498
        %4558 = vmatprep.subr.mxu0 %v4503
        %4559 = vmatpush1.msra.mxu0 %v4502
        %4560 = vmatprep.subr.mxu0 %v4507
        %4561 = vmatpush1.msra.mxu0 %v4506
        %4562 = vmatprep.subr.mxu0 %v4511
        %4563 = vmatpush1.msra.mxu0 %v4510
        %4564 = vmatprep.subr.mxu0 %v4515
        %4565 = vmatpush1.msra.mxu0 %v4514
        %4566 = vmatprep.subr.mxu0 %v4519
        %4567 = vmatpush1.msra.mxu0 %v4518
        %4568 = vmatprep.subr.mxu0 %v4523
        %4569 = vmatpush1.msra.mxu0 %v4522
        %4570 = vmatprep.subr.mxu0 %v4527
        %4571 = vmatpush1.msra.mxu0 %v4526
        %4572 = vmatprep.subr.mxu0 %v4531
        %4573 = vmatpush1.msra.mxu0 %v4530
        %4574 = vmatprep.subr.mxu0 %v4535
        %4575 = vmatpush1.msra.mxu0 %v4534
        %4576 = vmatprep.subr.mxu0 %v4539
        %4577 = vmatpush1.msra.mxu0 %v4538
        %4578 = vmatprep.subr.mxu0 %v4543
        %4579 = vmatpush1.msra.mxu0 %v4542
        %4580 = vmatprep.subr.mxu0 %v4547
        %4581 = vmatpush1.msra.mxu0 %v4546
        %4582 = vmatprep.subr.mxu0 0.0
        %4583 = vmatpush1.msra.mxu0 0.0
        %4584 = vmatprep.subr.mxu0 0.0
        %4585 = vmatpush1.msra.mxu0 0.0
        %4586 = vmatprep.subr.mxu0 0.0
        %4587 = vmatpush1.msra.mxu0 0.0
        %4588 = vmatprep.subr.mxu0 0.0
        %4589 = vmatpush1.msra.mxu0 0.0
        %4590 = vmatprep.subr.mxu0 0.0
        %4591 = vmatpush1.msra.mxu0 0.0
        %4592 = vmatprep.subr.mxu0 0.0
        %4593 = vmatpush1.msra.mxu0 0.0
        %4594 = vmatprep.subr.mxu0 0.0
        %4595 = vmatpush1.msra.mxu0 0.0
        %4596 = vmatprep.subr.mxu0 0.0
        %4597 = vmatpush1.msra.mxu0 0.0
        %4598 = vmatprep.subr.mxu0 0.0
        %4599 = vmatpush1.msra.mxu0 0.0
        %4600 = vmatprep.subr.mxu0 0.0
        %4601 = vmatpush1.msra.mxu0 0.0
        %4602 = vmatprep.subr.mxu0 0.0
        %4603 = vmatpush1.msra.mxu0 0.0
        %4604 = vmatprep.subr.mxu0 0.0
        %4605 = vmatpush1.msra.mxu0 0.0
        %4606 = vmatprep.subr.mxu0 0.0
        %4607 = vmatpush1.msra.mxu0 0.0
        %4608 = vmatprep.subr.mxu0 0.0
        %4609 = vmatpush1.msra.mxu0 0.0
        %4610 = vmatprep.subr.mxu0 0.0
        %4611 = vmatpush1.msra.mxu0 0.0
        %4612 = vmatprep.subr.mxu0 0.0
        %4613 = vmatpush1.msra.mxu0 0.0
        %4614 = vmatprep.mubr.f32.mxu0 0.0
        %4615 = vmatmul.mubr.f32.gmra.mrb[0].mxu0 %v4241
        %v4616 = vpop.f32.mrb[0].mxu0
        %v4617 = vadd.f32 0.0, %v4616
        %v4618 = vpop.f32.mrb[0].mxu0
        %v4619 = vadd.f32 0.0, %v4618
        %4620 = vdwg.mxu0
        %4621 = vmatprep.subr.mxu0 %v4489
        %4622 = vmatpush1.msra.mxu0 %v4488
        %4623 = vmatprep.subr.mxu0 %v4493
        %4624 = vmatpush1.msra.mxu0 %v4492
        %4625 = vmatprep.subr.mxu0 %v4497
        %4626 = vmatpush1.msra.mxu0 %v4496
        %4627 = vmatprep.subr.mxu0 %v4501
        %4628 = vmatpush1.msra.mxu0 %v4500
        %4629 = vmatprep.subr.mxu0 %v4505
        %4630 = vmatpush1.msra.mxu0 %v4504
        %4631 = vmatprep.subr.mxu0 %v4509
        %4632 = vmatpush1.msra.mxu0 %v4508
        %4633 = vmatprep.subr.mxu0 %v4513
        %4634 = vmatpush1.msra.mxu0 %v4512
        %4635 = vmatprep.subr.mxu0 %v4517
        %4636 = vmatpush1.msra.mxu0 %v4516
        %4637 = vmatprep.subr.mxu0 %v4521
        %4638 = vmatpush1.msra.mxu0 %v4520
        %4639 = vmatprep.subr.mxu0 %v4525
        %4640 = vmatpush1.msra.mxu0 %v4524
        %4641 = vmatprep.subr.mxu0 %v4529
        %4642 = vmatpush1.msra.mxu0 %v4528
        %4643 = vmatprep.subr.mxu0 %v4533
        %4644 = vmatpush1.msra.mxu0 %v4532
        %4645 = vmatprep.subr.mxu0 %v4537
        %4646 = vmatpush1.msra.mxu0 %v4536
        %4647 = vmatprep.subr.mxu0 %v4541
        %4648 = vmatpush1.msra.mxu0 %v4540
        %4649 = vmatprep.subr.mxu0 %v4545
        %4650 = vmatpush1.msra.mxu0 %v4544
        %4651 = vmatprep.subr.mxu0 %v4549
        %4652 = vmatpush1.msra.mxu0 %v4548
        %4653 = vmatprep.subr.mxu0 0.0
        %4654 = vmatpush1.msra.mxu0 0.0
        %4655 = vmatprep.subr.mxu0 0.0
        %4656 = vmatpush1.msra.mxu0 0.0
        %4657 = vmatprep.subr.mxu0 0.0
        %4658 = vmatpush1.msra.mxu0 0.0
        %4659 = vmatprep.subr.mxu0 0.0
        %4660 = vmatpush1.msra.mxu0 0.0
        %4661 = vmatprep.subr.mxu0 0.0
        %4662 = vmatpush1.msra.mxu0 0.0
        %4663 = vmatprep.subr.mxu0 0.0
        %4664 = vmatpush1.msra.mxu0 0.0
        %4665 = vmatprep.subr.mxu0 0.0
        %4666 = vmatpush1.msra.mxu0 0.0
        %4667 = vmatprep.subr.mxu0 0.0
        %4668 = vmatpush1.msra.mxu0 0.0
        %4669 = vmatprep.subr.mxu0 0.0
        %4670 = vmatpush1.msra.mxu0 0.0
        %4671 = vmatprep.subr.mxu0 0.0
        %4672 = vmatpush1.msra.mxu0 0.0
        %4673 = vmatprep.subr.mxu0 0.0
        %4674 = vmatpush1.msra.mxu0 0.0
        %4675 = vmatprep.subr.mxu0 0.0
        %4676 = vmatpush1.msra.mxu0 0.0
        %4677 = vmatprep.subr.mxu0 0.0
        %4678 = vmatpush1.msra.mxu0 0.0
        %4679 = vmatprep.subr.mxu0 0.0
        %4680 = vmatpush1.msra.mxu0 0.0
        %4681 = vmatprep.subr.mxu0 0.0
        %4682 = vmatpush1.msra.mxu0 0.0
        %4683 = vmatprep.subr.mxu0 0.0
        %4684 = vmatpush1.msra.mxu0 0.0
        %4685 = vmatprep.mubr.f32.mxu0 0.0
        %4686 = vmatmul.mubr.f32.gmra.mrb[0].mxu0 %v4241
        %v4687 = vpop.f32.mrb[0].mxu0
        %v4688 = vadd.f32 0.0, %v4687
        %v4689 = vpop.f32.mrb[0].mxu0
        %v4690 = vadd.f32 0.0, %v4689
        %4691 = vdwg.mxu0
        %v4692 = vadd.f32 %v4482, %v4617
        %v4693 = vadd.f32 %v4483, %v4619
        %v4694 = vadd.f32 %v4484, %v4688
        %v4695 = vadd.f32 %v4485, %v4690
        %v4696 = vxor.u32 %v4692, 2147483648
        %v4697 = vmul.f32 %v4696, 1.442695
        %v4698 = vpow.pop %v4697
        %v4699 = vadd.f32 %v4698, 1.0
        %v4700 = vrcp.pop %v4699
        %v4701 = vmul.f32 1.0, %v4700
        %v4702 = vxor.u32 %v4693, 2147483648
        %v4703 = vmul.f32 %v4702, 1.442695
        %v4704 = vpow.pop %v4703
        %v4705 = vadd.f32 %v4704, 1.0
        %v4706 = vrcp.pop %v4705
        %v4707 = vmul.f32 1.0, %v4706
        %v4708 = vtanh.pop %v4694
        %v4709 = vxor.u32 %v4695, 2147483648
        %v4710 = vmul.f32 %v4709, 1.442695
        %v4711 = vpow.pop %v4710
        %v4712 = vadd.f32 %v4711, 1.0
        %v4713 = vrcp.pop %v4712
        %v4714 = vmul.f32 1.0, %v4713
        %v4715 = vmul.f32 %v4707, %v4239
        %v4716 = vmul.f32 %v4701, %v4708
        %v4717 = vadd.f32 %v4715, %v4716
        %v4718 = vtanh.pop %v4717
        %v4719 = vmul.f32 %v4714, %v4718
        %4720 = vst [vmem:[%s3512] sm:$0xff] %v4719
        %v4721 = vld [vmem:[%s3026 + $0x20] sm:$0xff]
        %v4722 = vld [vmem:[%s3026 + $0x28] sm:$0xff]
        %v4723 = vld [vmem:[%s3026 + $0x30] sm:$0xff]
        %v4724 = vld [vmem:[%s3026 + $0x38] sm:$0xff]
        %v4725 = vld [vmem:[%s2295] sm:$0xff]
        %v4726 = vld [vmem:[%s2295 + $0x8] sm:$0xff]
        %v4727 = vld [vmem:[%s2295 + $0x10] sm:$0xff]
        %v4728 = vld [vmem:[%s2295 + $0x18] sm:$0xff]
        %v4729 = vld [vmem:[%s2295 + $0x20] sm:$0xff]
        %v4730 = vld [vmem:[%s2295 + $0x28] sm:$0xff]
        %v4731 = vld [vmem:[%s2295 + $0x30] sm:$0xff]
        %v4732 = vld [vmem:[%s2295 + $0x38] sm:$0xff]
        %v4733 = vld [vmem:[%s2295 + $0x40] sm:$0xff]
        %v4734 = vld [vmem:[%s2295 + $0x48] sm:$0xff]
        %v4735 = vld [vmem:[%s2295 + $0x50] sm:$0xff]
        %v4736 = vld [vmem:[%s2295 + $0x58] sm:$0xff]
        %v4737 = vld [vmem:[%s2295 + $0x60] sm:$0xff]
        %v4738 = vld [vmem:[%s2295 + $0x68] sm:$0xff]
        %v4739 = vld [vmem:[%s2295 + $0x70] sm:$0xff]
        %v4740 = vld [vmem:[%s2295 + $0x78] sm:$0xff]
        %v4741 = vld [vmem:[%s2295 + $0x80] sm:$0xff]
        %v4742 = vld [vmem:[%s2295 + $0x88] sm:$0xff]
        %v4743 = vld [vmem:[%s2295 + $0x90] sm:$0xff]
        %v4744 = vld [vmem:[%s2295 + $0x98] sm:$0xff]
        %v4745 = vld [vmem:[%s2295 + $0xa0] sm:$0xff]
        %v4746 = vld [vmem:[%s2295 + $0xa8] sm:$0xff]
        %v4747 = vld [vmem:[%s2295 + $0xb0] sm:$0xff]
        %v4748 = vld [vmem:[%s2295 + $0xb8] sm:$0xff]
        %v4749 = vld [vmem:[%s2295 + $0xc0] sm:$0xff]
        %v4750 = vld [vmem:[%s2295 + $0xc8] sm:$0xff]
        %v4751 = vld [vmem:[%s2295 + $0xd0] sm:$0xff]
        %v4752 = vld [vmem:[%s2295 + $0xd8] sm:$0xff]
        %v4753 = vld [vmem:[%s2295 + $0xe0] sm:$0xff]
        %v4754 = vld [vmem:[%s2295 + $0xe8] sm:$0xff]
        %v4755 = vld [vmem:[%s2295 + $0xf0] sm:$0xff]
        %v4756 = vld [vmem:[%s2295 + $0xf8] sm:$0xff]
        %v4757 = vld [vmem:[%s2295 + $0x100] sm:$0xff]
        %v4758 = vld [vmem:[%s2295 + $0x108] sm:$0xff]
        %v4759 = vld [vmem:[%s2295 + $0x110] sm:$0xff]
        %v4760 = vld [vmem:[%s2295 + $0x118] sm:$0xff]
        %v4761 = vld [vmem:[%s2295 + $0x120] sm:$0xff]
        %v4762 = vld [vmem:[%s2295 + $0x128] sm:$0xff]
        %v4763 = vld [vmem:[%s2295 + $0x130] sm:$0xff]
        %v4764 = vld [vmem:[%s2295 + $0x138] sm:$0xff]
        %v4765 = vld [vmem:[%s2295 + $0x140] sm:$0xff]
        %v4766 = vld [vmem:[%s2295 + $0x148] sm:$0xff]
        %v4767 = vld [vmem:[%s2295 + $0x150] sm:$0xff]
        %v4768 = vld [vmem:[%s2295 + $0x158] sm:$0xff]
        %v4769 = vld [vmem:[%s2295 + $0x160] sm:$0xff]
        %v4770 = vld [vmem:[%s2295 + $0x168] sm:$0xff]
        %v4771 = vld [vmem:[%s2295 + $0x170] sm:$0xff]
        %v4772 = vld [vmem:[%s2295 + $0x178] sm:$0xff]
        %v4773 = vld [vmem:[%s2295 + $0x180] sm:$0xff]
        %v4774 = vld [vmem:[%s2295 + $0x188] sm:$0xff]
        %v4775 = vld [vmem:[%s2295 + $0x190] sm:$0xff]
        %v4776 = vld [vmem:[%s2295 + $0x198] sm:$0xff]
        %v4777 = vld [vmem:[%s2295 + $0x1a0] sm:$0xff]
        %v4778 = vld [vmem:[%s2295 + $0x1a8] sm:$0xff]
        %v4779 = vld [vmem:[%s2295 + $0x1b0] sm:$0xff]
        %v4780 = vld [vmem:[%s2295 + $0x1b8] sm:$0xff]
        %v4781 = vld [vmem:[%s2295 + $0x1c0] sm:$0xff]
        %v4782 = vld [vmem:[%s2295 + $0x1c8] sm:$0xff]
        %v4783 = vld [vmem:[%s2295 + $0x1d0] sm:$0xff]
        %v4784 = vld [vmem:[%s2295 + $0x1d8] sm:$0xff]
        %v4785 = vld [vmem:[%s2295 + $0x1e0] sm:$0xff]
        %v4786 = vld [vmem:[%s2295 + $0x1e8] sm:$0xff]
        %v4787 = vld [vmem:[%s2295 + $0x1f0] sm:$0xff]
        %v4788 = vld [vmem:[%s2295 + $0x1f8] sm:$0xff]
        %4789 = vmatprep.subr.mxu0 %v4726
        %4790 = vmatpush1.msra.mxu0 %v4725
        %4791 = vmatprep.subr.mxu0 %v4730
        %4792 = vmatpush1.msra.mxu0 %v4729
        %4793 = vmatprep.subr.mxu0 %v4734
        %4794 = vmatpush1.msra.mxu0 %v4733
        %4795 = vmatprep.subr.mxu0 %v4738
        %4796 = vmatpush1.msra.mxu0 %v4737
        %4797 = vmatprep.subr.mxu0 %v4742
        %4798 = vmatpush1.msra.mxu0 %v4741
        %4799 = vmatprep.subr.mxu0 %v4746
        %4800 = vmatpush1.msra.mxu0 %v4745
        %4801 = vmatprep.subr.mxu0 %v4750
        %4802 = vmatpush1.msra.mxu0 %v4749
        %4803 = vmatprep.subr.mxu0 %v4754
        %4804 = vmatpush1.msra.mxu0 %v4753
        %4805 = vmatprep.subr.mxu0 %v4758
        %4806 = vmatpush1.msra.mxu0 %v4757
        %4807 = vmatprep.subr.mxu0 %v4762
        %4808 = vmatpush1.msra.mxu0 %v4761
        %4809 = vmatprep.subr.mxu0 %v4766
        %4810 = vmatpush1.msra.mxu0 %v4765
        %4811 = vmatprep.subr.mxu0 %v4770
        %4812 = vmatpush1.msra.mxu0 %v4769
        %4813 = vmatprep.subr.mxu0 %v4774
        %4814 = vmatpush1.msra.mxu0 %v4773
        %4815 = vmatprep.subr.mxu0 %v4778
        %4816 = vmatpush1.msra.mxu0 %v4777
        %4817 = vmatprep.subr.mxu0 %v4782
        %4818 = vmatpush1.msra.mxu0 %v4781
        %4819 = vmatprep.subr.mxu0 %v4786
        %4820 = vmatpush1.msra.mxu0 %v4785
        %4821 = vmatprep.subr.mxu0 0.0
        %4822 = vmatpush1.msra.mxu0 0.0
        %4823 = vmatprep.subr.mxu0 0.0
        %4824 = vmatpush1.msra.mxu0 0.0
        %4825 = vmatprep.subr.mxu0 0.0
        %4826 = vmatpush1.msra.mxu0 0.0
        %4827 = vmatprep.subr.mxu0 0.0
        %4828 = vmatpush1.msra.mxu0 0.0
        %4829 = vmatprep.subr.mxu0 0.0
        %4830 = vmatpush1.msra.mxu0 0.0
        %4831 = vmatprep.subr.mxu0 0.0
        %4832 = vmatpush1.msra.mxu0 0.0
        %4833 = vmatprep.subr.mxu0 0.0
        %4834 = vmatpush1.msra.mxu0 0.0
        %4835 = vmatprep.subr.mxu0 0.0
        %4836 = vmatpush1.msra.mxu0 0.0
        %4837 = vmatprep.subr.mxu0 0.0
        %4838 = vmatpush1.msra.mxu0 0.0
        %4839 = vmatprep.subr.mxu0 0.0
        %4840 = vmatpush1.msra.mxu0 0.0
        %4841 = vmatprep.subr.mxu0 0.0
        %4842 = vmatpush1.msra.mxu0 0.0
        %4843 = vmatprep.subr.mxu0 0.0
        %4844 = vmatpush1.msra.mxu0 0.0
        %4845 = vmatprep.subr.mxu0 0.0
        %4846 = vmatpush1.msra.mxu0 0.0
        %4847 = vmatprep.subr.mxu0 0.0
        %4848 = vmatpush1.msra.mxu0 0.0
        %4849 = vmatprep.subr.mxu0 0.0
        %4850 = vmatpush1.msra.mxu0 0.0
        %4851 = vmatprep.subr.mxu0 0.0
        %4852 = vmatpush1.msra.mxu0 0.0
        %4853 = vmatprep.mubr.f32.mxu0 0.0
        %4854 = vmatmul.mubr.f32.gmra.mrb[0].mxu0 %v4480
        %v4855 = vpop.f32.mrb[0].mxu0
        %v4856 = vadd.f32 0.0, %v4855
        %v4857 = vpop.f32.mrb[0].mxu0
        %v4858 = vadd.f32 0.0, %v4857
        %4859 = vdwg.mxu0
        %4860 = vmatprep.subr.mxu0 %v4728
        %4861 = vmatpush1.msra.mxu0 %v4727
        %4862 = vmatprep.subr.mxu0 %v4732
        %4863 = vmatpush1.msra.mxu0 %v4731
        %4864 = vmatprep.subr.mxu0 %v4736
        %4865 = vmatpush1.msra.mxu0 %v4735
        %4866 = vmatprep.subr.mxu0 %v4740
        %4867 = vmatpush1.msra.mxu0 %v4739
        %4868 = vmatprep.subr.mxu0 %v4744
        %4869 = vmatpush1.msra.mxu0 %v4743
        %4870 = vmatprep.subr.mxu0 %v4748
        %4871 = vmatpush1.msra.mxu0 %v4747
        %4872 = vmatprep.subr.mxu0 %v4752
        %4873 = vmatpush1.msra.mxu0 %v4751
        %4874 = vmatprep.subr.mxu0 %v4756
        %4875 = vmatpush1.msra.mxu0 %v4755
        %4876 = vmatprep.subr.mxu0 %v4760
        %4877 = vmatpush1.msra.mxu0 %v4759
        %4878 = vmatprep.subr.mxu0 %v4764
        %4879 = vmatpush1.msra.mxu0 %v4763
        %4880 = vmatprep.subr.mxu0 %v4768
        %4881 = vmatpush1.msra.mxu0 %v4767
        %4882 = vmatprep.subr.mxu0 %v4772
        %4883 = vmatpush1.msra.mxu0 %v4771
        %4884 = vmatprep.subr.mxu0 %v4776
        %4885 = vmatpush1.msra.mxu0 %v4775
        %4886 = vmatprep.subr.mxu0 %v4780
        %4887 = vmatpush1.msra.mxu0 %v4779
        %4888 = vmatprep.subr.mxu0 %v4784
        %4889 = vmatpush1.msra.mxu0 %v4783
        %4890 = vmatprep.subr.mxu0 %v4788
        %4891 = vmatpush1.msra.mxu0 %v4787
        %4892 = vmatprep.subr.mxu0 0.0
        %4893 = vmatpush1.msra.mxu0 0.0
        %4894 = vmatprep.subr.mxu0 0.0
        %4895 = vmatpush1.msra.mxu0 0.0
        %4896 = vmatprep.subr.mxu0 0.0
        %4897 = vmatpush1.msra.mxu0 0.0
        %4898 = vmatprep.subr.mxu0 0.0
        %4899 = vmatpush1.msra.mxu0 0.0
        %4900 = vmatprep.subr.mxu0 0.0
        %4901 = vmatpush1.msra.mxu0 0.0
        %4902 = vmatprep.subr.mxu0 0.0
        %4903 = vmatpush1.msra.mxu0 0.0
        %4904 = vmatprep.subr.mxu0 0.0
        %4905 = vmatpush1.msra.mxu0 0.0
        %4906 = vmatprep.subr.mxu0 0.0
        %4907 = vmatpush1.msra.mxu0 0.0
        %4908 = vmatprep.subr.mxu0 0.0
        %4909 = vmatpush1.msra.mxu0 0.0
        %4910 = vmatprep.subr.mxu0 0.0
        %4911 = vmatpush1.msra.mxu0 0.0
        %4912 = vmatprep.subr.mxu0 0.0
        %4913 = vmatpush1.msra.mxu0 0.0
        %4914 = vmatprep.subr.mxu0 0.0
        %4915 = vmatpush1.msra.mxu0 0.0
        %4916 = vmatprep.subr.mxu0 0.0
        %4917 = vmatpush1.msra.mxu0 0.0
        %4918 = vmatprep.subr.mxu0 0.0
        %4919 = vmatpush1.msra.mxu0 0.0
        %4920 = vmatprep.subr.mxu0 0.0
        %4921 = vmatpush1.msra.mxu0 0.0
        %4922 = vmatprep.subr.mxu0 0.0
        %4923 = vmatpush1.msra.mxu0 0.0
        %4924 = vmatprep.mubr.f32.mxu0 0.0
        %4925 = vmatmul.mubr.f32.gmra.mrb[0].mxu0 %v4480
        %v4926 = vpop.f32.mrb[0].mxu0
        %v4927 = vadd.f32 0.0, %v4926
        %v4928 = vpop.f32.mrb[0].mxu0
        %v4929 = vadd.f32 0.0, %v4928
        %4930 = vdwg.mxu0
        %v4931 = vadd.f32 %v4721, %v4856
        %v4932 = vadd.f32 %v4722, %v4858
        %v4933 = vadd.f32 %v4723, %v4927
        %v4934 = vadd.f32 %v4724, %v4929
        %v4935 = vxor.u32 %v4931, 2147483648
        %v4936 = vmul.f32 %v4935, 1.442695
        %v4937 = vpow.pop %v4936
        %v4938 = vadd.f32 %v4937, 1.0
        %v4939 = vrcp.pop %v4938
        %v4940 = vmul.f32 1.0, %v4939
        %v4941 = vxor.u32 %v4932, 2147483648
        %v4942 = vmul.f32 %v4941, 1.442695
        %v4943 = vpow.pop %v4942
        %v4944 = vadd.f32 %v4943, 1.0
        %v4945 = vrcp.pop %v4944
        %v4946 = vmul.f32 1.0, %v4945
        %v4947 = vtanh.pop %v4933
        %v4948 = vxor.u32 %v4934, 2147483648
        %v4949 = vmul.f32 %v4948, 1.442695
        %v4950 = vpow.pop %v4949
        %v4951 = vadd.f32 %v4950, 1.0
        %v4952 = vrcp.pop %v4951
        %v4953 = vmul.f32 1.0, %v4952
        %v4954 = vmul.f32 %v4946, %v4478
        %v4955 = vmul.f32 %v4940, %v4947
        %v4956 = vadd.f32 %v4954, %v4955
        %v4957 = vtanh.pop %v4956
        %v4958 = vmul.f32 %v4953, %v4957
        %4959 = vst [vmem:[%s3267 + $0x8] sm:$0xff] %v4958
        %v4960 = vld [vmem:[%s2781] sm:$0xff]
        %v4961 = vld [vmem:[%s2781 + $0x8] sm:$0xff]
        %v4962 = vld [vmem:[%s2781 + $0x10] sm:$0xff]
        %v4963 = vld [vmem:[%s2781 + $0x18] sm:$0xff]
        %v4964 = vld [vmem:[%s308] sm:$0xff]
        %v4965 = vld [vmem:[%s308 + $0x8] sm:$0xff]
        %v4966 = vld [vmem:[%s308 + $0x10] sm:$0xff]
        %v4967 = vld [vmem:[%s308 + $0x18] sm:$0xff]
        %v4968 = vld [vmem:[%s308 + $0x20] sm:$0xff]
        %v4969 = vld [vmem:[%s308 + $0x28] sm:$0xff]
        %v4970 = vld [vmem:[%s308 + $0x30] sm:$0xff]
        %v4971 = vld [vmem:[%s308 + $0x38] sm:$0xff]
        %v4972 = vld [vmem:[%s308 + $0x40] sm:$0xff]
        %v4973 = vld [vmem:[%s308 + $0x48] sm:$0xff]
        %v4974 = vld [vmem:[%s308 + $0x50] sm:$0xff]
        %v4975 = vld [vmem:[%s308 + $0x58] sm:$0xff]
        %v4976 = vld [vmem:[%s308 + $0x60] sm:$0xff]
        %v4977 = vld [vmem:[%s308 + $0x68] sm:$0xff]
        %v4978 = vld [vmem:[%s308 + $0x70] sm:$0xff]
        %v4979 = vld [vmem:[%s308 + $0x78] sm:$0xff]
        %v4980 = vld [vmem:[%s308 + $0x80] sm:$0xff]
        %v4981 = vld [vmem:[%s308 + $0x88] sm:$0xff]
        %v4982 = vld [vmem:[%s308 + $0x90] sm:$0xff]
        %v4983 = vld [vmem:[%s308 + $0x98] sm:$0xff]
        %v4984 = vld [vmem:[%s308 + $0xa0] sm:$0xff]
        %v4985 = vld [vmem:[%s308 + $0xa8] sm:$0xff]
        %v4986 = vld [vmem:[%s308 + $0xb0] sm:$0xff]
        %v4987 = vld [vmem:[%s308 + $0xb8] sm:$0xff]
        %v4988 = vld [vmem:[%s308 + $0xc0] sm:$0xff]
        %v4989 = vld [vmem:[%s308 + $0xc8] sm:$0xff]
        %v4990 = vld [vmem:[%s308 + $0xd0] sm:$0xff]
        %v4991 = vld [vmem:[%s308 + $0xd8] sm:$0xff]
        %v4992 = vld [vmem:[%s308 + $0xe0] sm:$0xff]
        %v4993 = vld [vmem:[%s308 + $0xe8] sm:$0xff]
        %v4994 = vld [vmem:[%s308 + $0xf0] sm:$0xff]
        %v4995 = vld [vmem:[%s308 + $0xf8] sm:$0xff]
        %v4996 = vld [vmem:[%s308 + $0x100] sm:$0xff]
        %v4997 = vld [vmem:[%s308 + $0x108] sm:$0xff]
        %v4998 = vld [vmem:[%s308 + $0x110] sm:$0xff]
        %v4999 = vld [vmem:[%s308 + $0x118] sm:$0xff]
        %v5000 = vld [vmem:[%s308 + $0x120] sm:$0xff]
        %v5001 = vld [vmem:[%s308 + $0x128] sm:$0xff]
        %v5002 = vld [vmem:[%s308 + $0x130] sm:$0xff]
        %v5003 = vld [vmem:[%s308 + $0x138] sm:$0xff]
        %v5004 = vld [vmem:[%s308 + $0x140] sm:$0xff]
        %v5005 = vld [vmem:[%s308 + $0x148] sm:$0xff]
        %v5006 = vld [vmem:[%s308 + $0x150] sm:$0xff]
        %v5007 = vld [vmem:[%s308 + $0x158] sm:$0xff]
        %v5008 = vld [vmem:[%s308 + $0x160] sm:$0xff]
        %v5009 = vld [vmem:[%s308 + $0x168] sm:$0xff]
        %v5010 = vld [vmem:[%s308 + $0x170] sm:$0xff]
        %v5011 = vld [vmem:[%s308 + $0x178] sm:$0xff]
        %v5012 = vld [vmem:[%s308 + $0x180] sm:$0xff]
        %v5013 = vld [vmem:[%s308 + $0x188] sm:$0xff]
        %v5014 = vld [vmem:[%s308 + $0x190] sm:$0xff]
        %v5015 = vld [vmem:[%s308 + $0x198] sm:$0xff]
        %v5016 = vld [vmem:[%s308 + $0x1a0] sm:$0xff]
        %v5017 = vld [vmem:[%s308 + $0x1a8] sm:$0xff]
        %v5018 = vld [vmem:[%s308 + $0x1b0] sm:$0xff]
        %v5019 = vld [vmem:[%s308 + $0x1b8] sm:$0xff]
        %v5020 = vld [vmem:[%s308 + $0x1c0] sm:$0xff]
        %v5021 = vld [vmem:[%s308 + $0x1c8] sm:$0xff]
        %v5022 = vld [vmem:[%s308 + $0x1d0] sm:$0xff]
        %v5023 = vld [vmem:[%s308 + $0x1d8] sm:$0xff]
        %v5024 = vld [vmem:[%s308 + $0x1e0] sm:$0xff]
        %v5025 = vld [vmem:[%s308 + $0x1e8] sm:$0xff]
        %v5026 = vld [vmem:[%s308 + $0x1f0] sm:$0xff]
        %v5027 = vld [vmem:[%s308 + $0x1f8] sm:$0xff]
        %5028 = vmatprep.subr.mxu0 %v4965
        %5029 = vmatpush1.msra.mxu0 %v4964
        %5030 = vmatprep.subr.mxu0 %v4969
        %5031 = vmatpush1.msra.mxu0 %v4968
        %5032 = vmatprep.subr.mxu0 %v4973
        %5033 = vmatpush1.msra.mxu0 %v4972
        %5034 = vmatprep.subr.mxu0 %v4977
        %5035 = vmatpush1.msra.mxu0 %v4976
        %5036 = vmatprep.subr.mxu0 %v4981
        %5037 = vmatpush1.msra.mxu0 %v4980
        %5038 = vmatprep.subr.mxu0 %v4985
        %5039 = vmatpush1.msra.mxu0 %v4984
        %5040 = vmatprep.subr.mxu0 %v4989
        %5041 = vmatpush1.msra.mxu0 %v4988
        %5042 = vmatprep.subr.mxu0 %v4993
        %5043 = vmatpush1.msra.mxu0 %v4992
        %5044 = vmatprep.subr.mxu0 %v4997
        %5045 = vmatpush1.msra.mxu0 %v4996
        %5046 = vmatprep.subr.mxu0 %v5001
        %5047 = vmatpush1.msra.mxu0 %v5000
        %5048 = vmatprep.subr.mxu0 %v5005
        %5049 = vmatpush1.msra.mxu0 %v5004
        %5050 = vmatprep.subr.mxu0 %v5009
        %5051 = vmatpush1.msra.mxu0 %v5008
        %5052 = vmatprep.subr.mxu0 %v5013
        %5053 = vmatpush1.msra.mxu0 %v5012
        %5054 = vmatprep.subr.mxu0 %v5017
        %5055 = vmatpush1.msra.mxu0 %v5016
        %5056 = vmatprep.subr.mxu0 %v5021
        %5057 = vmatpush1.msra.mxu0 %v5020
        %5058 = vmatprep.subr.mxu0 %v5025
        %5059 = vmatpush1.msra.mxu0 %v5024
        %5060 = vmatprep.subr.mxu0 0.0
        %5061 = vmatpush1.msra.mxu0 0.0
        %5062 = vmatprep.subr.mxu0 0.0
        %5063 = vmatpush1.msra.mxu0 0.0
        %5064 = vmatprep.subr.mxu0 0.0
        %5065 = vmatpush1.msra.mxu0 0.0
        %5066 = vmatprep.subr.mxu0 0.0
        %5067 = vmatpush1.msra.mxu0 0.0
        %5068 = vmatprep.subr.mxu0 0.0
        %5069 = vmatpush1.msra.mxu0 0.0
        %5070 = vmatprep.subr.mxu0 0.0
        %5071 = vmatpush1.msra.mxu0 0.0
        %5072 = vmatprep.subr.mxu0 0.0
        %5073 = vmatpush1.msra.mxu0 0.0
        %5074 = vmatprep.subr.mxu0 0.0
        %5075 = vmatpush1.msra.mxu0 0.0
        %5076 = vmatprep.subr.mxu0 0.0
        %5077 = vmatpush1.msra.mxu0 0.0
        %5078 = vmatprep.subr.mxu0 0.0
        %5079 = vmatpush1.msra.mxu0 0.0
        %5080 = vmatprep.subr.mxu0 0.0
        %5081 = vmatpush1.msra.mxu0 0.0
        %5082 = vmatprep.subr.mxu0 0.0
        %5083 = vmatpush1.msra.mxu0 0.0
        %5084 = vmatprep.subr.mxu0 0.0
        %5085 = vmatpush1.msra.mxu0 0.0
        %5086 = vmatprep.subr.mxu0 0.0
        %5087 = vmatpush1.msra.mxu0 0.0
        %5088 = vmatprep.subr.mxu0 0.0
        %5089 = vmatpush1.msra.mxu0 0.0
        %5090 = vmatprep.subr.mxu0 0.0
        %5091 = vmatpush1.msra.mxu0 0.0
        %5092 = vmatprep.mubr.f32.mxu0 0.0
        %5093 = vmatmul.mubr.f32.gmra.mrb[0].mxu0 %v4719
        %v5094 = vpop.f32.mrb[0].mxu0
        %v5095 = vadd.f32 0.0, %v5094
        %v5096 = vpop.f32.mrb[0].mxu0
        %v5097 = vadd.f32 0.0, %v5096
        %5098 = vdwg.mxu0
        %5099 = vmatprep.subr.mxu0 %v4967
        %5100 = vmatpush1.msra.mxu0 %v4966
        %5101 = vmatprep.subr.mxu0 %v4971
        %5102 = vmatpush1.msra.mxu0 %v4970
        %5103 = vmatprep.subr.mxu0 %v4975
        %5104 = vmatpush1.msra.mxu0 %v4974
        %5105 = vmatprep.subr.mxu0 %v4979
        %5106 = vmatpush1.msra.mxu0 %v4978
        %5107 = vmatprep.subr.mxu0 %v4983
        %5108 = vmatpush1.msra.mxu0 %v4982
        %5109 = vmatprep.subr.mxu0 %v4987
        %5110 = vmatpush1.msra.mxu0 %v4986
        %5111 = vmatprep.subr.mxu0 %v4991
        %5112 = vmatpush1.msra.mxu0 %v4990
        %5113 = vmatprep.subr.mxu0 %v4995
        %5114 = vmatpush1.msra.mxu0 %v4994
        %5115 = vmatprep.subr.mxu0 %v4999
        %5116 = vmatpush1.msra.mxu0 %v4998
        %5117 = vmatprep.subr.mxu0 %v5003
        %5118 = vmatpush1.msra.mxu0 %v5002
        %5119 = vmatprep.subr.mxu0 %v5007
        %5120 = vmatpush1.msra.mxu0 %v5006
        %5121 = vmatprep.subr.mxu0 %v5011
        %5122 = vmatpush1.msra.mxu0 %v5010
        %5123 = vmatprep.subr.mxu0 %v5015
        %5124 = vmatpush1.msra.mxu0 %v5014
        %5125 = vmatprep.subr.mxu0 %v5019
        %5126 = vmatpush1.msra.mxu0 %v5018
        %5127 = vmatprep.subr.mxu0 %v5023
        %5128 = vmatpush1.msra.mxu0 %v5022
        %5129 = vmatprep.subr.mxu0 %v5027
        %5130 = vmatpush1.msra.mxu0 %v5026
        %5131 = vmatprep.subr.mxu0 0.0
        %5132 = vmatpush1.msra.mxu0 0.0
        %5133 = vmatprep.subr.mxu0 0.0
        %5134 = vmatpush1.msra.mxu0 0.0
        %5135 = vmatprep.subr.mxu0 0.0
        %5136 = vmatpush1.msra.mxu0 0.0
        %5137 = vmatprep.subr.mxu0 0.0
        %5138 = vmatpush1.msra.mxu0 0.0
        %5139 = vmatprep.subr.mxu0 0.0
        %5140 = vmatpush1.msra.mxu0 0.0
        %5141 = vmatprep.subr.mxu0 0.0
        %5142 = vmatpush1.msra.mxu0 0.0
        %5143 = vmatprep.subr.mxu0 0.0
        %5144 = vmatpush1.msra.mxu0 0.0
        %5145 = vmatprep.subr.mxu0 0.0
        %5146 = vmatpush1.msra.mxu0 0.0
        %5147 = vmatprep.subr.mxu0 0.0
        %5148 = vmatpush1.msra.mxu0 0.0
        %5149 = vmatprep.subr.mxu0 0.0
        %5150 = vmatpush1.msra.mxu0 0.0
        %5151 = vmatprep.subr.mxu0 0.0
        %5152 = vmatpush1.msra.mxu0 0.0
        %5153 = vmatprep.subr.mxu0 0.0
        %5154 = vmatpush1.msra.mxu0 0.0
        %5155 = vmatprep.subr.mxu0 0.0
        %5156 = vmatpush1.msra.mxu0 0.0
        %5157 = vmatprep.subr.mxu0 0.0
        %5158 = vmatpush1.msra.mxu0 0.0
        %5159 = vmatprep.subr.mxu0 0.0
        %5160 = vmatpush1.msra.mxu0 0.0
        %5161 = vmatprep.subr.mxu0 0.0
        %5162 = vmatpush1.msra.mxu0 0.0
        %5163 = vmatprep.mubr.f32.mxu0 0.0
        %5164 = vmatmul.mubr.f32.gmra.mrb[0].mxu0 %v4719
        %v5165 = vpop.f32.mrb[0].mxu0
        %v5166 = vadd.f32 0.0, %v5165
        %v5167 = vpop.f32.mrb[0].mxu0
        %v5168 = vadd.f32 0.0, %v5167
        %5169 = vdwg.mxu0
        %v5170 = vadd.f32 %v4960, %v5095
        %v5171 = vadd.f32 %v4961, %v5097
        %v5172 = vadd.f32 %v4962, %v5166
        %v5173 = vadd.f32 %v4963, %v5168
        %v5174 = vxor.u32 %v5170, 2147483648
        %v5175 = vmul.f32 %v5174, 1.442695
        %v5176 = vpow.pop %v5175
        %v5177 = vadd.f32 %v5176, 1.0
        %v5178 = vrcp.pop %v5177
        %v5179 = vmul.f32 1.0, %v5178
        %v5180 = vxor.u32 %v5171, 2147483648
        %v5181 = vmul.f32 %v5180, 1.442695
        %v5182 = vpow.pop %v5181
        %v5183 = vadd.f32 %v5182, 1.0
        %v5184 = vrcp.pop %v5183
        %v5185 = vmul.f32 1.0, %v5184
        %v5186 = vtanh.pop %v5172
        %v5187 = vxor.u32 %v5173, 2147483648
        %v5188 = vmul.f32 %v5187, 1.442695
        %v5189 = vpow.pop %v5188
        %v5190 = vadd.f32 %v5189, 1.0
        %v5191 = vrcp.pop %v5190
        %v5192 = vmul.f32 1.0, %v5191
        %v5193 = vmul.f32 %v5185, %v4717
        %v5194 = vmul.f32 %v5179, %v5186
        %v5195 = vadd.f32 %v5193, %v5194
        %v5196 = vtanh.pop %v5195
        %v5197 = vmul.f32 %v5192, %v5196
        %5198 = vst [vmem:[%s3022] sm:$0xff] %v5197
        %v5199 = vld [vmem:[%s2536 + $0x20] sm:$0xff]
        %v5200 = vld [vmem:[%s2536 + $0x28] sm:$0xff]
        %v5201 = vld [vmem:[%s2536 + $0x30] sm:$0xff]
        %v5202 = vld [vmem:[%s2536 + $0x38] sm:$0xff]
        %v5203 = vld [vmem:[%s2295] sm:$0xff]
        %v5204 = vld [vmem:[%s2295 + $0x8] sm:$0xff]
        %v5205 = vld [vmem:[%s2295 + $0x10] sm:$0xff]
        %v5206 = vld [vmem:[%s2295 + $0x18] sm:$0xff]
        %v5207 = vld [vmem:[%s2295 + $0x20] sm:$0xff]
        %v5208 = vld [vmem:[%s2295 + $0x28] sm:$0xff]
        %v5209 = vld [vmem:[%s2295 + $0x30] sm:$0xff]
        %v5210 = vld [vmem:[%s2295 + $0x38] sm:$0xff]
        %v5211 = vld [vmem:[%s2295 + $0x40] sm:$0xff]
        %v5212 = vld [vmem:[%s2295 + $0x48] sm:$0xff]
        %v5213 = vld [vmem:[%s2295 + $0x50] sm:$0xff]
        %v5214 = vld [vmem:[%s2295 + $0x58] sm:$0xff]
        %v5215 = vld [vmem:[%s2295 + $0x60] sm:$0xff]
        %v5216 = vld [vmem:[%s2295 + $0x68] sm:$0xff]
        %v5217 = vld [vmem:[%s2295 + $0x70] sm:$0xff]
        %v5218 = vld [vmem:[%s2295 + $0x78] sm:$0xff]
        %v5219 = vld [vmem:[%s2295 + $0x80] sm:$0xff]
        %v5220 = vld [vmem:[%s2295 + $0x88] sm:$0xff]
        %v5221 = vld [vmem:[%s2295 + $0x90] sm:$0xff]
        %v5222 = vld [vmem:[%s2295 + $0x98] sm:$0xff]
        %v5223 = vld [vmem:[%s2295 + $0xa0] sm:$0xff]
        %v5224 = vld [vmem:[%s2295 + $0xa8] sm:$0xff]
        %v5225 = vld [vmem:[%s2295 + $0xb0] sm:$0xff]
        %v5226 = vld [vmem:[%s2295 + $0xb8] sm:$0xff]
        %v5227 = vld [vmem:[%s2295 + $0xc0] sm:$0xff]
        %v5228 = vld [vmem:[%s2295 + $0xc8] sm:$0xff]
        %v5229 = vld [vmem:[%s2295 + $0xd0] sm:$0xff]
        %v5230 = vld [vmem:[%s2295 + $0xd8] sm:$0xff]
        %v5231 = vld [vmem:[%s2295 + $0xe0] sm:$0xff]
        %v5232 = vld [vmem:[%s2295 + $0xe8] sm:$0xff]
        %v5233 = vld [vmem:[%s2295 + $0xf0] sm:$0xff]
        %v5234 = vld [vmem:[%s2295 + $0xf8] sm:$0xff]
        %v5235 = vld [vmem:[%s2295 + $0x100] sm:$0xff]
        %v5236 = vld [vmem:[%s2295 + $0x108] sm:$0xff]
        %v5237 = vld [vmem:[%s2295 + $0x110] sm:$0xff]
        %v5238 = vld [vmem:[%s2295 + $0x118] sm:$0xff]
        %v5239 = vld [vmem:[%s2295 + $0x120] sm:$0xff]
        %v5240 = vld [vmem:[%s2295 + $0x128] sm:$0xff]
        %v5241 = vld [vmem:[%s2295 + $0x130] sm:$0xff]
        %v5242 = vld [vmem:[%s2295 + $0x138] sm:$0xff]
        %v5243 = vld [vmem:[%s2295 + $0x140] sm:$0xff]
        %v5244 = vld [vmem:[%s2295 + $0x148] sm:$0xff]
        %v5245 = vld [vmem:[%s2295 + $0x150] sm:$0xff]
        %v5246 = vld [vmem:[%s2295 + $0x158] sm:$0xff]
        %v5247 = vld [vmem:[%s2295 + $0x160] sm:$0xff]
        %v5248 = vld [vmem:[%s2295 + $0x168] sm:$0xff]
        %v5249 = vld [vmem:[%s2295 + $0x170] sm:$0xff]
        %v5250 = vld [vmem:[%s2295 + $0x178] sm:$0xff]
        %v5251 = vld [vmem:[%s2295 + $0x180] sm:$0xff]
        %v5252 = vld [vmem:[%s2295 + $0x188] sm:$0xff]
        %v5253 = vld [vmem:[%s2295 + $0x190] sm:$0xff]
        %v5254 = vld [vmem:[%s2295 + $0x198] sm:$0xff]
        %v5255 = vld [vmem:[%s2295 + $0x1a0] sm:$0xff]
        %v5256 = vld [vmem:[%s2295 + $0x1a8] sm:$0xff]
        %v5257 = vld [vmem:[%s2295 + $0x1b0] sm:$0xff]
        %v5258 = vld [vmem:[%s2295 + $0x1b8] sm:$0xff]
        %v5259 = vld [vmem:[%s2295 + $0x1c0] sm:$0xff]
        %v5260 = vld [vmem:[%s2295 + $0x1c8] sm:$0xff]
        %v5261 = vld [vmem:[%s2295 + $0x1d0] sm:$0xff]
        %v5262 = vld [vmem:[%s2295 + $0x1d8] sm:$0xff]
        %v5263 = vld [vmem:[%s2295 + $0x1e0] sm:$0xff]
        %v5264 = vld [vmem:[%s2295 + $0x1e8] sm:$0xff]
        %v5265 = vld [vmem:[%s2295 + $0x1f0] sm:$0xff]
        %v5266 = vld [vmem:[%s2295 + $0x1f8] sm:$0xff]
        %5267 = vmatprep.subr.mxu0 %v5204
        %5268 = vmatpush1.msra.mxu0 %v5203
        %5269 = vmatprep.subr.mxu0 %v5208
        %5270 = vmatpush1.msra.mxu0 %v5207
        %5271 = vmatprep.subr.mxu0 %v5212
        %5272 = vmatpush1.msra.mxu0 %v5211
        %5273 = vmatprep.subr.mxu0 %v5216
        %5274 = vmatpush1.msra.mxu0 %v5215
        %5275 = vmatprep.subr.mxu0 %v5220
        %5276 = vmatpush1.msra.mxu0 %v5219
        %5277 = vmatprep.subr.mxu0 %v5224
        %5278 = vmatpush1.msra.mxu0 %v5223
        %5279 = vmatprep.subr.mxu0 %v5228
        %5280 = vmatpush1.msra.mxu0 %v5227
        %5281 = vmatprep.subr.mxu0 %v5232
        %5282 = vmatpush1.msra.mxu0 %v5231
        %5283 = vmatprep.subr.mxu0 %v5236
        %5284 = vmatpush1.msra.mxu0 %v5235
        %5285 = vmatprep.subr.mxu0 %v5240
        %5286 = vmatpush1.msra.mxu0 %v5239
        %5287 = vmatprep.subr.mxu0 %v5244
        %5288 = vmatpush1.msra.mxu0 %v5243
        %5289 = vmatprep.subr.mxu0 %v5248
        %5290 = vmatpush1.msra.mxu0 %v5247
        %5291 = vmatprep.subr.mxu0 %v5252
        %5292 = vmatpush1.msra.mxu0 %v5251
        %5293 = vmatprep.subr.mxu0 %v5256
        %5294 = vmatpush1.msra.mxu0 %v5255
        %5295 = vmatprep.subr.mxu0 %v5260
        %5296 = vmatpush1.msra.mxu0 %v5259
        %5297 = vmatprep.subr.mxu0 %v5264
        %5298 = vmatpush1.msra.mxu0 %v5263
        %5299 = vmatprep.subr.mxu0 0.0
        %5300 = vmatpush1.msra.mxu0 0.0
        %5301 = vmatprep.subr.mxu0 0.0
        %5302 = vmatpush1.msra.mxu0 0.0
        %5303 = vmatprep.subr.mxu0 0.0
        %5304 = vmatpush1.msra.mxu0 0.0
        %5305 = vmatprep.subr.mxu0 0.0
        %5306 = vmatpush1.msra.mxu0 0.0
        %5307 = vmatprep.subr.mxu0 0.0
        %5308 = vmatpush1.msra.mxu0 0.0
        %5309 = vmatprep.subr.mxu0 0.0
        %5310 = vmatpush1.msra.mxu0 0.0
        %5311 = vmatprep.subr.mxu0 0.0
        %5312 = vmatpush1.msra.mxu0 0.0
        %5313 = vmatprep.subr.mxu0 0.0
        %5314 = vmatpush1.msra.mxu0 0.0
        %5315 = vmatprep.subr.mxu0 0.0
        %5316 = vmatpush1.msra.mxu0 0.0
        %5317 = vmatprep.subr.mxu0 0.0
        %5318 = vmatpush1.msra.mxu0 0.0
        %5319 = vmatprep.subr.mxu0 0.0
        %5320 = vmatpush1.msra.mxu0 0.0
        %5321 = vmatprep.subr.mxu0 0.0
        %5322 = vmatpush1.msra.mxu0 0.0
        %5323 = vmatprep.subr.mxu0 0.0
        %5324 = vmatpush1.msra.mxu0 0.0
        %5325 = vmatprep.subr.mxu0 0.0
        %5326 = vmatpush1.msra.mxu0 0.0
        %5327 = vmatprep.subr.mxu0 0.0
        %5328 = vmatpush1.msra.mxu0 0.0
        %5329 = vmatprep.subr.mxu0 0.0
        %5330 = vmatpush1.msra.mxu0 0.0
        %5331 = vmatprep.mubr.f32.mxu0 0.0
        %5332 = vmatmul.mubr.f32.gmra.mrb[0].mxu0 %v4958
        %v5333 = vpop.f32.mrb[0].mxu0
        %v5334 = vadd.f32 0.0, %v5333
        %v5335 = vpop.f32.mrb[0].mxu0
        %v5336 = vadd.f32 0.0, %v5335
        %5337 = vdwg.mxu0
        %5338 = vmatprep.subr.mxu0 %v5206
        %5339 = vmatpush1.msra.mxu0 %v5205
        %5340 = vmatprep.subr.mxu0 %v5210
        %5341 = vmatpush1.msra.mxu0 %v5209
        %5342 = vmatprep.subr.mxu0 %v5214
        %5343 = vmatpush1.msra.mxu0 %v5213
        %5344 = vmatprep.subr.mxu0 %v5218
        %5345 = vmatpush1.msra.mxu0 %v5217
        %5346 = vmatprep.subr.mxu0 %v5222
        %5347 = vmatpush1.msra.mxu0 %v5221
        %5348 = vmatprep.subr.mxu0 %v5226
        %5349 = vmatpush1.msra.mxu0 %v5225
        %5350 = vmatprep.subr.mxu0 %v5230
        %5351 = vmatpush1.msra.mxu0 %v5229
        %5352 = vmatprep.subr.mxu0 %v5234
        %5353 = vmatpush1.msra.mxu0 %v5233
        %5354 = vmatprep.subr.mxu0 %v5238
        %5355 = vmatpush1.msra.mxu0 %v5237
        %5356 = vmatprep.subr.mxu0 %v5242
        %5357 = vmatpush1.msra.mxu0 %v5241
        %5358 = vmatprep.subr.mxu0 %v5246
        %5359 = vmatpush1.msra.mxu0 %v5245
        %5360 = vmatprep.subr.mxu0 %v5250
        %5361 = vmatpush1.msra.mxu0 %v5249
        %5362 = vmatprep.subr.mxu0 %v5254
        %5363 = vmatpush1.msra.mxu0 %v5253
        %5364 = vmatprep.subr.mxu0 %v5258
        %5365 = vmatpush1.msra.mxu0 %v5257
        %5366 = vmatprep.subr.mxu0 %v5262
        %5367 = vmatpush1.msra.mxu0 %v5261
        %5368 = vmatprep.subr.mxu0 %v5266
        %5369 = vmatpush1.msra.mxu0 %v5265
        %5370 = vmatprep.subr.mxu0 0.0
        %5371 = vmatpush1.msra.mxu0 0.0
        %5372 = vmatprep.subr.mxu0 0.0
        %5373 = vmatpush1.msra.mxu0 0.0
        %5374 = vmatprep.subr.mxu0 0.0
        %5375 = vmatpush1.msra.mxu0 0.0
        %5376 = vmatprep.subr.mxu0 0.0
        %5377 = vmatpush1.msra.mxu0 0.0
        %5378 = vmatprep.subr.mxu0 0.0
        %5379 = vmatpush1.msra.mxu0 0.0
        %5380 = vmatprep.subr.mxu0 0.0
        %5381 = vmatpush1.msra.mxu0 0.0
        %5382 = vmatprep.subr.mxu0 0.0
        %5383 = vmatpush1.msra.mxu0 0.0
        %5384 = vmatprep.subr.mxu0 0.0
        %5385 = vmatpush1.msra.mxu0 0.0
        %5386 = vmatprep.subr.mxu0 0.0
        %5387 = vmatpush1.msra.mxu0 0.0
        %5388 = vmatprep.subr.mxu0 0.0
        %5389 = vmatpush1.msra.mxu0 0.0
        %5390 = vmatprep.subr.mxu0 0.0
        %5391 = vmatpush1.msra.mxu0 0.0
        %5392 = vmatprep.subr.mxu0 0.0
        %5393 = vmatpush1.msra.mxu0 0.0
        %5394 = vmatprep.subr.mxu0 0.0
        %5395 = vmatpush1.msra.mxu0 0.0
        %5396 = vmatprep.subr.mxu0 0.0
        %5397 = vmatpush1.msra.mxu0 0.0
        %5398 = vmatprep.subr.mxu0 0.0
        %5399 = vmatpush1.msra.mxu0 0.0
        %5400 = vmatprep.subr.mxu0 0.0
        %5401 = vmatpush1.msra.mxu0 0.0
        %5402 = vmatprep.mubr.f32.mxu0 0.0
        %5403 = vmatmul.mubr.f32.gmra.mrb[0].mxu0 %v4958
        %v5404 = vpop.f32.mrb[0].mxu0
        %v5405 = vadd.f32 0.0, %v5404
        %v5406 = vpop.f32.mrb[0].mxu0
        %v5407 = vadd.f32 0.0, %v5406
        %5408 = vdwg.mxu0
        %v5409 = vadd.f32 %v5199, %v5334
        %v5410 = vadd.f32 %v5200, %v5336
        %v5411 = vadd.f32 %v5201, %v5405
        %v5412 = vadd.f32 %v5202, %v5407
        %v5413 = vxor.u32 %v5409, 2147483648
        %v5414 = vmul.f32 %v5413, 1.442695
        %v5415 = vpow.pop %v5414
        %v5416 = vadd.f32 %v5415, 1.0
        %v5417 = vrcp.pop %v5416
        %v5418 = vmul.f32 1.0, %v5417
        %v5419 = vxor.u32 %v5410, 2147483648
        %v5420 = vmul.f32 %v5419, 1.442695
        %v5421 = vpow.pop %v5420
        %v5422 = vadd.f32 %v5421, 1.0
        %v5423 = vrcp.pop %v5422
        %v5424 = vmul.f32 1.0, %v5423
        %v5425 = vtanh.pop %v5411
        %v5426 = vxor.u32 %v5412, 2147483648
        %v5427 = vmul.f32 %v5426, 1.442695
        %v5428 = vpow.pop %v5427
        %v5429 = vadd.f32 %v5428, 1.0
        %v5430 = vrcp.pop %v5429
        %v5431 = vmul.f32 1.0, %v5430
        %v5432 = vmul.f32 %v5424, %v4956
        %v5433 = vmul.f32 %v5418, %v5425
        %v5434 = vadd.f32 %v5432, %v5433
        %v5435 = vtanh.pop %v5434
        %v5436 = vmul.f32 %v5431, %v5435
        %5437 = vst [vmem:[%s2777 + $0x8] sm:$0xff] %v5436
        %v5438 = vld [vmem:[%s2290] sm:$0xff]
        %v5439 = vld [vmem:[%s2290 + $0x8] sm:$0xff]
        %v5440 = vld [vmem:[%s2290 + $0x10] sm:$0xff]
        %v5441 = vld [vmem:[%s2290 + $0x18] sm:$0xff]
        %v5442 = vld [vmem:[%s308] sm:$0xff]
        %v5443 = vld [vmem:[%s308 + $0x8] sm:$0xff]
        %v5444 = vld [vmem:[%s308 + $0x10] sm:$0xff]
        %v5445 = vld [vmem:[%s308 + $0x18] sm:$0xff]
        %v5446 = vld [vmem:[%s308 + $0x20] sm:$0xff]
        %v5447 = vld [vmem:[%s308 + $0x28] sm:$0xff]
        %v5448 = vld [vmem:[%s308 + $0x30] sm:$0xff]
        %v5449 = vld [vmem:[%s308 + $0x38] sm:$0xff]
        %v5450 = vld [vmem:[%s308 + $0x40] sm:$0xff]
        %v5451 = vld [vmem:[%s308 + $0x48] sm:$0xff]
        %v5452 = vld [vmem:[%s308 + $0x50] sm:$0xff]
        %v5453 = vld [vmem:[%s308 + $0x58] sm:$0xff]
        %v5454 = vld [vmem:[%s308 + $0x60] sm:$0xff]
        %v5455 = vld [vmem:[%s308 + $0x68] sm:$0xff]
        %v5456 = vld [vmem:[%s308 + $0x70] sm:$0xff]
        %v5457 = vld [vmem:[%s308 + $0x78] sm:$0xff]
        %v5458 = vld [vmem:[%s308 + $0x80] sm:$0xff]
        %v5459 = vld [vmem:[%s308 + $0x88] sm:$0xff]
        %v5460 = vld [vmem:[%s308 + $0x90] sm:$0xff]
        %v5461 = vld [vmem:[%s308 + $0x98] sm:$0xff]
        %v5462 = vld [vmem:[%s308 + $0xa0] sm:$0xff]
        %v5463 = vld [vmem:[%s308 + $0xa8] sm:$0xff]
        %v5464 = vld [vmem:[%s308 + $0xb0] sm:$0xff]
        %v5465 = vld [vmem:[%s308 + $0xb8] sm:$0xff]
        %v5466 = vld [vmem:[%s308 + $0xc0] sm:$0xff]
        %v5467 = vld [vmem:[%s308 + $0xc8] sm:$0xff]
        %v5468 = vld [vmem:[%s308 + $0xd0] sm:$0xff]
        %v5469 = vld [vmem:[%s308 + $0xd8] sm:$0xff]
        %v5470 = vld [vmem:[%s308 + $0xe0] sm:$0xff]
        %v5471 = vld [vmem:[%s308 + $0xe8] sm:$0xff]
        %v5472 = vld [vmem:[%s308 + $0xf0] sm:$0xff]
        %v5473 = vld [vmem:[%s308 + $0xf8] sm:$0xff]
        %v5474 = vld [vmem:[%s308 + $0x100] sm:$0xff]
        %v5475 = vld [vmem:[%s308 + $0x108] sm:$0xff]
        %v5476 = vld [vmem:[%s308 + $0x110] sm:$0xff]
        %v5477 = vld [vmem:[%s308 + $0x118] sm:$0xff]
        %v5478 = vld [vmem:[%s308 + $0x120] sm:$0xff]
        %v5479 = vld [vmem:[%s308 + $0x128] sm:$0xff]
        %v5480 = vld [vmem:[%s308 + $0x130] sm:$0xff]
        %v5481 = vld [vmem:[%s308 + $0x138] sm:$0xff]
        %v5482 = vld [vmem:[%s308 + $0x140] sm:$0xff]
        %v5483 = vld [vmem:[%s308 + $0x148] sm:$0xff]
        %v5484 = vld [vmem:[%s308 + $0x150] sm:$0xff]
        %v5485 = vld [vmem:[%s308 + $0x158] sm:$0xff]
        %v5486 = vld [vmem:[%s308 + $0x160] sm:$0xff]
        %v5487 = vld [vmem:[%s308 + $0x168] sm:$0xff]
        %v5488 = vld [vmem:[%s308 + $0x170] sm:$0xff]
        %v5489 = vld [vmem:[%s308 + $0x178] sm:$0xff]
        %v5490 = vld [vmem:[%s308 + $0x180] sm:$0xff]
        %v5491 = vld [vmem:[%s308 + $0x188] sm:$0xff]
        %v5492 = vld [vmem:[%s308 + $0x190] sm:$0xff]
        %v5493 = vld [vmem:[%s308 + $0x198] sm:$0xff]
        %v5494 = vld [vmem:[%s308 + $0x1a0] sm:$0xff]
        %v5495 = vld [vmem:[%s308 + $0x1a8] sm:$0xff]
        %v5496 = vld [vmem:[%s308 + $0x1b0] sm:$0xff]
        %v5497 = vld [vmem:[%s308 + $0x1b8] sm:$0xff]
        %v5498 = vld [vmem:[%s308 + $0x1c0] sm:$0xff]
        %v5499 = vld [vmem:[%s308 + $0x1c8] sm:$0xff]
        %v5500 = vld [vmem:[%s308 + $0x1d0] sm:$0xff]
        %v5501 = vld [vmem:[%s308 + $0x1d8] sm:$0xff]
        %v5502 = vld [vmem:[%s308 + $0x1e0] sm:$0xff]
        %v5503 = vld [vmem:[%s308 + $0x1e8] sm:$0xff]
        %v5504 = vld [vmem:[%s308 + $0x1f0] sm:$0xff]
        %v5505 = vld [vmem:[%s308 + $0x1f8] sm:$0xff]
        %5506 = vmatprep.subr.mxu0 %v5443
        %5507 = vmatpush1.msra.mxu0 %v5442
        %5508 = vmatprep.subr.mxu0 %v5447
        %5509 = vmatpush1.msra.mxu0 %v5446
        %5510 = vmatprep.subr.mxu0 %v5451
        %5511 = vmatpush1.msra.mxu0 %v5450
        %5512 = vmatprep.subr.mxu0 %v5455
        %5513 = vmatpush1.msra.mxu0 %v5454
        %5514 = vmatprep.subr.mxu0 %v5459
        %5515 = vmatpush1.msra.mxu0 %v5458
        %5516 = vmatprep.subr.mxu0 %v5463
        %5517 = vmatpush1.msra.mxu0 %v5462
        %5518 = vmatprep.subr.mxu0 %v5467
        %5519 = vmatpush1.msra.mxu0 %v5466
        %5520 = vmatprep.subr.mxu0 %v5471
        %5521 = vmatpush1.msra.mxu0 %v5470
        %5522 = vmatprep.subr.mxu0 %v5475
        %5523 = vmatpush1.msra.mxu0 %v5474
        %5524 = vmatprep.subr.mxu0 %v5479
        %5525 = vmatpush1.msra.mxu0 %v5478
        %5526 = vmatprep.subr.mxu0 %v5483
        %5527 = vmatpush1.msra.mxu0 %v5482
        %5528 = vmatprep.subr.mxu0 %v5487
        %5529 = vmatpush1.msra.mxu0 %v5486
        %5530 = vmatprep.subr.mxu0 %v5491
        %5531 = vmatpush1.msra.mxu0 %v5490
        %5532 = vmatprep.subr.mxu0 %v5495
        %5533 = vmatpush1.msra.mxu0 %v5494
        %5534 = vmatprep.subr.mxu0 %v5499
        %5535 = vmatpush1.msra.mxu0 %v5498
        %5536 = vmatprep.subr.mxu0 %v5503
        %5537 = vmatpush1.msra.mxu0 %v5502
        %5538 = vmatprep.subr.mxu0 0.0
        %5539 = vmatpush1.msra.mxu0 0.0
        %5540 = vmatprep.subr.mxu0 0.0
        %5541 = vmatpush1.msra.mxu0 0.0
        %5542 = vmatprep.subr.mxu0 0.0
        %5543 = vmatpush1.msra.mxu0 0.0
        %5544 = vmatprep.subr.mxu0 0.0
        %5545 = vmatpush1.msra.mxu0 0.0
        %5546 = vmatprep.subr.mxu0 0.0
        %5547 = vmatpush1.msra.mxu0 0.0
        %5548 = vmatprep.subr.mxu0 0.0
        %5549 = vmatpush1.msra.mxu0 0.0
        %5550 = vmatprep.subr.mxu0 0.0
        %5551 = vmatpush1.msra.mxu0 0.0
        %5552 = vmatprep.subr.mxu0 0.0
        %5553 = vmatpush1.msra.mxu0 0.0
        %5554 = vmatprep.subr.mxu0 0.0
        %5555 = vmatpush1.msra.mxu0 0.0
        %5556 = vmatprep.subr.mxu0 0.0
        %5557 = vmatpush1.msra.mxu0 0.0
        %5558 = vmatprep.subr.mxu0 0.0
        %5559 = vmatpush1.msra.mxu0 0.0
        %5560 = vmatprep.subr.mxu0 0.0
        %5561 = vmatpush1.msra.mxu0 0.0
        %5562 = vmatprep.subr.mxu0 0.0
        %5563 = vmatpush1.msra.mxu0 0.0
        %5564 = vmatprep.subr.mxu0 0.0
        %5565 = vmatpush1.msra.mxu0 0.0
        %5566 = vmatprep.subr.mxu0 0.0
        %5567 = vmatpush1.msra.mxu0 0.0
        %5568 = vmatprep.subr.mxu0 0.0
        %5569 = vmatpush1.msra.mxu0 0.0
        %5570 = vmatprep.mubr.f32.mxu0 0.0
        %5571 = vmatmul.mubr.f32.gmra.mrb[0].mxu0 %v5197
        %v5572 = vpop.f32.mrb[0].mxu0
        %v5573 = vadd.f32 0.0, %v5572
        %v5574 = vpop.f32.mrb[0].mxu0
        %v5575 = vadd.f32 0.0, %v5574
        %5576 = vdwg.mxu0
        %5577 = vmatprep.subr.mxu0 %v5445
        %5578 = vmatpush1.msra.mxu0 %v5444
        %5579 = vmatprep.subr.mxu0 %v5449
        %5580 = vmatpush1.msra.mxu0 %v5448
        %5581 = vmatprep.subr.mxu0 %v5453
        %5582 = vmatpush1.msra.mxu0 %v5452
        %5583 = vmatprep.subr.mxu0 %v5457
        %5584 = vmatpush1.msra.mxu0 %v5456
        %5585 = vmatprep.subr.mxu0 %v5461
        %5586 = vmatpush1.msra.mxu0 %v5460
        %5587 = vmatprep.subr.mxu0 %v5465
        %5588 = vmatpush1.msra.mxu0 %v5464
        %5589 = vmatprep.subr.mxu0 %v5469
        %5590 = vmatpush1.msra.mxu0 %v5468
        %5591 = vmatprep.subr.mxu0 %v5473
        %5592 = vmatpush1.msra.mxu0 %v5472
        %5593 = vmatprep.subr.mxu0 %v5477
        %5594 = vmatpush1.msra.mxu0 %v5476
        %5595 = vmatprep.subr.mxu0 %v5481
        %5596 = vmatpush1.msra.mxu0 %v5480
        %5597 = vmatprep.subr.mxu0 %v5485
        %5598 = vmatpush1.msra.mxu0 %v5484
        %5599 = vmatprep.subr.mxu0 %v5489
        %5600 = vmatpush1.msra.mxu0 %v5488
        %5601 = vmatprep.subr.mxu0 %v5493
        %5602 = vmatpush1.msra.mxu0 %v5492
        %5603 = vmatprep.subr.mxu0 %v5497
        %5604 = vmatpush1.msra.mxu0 %v5496
        %5605 = vmatprep.subr.mxu0 %v5501
        %5606 = vmatpush1.msra.mxu0 %v5500
        %5607 = vmatprep.subr.mxu0 %v5505
        %5608 = vmatpush1.msra.mxu0 %v5504
        %5609 = vmatprep.subr.mxu0 0.0
        %5610 = vmatpush1.msra.mxu0 0.0
        %5611 = vmatprep.subr.mxu0 0.0
        %5612 = vmatpush1.msra.mxu0 0.0
        %5613 = vmatprep.subr.mxu0 0.0
        %5614 = vmatpush1.msra.mxu0 0.0
        %5615 = vmatprep.subr.mxu0 0.0
        %5616 = vmatpush1.msra.mxu0 0.0
        %5617 = vmatprep.subr.mxu0 0.0
        %5618 = vmatpush1.msra.mxu0 0.0
        %5619 = vmatprep.subr.mxu0 0.0
        %5620 = vmatpush1.msra.mxu0 0.0
        %5621 = vmatprep.subr.mxu0 0.0
        %5622 = vmatpush1.msra.mxu0 0.0
        %5623 = vmatprep.subr.mxu0 0.0
        %5624 = vmatpush1.msra.mxu0 0.0
        %5625 = vmatprep.subr.mxu0 0.0
        %5626 = vmatpush1.msra.mxu0 0.0
        %5627 = vmatprep.subr.mxu0 0.0
        %5628 = vmatpush1.msra.mxu0 0.0
        %5629 = vmatprep.subr.mxu0 0.0
        %5630 = vmatpush1.msra.mxu0 0.0
        %5631 = vmatprep.subr.mxu0 0.0
        %5632 = vmatpush1.msra.mxu0 0.0
        %5633 = vmatprep.subr.mxu0 0.0
        %5634 = vmatpush1.msra.mxu0 0.0
        %5635 = vmatprep.subr.mxu0 0.0
        %5636 = vmatpush1.msra.mxu0 0.0
        %5637 = vmatprep.subr.mxu0 0.0
        %5638 = vmatpush1.msra.mxu0 0.0
        %5639 = vmatprep.subr.mxu0 0.0
        %5640 = vmatpush1.msra.mxu0 0.0
        %5641 = vmatprep.mubr.f32.mxu0 0.0
        %5642 = vmatmul.mubr.f32.gmra.mrb[0].mxu0 %v5197
        %v5643 = vpop.f32.mrb[0].mxu0
        %v5644 = vadd.f32 0.0, %v5643
        %v5645 = vpop.f32.mrb[0].mxu0
        %v5646 = vadd.f32 0.0, %v5645
        %5647 = vdwg.mxu0
        %v5648 = vadd.f32 %v5438, %v5573
        %v5649 = vadd.f32 %v5439, %v5575
        %v5650 = vadd.f32 %v5440, %v5644
        %v5651 = vadd.f32 %v5441, %v5646
        %v5652 = vxor.u32 %v5648, 2147483648
        %v5653 = vmul.f32 %v5652, 1.442695
        %v5654 = vpow.pop %v5653
        %v5655 = vadd.f32 %v5654, 1.0
        %v5656 = vrcp.pop %v5655
        %v5657 = vmul.f32 1.0, %v5656
        %v5658 = vxor.u32 %v5649, 2147483648
        %v5659 = vmul.f32 %v5658, 1.442695
        %v5660 = vpow.pop %v5659
        %v5661 = vadd.f32 %v5660, 1.0
        %v5662 = vrcp.pop %v5661
        %v5663 = vmul.f32 1.0, %v5662
        %v5664 = vtanh.pop %v5650
        %v5665 = vxor.u32 %v5651, 2147483648
        %v5666 = vmul.f32 %v5665, 1.442695
        %v5667 = vpow.pop %v5666
        %v5668 = vadd.f32 %v5667, 1.0
        %v5669 = vrcp.pop %v5668
        %v5670 = vmul.f32 1.0, %v5669
        %v5671 = vmul.f32 %v5663, %v5195
        %v5672 = vmul.f32 %v5657, %v5664
        %v5673 = vadd.f32 %v5671, %v5672
        %v5674 = vtanh.pop %v5673
        %v5675 = vmul.f32 %v5670, %v5674
        %5676 = vst [vmem:[%s2532] sm:$0xff] %v5675
        %v5677 = vld [vmem:[%s2045 + $0x20] sm:$0xff]
        %v5678 = vld [vmem:[%s2045 + $0x28] sm:$0xff]
        %v5679 = vld [vmem:[%s2045 + $0x30] sm:$0xff]
        %v5680 = vld [vmem:[%s2045 + $0x38] sm:$0xff]
        %v5681 = vld [vmem:[%s2295] sm:$0xff]
        %v5682 = vld [vmem:[%s2295 + $0x8] sm:$0xff]
        %v5683 = vld [vmem:[%s2295 + $0x10] sm:$0xff]
        %v5684 = vld [vmem:[%s2295 + $0x18] sm:$0xff]
        %v5685 = vld [vmem:[%s2295 + $0x20] sm:$0xff]
        %v5686 = vld [vmem:[%s2295 + $0x28] sm:$0xff]
        %v5687 = vld [vmem:[%s2295 + $0x30] sm:$0xff]
        %v5688 = vld [vmem:[%s2295 + $0x38] sm:$0xff]
        %v5689 = vld [vmem:[%s2295 + $0x40] sm:$0xff]
        %v5690 = vld [vmem:[%s2295 + $0x48] sm:$0xff]
        %v5691 = vld [vmem:[%s2295 + $0x50] sm:$0xff]
        %v5692 = vld [vmem:[%s2295 + $0x58] sm:$0xff]
        %v5693 = vld [vmem:[%s2295 + $0x60] sm:$0xff]
        %v5694 = vld [vmem:[%s2295 + $0x68] sm:$0xff]
        %v5695 = vld [vmem:[%s2295 + $0x70] sm:$0xff]
        %v5696 = vld [vmem:[%s2295 + $0x78] sm:$0xff]
        %v5697 = vld [vmem:[%s2295 + $0x80] sm:$0xff]
        %v5698 = vld [vmem:[%s2295 + $0x88] sm:$0xff]
        %v5699 = vld [vmem:[%s2295 + $0x90] sm:$0xff]
        %v5700 = vld [vmem:[%s2295 + $0x98] sm:$0xff]
        %v5701 = vld [vmem:[%s2295 + $0xa0] sm:$0xff]
        %v5702 = vld [vmem:[%s2295 + $0xa8] sm:$0xff]
        %v5703 = vld [vmem:[%s2295 + $0xb0] sm:$0xff]
        %v5704 = vld [vmem:[%s2295 + $0xb8] sm:$0xff]
        %v5705 = vld [vmem:[%s2295 + $0xc0] sm:$0xff]
        %v5706 = vld [vmem:[%s2295 + $0xc8] sm:$0xff]
        %v5707 = vld [vmem:[%s2295 + $0xd0] sm:$0xff]
        %v5708 = vld [vmem:[%s2295 + $0xd8] sm:$0xff]
        %v5709 = vld [vmem:[%s2295 + $0xe0] sm:$0xff]
        %v5710 = vld [vmem:[%s2295 + $0xe8] sm:$0xff]
        %v5711 = vld [vmem:[%s2295 + $0xf0] sm:$0xff]
        %v5712 = vld [vmem:[%s2295 + $0xf8] sm:$0xff]
        %v5713 = vld [vmem:[%s2295 + $0x100] sm:$0xff]
        %v5714 = vld [vmem:[%s2295 + $0x108] sm:$0xff]
        %v5715 = vld [vmem:[%s2295 + $0x110] sm:$0xff]
        %v5716 = vld [vmem:[%s2295 + $0x118] sm:$0xff]
        %v5717 = vld [vmem:[%s2295 + $0x120] sm:$0xff]
        %v5718 = vld [vmem:[%s2295 + $0x128] sm:$0xff]
        %v5719 = vld [vmem:[%s2295 + $0x130] sm:$0xff]
        %v5720 = vld [vmem:[%s2295 + $0x138] sm:$0xff]
        %v5721 = vld [vmem:[%s2295 + $0x140] sm:$0xff]
        %v5722 = vld [vmem:[%s2295 + $0x148] sm:$0xff]
        %v5723 = vld [vmem:[%s2295 + $0x150] sm:$0xff]
        %v5724 = vld [vmem:[%s2295 + $0x158] sm:$0xff]
        %v5725 = vld [vmem:[%s2295 + $0x160] sm:$0xff]
        %v5726 = vld [vmem:[%s2295 + $0x168] sm:$0xff]
        %v5727 = vld [vmem:[%s2295 + $0x170] sm:$0xff]
        %v5728 = vld [vmem:[%s2295 + $0x178] sm:$0xff]
        %v5729 = vld [vmem:[%s2295 + $0x180] sm:$0xff]
        %v5730 = vld [vmem:[%s2295 + $0x188] sm:$0xff]
        %v5731 = vld [vmem:[%s2295 + $0x190] sm:$0xff]
        %v5732 = vld [vmem:[%s2295 + $0x198] sm:$0xff]
        %v5733 = vld [vmem:[%s2295 + $0x1a0] sm:$0xff]
        %v5734 = vld [vmem:[%s2295 + $0x1a8] sm:$0xff]
        %v5735 = vld [vmem:[%s2295 + $0x1b0] sm:$0xff]
        %v5736 = vld [vmem:[%s2295 + $0x1b8] sm:$0xff]
        %v5737 = vld [vmem:[%s2295 + $0x1c0] sm:$0xff]
        %v5738 = vld [vmem:[%s2295 + $0x1c8] sm:$0xff]
        %v5739 = vld [vmem:[%s2295 + $0x1d0] sm:$0xff]
        %v5740 = vld [vmem:[%s2295 + $0x1d8] sm:$0xff]
        %v5741 = vld [vmem:[%s2295 + $0x1e0] sm:$0xff]
        %v5742 = vld [vmem:[%s2295 + $0x1e8] sm:$0xff]
        %v5743 = vld [vmem:[%s2295 + $0x1f0] sm:$0xff]
        %v5744 = vld [vmem:[%s2295 + $0x1f8] sm:$0xff]
        %5745 = vmatprep.subr.mxu0 %v5682
        %5746 = vmatpush1.msra.mxu0 %v5681
        %5747 = vmatprep.subr.mxu0 %v5686
        %5748 = vmatpush1.msra.mxu0 %v5685
        %5749 = vmatprep.subr.mxu0 %v5690
        %5750 = vmatpush1.msra.mxu0 %v5689
        %5751 = vmatprep.subr.mxu0 %v5694
        %5752 = vmatpush1.msra.mxu0 %v5693
        %5753 = vmatprep.subr.mxu0 %v5698
        %5754 = vmatpush1.msra.mxu0 %v5697
        %5755 = vmatprep.subr.mxu0 %v5702
        %5756 = vmatpush1.msra.mxu0 %v5701
        %5757 = vmatprep.subr.mxu0 %v5706
        %5758 = vmatpush1.msra.mxu0 %v5705
        %5759 = vmatprep.subr.mxu0 %v5710
        %5760 = vmatpush1.msra.mxu0 %v5709
        %5761 = vmatprep.subr.mxu0 %v5714
        %5762 = vmatpush1.msra.mxu0 %v5713
        %5763 = vmatprep.subr.mxu0 %v5718
        %5764 = vmatpush1.msra.mxu0 %v5717
        %5765 = vmatprep.subr.mxu0 %v5722
        %5766 = vmatpush1.msra.mxu0 %v5721
        %5767 = vmatprep.subr.mxu0 %v5726
        %5768 = vmatpush1.msra.mxu0 %v5725
        %5769 = vmatprep.subr.mxu0 %v5730
        %5770 = vmatpush1.msra.mxu0 %v5729
        %5771 = vmatprep.subr.mxu0 %v5734
        %5772 = vmatpush1.msra.mxu0 %v5733
        %5773 = vmatprep.subr.mxu0 %v5738
        %5774 = vmatpush1.msra.mxu0 %v5737
        %5775 = vmatprep.subr.mxu0 %v5742
        %5776 = vmatpush1.msra.mxu0 %v5741
        %5777 = vmatprep.subr.mxu0 0.0
        %5778 = vmatpush1.msra.mxu0 0.0
        %5779 = vmatprep.subr.mxu0 0.0
        %5780 = vmatpush1.msra.mxu0 0.0
        %5781 = vmatprep.subr.mxu0 0.0
        %5782 = vmatpush1.msra.mxu0 0.0
        %5783 = vmatprep.subr.mxu0 0.0
        %5784 = vmatpush1.msra.mxu0 0.0
        %5785 = vmatprep.subr.mxu0 0.0
        %5786 = vmatpush1.msra.mxu0 0.0
        %5787 = vmatprep.subr.mxu0 0.0
        %5788 = vmatpush1.msra.mxu0 0.0
        %5789 = vmatprep.subr.mxu0 0.0
        %5790 = vmatpush1.msra.mxu0 0.0
        %5791 = vmatprep.subr.mxu0 0.0
        %5792 = vmatpush1.msra.mxu0 0.0
        %5793 = vmatprep.subr.mxu0 0.0
        %5794 = vmatpush1.msra.mxu0 0.0
        %5795 = vmatprep.subr.mxu0 0.0
        %5796 = vmatpush1.msra.mxu0 0.0
        %5797 = vmatprep.subr.mxu0 0.0
        %5798 = vmatpush1.msra.mxu0 0.0
        %5799 = vmatprep.subr.mxu0 0.0
        %5800 = vmatpush1.msra.mxu0 0.0
        %5801 = vmatprep.subr.mxu0 0.0
        %5802 = vmatpush1.msra.mxu0 0.0
        %5803 = vmatprep.subr.mxu0 0.0
        %5804 = vmatpush1.msra.mxu0 0.0
        %5805 = vmatprep.subr.mxu0 0.0
        %5806 = vmatpush1.msra.mxu0 0.0
        %5807 = vmatprep.subr.mxu0 0.0
        %5808 = vmatpush1.msra.mxu0 0.0
        %5809 = vmatprep.mubr.f32.mxu0 0.0
        %5810 = vmatmul.mubr.f32.gmra.mrb[0].mxu0 %v5436
        %v5811 = vpop.f32.mrb[0].mxu0
        %v5812 = vadd.f32 0.0, %v5811
        %v5813 = vpop.f32.mrb[0].mxu0
        %v5814 = vadd.f32 0.0, %v5813
        %5815 = vdwg.mxu0
        %5816 = vmatprep.subr.mxu0 %v5684
        %5817 = vmatpush1.msra.mxu0 %v5683
        %5818 = vmatprep.subr.mxu0 %v5688
        %5819 = vmatpush1.msra.mxu0 %v5687
        %5820 = vmatprep.subr.mxu0 %v5692
        %5821 = vmatpush1.msra.mxu0 %v5691
        %5822 = vmatprep.subr.mxu0 %v5696
        %5823 = vmatpush1.msra.mxu0 %v5695
        %5824 = vmatprep.subr.mxu0 %v5700
        %5825 = vmatpush1.msra.mxu0 %v5699
        %5826 = vmatprep.subr.mxu0 %v5704
        %5827 = vmatpush1.msra.mxu0 %v5703
        %5828 = vmatprep.subr.mxu0 %v5708
        %5829 = vmatpush1.msra.mxu0 %v5707
        %5830 = vmatprep.subr.mxu0 %v5712
        %5831 = vmatpush1.msra.mxu0 %v5711
        %5832 = vmatprep.subr.mxu0 %v5716
        %5833 = vmatpush1.msra.mxu0 %v5715
        %5834 = vmatprep.subr.mxu0 %v5720
        %5835 = vmatpush1.msra.mxu0 %v5719
        %5836 = vmatprep.subr.mxu0 %v5724
        %5837 = vmatpush1.msra.mxu0 %v5723
        %5838 = vmatprep.subr.mxu0 %v5728
        %5839 = vmatpush1.msra.mxu0 %v5727
        %5840 = vmatprep.subr.mxu0 %v5732
        %5841 = vmatpush1.msra.mxu0 %v5731
        %5842 = vmatprep.subr.mxu0 %v5736
        %5843 = vmatpush1.msra.mxu0 %v5735
        %5844 = vmatprep.subr.mxu0 %v5740
        %5845 = vmatpush1.msra.mxu0 %v5739
        %5846 = vmatprep.subr.mxu0 %v5744
        %5847 = vmatpush1.msra.mxu0 %v5743
        %5848 = vmatprep.subr.mxu0 0.0
        %5849 = vmatpush1.msra.mxu0 0.0
        %5850 = vmatprep.subr.mxu0 0.0
        %5851 = vmatpush1.msra.mxu0 0.0
        %5852 = vmatprep.subr.mxu0 0.0
        %5853 = vmatpush1.msra.mxu0 0.0
        %5854 = vmatprep.subr.mxu0 0.0
        %5855 = vmatpush1.msra.mxu0 0.0
        %5856 = vmatprep.subr.mxu0 0.0
        %5857 = vmatpush1.msra.mxu0 0.0
        %5858 = vmatprep.subr.mxu0 0.0
        %5859 = vmatpush1.msra.mxu0 0.0
        %5860 = vmatprep.subr.mxu0 0.0
        %5861 = vmatpush1.msra.mxu0 0.0
        %5862 = vmatprep.subr.mxu0 0.0
        %5863 = vmatpush1.msra.mxu0 0.0
        %5864 = vmatprep.subr.mxu0 0.0
        %5865 = vmatpush1.msra.mxu0 0.0
        %5866 = vmatprep.subr.mxu0 0.0
        %5867 = vmatpush1.msra.mxu0 0.0
        %5868 = vmatprep.subr.mxu0 0.0
        %5869 = vmatpush1.msra.mxu0 0.0
        %5870 = vmatprep.subr.mxu0 0.0
        %5871 = vmatpush1.msra.mxu0 0.0
        %5872 = vmatprep.subr.mxu0 0.0
        %5873 = vmatpush1.msra.mxu0 0.0
        %5874 = vmatprep.subr.mxu0 0.0
        %5875 = vmatpush1.msra.mxu0 0.0
        %5876 = vmatprep.subr.mxu0 0.0
        %5877 = vmatpush1.msra.mxu0 0.0
        %5878 = vmatprep.subr.mxu0 0.0
        %5879 = vmatpush1.msra.mxu0 0.0
        %5880 = vmatprep.mubr.f32.mxu0 0.0
        %5881 = vmatmul.mubr.f32.gmra.mrb[0].mxu0 %v5436
        %v5882 = vpop.f32.mrb[0].mxu0
        %v5883 = vadd.f32 0.0, %v5882
        %v5884 = vpop.f32.mrb[0].mxu0
        %v5885 = vadd.f32 0.0, %v5884
        %5886 = vdwg.mxu0
        %v5887 = vadd.f32 %v5677, %v5812
        %v5888 = vadd.f32 %v5678, %v5814
        %v5889 = vadd.f32 %v5679, %v5883
        %v5890 = vadd.f32 %v5680, %v5885
        %v5891 = vxor.u32 %v5887, 2147483648
        %v5892 = vmul.f32 %v5891, 1.442695
        %v5893 = vpow.pop %v5892
        %v5894 = vadd.f32 %v5893, 1.0
        %v5895 = vrcp.pop %v5894
        %v5896 = vmul.f32 1.0, %v5895
        %v5897 = vxor.u32 %v5888, 2147483648
        %v5898 = vmul.f32 %v5897, 1.442695
        %v5899 = vpow.pop %v5898
        %v5900 = vadd.f32 %v5899, 1.0
        %v5901 = vrcp.pop %v5900
        %v5902 = vmul.f32 1.0, %v5901
        %v5903 = vtanh.pop %v5889
        %v5904 = vxor.u32 %v5890, 2147483648
        %v5905 = vmul.f32 %v5904, 1.442695
        %v5906 = vpow.pop %v5905
        %v5907 = vadd.f32 %v5906, 1.0
        %v5908 = vrcp.pop %v5907
        %v5909 = vmul.f32 1.0, %v5908
        %v5910 = vmul.f32 %v5902, %v5434
        %v5911 = vmul.f32 %v5896, %v5903
        %v5912 = vadd.f32 %v5910, %v5911
        %v5913 = vtanh.pop %v5912
        %v5914 = vmul.f32 %v5909, %v5913
        %5915 = vst [vmem:[%s2286 + $0x8] sm:$0xff] %v5914
        %p5916 = scmp.eq.s32.totalorder %s24, 1
        // Predicated region
        $region73: #{simple_lstm_forward.1} parent=43 // pred_check
          %p5917 = pneg %p5916
        $region74: #{simple_lstm_forward.1} parent=43 // pred_check_branch
          %5919 = sbr.rel (%p5917) target = $region76
        $region75: #{simple_lstm_forward.1} parent=43 // pred_region
          %v5920 = vld [vmem:[#allocation3] sm:$0xff]
          %v5921 = vld [vmem:[#allocation3 + $0x8] sm:$0xff]
          %v5922 = vld [vmem:[#allocation3 + $0x10] sm:$0xff]
          %v5923 = vld [vmem:[#allocation3 + $0x18] sm:$0xff]
          %v5924 = vld [vmem:[#allocation3 + $0x20] sm:$0xff]
          %v5925 = vld [vmem:[#allocation3 + $0x28] sm:$0xff]
          %v5926 = vld [vmem:[#allocation3 + $0x30] sm:$0xff]
          %v5927 = vld [vmem:[#allocation3 + $0x38] sm:$0xff]
          %v5928 = vld [vmem:[#allocation3 + $0x40] sm:$0xff]
          %v5929 = vld [vmem:[#allocation3 + $0x48] sm:$0xff]
          %v5930 = vld [vmem:[#allocation3 + $0x50] sm:$0xff]
          %v5931 = vld [vmem:[#allocation3 + $0x58] sm:$0xff]
          %v5932 = vld [vmem:[#allocation3 + $0x60] sm:$0xff]
          %v5933 = vld [vmem:[#allocation3 + $0x68] sm:$0xff]
          %v5934 = vld [vmem:[#allocation3 + $0x70] sm:$0xff]
          %v5935 = vld [vmem:[#allocation3 + $0x78] sm:$0xff]
          %v5936 = vld [vmem:[#allocation9] sm:$0xff]
          %v5937 = vld [vmem:[#allocation9 + $0x8] sm:$0xff]
          %v5938 = vld [vmem:[#allocation9 + $0x10] sm:$0xff]
          %v5939 = vld [vmem:[#allocation9 + $0x18] sm:$0xff]
          %v5940 = vld [vmem:[#allocation9 + $0x20] sm:$0xff]
          %v5941 = vld [vmem:[#allocation9 + $0x28] sm:$0xff]
          %v5942 = vld [vmem:[#allocation9 + $0x30] sm:$0xff]
          %v5943 = vld [vmem:[#allocation9 + $0x38] sm:$0xff]
          %v5944 = vld [vmem:[#allocation9 + $0x40] sm:$0xff]
          %v5945 = vld [vmem:[#allocation9 + $0x48] sm:$0xff]
          %v5946 = vld [vmem:[#allocation9 + $0x50] sm:$0xff]
          %v5947 = vld [vmem:[#allocation9 + $0x58] sm:$0xff]
          %v5948 = vld [vmem:[#allocation9 + $0x60] sm:$0xff]
          %v5949 = vld [vmem:[#allocation9 + $0x68] sm:$0xff]
          %v5950 = vld [vmem:[#allocation9 + $0x70] sm:$0xff]
          %v5951 = vld [vmem:[#allocation9 + $0x78] sm:$0xff]
          %v5952 = vld [vmem:[#allocation9 + $0x80] sm:$0xff]
          %v5953 = vld [vmem:[#allocation9 + $0x88] sm:$0xff]
          %v5954 = vld [vmem:[#allocation9 + $0x90] sm:$0xff]
          %v5955 = vld [vmem:[#allocation9 + $0x98] sm:$0xff]
          %v5956 = vld [vmem:[#allocation9 + $0xa0] sm:$0xff]
          %v5957 = vld [vmem:[#allocation9 + $0xa8] sm:$0xff]
          %v5958 = vld [vmem:[#allocation9 + $0xb0] sm:$0xff]
          %v5959 = vld [vmem:[#allocation9 + $0xb8] sm:$0xff]
          %v5960 = vld [vmem:[#allocation9 + $0xc0] sm:$0xff]
          %v5961 = vld [vmem:[#allocation9 + $0xc8] sm:$0xff]
          %v5962 = vld [vmem:[#allocation9 + $0xd0] sm:$0xff]
          %v5963 = vld [vmem:[#allocation9 + $0xd8] sm:$0xff]
          %v5964 = vld [vmem:[#allocation9 + $0xe0] sm:$0xff]
          %v5965 = vld [vmem:[#allocation9 + $0xe8] sm:$0xff]
          %v5966 = vld [vmem:[#allocation9 + $0xf0] sm:$0xff]
          %v5967 = vld [vmem:[#allocation9 + $0xf8] sm:$0xff]
          %v5968 = vld [vmem:[#allocation11] sm:$0x1]
          %v5970 = vlaneseq
          %v5971 = vshrl.u32 %v5970, 7
          %v5972 = vsub.s32 0, %v5971
          %v5973 = vrot.slane %v5968, %v5972
          %5975 = vmatprep.subr.mxu0 0.0
          %5976 = vmatpush1.msra.mxu0 %v5936
          %5977 = vmatprep.subr.mxu0 0.0
          %5978 = vmatpush1.msra.mxu0 %v5937
          %5979 = vmatprep.subr.mxu0 0.0
          %5980 = vmatpush1.msra.mxu0 %v5938
          %5981 = vmatprep.subr.mxu0 0.0
          %5982 = vmatpush1.msra.mxu0 %v5939
          %5983 = vmatprep.subr.mxu0 0.0
          %5984 = vmatpush1.msra.mxu0 %v5940
          %5985 = vmatprep.subr.mxu0 0.0
          %5986 = vmatpush1.msra.mxu0 %v5941
          %5987 = vmatprep.subr.mxu0 0.0
          %5988 = vmatpush1.msra.mxu0 %v5942
          %5989 = vmatprep.subr.mxu0 0.0
          %5990 = vmatpush1.msra.mxu0 %v5943
          %5991 = vmatprep.subr.mxu0 0.0
          %5992 = vmatpush1.msra.mxu0 %v5944
          %5993 = vmatprep.subr.mxu0 0.0
          %5994 = vmatpush1.msra.mxu0 %v5945
          %5995 = vmatprep.subr.mxu0 0.0
          %5996 = vmatpush1.msra.mxu0 %v5946
          %5997 = vmatprep.subr.mxu0 0.0
          %5998 = vmatpush1.msra.mxu0 %v5947
          %5999 = vmatprep.subr.mxu0 0.0
          %6000 = vmatpush1.msra.mxu0 %v5948
          %6001 = vmatprep.subr.mxu0 0.0
          %6002 = vmatpush1.msra.mxu0 %v5949
          %6003 = vmatprep.subr.mxu0 0.0
          %6004 = vmatpush1.msra.mxu0 %v5950
          %6005 = vmatprep.subr.mxu0 0.0
          %6006 = vmatpush1.msra.mxu0 %v5951
          %6007 = vmatprep.subr.mxu0 0.0
          %6008 = vmatpush1.msra.mxu0 %v5952
          %6009 = vmatprep.subr.mxu0 0.0
          %6010 = vmatpush1.msra.mxu0 %v5953
          %6011 = vmatprep.subr.mxu0 0.0
          %6012 = vmatpush1.msra.mxu0 %v5954
          %6013 = vmatprep.subr.mxu0 0.0
          %6014 = vmatpush1.msra.mxu0 %v5955
          %6015 = vmatprep.subr.mxu0 0.0
          %6016 = vmatpush1.msra.mxu0 %v5956
          %6017 = vmatprep.subr.mxu0 0.0
          %6018 = vmatpush1.msra.mxu0 %v5957
          %6019 = vmatprep.subr.mxu0 0.0
          %6020 = vmatpush1.msra.mxu0 %v5958
          %6021 = vmatprep.subr.mxu0 0.0
          %6022 = vmatpush1.msra.mxu0 %v5959
          %6023 = vmatprep.subr.mxu0 0.0
          %6024 = vmatpush1.msra.mxu0 %v5960
          %6025 = vmatprep.subr.mxu0 0.0
          %6026 = vmatpush1.msra.mxu0 %v5961
          %6027 = vmatprep.subr.mxu0 0.0
          %6028 = vmatpush1.msra.mxu0 %v5962
          %6029 = vmatprep.subr.mxu0 0.0
          %6030 = vmatpush1.msra.mxu0 %v5963
          %6031 = vmatprep.subr.mxu0 0.0
          %6032 = vmatpush1.msra.mxu0 %v5964
          %6033 = vmatprep.subr.mxu0 0.0
          %6034 = vmatpush1.msra.mxu0 %v5965
          %6035 = vmatprep.subr.mxu0 0.0
          %6036 = vmatpush1.msra.mxu0 %v5966
          %6037 = vmatprep.subr.mxu0 0.0
          %6038 = vmatpush1.msra.mxu0 %v5967
          %6039 = vmatprep.mubr.f32.mxu0 %v5921
          %6040 = vmatmul.mubr.f32.gmra.mrb[0].mxu0 %v5920
          %v6041 = vpop.f32.mrb[0].mxu0
          %v6042 = vadd.f32 %v5973, %v6041
          %v6043 = vpop.f32.mrb[0].mxu0
          %6044 = vmatprep.mubr.f32.mxu0 %v5923
          %6045 = vmatmul.mubr.f32.gmra.mrb[0].mxu0 %v5922
          %v6046 = vpop.f32.mrb[0].mxu0
          %v6047 = vadd.f32 %v5973, %v6046
          %v6048 = vpop.f32.mrb[0].mxu0
          %6049 = vmatprep.mubr.f32.mxu0 %v5925
          %6050 = vmatmul.mubr.f32.gmra.mrb[0].mxu0 %v5924
          %v6051 = vpop.f32.mrb[0].mxu0
          %v6052 = vadd.f32 %v5973, %v6051
          %v6053 = vpop.f32.mrb[0].mxu0
          %6054 = vmatprep.mubr.f32.mxu0 %v5927
          %6055 = vmatmul.mubr.f32.gmra.mrb[0].mxu0 %v5926
          %v6056 = vpop.f32.mrb[0].mxu0
          %v6057 = vadd.f32 %v5973, %v6056
          %v6058 = vpop.f32.mrb[0].mxu0
          %6059 = vmatprep.mubr.f32.mxu0 %v5929
          %6060 = vmatmul.mubr.f32.gmra.mrb[0].mxu0 %v5928
          %v6061 = vpop.f32.mrb[0].mxu0
          %v6062 = vadd.f32 %v5973, %v6061
          %v6063 = vpop.f32.mrb[0].mxu0
          %6064 = vmatprep.mubr.f32.mxu0 %v5931
          %6065 = vmatmul.mubr.f32.gmra.mrb[0].mxu0 %v5930
          %v6066 = vpop.f32.mrb[0].mxu0
          %v6067 = vadd.f32 %v5973, %v6066
          %v6068 = vpop.f32.mrb[0].mxu0
          %6069 = vmatprep.mubr.f32.mxu0 %v5933
          %6070 = vmatmul.mubr.f32.gmra.mrb[0].mxu0 %v5932
          %v6071 = vpop.f32.mrb[0].mxu0
          %v6072 = vadd.f32 %v5973, %v6071
          %v6073 = vpop.f32.mrb[0].mxu0
          %6074 = vmatprep.mubr.f32.mxu0 %v5935
          %6075 = vmatmul.mubr.f32.gmra.mrb[0].mxu0 %v5934
          %v6076 = vpop.f32.mrb[0].mxu0
          %v6077 = vadd.f32 %v5973, %v6076
          %v6078 = vpop.f32.mrb[0].mxu0
          %6079 = vdwg.mxu0
          %v6080 = vmax.f32 %v6042, 0.0
          %v6081 = vmax.f32 %v6047, 0.0
          %v6082 = vmax.f32 %v6052, 0.0
          %v6083 = vmax.f32 %v6057, 0.0
          %v6084 = vmax.f32 %v6062, 0.0
          %v6085 = vmax.f32 %v6067, 0.0
          %v6086 = vmax.f32 %v6072, 0.0
          %v6087 = vmax.f32 %v6077, 0.0
          %6088 = vst [vmem:[%s6] sm:$0xff] %v6080
          %6089 = vst [vmem:[%s6 + $0x8] sm:$0xff] %v6081
          %6090 = vst [vmem:[%s6 + $0x10] sm:$0xff] %v6082
          %6091 = vst [vmem:[%s6 + $0x18] sm:$0xff] %v6083
          %6092 = vst [vmem:[%s6 + $0x20] sm:$0xff] %v6084
          %6093 = vst [vmem:[%s6 + $0x28] sm:$0xff] %v6085
          %6094 = vst [vmem:[%s6 + $0x30] sm:$0xff] %v6086
          %6095 = vst [vmem:[%s6 + $0x38] sm:$0xff] %v6087
        $region76: #{simple_lstm_forward.1} parent=43 // pred_fallthru
          _
        // Predicated region
        $region77: #{simple_lstm_forward.1} parent=43 // pred_check
          %p6096 = pneg %p178
        $region78: #{simple_lstm_forward.1} parent=43 // pred_check_branch
          %6098 = sbr.rel (%p6096) target = $region80
        $region79: #{simple_lstm_forward.1} parent=43 // pred_region
          _
        $region80: #{simple_lstm_forward.1} parent=43 // pred_fallthru
          _
        // Predicated region
        $region81: #{simple_lstm_forward.1} parent=43 // pred_check
          %p6099 = pneg %p178
        $region82: #{simple_lstm_forward.1} parent=43 // pred_check_branch
          %6101 = sbr.rel (%p6099) target = $region84
        $region83: #{simple_lstm_forward.1} parent=43 // pred_region
          _
        $region84: #{simple_lstm_forward.1} parent=43 // pred_fallthru
          _
      $region44: #{simple_lstm_forward.1} parent=5 // pred_fallthru
        _
      %p6102 = scmp.le.s32.totalorder 2, %s19
      // Predicated region
      $region85: #{simple_lstm_forward.1} parent=5 // pred_check
        %p6103 = pneg %p6102
      $region86: #{simple_lstm_forward.1} parent=5 // pred_check_branch
        %6105 = sbr.rel (%p6103) target = $region88
      $region87: #{simple_lstm_forward.1} parent=5 // pred_region
        %s6106 = ssub.s32 %s19, 2
      $region88: #{simple_lstm_forward.1} parent=5 // pred_fallthru
        _
    $region6: #{simple_lstm_forward.1} parent=1 // loop_footer
      %s23 = sadd.s32 1, %s19
    $region7: #{simple_lstm_forward.1} parent=1 // loop_footer_branch
      %18 = sbr.rel target = $region3
    $region8: #{simple_lstm_forward.1} parent=1 // loop_exit
      _
    %6107 = vsyncpa [#allocation5], 1
    %s6108 = scalar_lea.sflag [#allocation5], 1
    %6109 = vsyncpa %s6108, 1
    %6110 = vsyncpa [#allocation7], 1
    %s6111 = scalar_lea.sflag [#allocation7], 1
    %6112 = vsyncpa %s6111, 1
    %6113 = vsyncpa [#allocation10], 1

</llo_original>
